<compile_context>
chip_gen: v6e
topology: v6e:2x2x1
jax: 0.10.0
libtpu: 0.0.40
codegen_flags: <defaults>
</compile_context>

<pallas_src>
import functools

import jax
import jax.numpy as jnp
from jax.experimental import pallas as pl
from jax.experimental.pallas import tpu as pltpu

KSZ = 7                  # depthwise conv kernel size
PAD = (KSZ - 1) // 2     # = 3, "same" padding


def _gnconv_kernel(*refs, dims, scale, H, W, h_tile):
    order = len(dims)
    n_pw = order - 1
    c_dw = sum(dims)
    f32 = jnp.float32

    it = iter(refs)
    x_ref = next(it)                                   # (1, C, HW)
    pin_w_ref = next(it)                               # (2C, C)
    pin_b_ref = next(it)                               # (2C, 1)
    dw_w_ref = next(it)                                # (KSZ*KSZ, c_dw)
    dw_b_ref = next(it)                                # (1, c_dw)
    pw_w_refs = [next(it) for _ in range(n_pw)]        # (dims[i+1], dims[i])
    pw_b_refs = [next(it) for _ in range(n_pw)]        # (dims[i+1], 1)
    pout_w_ref = next(it)                              # (C, C)
    pout_b_ref = next(it)                              # (C, 1)
    o_ref = next(it)                                   # (1, C, HW)
    pad_ref = next(it)                                 # (H+2P, W+2P, c_dw) scratch

    # ---- proj_in: 1x1 conv as (2C, C) @ (C, HW) MXU matmul (lane-dense) ----
    x = x_ref[0].astype(f32)                           # (C, HW)
    fused = jnp.dot(pin_w_ref[...].astype(f32), x, preferred_element_type=f32)
    fused = fused + pin_b_ref[...].astype(f32)         # (2C, HW)

    pwa = fused[:dims[0], :]                           # (dims[0], HW)
    abc = fused[dims[0]:, :]                           # (c_dw,   HW)

    # ---- depthwise 7x7, padding 3: channels-last only for this stage -------
    # One transpose in, bulk padded-tile build (aligned zero-fill + single
    # interior store), per-strip transpose back.
    abc_hwc = jnp.transpose(abc).reshape(H, W, c_dw)   # (H, W, c_dw)
    pad_ref[...] = jnp.zeros_like(pad_ref)             # halo zero, megacore safe
    pad_ref[PAD:PAD + H, PAD:PAD + W, :] = abc_hwc     # single bulk interior store

    dw_w = dw_w_ref[...].astype(f32)                   # (49, c_dw)
    dw_b = dw_b_ref[...].astype(f32)                   # (1,  c_dw)

    strips_t = []
    for h0 in range(0, H, h_tile):                     # strip-mine over rows
        acc = jnp.zeros((h_tile, W, c_dw), f32)
        for kw in range(KSZ):                          # hoisted unaligned slice
            win = pad_ref[h0:h0 + h_tile + 2 * PAD, kw:kw + W, :]
            for kh in range(KSZ):                      # kh indexes outer dim: free
                k = kh * KSZ + kw
                wk = dw_w[k:k + 1, :]                  # (1, c_dw): lane vector
                acc = acc + wk * win[kh:kh + h_tile]
        strip = (acc + dw_b) * scale                   # conv bias + self.scale
        # back to lane-dense (c_dw, strip_HW) right away (keeps live set small)
        strips_t.append(jnp.transpose(strip.reshape(h_tile * W, c_dw)))
    dw = strips_t[0] if len(strips_t) == 1 else jnp.concatenate(strips_t, axis=1)
    # dw: (c_dw, HW)

    # ---- recursive gating: y = pwa * g0;  y = pw_i(y) * g_{i+1} ------------
    y = pwa * dw[:dims[0], :]
    off = dims[0]
    for i in range(n_pw):
        y = jnp.dot(pw_w_refs[i][...].astype(f32), y, preferred_element_type=f32)
        y = (y + pw_b_refs[i][...].astype(f32)) * dw[off:off + dims[i + 1], :]
        off += dims[i + 1]

    # ---- proj_out -----------------------------------------------------------
    out = jnp.dot(pout_w_ref[...].astype(f32), y, preferred_element_type=f32)
    out = out + pout_b_ref[...].astype(f32)            # (C, HW)
    o_ref[0] = out.astype(o_ref.dtype)                 # lane-dense unmasked store


def gnconv_forward(x, params, dims, scale):
    """Pallas equivalent of gnconv.forward (NCHW in, NCHW out)."""
    B, C, H, W = x.shape
    dims = tuple(int(d) for d in dims)
    order = len(dims)
    dim = dims[-1]
    assert C == dim
    c_dw = sum(dims)
    hw = H * W

    # Layout-preserving in-kernel reshapes assume the spatial dims tile evenly.
    # TODO(synk): general (non multiple-of-8) H/W and spatial row-block tiling
    # for large UNet feature maps (needed for v7x's 64 MiB VMEM) not handled.
    assert H % 8 == 0 and W % 8 == 0, "H and W must be multiples of 8"
    h_tile = 8 if H % 8 == 0 else H

    # Kernel I/O is (B, C, HW): a free reshape of NCHW, no HBM transpose.
    x_chw = x.reshape(B, C, hw)

    # Weights stay in native (Cout, Cin) orientation / native dtype.
    pin_w = params["pin_w"].reshape(2 * dim, dim)
    pin_b = params["pin_b"].reshape(2 * dim, 1)
    dw_w = jnp.transpose(params["dw_w"].reshape(c_dw, KSZ * KSZ))   # (49, c_dw)
    dw_b = params["dw_b"].reshape(1, c_dw)
    pw_ws = [params[f"pw{i}_w"].reshape(dims[i + 1], dims[i]) for i in range(order - 1)]
    pw_bs = [params[f"pw{i}_b"].reshape(dims[i + 1], 1) for i in range(order - 1)]
    pout_w = params["pout_w"].reshape(dim, dim)
    pout_b = params["pout_b"].reshape(dim, 1)

    weights = [pin_w, pin_b, dw_w, dw_b, *pw_ws, *pw_bs, pout_w, pout_b]

    def _resident(a):
        # full-array block with constant index -> fetched once, stays in VMEM
        nd = a.ndim
        return pl.BlockSpec(a.shape, lambda n, _nd=nd: (0,) * _nd)

    kernel = functools.partial(_gnconv_kernel, dims=dims, scale=float(scale),
                               H=H, W=W, h_tile=h_tile)

    out_chw = pl.pallas_call(
        kernel,
        out_shape=jax.ShapeDtypeStruct((B, dim, hw), x.dtype),
        grid_spec=pltpu.PrefetchScalarGridSpec(
            num_scalar_prefetch=0,
            grid=(B,),
            in_specs=[pl.BlockSpec((1, C, hw), lambda n: (n, 0, 0))]
                     + [_resident(a) for a in weights],
            out_specs=pl.BlockSpec((1, dim, hw), lambda n: (n, 0, 0)),
            scratch_shapes=[
                pltpu.VMEM((H + 2 * PAD, W + 2 * PAD, c_dw), jnp.float32),
            ],
        ),
        compiler_params=pltpu.CompilerParams(
            dimension_semantics=("parallel",),
        ),
    )(x_chw, *weights)

    return out_chw.reshape(B, dim, H, W)


# --------------------------- pure-JAX reference -----------------------------
def gnconv_ref(x, params, dims, scale):
    order = len(dims)
    c_dw = sum(dims)
    hp = jax.lax.Precision.HIGHEST

    def conv1x1(t, w, b):
        return jnp.einsum("oi,bihw->bohw", w, t, precision=hp) \
            + b[None, :, None, None]

    fused = conv1x1(x, params["pin_w"], params["pin_b"])
    pwa = fused[:, :dims[0]]
    abc = fused[:, dims[0]:]
    dw = jax.lax.conv_general_dilated(
        abc, params["dw_w"], window_strides=(1, 1),
        padding=[(PAD, PAD), (PAD, PAD)],
        dimension_numbers=("NCHW", "OIHW", "NCHW"),
        feature_group_count=c_dw, precision=hp)
    dw = (dw + params["dw_b"][None, :, None, None]) * scale

    y = pwa * dw[:, :dims[0]]
    off = dims[0]
    for i in range(order - 1):
        y = conv1x1(y, params[f"pw{i}_w"], params[f"pw{i}_b"]) \
            * dw[:, off:off + dims[i + 1]]
        off += dims[i + 1]
    return conv1x1(y, params["pout_w"], params["pout_b"])


if __name__ == "__main__":
    # Small but representative gnconv config (order is a constructor arg; the
    # kernel is generic over it).  dim=32, order=3 -> dims=[8, 16, 32].
    dim, order, scale = 32, 3, 0.5
    dims = [dim // 2 ** i for i in range(order)]
    dims.reverse()
    c_dw = sum(dims)
    B, H, W = 2, 16, 16

    key = jax.random.PRNGKey(0)
    keys = jax.random.split(key, 7 + 2 * (order - 1))
    x = jax.random.normal(keys[0], (B, dim, H, W), jnp.float32)
    params = {
        "pin_w": 0.2 * jax.random.normal(keys[1], (2 * dim, dim), jnp.float32),
        "pin_b": 0.2 * jax.random.normal(keys[2], (2 * dim,), jnp.float32),
        "dw_w": 0.2 * jax.random.normal(keys[3], (c_dw, 1, KSZ, KSZ), jnp.float32),
        "dw_b": 0.2 * jax.random.normal(keys[4], (c_dw,), jnp.float32),
        "pout_w": 0.2 * jax.random.normal(keys[5], (dim, dim), jnp.float32),
        "pout_b": 0.2 * jax.random.normal(keys[6], (dim,), jnp.float32),
    }
    for i in range(order - 1):
        params[f"pw{i}_w"] = 0.2 * jax.random.normal(
            keys[7 + 2 * i], (dims[i + 1], dims[i]), jnp.float32)
        params[f"pw{i}_b"] = 0.2 * jax.random.normal(
            keys[8 + 2 * i], (dims[i + 1],), jnp.float32)

    out = gnconv_forward(x, params, dims, scale)
    out = jax.block_until_ready(out)

    ref = gnconv_ref(x, params, dims, scale)
    assert out.shape == (B, dim, H, W)
    if not jnp.allclose(out, ref, atol=1e-3, rtol=1e-2):
        max_err = float(jnp.max(jnp.abs(out - ref)))
        raise AssertionError(f"Pallas output mismatch vs reference, max_err={max_err}")

    # TODO(synk): the optional gflayer (FFT GlobalLocalFilter) branch of gnconv
    # is not implemented; the default depthwise-conv path (gflayer=None) is.
    print("KERNEL_OK")
</pallas_src>

<mosaic_0001>
module attributes {stable_mosaic.version = 11 : i64} {
  func.func @_gnconv_kernel(%arg0: i32, %arg1: memref<1x32x256xf32, #tpu.memory_space<vmem>>, %arg2: memref<64x32xf32, #tpu.memory_space<vmem>>, %arg3: memref<64x1xf32, #tpu.memory_space<vmem>>, %arg4: memref<49x56xf32, #tpu.memory_space<vmem>>, %arg5: memref<1x56xf32, #tpu.memory_space<vmem>>, %arg6: memref<16x8xf32, #tpu.memory_space<vmem>>, %arg7: memref<32x16xf32, #tpu.memory_space<vmem>>, %arg8: memref<16x1xf32, #tpu.memory_space<vmem>>, %arg9: memref<32x1xf32, #tpu.memory_space<vmem>>, %arg10: memref<32x32xf32, #tpu.memory_space<vmem>>, %arg11: memref<32x1xf32, #tpu.memory_space<vmem>>, %arg12: memref<1x32x256xf32, #tpu.memory_space<vmem>>, %arg13: memref<22x22x56xf32, #tpu.memory_space<vmem>>) attributes {dimension_semantics = [#tpu.dimension_semantics<parallel>], iteration_bounds = array<i64: 2>, scalar_prefetch = 0 : i64, scratch_operands = 1 : i64, tpu.core_type = #tpu.core_type<tc>, window_params = [{transform_indices = @transform_0, window_bounds = array<i64: 1, 32, 256>}, {pipeline_mode = #tpu.pipeline_mode<synchronous>, transform_indices = @transform_1, window_bounds = array<i64: 64, 32>}, {pipeline_mode = #tpu.pipeline_mode<synchronous>, transform_indices = @transform_2, window_bounds = array<i64: 64, 1>}, {pipeline_mode = #tpu.pipeline_mode<synchronous>, transform_indices = @transform_3, window_bounds = array<i64: 49, 56>}, {pipeline_mode = #tpu.pipeline_mode<synchronous>, transform_indices = @transform_4, window_bounds = array<i64: 1, 56>}, {pipeline_mode = #tpu.pipeline_mode<synchronous>, transform_indices = @transform_5, window_bounds = array<i64: 16, 8>}, {pipeline_mode = #tpu.pipeline_mode<synchronous>, transform_indices = @transform_6, window_bounds = array<i64: 32, 16>}, {pipeline_mode = #tpu.pipeline_mode<synchronous>, transform_indices = @transform_7, window_bounds = array<i64: 16, 1>}, {pipeline_mode = #tpu.pipeline_mode<synchronous>, transform_indices = @transform_8, window_bounds = array<i64: 32, 1>}, {pipeline_mode = #tpu.pipeline_mode<synchronous>, transform_indices = @transform_9, window_bounds = array<i64: 32, 32>}, {pipeline_mode = #tpu.pipeline_mode<synchronous>, transform_indices = @transform_10, window_bounds = array<i64: 32, 1>}, {transform_indices = @transform_11, window_bounds = array<i64: 1, 32, 256>}]} {
    %c0 = arith.constant 0 : index
    %c0_0 = arith.constant 0 : index
    %c0_1 = arith.constant 0 : index
    %0 = vector.load %arg1[%c0, %c0_0, %c0_1] : memref<1x32x256xf32, #tpu.memory_space<vmem>>, vector<1x32x256xf32>
    %1 = vector.shape_cast %0 : vector<1x32x256xf32> to vector<32x256xf32>
    %c0_2 = arith.constant 0 : index
    %c0_3 = arith.constant 0 : index
    %2 = vector.load %arg2[%c0_2, %c0_3] : memref<64x32xf32, #tpu.memory_space<vmem>>, vector<64x32xf32>
    %cst = arith.constant dense<0.000000e+00> : vector<64x256xf32>
    %3 = tpu.matmul %2, %1, %cst {dimension_numbers = #tpu.dot_dimension_numbers<[1], [0], [0], [1], [0, 0, 1, 1], [], []>} : vector<64x32xf32>, vector<32x256xf32>, vector<64x256xf32> -> vector<64x256xf32>
    %c0_4 = arith.constant 0 : index
    %c0_5 = arith.constant 0 : index
    %4 = vector.load %arg3[%c0_4, %c0_5] : memref<64x1xf32, #tpu.memory_space<vmem>>, vector<64x1xf32>
    %5 = vector.broadcast %4 : vector<64x1xf32> to vector<64x256xf32>
    %6 = arith.addf %3, %5 : vector<64x256xf32>
    %7 = vector.extract_strided_slice %6 {offsets = [0, 0], sizes = [8, 256], strides = [1, 1]} : vector<64x256xf32> to vector<8x256xf32>
    %8 = vector.extract_strided_slice %6 {offsets = [8, 0], sizes = [56, 256], strides = [1, 1]} : vector<64x256xf32> to vector<56x256xf32>
    %9 = tpu.transpose %8, [1, 0] : vector<56x256xf32> -> vector<256x56xf32>
    %10 = vector.shape_cast %9 : vector<256x56xf32> to vector<16x16x56xf32>
    %cst_6 = arith.constant 0.000000e+00 : f32
    %11 = vector.broadcast %cst_6 : f32 to vector<22x22x56xf32>
    %c0_7 = arith.constant 0 : index
    %c0_8 = arith.constant 0 : index
    %c0_9 = arith.constant 0 : index
    %12 = vector.load %arg13[%c0_7, %c0_8, %c0_9] : memref<22x22x56xf32, #tpu.memory_space<vmem>>, vector<22x22x56xf32>
    tpu.vector_store %arg13[%c0_7, %c0_8, %c0_9], %11 {strides = array<i32>} : memref<22x22x56xf32, #tpu.memory_space<vmem>>, vector<22x22x56xf32>,
    %c3 = arith.constant 3 : index
    %c3_10 = arith.constant 3 : index
    %c0_11 = arith.constant 0 : index
    %13 = vector.load %arg13[%c3, %c3_10, %c0_11] : memref<22x22x56xf32, #tpu.memory_space<vmem>>, vector<16x16x56xf32>
    tpu.vector_store %arg13[%c3, %c3_10, %c0_11], %10 {strides = array<i32>} : memref<22x22x56xf32, #tpu.memory_space<vmem>>, vector<16x16x56xf32>,
    %c0_12 = arith.constant 0 : index
    %c0_13 = arith.constant 0 : index
    %14 = vector.load %arg4[%c0_12, %c0_13] : memref<49x56xf32, #tpu.memory_space<vmem>>, vector<49x56xf32>
    %c0_14 = arith.constant 0 : index
    %c0_15 = arith.constant 0 : index
    %15 = vector.load %arg5[%c0_14, %c0_15] : memref<1x56xf32, #tpu.memory_space<vmem>>, vector<1x56xf32>
    %cst_16 = arith.constant 0.000000e+00 : f32
    %16 = vector.broadcast %cst_16 : f32 to vector<8x16x56xf32>
    %c0_17 = arith.constant 0 : index
    %c0_18 = arith.constant 0 : index
    %c0_19 = arith.constant 0 : index
    %17 = vector.load %arg13[%c0_17, %c0_18, %c0_19] : memref<22x22x56xf32, #tpu.memory_space<vmem>>, vector<14x16x56xf32>
    %18 = vector.extract_strided_slice %14 {offsets = [0, 0], sizes = [1, 56], strides = [1, 1]} : vector<49x56xf32> to vector<1x56xf32>
    %19 = vector.extract_strided_slice %17 {offsets = [0, 0, 0], sizes = [8, 16, 56], strides = [1, 1, 1]} : vector<14x16x56xf32> to vector<8x16x56xf32>
    %20 = vector.shape_cast %18 : vector<1x56xf32> to vector<1x1x56xf32>
    %21 = vector.broadcast %20 : vector<1x1x56xf32> to vector<8x16x56xf32>
    %22 = arith.mulf %21, %19 : vector<8x16x56xf32>
    %23 = arith.addf %16, %22 : vector<8x16x56xf32>
    %24 = vector.extract_strided_slice %14 {offsets = [7, 0], sizes = [1, 56], strides = [1, 1]} : vector<49x56xf32> to vector<1x56xf32>
    %25 = vector.extract_strided_slice %17 {offsets = [1, 0, 0], sizes = [8, 16, 56], strides = [1, 1, 1]} : vector<14x16x56xf32> to vector<8x16x56xf32>
    %26 = vector.shape_cast %24 : vector<1x56xf32> to vector<1x1x56xf32>
    %27 = vector.broadcast %26 : vector<1x1x56xf32> to vector<8x16x56xf32>
    %28 = arith.mulf %27, %25 : vector<8x16x56xf32>
    %29 = arith.addf %23, %28 : vector<8x16x56xf32>
    %30 = vector.extract_strided_slice %14 {offsets = [14, 0], sizes = [1, 56], strides = [1, 1]} : vector<49x56xf32> to vector<1x56xf32>
    %31 = vector.extract_strided_slice %17 {offsets = [2, 0, 0], sizes = [8, 16, 56], strides = [1, 1, 1]} : vector<14x16x56xf32> to vector<8x16x56xf32>
    %32 = vector.shape_cast %30 : vector<1x56xf32> to vector<1x1x56xf32>
    %33 = vector.broadcast %32 : vector<1x1x56xf32> to vector<8x16x56xf32>
    %34 = arith.mulf %33, %31 : vector<8x16x56xf32>
    %35 = arith.addf %29, %34 : vector<8x16x56xf32>
    %36 = vector.extract_strided_slice %14 {offsets = [21, 0], sizes = [1, 56], strides = [1, 1]} : vector<49x56xf32> to vector<1x56xf32>
    %37 = vector.extract_strided_slice %17 {offsets = [3, 0, 0], sizes = [8, 16, 56], strides = [1, 1, 1]} : vector<14x16x56xf32> to vector<8x16x56xf32>
    %38 = vector.shape_cast %36 : vector<1x56xf32> to vector<1x1x56xf32>
    %39 = vector.broadcast %38 : vector<1x1x56xf32> to vector<8x16x56xf32>
    %40 = arith.mulf %39, %37 : vector<8x16x56xf32>
    %41 = arith.addf %35, %40 : vector<8x16x56xf32>
    %42 = vector.extract_strided_slice %14 {offsets = [28, 0], sizes = [1, 56], strides = [1, 1]} : vector<49x56xf32> to vector<1x56xf32>
    %43 = vector.extract_strided_slice %17 {offsets = [4, 0, 0], sizes = [8, 16, 56], strides = [1, 1, 1]} : vector<14x16x56xf32> to vector<8x16x56xf32>
    %44 = vector.shape_cast %42 : vector<1x56xf32> to vector<1x1x56xf32>
    %45 = vector.broadcast %44 : vector<1x1x56xf32> to vector<8x16x56xf32>
    %46 = arith.mulf %45, %43 : vector<8x16x56xf32>
    %47 = arith.addf %41, %46 : vector<8x16x56xf32>
    %48 = vector.extract_strided_slice %14 {offsets = [35, 0], sizes = [1, 56], strides = [1, 1]} : vector<49x56xf32> to vector<1x56xf32>
    %49 = vector.extract_strided_slice %17 {offsets = [5, 0, 0], sizes = [8, 16, 56], strides = [1, 1, 1]} : vector<14x16x56xf32> to vector<8x16x56xf32>
    %50 = vector.shape_cast %48 : vector<1x56xf32> to vector<1x1x56xf32>
    %51 = vector.broadcast %50 : vector<1x1x56xf32> to vector<8x16x56xf32>
    %52 = arith.mulf %51, %49 : vector<8x16x56xf32>
    %53 = arith.addf %47, %52 : vector<8x16x56xf32>
    %54 = vector.extract_strided_slice %14 {offsets = [42, 0], sizes = [1, 56], strides = [1, 1]} : vector<49x56xf32> to vector<1x56xf32>
    %55 = vector.extract_strided_slice %17 {offsets = [6, 0, 0], sizes = [8, 16, 56], strides = [1, 1, 1]} : vector<14x16x56xf32> to vector<8x16x56xf32>
    %56 = vector.shape_cast %54 : vector<1x56xf32> to vector<1x1x56xf32>
    %57 = vector.broadcast %56 : vector<1x1x56xf32> to vector<8x16x56xf32>
    %58 = arith.mulf %57, %55 : vector<8x16x56xf32>
    %59 = arith.addf %53, %58 : vector<8x16x56xf32>
    %c0_20 = arith.constant 0 : index
    %c1 = arith.constant 1 : index
    %c0_21 = arith.constant 0 : index
    %60 = vector.load %arg13[%c0_20, %c1, %c0_21] : memref<22x22x56xf32, #tpu.memory_space<vmem>>, vector<14x16x56xf32>
    %61 = vector.extract_strided_slice %14 {offsets = [1, 0], sizes = [1, 56], strides = [1, 1]} : vector<49x56xf32> to vector<1x56xf32>
    %62 = vector.extract_strided_slice %60 {offsets = [0, 0, 0], sizes = [8, 16, 56], strides = [1, 1, 1]} : vector<14x16x56xf32> to vector<8x16x56xf32>
    %63 = vector.shape_cast %61 : vector<1x56xf32> to vector<1x1x56xf32>
    %64 = vector.broadcast %63 : vector<1x1x56xf32> to vector<8x16x56xf32>
    %65 = arith.mulf %64, %62 : vector<8x16x56xf32>
    %66 = arith.addf %59, %65 : vector<8x16x56xf32>
    %67 = vector.extract_strided_slice %14 {offsets = [8, 0], sizes = [1, 56], strides = [1, 1]} : vector<49x56xf32> to vector<1x56xf32>
    %68 = vector.extract_strided_slice %60 {offsets = [1, 0, 0], sizes = [8, 16, 56], strides = [1, 1, 1]} : vector<14x16x56xf32> to vector<8x16x56xf32>
    %69 = vector.shape_cast %67 : vector<1x56xf32> to vector<1x1x56xf32>
    %70 = vector.broadcast %69 : vector<1x1x56xf32> to vector<8x16x56xf32>
    %71 = arith.mulf %70, %68 : vector<8x16x56xf32>
    %72 = arith.addf %66, %71 : vector<8x16x56xf32>
    %73 = vector.extract_strided_slice %14 {offsets = [15, 0], sizes = [1, 56], strides = [1, 1]} : vector<49x56xf32> to vector<1x56xf32>
    %74 = vector.extract_strided_slice %60 {offsets = [2, 0, 0], sizes = [8, 16, 56], strides = [1, 1, 1]} : vector<14x16x56xf32> to vector<8x16x56xf32>
    %75 = vector.shape_cast %73 : vector<1x56xf32> to vector<1x1x56xf32>
    %76 = vector.broadcast %75 : vector<1x1x56xf32> to vector<8x16x56xf32>
    %77 = arith.mulf %76, %74 : vector<8x16x56xf32>
    %78 = arith.addf %72, %77 : vector<8x16x56xf32>
    %79 = vector.extract_strided_slice %14 {offsets = [22, 0], sizes = [1, 56], strides = [1, 1]} : vector<49x56xf32> to vector<1x56xf32>
    %80 = vector.extract_strided_slice %60 {offsets = [3, 0, 0], sizes = [8, 16, 56], strides = [1, 1, 1]} : vector<14x16x56xf32> to vector<8x16x56xf32>
    %81 = vector.shape_cast %79 : vector<1x56xf32> to vector<1x1x56xf32>
    %82 = vector.broadcast %81 : vector<1x1x56xf32> to vector<8x16x56xf32>
    %83 = arith.mulf %82, %80 : vector<8x16x56xf32>
    %84 = arith.addf %78, %83 : vector<8x16x56xf32>
    %85 = vector.extract_strided_slice %14 {offsets = [29, 0], sizes = [1, 56], strides = [1, 1]} : vector<49x56xf32> to vector<1x56xf32>
    %86 = vector.extract_strided_slice %60 {offsets = [4, 0, 0], sizes = [8, 16, 56], strides = [1, 1, 1]} : vector<14x16x56xf32> to vector<8x16x56xf32>
    %87 = vector.shape_cast %85 : vector<1x56xf32> to vector<1x1x56xf32>
    %88 = vector.broadcast %87 : vector<1x1x56xf32> to vector<8x16x56xf32>
    %89 = arith.mulf %88, %86 : vector<8x16x56xf32>
    %90 = arith.addf %84, %89 : vector<8x16x56xf32>
    %91 = vector.extract_strided_slice %14 {offsets = [36, 0], sizes = [1, 56], strides = [1, 1]} : vector<49x56xf32> to vector<1x56xf32>
    %92 = vector.extract_strided_slice %60 {offsets = [5, 0, 0], sizes = [8, 16, 56], strides = [1, 1, 1]} : vector<14x16x56xf32> to vector<8x16x56xf32>
    %93 = vector.shape_cast %91 : vector<1x56xf32> to vector<1x1x56xf32>
    %94 = vector.broadcast %93 : vector<1x1x56xf32> to vector<8x16x56xf32>
    %95 = arith.mulf %94, %92 : vector<8x16x56xf32>
    %96 = arith.addf %90, %95 : vector<8x16x56xf32>
    %97 = vector.extract_strided_slice %14 {offsets = [43, 0], sizes = [1, 56], strides = [1, 1]} : vector<49x56xf32> to vector<1x56xf32>
    %98 = vector.extract_strided_slice %60 {offsets = [6, 0, 0], sizes = [8, 16, 56], strides = [1, 1, 1]} : vector<14x16x56xf32> to vector<8x16x56xf32>
    %99 = vector.shape_cast %97 : vector<1x56xf32> to vector<1x1x56xf32>
    %100 = vector.broadcast %99 : vector<1x1x56xf32> to vector<8x16x56xf32>
    %101 = arith.mulf %100, %98 : vector<8x16x56xf32>
    %102 = arith.addf %96, %101 : vector<8x16x56xf32>
    %c0_22 = arith.constant 0 : index
    %c2 = arith.constant 2 : index
    %c0_23 = arith.constant 0 : index
    %103 = vector.load %arg13[%c0_22, %c2, %c0_23] : memref<22x22x56xf32, #tpu.memory_space<vmem>>, vector<14x16x56xf32>
    %104 = vector.extract_strided_slice %14 {offsets = [2, 0], sizes = [1, 56], strides = [1, 1]} : vector<49x56xf32> to vector<1x56xf32>
    %105 = vector.extract_strided_slice %103 {offsets = [0, 0, 0], sizes = [8, 16, 56], strides = [1, 1, 1]} : vector<14x16x56xf32> to vector<8x16x56xf32>
    %106 = vector.shape_cast %104 : vector<1x56xf32> to vector<1x1x56xf32>
    %107 = vector.broadcast %106 : vector<1x1x56xf32> to vector<8x16x56xf32>
    %108 = arith.mulf %107, %105 : vector<8x16x56xf32>
    %109 = arith.addf %102, %108 : vector<8x16x56xf32>
    %110 = vector.extract_strided_slice %14 {offsets = [9, 0], sizes = [1, 56], strides = [1, 1]} : vector<49x56xf32> to vector<1x56xf32>
    %111 = vector.extract_strided_slice %103 {offsets = [1, 0, 0], sizes = [8, 16, 56], strides = [1, 1, 1]} : vector<14x16x56xf32> to vector<8x16x56xf32>
    %112 = vector.shape_cast %110 : vector<1x56xf32> to vector<1x1x56xf32>
    %113 = vector.broadcast %112 : vector<1x1x56xf32> to vector<8x16x56xf32>
    %114 = arith.mulf %113, %111 : vector<8x16x56xf32>
    %115 = arith.addf %109, %114 : vector<8x16x56xf32>
    %116 = vector.extract_strided_slice %14 {offsets = [16, 0], sizes = [1, 56], strides = [1, 1]} : vector<49x56xf32> to vector<1x56xf32>
    %117 = vector.extract_strided_slice %103 {offsets = [2, 0, 0], sizes = [8, 16, 56], strides = [1, 1, 1]} : vector<14x16x56xf32> to vector<8x16x56xf32>
    %118 = vector.shape_cast %116 : vector<1x56xf32> to vector<1x1x56xf32>
    %119 = vector.broadcast %118 : vector<1x1x56xf32> to vector<8x16x56xf32>
    %120 = arith.mulf %119, %117 : vector<8x16x56xf32>
    %121 = arith.addf %115, %120 : vector<8x16x56xf32>
    %122 = vector.extract_strided_slice %14 {offsets = [23, 0], sizes = [1, 56], strides = [1, 1]} : vector<49x56xf32> to vector<1x56xf32>
    %123 = vector.extract_strided_slice %103 {offsets = [3, 0, 0], sizes = [8, 16, 56], strides = [1, 1, 1]} : vector<14x16x56xf32> to vector<8x16x56xf32>
    %124 = vector.shape_cast %122 : vector<1x56xf32> to vector<1x1x56xf32>
    %125 = vector.broadcast %124 : vector<1x1x56xf32> to vector<8x16x56xf32>
    %126 = arith.mulf %125, %123 : vector<8x16x56xf32>
    %127 = arith.addf %121, %126 : vector<8x16x56xf32>
    %128 = vector.extract_strided_slice %14 {offsets = [30, 0], sizes = [1, 56], strides = [1, 1]} : vector<49x56xf32> to vector<1x56xf32>
    %129 = vector.extract_strided_slice %103 {offsets = [4, 0, 0], sizes = [8, 16, 56], strides = [1, 1, 1]} : vector<14x16x56xf32> to vector<8x16x56xf32>
    %130 = vector.shape_cast %128 : vector<1x56xf32> to vector<1x1x56xf32>
    %131 = vector.broadcast %130 : vector<1x1x56xf32> to vector<8x16x56xf32>
    %132 = arith.mulf %131, %129 : vector<8x16x56xf32>
    %133 = arith.addf %127, %132 : vector<8x16x56xf32>
    %134 = vector.extract_strided_slice %14 {offsets = [37, 0], sizes = [1, 56], strides = [1, 1]} : vector<49x56xf32> to vector<1x56xf32>
    %135 = vector.extract_strided_slice %103 {offsets = [5, 0, 0], sizes = [8, 16, 56], strides = [1, 1, 1]} : vector<14x16x56xf32> to vector<8x16x56xf32>
    %136 = vector.shape_cast %134 : vector<1x56xf32> to vector<1x1x56xf32>
    %137 = vector.broadcast %136 : vector<1x1x56xf32> to vector<8x16x56xf32>
    %138 = arith.mulf %137, %135 : vector<8x16x56xf32>
    %139 = arith.addf %133, %138 : vector<8x16x56xf32>
    %140 = vector.extract_strided_slice %14 {offsets = [44, 0], sizes = [1, 56], strides = [1, 1]} : vector<49x56xf32> to vector<1x56xf32>
    %141 = vector.extract_strided_slice %103 {offsets = [6, 0, 0], sizes = [8, 16, 56], strides = [1, 1, 1]} : vector<14x16x56xf32> to vector<8x16x56xf32>
    %142 = vector.shape_cast %140 : vector<1x56xf32> to vector<1x1x56xf32>
    %143 = vector.broadcast %142 : vector<1x1x56xf32> to vector<8x16x56xf32>
    %144 = arith.mulf %143, %141 : vector<8x16x56xf32>
    %145 = arith.addf %139, %144 : vector<8x16x56xf32>
    %c0_24 = arith.constant 0 : index
    %c3_25 = arith.constant 3 : index
    %c0_26 = arith.constant 0 : index
    %146 = vector.load %arg13[%c0_24, %c3_25, %c0_26] : memref<22x22x56xf32, #tpu.memory_space<vmem>>, vector<14x16x56xf32>
    %147 = vector.extract_strided_slice %14 {offsets = [3, 0], sizes = [1, 56], strides = [1, 1]} : vector<49x56xf32> to vector<1x56xf32>
    %148 = vector.extract_strided_slice %146 {offsets = [0, 0, 0], sizes = [8, 16, 56], strides = [1, 1, 1]} : vector<14x16x56xf32> to vector<8x16x56xf32>
    %149 = vector.shape_cast %147 : vector<1x56xf32> to vector<1x1x56xf32>
    %150 = vector.broadcast %149 : vector<1x1x56xf32> to vector<8x16x56xf32>
    %151 = arith.mulf %150, %148 : vector<8x16x56xf32>
    %152 = arith.addf %145, %151 : vector<8x16x56xf32>
    %153 = vector.extract_strided_slice %14 {offsets = [10, 0], sizes = [1, 56], strides = [1, 1]} : vector<49x56xf32> to vector<1x56xf32>
    %154 = vector.extract_strided_slice %146 {offsets = [1, 0, 0], sizes = [8, 16, 56], strides = [1, 1, 1]} : vector<14x16x56xf32> to vector<8x16x56xf32>
    %155 = vector.shape_cast %153 : vector<1x56xf32> to vector<1x1x56xf32>
    %156 = vector.broadcast %155 : vector<1x1x56xf32> to vector<8x16x56xf32>
    %157 = arith.mulf %156, %154 : vector<8x16x56xf32>
    %158 = arith.addf %152, %157 : vector<8x16x56xf32>
    %159 = vector.extract_strided_slice %14 {offsets = [17, 0], sizes = [1, 56], strides = [1, 1]} : vector<49x56xf32> to vector<1x56xf32>
    %160 = vector.extract_strided_slice %146 {offsets = [2, 0, 0], sizes = [8, 16, 56], strides = [1, 1, 1]} : vector<14x16x56xf32> to vector<8x16x56xf32>
    %161 = vector.shape_cast %159 : vector<1x56xf32> to vector<1x1x56xf32>
    %162 = vector.broadcast %161 : vector<1x1x56xf32> to vector<8x16x56xf32>
    %163 = arith.mulf %162, %160 : vector<8x16x56xf32>
    %164 = arith.addf %158, %163 : vector<8x16x56xf32>
    %165 = vector.extract_strided_slice %14 {offsets = [24, 0], sizes = [1, 56], strides = [1, 1]} : vector<49x56xf32> to vector<1x56xf32>
    %166 = vector.extract_strided_slice %146 {offsets = [3, 0, 0], sizes = [8, 16, 56], strides = [1, 1, 1]} : vector<14x16x56xf32> to vector<8x16x56xf32>
    %167 = vector.shape_cast %165 : vector<1x56xf32> to vector<1x1x56xf32>
    %168 = vector.broadcast %167 : vector<1x1x56xf32> to vector<8x16x56xf32>
    %169 = arith.mulf %168, %166 : vector<8x16x56xf32>
    %170 = arith.addf %164, %169 : vector<8x16x56xf32>
    %171 = vector.extract_strided_slice %14 {offsets = [31, 0], sizes = [1, 56], strides = [1, 1]} : vector<49x56xf32> to vector<1x56xf32>
    %172 = vector.extract_strided_slice %146 {offsets = [4, 0, 0], sizes = [8, 16, 56], strides = [1, 1, 1]} : vector<14x16x56xf32> to vector<8x16x56xf32>
    %173 = vector.shape_cast %171 : vector<1x56xf32> to vector<1x1x56xf32>
    %174 = vector.broadcast %173 : vector<1x1x56xf32> to vector<8x16x56xf32>
    %175 = arith.mulf %174, %172 : vector<8x16x56xf32>
    %176 = arith.addf %170, %175 : vector<8x16x56xf32>
    %177 = vector.extract_strided_slice %14 {offsets = [38, 0], sizes = [1, 56], strides = [1, 1]} : vector<49x56xf32> to vector<1x56xf32>
    %178 = vector.extract_strided_slice %146 {offsets = [5, 0, 0], sizes = [8, 16, 56], strides = [1, 1, 1]} : vector<14x16x56xf32> to vector<8x16x56xf32>
    %179 = vector.shape_cast %177 : vector<1x56xf32> to vector<1x1x56xf32>
    %180 = vector.broadcast %179 : vector<1x1x56xf32> to vector<8x16x56xf32>
    %181 = arith.mulf %180, %178 : vector<8x16x56xf32>
    %182 = arith.addf %176, %181 : vector<8x16x56xf32>
    %183 = vector.extract_strided_slice %14 {offsets = [45, 0], sizes = [1, 56], strides = [1, 1]} : vector<49x56xf32> to vector<1x56xf32>
    %184 = vector.extract_strided_slice %146 {offsets = [6, 0, 0], sizes = [8, 16, 56], strides = [1, 1, 1]} : vector<14x16x56xf32> to vector<8x16x56xf32>
    %185 = vector.shape_cast %183 : vector<1x56xf32> to vector<1x1x56xf32>
    %186 = vector.broadcast %185 : vector<1x1x56xf32> to vector<8x16x56xf32>
    %187 = arith.mulf %186, %184 : vector<8x16x56xf32>
    %188 = arith.addf %182, %187 : vector<8x16x56xf32>
    %c0_27 = arith.constant 0 : index
    %c4 = arith.constant 4 : index
    %c0_28 = arith.constant 0 : index
    %189 = vector.load %arg13[%c0_27, %c4, %c0_28] : memref<22x22x56xf32, #tpu.memory_space<vmem>>, vector<14x16x56xf32>
    %190 = vector.extract_strided_slice %14 {offsets = [4, 0], sizes = [1, 56], strides = [1, 1]} : vector<49x56xf32> to vector<1x56xf32>
    %191 = vector.extract_strided_slice %189 {offsets = [0, 0, 0], sizes = [8, 16, 56], strides = [1, 1, 1]} : vector<14x16x56xf32> to vector<8x16x56xf32>
    %192 = vector.shape_cast %190 : vector<1x56xf32> to vector<1x1x56xf32>
    %193 = vector.broadcast %192 : vector<1x1x56xf32> to vector<8x16x56xf32>
    %194 = arith.mulf %193, %191 : vector<8x16x56xf32>
    %195 = arith.addf %188, %194 : vector<8x16x56xf32>
    %196 = vector.extract_strided_slice %14 {offsets = [11, 0], sizes = [1, 56], strides = [1, 1]} : vector<49x56xf32> to vector<1x56xf32>
    %197 = vector.extract_strided_slice %189 {offsets = [1, 0, 0], sizes = [8, 16, 56], strides = [1, 1, 1]} : vector<14x16x56xf32> to vector<8x16x56xf32>
    %198 = vector.shape_cast %196 : vector<1x56xf32> to vector<1x1x56xf32>
    %199 = vector.broadcast %198 : vector<1x1x56xf32> to vector<8x16x56xf32>
    %200 = arith.mulf %199, %197 : vector<8x16x56xf32>
    %201 = arith.addf %195, %200 : vector<8x16x56xf32>
    %202 = vector.extract_strided_slice %14 {offsets = [18, 0], sizes = [1, 56], strides = [1, 1]} : vector<49x56xf32> to vector<1x56xf32>
    %203 = vector.extract_strided_slice %189 {offsets = [2, 0, 0], sizes = [8, 16, 56], strides = [1, 1, 1]} : vector<14x16x56xf32> to vector<8x16x56xf32>
    %204 = vector.shape_cast %202 : vector<1x56xf32> to vector<1x1x56xf32>
    %205 = vector.broadcast %204 : vector<1x1x56xf32> to vector<8x16x56xf32>
    %206 = arith.mulf %205, %203 : vector<8x16x56xf32>
    %207 = arith.addf %201, %206 : vector<8x16x56xf32>
    %208 = vector.extract_strided_slice %14 {offsets = [25, 0], sizes = [1, 56], strides = [1, 1]} : vector<49x56xf32> to vector<1x56xf32>
    %209 = vector.extract_strided_slice %189 {offsets = [3, 0, 0], sizes = [8, 16, 56], strides = [1, 1, 1]} : vector<14x16x56xf32> to vector<8x16x56xf32>
    %210 = vector.shape_cast %208 : vector<1x56xf32> to vector<1x1x56xf32>
    %211 = vector.broadcast %210 : vector<1x1x56xf32> to vector<8x16x56xf32>
    %212 = arith.mulf %211, %209 : vector<8x16x56xf32>
    %213 = arith.addf %207, %212 : vector<8x16x56xf32>
    %214 = vector.extract_strided_slice %14 {offsets = [32, 0], sizes = [1, 56], strides = [1, 1]} : vector<49x56xf32> to vector<1x56xf32>
    %215 = vector.extract_strided_slice %189 {offsets = [4, 0, 0], sizes = [8, 16, 56], strides = [1, 1, 1]} : vector<14x16x56xf32> to vector<8x16x56xf32>
    %216 = vector.shape_cast %214 : vector<1x56xf32> to vector<1x1x56xf32>
    %217 = vector.broadcast %216 : vector<1x1x56xf32> to vector<8x16x56xf32>
    %218 = arith.mulf %217, %215 : vector<8x16x56xf32>
    %219 = arith.addf %213, %218 : vector<8x16x56xf32>
    %220 = vector.extract_strided_slice %14 {offsets = [39, 0], sizes = [1, 56], strides = [1, 1]} : vector<49x56xf32> to vector<1x56xf32>
    %221 = vector.extract_strided_slice %189 {offsets = [5, 0, 0], sizes = [8, 16, 56], strides = [1, 1, 1]} : vector<14x16x56xf32> to vector<8x16x56xf32>
    %222 = vector.shape_cast %220 : vector<1x56xf32> to vector<1x1x56xf32>
    %223 = vector.broadcast %222 : vector<1x1x56xf32> to vector<8x16x56xf32>
    %224 = arith.mulf %223, %221 : vector<8x16x56xf32>
    %225 = arith.addf %219, %224 : vector<8x16x56xf32>
    %226 = vector.extract_strided_slice %14 {offsets = [46, 0], sizes = [1, 56], strides = [1, 1]} : vector<49x56xf32> to vector<1x56xf32>
    %227 = vector.extract_strided_slice %189 {offsets = [6, 0, 0], sizes = [8, 16, 56], strides = [1, 1, 1]} : vector<14x16x56xf32> to vector<8x16x56xf32>
    %228 = vector.shape_cast %226 : vector<1x56xf32> to vector<1x1x56xf32>
    %229 = vector.broadcast %228 : vector<1x1x56xf32> to vector<8x16x56xf32>
    %230 = arith.mulf %229, %227 : vector<8x16x56xf32>
    %231 = arith.addf %225, %230 : vector<8x16x56xf32>
    %c0_29 = arith.constant 0 : index
    %c5 = arith.constant 5 : index
    %c0_30 = arith.constant 0 : index
    %232 = vector.load %arg13[%c0_29, %c5, %c0_30] : memref<22x22x56xf32, #tpu.memory_space<vmem>>, vector<14x16x56xf32>
    %233 = vector.extract_strided_slice %14 {offsets = [5, 0], sizes = [1, 56], strides = [1, 1]} : vector<49x56xf32> to vector<1x56xf32>
    %234 = vector.extract_strided_slice %232 {offsets = [0, 0, 0], sizes = [8, 16, 56], strides = [1, 1, 1]} : vector<14x16x56xf32> to vector<8x16x56xf32>
    %235 = vector.shape_cast %233 : vector<1x56xf32> to vector<1x1x56xf32>
    %236 = vector.broadcast %235 : vector<1x1x56xf32> to vector<8x16x56xf32>
    %237 = arith.mulf %236, %234 : vector<8x16x56xf32>
    %238 = arith.addf %231, %237 : vector<8x16x56xf32>
    %239 = vector.extract_strided_slice %14 {offsets = [12, 0], sizes = [1, 56], strides = [1, 1]} : vector<49x56xf32> to vector<1x56xf32>
    %240 = vector.extract_strided_slice %232 {offsets = [1, 0, 0], sizes = [8, 16, 56], strides = [1, 1, 1]} : vector<14x16x56xf32> to vector<8x16x56xf32>
    %241 = vector.shape_cast %239 : vector<1x56xf32> to vector<1x1x56xf32>
    %242 = vector.broadcast %241 : vector<1x1x56xf32> to vector<8x16x56xf32>
    %243 = arith.mulf %242, %240 : vector<8x16x56xf32>
    %244 = arith.addf %238, %243 : vector<8x16x56xf32>
    %245 = vector.extract_strided_slice %14 {offsets = [19, 0], sizes = [1, 56], strides = [1, 1]} : vector<49x56xf32> to vector<1x56xf32>
    %246 = vector.extract_strided_slice %232 {offsets = [2, 0, 0], sizes = [8, 16, 56], strides = [1, 1, 1]} : vector<14x16x56xf32> to vector<8x16x56xf32>
    %247 = vector.shape_cast %245 : vector<1x56xf32> to vector<1x1x56xf32>
    %248 = vector.broadcast %247 : vector<1x1x56xf32> to vector<8x16x56xf32>
    %249 = arith.mulf %248, %246 : vector<8x16x56xf32>
    %250 = arith.addf %244, %249 : vector<8x16x56xf32>
    %251 = vector.extract_strided_slice %14 {offsets = [26, 0], sizes = [1, 56], strides = [1, 1]} : vector<49x56xf32> to vector<1x56xf32>
    %252 = vector.extract_strided_slice %232 {offsets = [3, 0, 0], sizes = [8, 16, 56], strides = [1, 1, 1]} : vector<14x16x56xf32> to vector<8x16x56xf32>
    %253 = vector.shape_cast %251 : vector<1x56xf32> to vector<1x1x56xf32>
    %254 = vector.broadcast %253 : vector<1x1x56xf32> to vector<8x16x56xf32>
    %255 = arith.mulf %254, %252 : vector<8x16x56xf32>
    %256 = arith.addf %250, %255 : vector<8x16x56xf32>
    %257 = vector.extract_strided_slice %14 {offsets = [33, 0], sizes = [1, 56], strides = [1, 1]} : vector<49x56xf32> to vector<1x56xf32>
    %258 = vector.extract_strided_slice %232 {offsets = [4, 0, 0], sizes = [8, 16, 56], strides = [1, 1, 1]} : vector<14x16x56xf32> to vector<8x16x56xf32>
    %259 = vector.shape_cast %257 : vector<1x56xf32> to vector<1x1x56xf32>
    %260 = vector.broadcast %259 : vector<1x1x56xf32> to vector<8x16x56xf32>
    %261 = arith.mulf %260, %258 : vector<8x16x56xf32>
    %262 = arith.addf %256, %261 : vector<8x16x56xf32>
    %263 = vector.extract_strided_slice %14 {offsets = [40, 0], sizes = [1, 56], strides = [1, 1]} : vector<49x56xf32> to vector<1x56xf32>
    %264 = vector.extract_strided_slice %232 {offsets = [5, 0, 0], sizes = [8, 16, 56], strides = [1, 1, 1]} : vector<14x16x56xf32> to vector<8x16x56xf32>
    %265 = vector.shape_cast %263 : vector<1x56xf32> to vector<1x1x56xf32>
    %266 = vector.broadcast %265 : vector<1x1x56xf32> to vector<8x16x56xf32>
    %267 = arith.mulf %266, %264 : vector<8x16x56xf32>
    %268 = arith.addf %262, %267 : vector<8x16x56xf32>
    %269 = vector.extract_strided_slice %14 {offsets = [47, 0], sizes = [1, 56], strides = [1, 1]} : vector<49x56xf32> to vector<1x56xf32>
    %270 = vector.extract_strided_slice %232 {offsets = [6, 0, 0], sizes = [8, 16, 56], strides = [1, 1, 1]} : vector<14x16x56xf32> to vector<8x16x56xf32>
    %271 = vector.shape_cast %269 : vector<1x56xf32> to vector<1x1x56xf32>
    %272 = vector.broadcast %271 : vector<1x1x56xf32> to vector<8x16x56xf32>
    %273 = arith.mulf %272, %270 : vector<8x16x56xf32>
    %274 = arith.addf %268, %273 : vector<8x16x56xf32>
    %c0_31 = arith.constant 0 : index
    %c6 = arith.constant 6 : index
    %c0_32 = arith.constant 0 : index
    %275 = vector.load %arg13[%c0_31, %c6, %c0_32] : memref<22x22x56xf32, #tpu.memory_space<vmem>>, vector<14x16x56xf32>
    %276 = vector.extract_strided_slice %14 {offsets = [6, 0], sizes = [1, 56], strides = [1, 1]} : vector<49x56xf32> to vector<1x56xf32>
    %277 = vector.extract_strided_slice %275 {offsets = [0, 0, 0], sizes = [8, 16, 56], strides = [1, 1, 1]} : vector<14x16x56xf32> to vector<8x16x56xf32>
    %278 = vector.shape_cast %276 : vector<1x56xf32> to vector<1x1x56xf32>
    %279 = vector.broadcast %278 : vector<1x1x56xf32> to vector<8x16x56xf32>
    %280 = arith.mulf %279, %277 : vector<8x16x56xf32>
    %281 = arith.addf %274, %280 : vector<8x16x56xf32>
    %282 = vector.extract_strided_slice %14 {offsets = [13, 0], sizes = [1, 56], strides = [1, 1]} : vector<49x56xf32> to vector<1x56xf32>
    %283 = vector.extract_strided_slice %275 {offsets = [1, 0, 0], sizes = [8, 16, 56], strides = [1, 1, 1]} : vector<14x16x56xf32> to vector<8x16x56xf32>
    %284 = vector.shape_cast %282 : vector<1x56xf32> to vector<1x1x56xf32>
    %285 = vector.broadcast %284 : vector<1x1x56xf32> to vector<8x16x56xf32>
    %286 = arith.mulf %285, %283 : vector<8x16x56xf32>
    %287 = arith.addf %281, %286 : vector<8x16x56xf32>
    %288 = vector.extract_strided_slice %14 {offsets = [20, 0], sizes = [1, 56], strides = [1, 1]} : vector<49x56xf32> to vector<1x56xf32>
    %289 = vector.extract_strided_slice %275 {offsets = [2, 0, 0], sizes = [8, 16, 56], strides = [1, 1, 1]} : vector<14x16x56xf32> to vector<8x16x56xf32>
    %290 = vector.shape_cast %288 : vector<1x56xf32> to vector<1x1x56xf32>
    %291 = vector.broadcast %290 : vector<1x1x56xf32> to vector<8x16x56xf32>
    %292 = arith.mulf %291, %289 : vector<8x16x56xf32>
    %293 = arith.addf %287, %292 : vector<8x16x56xf32>
    %294 = vector.extract_strided_slice %14 {offsets = [27, 0], sizes = [1, 56], strides = [1, 1]} : vector<49x56xf32> to vector<1x56xf32>
    %295 = vector.extract_strided_slice %275 {offsets = [3, 0, 0], sizes = [8, 16, 56], strides = [1, 1, 1]} : vector<14x16x56xf32> to vector<8x16x56xf32>
    %296 = vector.shape_cast %294 : vector<1x56xf32> to vector<1x1x56xf32>
    %297 = vector.broadcast %296 : vector<1x1x56xf32> to vector<8x16x56xf32>
    %298 = arith.mulf %297, %295 : vector<8x16x56xf32>
    %299 = arith.addf %293, %298 : vector<8x16x56xf32>
    %300 = vector.extract_strided_slice %14 {offsets = [34, 0], sizes = [1, 56], strides = [1, 1]} : vector<49x56xf32> to vector<1x56xf32>
    %301 = vector.extract_strided_slice %275 {offsets = [4, 0, 0], sizes = [8, 16, 56], strides = [1, 1, 1]} : vector<14x16x56xf32> to vector<8x16x56xf32>
    %302 = vector.shape_cast %300 : vector<1x56xf32> to vector<1x1x56xf32>
    %303 = vector.broadcast %302 : vector<1x1x56xf32> to vector<8x16x56xf32>
    %304 = arith.mulf %303, %301 : vector<8x16x56xf32>
    %305 = arith.addf %299, %304 : vector<8x16x56xf32>
    %306 = vector.extract_strided_slice %14 {offsets = [41, 0], sizes = [1, 56], strides = [1, 1]} : vector<49x56xf32> to vector<1x56xf32>
    %307 = vector.extract_strided_slice %275 {offsets = [5, 0, 0], sizes = [8, 16, 56], strides = [1, 1, 1]} : vector<14x16x56xf32> to vector<8x16x56xf32>
    %308 = vector.shape_cast %306 : vector<1x56xf32> to vector<1x1x56xf32>
    %309 = vector.broadcast %308 : vector<1x1x56xf32> to vector<8x16x56xf32>
    %310 = arith.mulf %309, %307 : vector<8x16x56xf32>
    %311 = arith.addf %305, %310 : vector<8x16x56xf32>
    %312 = vector.extract_strided_slice %14 {offsets = [48, 0], sizes = [1, 56], strides = [1, 1]} : vector<49x56xf32> to vector<1x56xf32>
    %313 = vector.extract_strided_slice %275 {offsets = [6, 0, 0], sizes = [8, 16, 56], strides = [1, 1, 1]} : vector<14x16x56xf32> to vector<8x16x56xf32>
    %314 = vector.shape_cast %312 : vector<1x56xf32> to vector<1x1x56xf32>
    %315 = vector.broadcast %314 : vector<1x1x56xf32> to vector<8x16x56xf32>
    %316 = arith.mulf %315, %313 : vector<8x16x56xf32>
    %317 = arith.addf %311, %316 : vector<8x16x56xf32>
    %318 = vector.shape_cast %15 : vector<1x56xf32> to vector<1x1x56xf32>
    %319 = vector.broadcast %318 : vector<1x1x56xf32> to vector<8x16x56xf32>
    %320 = arith.addf %317, %319 : vector<8x16x56xf32>
    %cst_33 = arith.constant 5.000000e-01 : f32
    %321 = vector.broadcast %cst_33 : f32 to vector<8x16x56xf32>
    %322 = arith.mulf %320, %321 : vector<8x16x56xf32>
    %323 = vector.shape_cast %322 : vector<8x16x56xf32> to vector<128x56xf32>
    %324 = tpu.transpose %323, [1, 0] : vector<128x56xf32> -> vector<56x128xf32>
    %cst_34 = arith.constant 0.000000e+00 : f32
    %325 = vector.broadcast %cst_34 : f32 to vector<8x16x56xf32>
    %c8 = arith.constant 8 : index
    %c0_35 = arith.constant 0 : index
    %c0_36 = arith.constant 0 : index
    %326 = vector.load %arg13[%c8, %c0_35, %c0_36] : memref<22x22x56xf32, #tpu.memory_space<vmem>>, vector<14x16x56xf32>
    %327 = vector.extract_strided_slice %14 {offsets = [0, 0], sizes = [1, 56], strides = [1, 1]} : vector<49x56xf32> to vector<1x56xf32>
    %328 = vector.extract_strided_slice %326 {offsets = [0, 0, 0], sizes = [8, 16, 56], strides = [1, 1, 1]} : vector<14x16x56xf32> to vector<8x16x56xf32>
    %329 = vector.shape_cast %327 : vector<1x56xf32> to vector<1x1x56xf32>
    %330 = vector.broadcast %329 : vector<1x1x56xf32> to vector<8x16x56xf32>
    %331 = arith.mulf %330, %328 : vector<8x16x56xf32>
    %332 = arith.addf %325, %331 : vector<8x16x56xf32>
    %333 = vector.extract_strided_slice %14 {offsets = [7, 0], sizes = [1, 56], strides = [1, 1]} : vector<49x56xf32> to vector<1x56xf32>
    %334 = vector.extract_strided_slice %326 {offsets = [1, 0, 0], sizes = [8, 16, 56], strides = [1, 1, 1]} : vector<14x16x56xf32> to vector<8x16x56xf32>
    %335 = vector.shape_cast %333 : vector<1x56xf32> to vector<1x1x56xf32>
    %336 = vector.broadcast %335 : vector<1x1x56xf32> to vector<8x16x56xf32>
    %337 = arith.mulf %336, %334 : vector<8x16x56xf32>
    %338 = arith.addf %332, %337 : vector<8x16x56xf32>
    %339 = vector.extract_strided_slice %14 {offsets = [14, 0], sizes = [1, 56], strides = [1, 1]} : vector<49x56xf32> to vector<1x56xf32>
    %340 = vector.extract_strided_slice %326 {offsets = [2, 0, 0], sizes = [8, 16, 56], strides = [1, 1, 1]} : vector<14x16x56xf32> to vector<8x16x56xf32>
    %341 = vector.shape_cast %339 : vector<1x56xf32> to vector<1x1x56xf32>
    %342 = vector.broadcast %341 : vector<1x1x56xf32> to vector<8x16x56xf32>
    %343 = arith.mulf %342, %340 : vector<8x16x56xf32>
    %344 = arith.addf %338, %343 : vector<8x16x56xf32>
    %345 = vector.extract_strided_slice %14 {offsets = [21, 0], sizes = [1, 56], strides = [1, 1]} : vector<49x56xf32> to vector<1x56xf32>
    %346 = vector.extract_strided_slice %326 {offsets = [3, 0, 0], sizes = [8, 16, 56], strides = [1, 1, 1]} : vector<14x16x56xf32> to vector<8x16x56xf32>
    %347 = vector.shape_cast %345 : vector<1x56xf32> to vector<1x1x56xf32>
    %348 = vector.broadcast %347 : vector<1x1x56xf32> to vector<8x16x56xf32>
    %349 = arith.mulf %348, %346 : vector<8x16x56xf32>
    %350 = arith.addf %344, %349 : vector<8x16x56xf32>
    %351 = vector.extract_strided_slice %14 {offsets = [28, 0], sizes = [1, 56], strides = [1, 1]} : vector<49x56xf32> to vector<1x56xf32>
    %352 = vector.extract_strided_slice %326 {offsets = [4, 0, 0], sizes = [8, 16, 56], strides = [1, 1, 1]} : vector<14x16x56xf32> to vector<8x16x56xf32>
    %353 = vector.shape_cast %351 : vector<1x56xf32> to vector<1x1x56xf32>
    %354 = vector.broadcast %353 : vector<1x1x56xf32> to vector<8x16x56xf32>
    %355 = arith.mulf %354, %352 : vector<8x16x56xf32>
    %356 = arith.addf %350, %355 : vector<8x16x56xf32>
    %357 = vector.extract_strided_slice %14 {offsets = [35, 0], sizes = [1, 56], strides = [1, 1]} : vector<49x56xf32> to vector<1x56xf32>
    %358 = vector.extract_strided_slice %326 {offsets = [5, 0, 0], sizes = [8, 16, 56], strides = [1, 1, 1]} : vector<14x16x56xf32> to vector<8x16x56xf32>
    %359 = vector.shape_cast %357 : vector<1x56xf32> to vector<1x1x56xf32>
    %360 = vector.broadcast %359 : vector<1x1x56xf32> to vector<8x16x56xf32>
    %361 = arith.mulf %360, %358 : vector<8x16x56xf32>
    %362 = arith.addf %356, %361 : vector<8x16x56xf32>
    %363 = vector.extract_strided_slice %14 {offsets = [42, 0], sizes = [1, 56], strides = [1, 1]} : vector<49x56xf32> to vector<1x56xf32>
    %364 = vector.extract_strided_slice %326 {offsets = [6, 0, 0], sizes = [8, 16, 56], strides = [1, 1, 1]} : vector<14x16x56xf32> to vector<8x16x56xf32>
    %365 = vector.shape_cast %363 : vector<1x56xf32> to vector<1x1x56xf32>
    %366 = vector.broadcast %365 : vector<1x1x56xf32> to vector<8x16x56xf32>
    %367 = arith.mulf %366, %364 : vector<8x16x56xf32>
    %368 = arith.addf %362, %367 : vector<8x16x56xf32>
    %c8_37 = arith.constant 8 : index
    %c1_38 = arith.constant 1 : index
    %c0_39 = arith.constant 0 : index
    %369 = vector.load %arg13[%c8_37, %c1_38, %c0_39] : memref<22x22x56xf32, #tpu.memory_space<vmem>>, vector<14x16x56xf32>
    %370 = vector.extract_strided_slice %14 {offsets = [1, 0], sizes = [1, 56], strides = [1, 1]} : vector<49x56xf32> to vector<1x56xf32>
    %371 = vector.extract_strided_slice %369 {offsets = [0, 0, 0], sizes = [8, 16, 56], strides = [1, 1, 1]} : vector<14x16x56xf32> to vector<8x16x56xf32>
    %372 = vector.shape_cast %370 : vector<1x56xf32> to vector<1x1x56xf32>
    %373 = vector.broadcast %372 : vector<1x1x56xf32> to vector<8x16x56xf32>
    %374 = arith.mulf %373, %371 : vector<8x16x56xf32>
    %375 = arith.addf %368, %374 : vector<8x16x56xf32>
    %376 = vector.extract_strided_slice %14 {offsets = [8, 0], sizes = [1, 56], strides = [1, 1]} : vector<49x56xf32> to vector<1x56xf32>
    %377 = vector.extract_strided_slice %369 {offsets = [1, 0, 0], sizes = [8, 16, 56], strides = [1, 1, 1]} : vector<14x16x56xf32> to vector<8x16x56xf32>
    %378 = vector.shape_cast %376 : vector<1x56xf32> to vector<1x1x56xf32>
    %379 = vector.broadcast %378 : vector<1x1x56xf32> to vector<8x16x56xf32>
    %380 = arith.mulf %379, %377 : vector<8x16x56xf32>
    %381 = arith.addf %375, %380 : vector<8x16x56xf32>
    %382 = vector.extract_strided_slice %14 {offsets = [15, 0], sizes = [1, 56], strides = [1, 1]} : vector<49x56xf32> to vector<1x56xf32>
    %383 = vector.extract_strided_slice %369 {offsets = [2, 0, 0], sizes = [8, 16, 56], strides = [1, 1, 1]} : vector<14x16x56xf32> to vector<8x16x56xf32>
    %384 = vector.shape_cast %382 : vector<1x56xf32> to vector<1x1x56xf32>
    %385 = vector.broadcast %384 : vector<1x1x56xf32> to vector<8x16x56xf32>
    %386 = arith.mulf %385, %383 : vector<8x16x56xf32>
    %387 = arith.addf %381, %386 : vector<8x16x56xf32>
    %388 = vector.extract_strided_slice %14 {offsets = [22, 0], sizes = [1, 56], strides = [1, 1]} : vector<49x56xf32> to vector<1x56xf32>
    %389 = vector.extract_strided_slice %369 {offsets = [3, 0, 0], sizes = [8, 16, 56], strides = [1, 1, 1]} : vector<14x16x56xf32> to vector<8x16x56xf32>
    %390 = vector.shape_cast %388 : vector<1x56xf32> to vector<1x1x56xf32>
    %391 = vector.broadcast %390 : vector<1x1x56xf32> to vector<8x16x56xf32>
    %392 = arith.mulf %391, %389 : vector<8x16x56xf32>
    %393 = arith.addf %387, %392 : vector<8x16x56xf32>
    %394 = vector.extract_strided_slice %14 {offsets = [29, 0], sizes = [1, 56], strides = [1, 1]} : vector<49x56xf32> to vector<1x56xf32>
    %395 = vector.extract_strided_slice %369 {offsets = [4, 0, 0], sizes = [8, 16, 56], strides = [1, 1, 1]} : vector<14x16x56xf32> to vector<8x16x56xf32>
    %396 = vector.shape_cast %394 : vector<1x56xf32> to vector<1x1x56xf32>
    %397 = vector.broadcast %396 : vector<1x1x56xf32> to vector<8x16x56xf32>
    %398 = arith.mulf %397, %395 : vector<8x16x56xf32>
    %399 = arith.addf %393, %398 : vector<8x16x56xf32>
    %400 = vector.extract_strided_slice %14 {offsets = [36, 0], sizes = [1, 56], strides = [1, 1]} : vector<49x56xf32> to vector<1x56xf32>
    %401 = vector.extract_strided_slice %369 {offsets = [5, 0, 0], sizes = [8, 16, 56], strides = [1, 1, 1]} : vector<14x16x56xf32> to vector<8x16x56xf32>
    %402 = vector.shape_cast %400 : vector<1x56xf32> to vector<1x1x56xf32>
    %403 = vector.broadcast %402 : vector<1x1x56xf32> to vector<8x16x56xf32>
    %404 = arith.mulf %403, %401 : vector<8x16x56xf32>
    %405 = arith.addf %399, %404 : vector<8x16x56xf32>
    %406 = vector.extract_strided_slice %14 {offsets = [43, 0], sizes = [1, 56], strides = [1, 1]} : vector<49x56xf32> to vector<1x56xf32>
    %407 = vector.extract_strided_slice %369 {offsets = [6, 0, 0], sizes = [8, 16, 56], strides = [1, 1, 1]} : vector<14x16x56xf32> to vector<8x16x56xf32>
    %408 = vector.shape_cast %406 : vector<1x56xf32> to vector<1x1x56xf32>
    %409 = vector.broadcast %408 : vector<1x1x56xf32> to vector<8x16x56xf32>
    %410 = arith.mulf %409, %407 : vector<8x16x56xf32>
    %411 = arith.addf %405, %410 : vector<8x16x56xf32>
    %c8_40 = arith.constant 8 : index
    %c2_41 = arith.constant 2 : index
    %c0_42 = arith.constant 0 : index
    %412 = vector.load %arg13[%c8_40, %c2_41, %c0_42] : memref<22x22x56xf32, #tpu.memory_space<vmem>>, vector<14x16x56xf32>
    %413 = vector.extract_strided_slice %14 {offsets = [2, 0], sizes = [1, 56], strides = [1, 1]} : vector<49x56xf32> to vector<1x56xf32>
    %414 = vector.extract_strided_slice %412 {offsets = [0, 0, 0], sizes = [8, 16, 56], strides = [1, 1, 1]} : vector<14x16x56xf32> to vector<8x16x56xf32>
    %415 = vector.shape_cast %413 : vector<1x56xf32> to vector<1x1x56xf32>
    %416 = vector.broadcast %415 : vector<1x1x56xf32> to vector<8x16x56xf32>
    %417 = arith.mulf %416, %414 : vector<8x16x56xf32>
    %418 = arith.addf %411, %417 : vector<8x16x56xf32>
    %419 = vector.extract_strided_slice %14 {offsets = [9, 0], sizes = [1, 56], strides = [1, 1]} : vector<49x56xf32> to vector<1x56xf32>
    %420 = vector.extract_strided_slice %412 {offsets = [1, 0, 0], sizes = [8, 16, 56], strides = [1, 1, 1]} : vector<14x16x56xf32> to vector<8x16x56xf32>
    %421 = vector.shape_cast %419 : vector<1x56xf32> to vector<1x1x56xf32>
    %422 = vector.broadcast %421 : vector<1x1x56xf32> to vector<8x16x56xf32>
    %423 = arith.mulf %422, %420 : vector<8x16x56xf32>
    %424 = arith.addf %418, %423 : vector<8x16x56xf32>
    %425 = vector.extract_strided_slice %14 {offsets = [16, 0], sizes = [1, 56], strides = [1, 1]} : vector<49x56xf32> to vector<1x56xf32>
    %426 = vector.extract_strided_slice %412 {offsets = [2, 0, 0], sizes = [8, 16, 56], strides = [1, 1, 1]} : vector<14x16x56xf32> to vector<8x16x56xf32>
    %427 = vector.shape_cast %425 : vector<1x56xf32> to vector<1x1x56xf32>
    %428 = vector.broadcast %427 : vector<1x1x56xf32> to vector<8x16x56xf32>
    %429 = arith.mulf %428, %426 : vector<8x16x56xf32>
    %430 = arith.addf %424, %429 : vector<8x16x56xf32>
    %431 = vector.extract_strided_slice %14 {offsets = [23, 0], sizes = [1, 56], strides = [1, 1]} : vector<49x56xf32> to vector<1x56xf32>
    %432 = vector.extract_strided_slice %412 {offsets = [3, 0, 0], sizes = [8, 16, 56], strides = [1, 1, 1]} : vector<14x16x56xf32> to vector<8x16x56xf32>
    %433 = vector.shape_cast %431 : vector<1x56xf32> to vector<1x1x56xf32>
    %434 = vector.broadcast %433 : vector<1x1x56xf32> to vector<8x16x56xf32>
    %435 = arith.mulf %434, %432 : vector<8x16x56xf32>
    %436 = arith.addf %430, %435 : vector<8x16x56xf32>
    %437 = vector.extract_strided_slice %14 {offsets = [30, 0], sizes = [1, 56], strides = [1, 1]} : vector<49x56xf32> to vector<1x56xf32>
    %438 = vector.extract_strided_slice %412 {offsets = [4, 0, 0], sizes = [8, 16, 56], strides = [1, 1, 1]} : vector<14x16x56xf32> to vector<8x16x56xf32>
    %439 = vector.shape_cast %437 : vector<1x56xf32> to vector<1x1x56xf32>
    %440 = vector.broadcast %439 : vector<1x1x56xf32> to vector<8x16x56xf32>
    %441 = arith.mulf %440, %438 : vector<8x16x56xf32>
    %442 = arith.addf %436, %441 : vector<8x16x56xf32>
    %443 = vector.extract_strided_slice %14 {offsets = [37, 0], sizes = [1, 56], strides = [1, 1]} : vector<49x56xf32> to vector<1x56xf32>
    %444 = vector.extract_strided_slice %412 {offsets = [5, 0, 0], sizes = [8, 16, 56], strides = [1, 1, 1]} : vector<14x16x56xf32> to vector<8x16x56xf32>
    %445 = vector.shape_cast %443 : vector<1x56xf32> to vector<1x1x56xf32>
    %446 = vector.broadcast %445 : vector<1x1x56xf32> to vector<8x16x56xf32>
    %447 = arith.mulf %446, %444 : vector<8x16x56xf32>
    %448 = arith.addf %442, %447 : vector<8x16x56xf32>
    %449 = vector.extract_strided_slice %14 {offsets = [44, 0], sizes = [1, 56], strides = [1, 1]} : vector<49x56xf32> to vector<1x56xf32>
    %450 = vector.extract_strided_slice %412 {offsets = [6, 0, 0], sizes = [8, 16, 56], strides = [1, 1, 1]} : vector<14x16x56xf32> to vector<8x16x56xf32>
    %451 = vector.shape_cast %449 : vector<1x56xf32> to vector<1x1x56xf32>
    %452 = vector.broadcast %451 : vector<1x1x56xf32> to vector<8x16x56xf32>
    %453 = arith.mulf %452, %450 : vector<8x16x56xf32>
    %454 = arith.addf %448, %453 : vector<8x16x56xf32>
    %c8_43 = arith.constant 8 : index
    %c3_44 = arith.constant 3 : index
    %c0_45 = arith.constant 0 : index
    %455 = vector.load %arg13[%c8_43, %c3_44, %c0_45] : memref<22x22x56xf32, #tpu.memory_space<vmem>>, vector<14x16x56xf32>
    %456 = vector.extract_strided_slice %14 {offsets = [3, 0], sizes = [1, 56], strides = [1, 1]} : vector<49x56xf32> to vector<1x56xf32>
    %457 = vector.extract_strided_slice %455 {offsets = [0, 0, 0], sizes = [8, 16, 56], strides = [1, 1, 1]} : vector<14x16x56xf32> to vector<8x16x56xf32>
    %458 = vector.shape_cast %456 : vector<1x56xf32> to vector<1x1x56xf32>
    %459 = vector.broadcast %458 : vector<1x1x56xf32> to vector<8x16x56xf32>
    %460 = arith.mulf %459, %457 : vector<8x16x56xf32>
    %461 = arith.addf %454, %460 : vector<8x16x56xf32>
    %462 = vector.extract_strided_slice %14 {offsets = [10, 0], sizes = [1, 56], strides = [1, 1]} : vector<49x56xf32> to vector<1x56xf32>
    %463 = vector.extract_strided_slice %455 {offsets = [1, 0, 0], sizes = [8, 16, 56], strides = [1, 1, 1]} : vector<14x16x56xf32> to vector<8x16x56xf32>
    %464 = vector.shape_cast %462 : vector<1x56xf32> to vector<1x1x56xf32>
    %465 = vector.broadcast %464 : vector<1x1x56xf32> to vector<8x16x56xf32>
    %466 = arith.mulf %465, %463 : vector<8x16x56xf32>
    %467 = arith.addf %461, %466 : vector<8x16x56xf32>
    %468 = vector.extract_strided_slice %14 {offsets = [17, 0], sizes = [1, 56], strides = [1, 1]} : vector<49x56xf32> to vector<1x56xf32>
    %469 = vector.extract_strided_slice %455 {offsets = [2, 0, 0], sizes = [8, 16, 56], strides = [1, 1, 1]} : vector<14x16x56xf32> to vector<8x16x56xf32>
    %470 = vector.shape_cast %468 : vector<1x56xf32> to vector<1x1x56xf32>
    %471 = vector.broadcast %470 : vector<1x1x56xf32> to vector<8x16x56xf32>
    %472 = arith.mulf %471, %469 : vector<8x16x56xf32>
    %473 = arith.addf %467, %472 : vector<8x16x56xf32>
    %474 = vector.extract_strided_slice %14 {offsets = [24, 0], sizes = [1, 56], strides = [1, 1]} : vector<49x56xf32> to vector<1x56xf32>
    %475 = vector.extract_strided_slice %455 {offsets = [3, 0, 0], sizes = [8, 16, 56], strides = [1, 1, 1]} : vector<14x16x56xf32> to vector<8x16x56xf32>
    %476 = vector.shape_cast %474 : vector<1x56xf32> to vector<1x1x56xf32>
    %477 = vector.broadcast %476 : vector<1x1x56xf32> to vector<8x16x56xf32>
    %478 = arith.mulf %477, %475 : vector<8x16x56xf32>
    %479 = arith.addf %473, %478 : vector<8x16x56xf32>
    %480 = vector.extract_strided_slice %14 {offsets = [31, 0], sizes = [1, 56], strides = [1, 1]} : vector<49x56xf32> to vector<1x56xf32>
    %481 = vector.extract_strided_slice %455 {offsets = [4, 0, 0], sizes = [8, 16, 56], strides = [1, 1, 1]} : vector<14x16x56xf32> to vector<8x16x56xf32>
    %482 = vector.shape_cast %480 : vector<1x56xf32> to vector<1x1x56xf32>
    %483 = vector.broadcast %482 : vector<1x1x56xf32> to vector<8x16x56xf32>
    %484 = arith.mulf %483, %481 : vector<8x16x56xf32>
    %485 = arith.addf %479, %484 : vector<8x16x56xf32>
    %486 = vector.extract_strided_slice %14 {offsets = [38, 0], sizes = [1, 56], strides = [1, 1]} : vector<49x56xf32> to vector<1x56xf32>
    %487 = vector.extract_strided_slice %455 {offsets = [5, 0, 0], sizes = [8, 16, 56], strides = [1, 1, 1]} : vector<14x16x56xf32> to vector<8x16x56xf32>
    %488 = vector.shape_cast %486 : vector<1x56xf32> to vector<1x1x56xf32>
    %489 = vector.broadcast %488 : vector<1x1x56xf32> to vector<8x16x56xf32>
    %490 = arith.mulf %489, %487 : vector<8x16x56xf32>
    %491 = arith.addf %485, %490 : vector<8x16x56xf32>
    %492 = vector.extract_strided_slice %14 {offsets = [45, 0], sizes = [1, 56], strides = [1, 1]} : vector<49x56xf32> to vector<1x56xf32>
    %493 = vector.extract_strided_slice %455 {offsets = [6, 0, 0], sizes = [8, 16, 56], strides = [1, 1, 1]} : vector<14x16x56xf32> to vector<8x16x56xf32>
    %494 = vector.shape_cast %492 : vector<1x56xf32> to vector<1x1x56xf32>
    %495 = vector.broadcast %494 : vector<1x1x56xf32> to vector<8x16x56xf32>
    %496 = arith.mulf %495, %493 : vector<8x16x56xf32>
    %497 = arith.addf %491, %496 : vector<8x16x56xf32>
    %c8_46 = arith.constant 8 : index
    %c4_47 = arith.constant 4 : index
    %c0_48 = arith.constant 0 : index
    %498 = vector.load %arg13[%c8_46, %c4_47, %c0_48] : memref<22x22x56xf32, #tpu.memory_space<vmem>>, vector<14x16x56xf32>
    %499 = vector.extract_strided_slice %14 {offsets = [4, 0], sizes = [1, 56], strides = [1, 1]} : vector<49x56xf32> to vector<1x56xf32>
    %500 = vector.extract_strided_slice %498 {offsets = [0, 0, 0], sizes = [8, 16, 56], strides = [1, 1, 1]} : vector<14x16x56xf32> to vector<8x16x56xf32>
    %501 = vector.shape_cast %499 : vector<1x56xf32> to vector<1x1x56xf32>
    %502 = vector.broadcast %501 : vector<1x1x56xf32> to vector<8x16x56xf32>
    %503 = arith.mulf %502, %500 : vector<8x16x56xf32>
    %504 = arith.addf %497, %503 : vector<8x16x56xf32>
    %505 = vector.extract_strided_slice %14 {offsets = [11, 0], sizes = [1, 56], strides = [1, 1]} : vector<49x56xf32> to vector<1x56xf32>
    %506 = vector.extract_strided_slice %498 {offsets = [1, 0, 0], sizes = [8, 16, 56], strides = [1, 1, 1]} : vector<14x16x56xf32> to vector<8x16x56xf32>
    %507 = vector.shape_cast %505 : vector<1x56xf32> to vector<1x1x56xf32>
    %508 = vector.broadcast %507 : vector<1x1x56xf32> to vector<8x16x56xf32>
    %509 = arith.mulf %508, %506 : vector<8x16x56xf32>
    %510 = arith.addf %504, %509 : vector<8x16x56xf32>
    %511 = vector.extract_strided_slice %14 {offsets = [18, 0], sizes = [1, 56], strides = [1, 1]} : vector<49x56xf32> to vector<1x56xf32>
    %512 = vector.extract_strided_slice %498 {offsets = [2, 0, 0], sizes = [8, 16, 56], strides = [1, 1, 1]} : vector<14x16x56xf32> to vector<8x16x56xf32>
    %513 = vector.shape_cast %511 : vector<1x56xf32> to vector<1x1x56xf32>
    %514 = vector.broadcast %513 : vector<1x1x56xf32> to vector<8x16x56xf32>
    %515 = arith.mulf %514, %512 : vector<8x16x56xf32>
    %516 = arith.addf %510, %515 : vector<8x16x56xf32>
    %517 = vector.extract_strided_slice %14 {offsets = [25, 0], sizes = [1, 56], strides = [1, 1]} : vector<49x56xf32> to vector<1x56xf32>
    %518 = vector.extract_strided_slice %498 {offsets = [3, 0, 0], sizes = [8, 16, 56], strides = [1, 1, 1]} : vector<14x16x56xf32> to vector<8x16x56xf32>
    %519 = vector.shape_cast %517 : vector<1x56xf32> to vector<1x1x56xf32>
    %520 = vector.broadcast %519 : vector<1x1x56xf32> to vector<8x16x56xf32>
    %521 = arith.mulf %520, %518 : vector<8x16x56xf32>
    %522 = arith.addf %516, %521 : vector<8x16x56xf32>
    %523 = vector.extract_strided_slice %14 {offsets = [32, 0], sizes = [1, 56], strides = [1, 1]} : vector<49x56xf32> to vector<1x56xf32>
    %524 = vector.extract_strided_slice %498 {offsets = [4, 0, 0], sizes = [8, 16, 56], strides = [1, 1, 1]} : vector<14x16x56xf32> to vector<8x16x56xf32>
    %525 = vector.shape_cast %523 : vector<1x56xf32> to vector<1x1x56xf32>
    %526 = vector.broadcast %525 : vector<1x1x56xf32> to vector<8x16x56xf32>
    %527 = arith.mulf %526, %524 : vector<8x16x56xf32>
    %528 = arith.addf %522, %527 : vector<8x16x56xf32>
    %529 = vector.extract_strided_slice %14 {offsets = [39, 0], sizes = [1, 56], strides = [1, 1]} : vector<49x56xf32> to vector<1x56xf32>
    %530 = vector.extract_strided_slice %498 {offsets = [5, 0, 0], sizes = [8, 16, 56], strides = [1, 1, 1]} : vector<14x16x56xf32> to vector<8x16x56xf32>
    %531 = vector.shape_cast %529 : vector<1x56xf32> to vector<1x1x56xf32>
    %532 = vector.broadcast %531 : vector<1x1x56xf32> to vector<8x16x56xf32>
    %533 = arith.mulf %532, %530 : vector<8x16x56xf32>
    %534 = arith.addf %528, %533 : vector<8x16x56xf32>
    %535 = vector.extract_strided_slice %14 {offsets = [46, 0], sizes = [1, 56], strides = [1, 1]} : vector<49x56xf32> to vector<1x56xf32>
    %536 = vector.extract_strided_slice %498 {offsets = [6, 0, 0], sizes = [8, 16, 56], strides = [1, 1, 1]} : vector<14x16x56xf32> to vector<8x16x56xf32>
    %537 = vector.shape_cast %535 : vector<1x56xf32> to vector<1x1x56xf32>
    %538 = vector.broadcast %537 : vector<1x1x56xf32> to vector<8x16x56xf32>
    %539 = arith.mulf %538, %536 : vector<8x16x56xf32>
    %540 = arith.addf %534, %539 : vector<8x16x56xf32>
    %c8_49 = arith.constant 8 : index
    %c5_50 = arith.constant 5 : index
    %c0_51 = arith.constant 0 : index
    %541 = vector.load %arg13[%c8_49, %c5_50, %c0_51] : memref<22x22x56xf32, #tpu.memory_space<vmem>>, vector<14x16x56xf32>
    %542 = vector.extract_strided_slice %14 {offsets = [5, 0], sizes = [1, 56], strides = [1, 1]} : vector<49x56xf32> to vector<1x56xf32>
    %543 = vector.extract_strided_slice %541 {offsets = [0, 0, 0], sizes = [8, 16, 56], strides = [1, 1, 1]} : vector<14x16x56xf32> to vector<8x16x56xf32>
    %544 = vector.shape_cast %542 : vector<1x56xf32> to vector<1x1x56xf32>
    %545 = vector.broadcast %544 : vector<1x1x56xf32> to vector<8x16x56xf32>
    %546 = arith.mulf %545, %543 : vector<8x16x56xf32>
    %547 = arith.addf %540, %546 : vector<8x16x56xf32>
    %548 = vector.extract_strided_slice %14 {offsets = [12, 0], sizes = [1, 56], strides = [1, 1]} : vector<49x56xf32> to vector<1x56xf32>
    %549 = vector.extract_strided_slice %541 {offsets = [1, 0, 0], sizes = [8, 16, 56], strides = [1, 1, 1]} : vector<14x16x56xf32> to vector<8x16x56xf32>
    %550 = vector.shape_cast %548 : vector<1x56xf32> to vector<1x1x56xf32>
    %551 = vector.broadcast %550 : vector<1x1x56xf32> to vector<8x16x56xf32>
    %552 = arith.mulf %551, %549 : vector<8x16x56xf32>
    %553 = arith.addf %547, %552 : vector<8x16x56xf32>
    %554 = vector.extract_strided_slice %14 {offsets = [19, 0], sizes = [1, 56], strides = [1, 1]} : vector<49x56xf32> to vector<1x56xf32>
    %555 = vector.extract_strided_slice %541 {offsets = [2, 0, 0], sizes = [8, 16, 56], strides = [1, 1, 1]} : vector<14x16x56xf32> to vector<8x16x56xf32>
    %556 = vector.shape_cast %554 : vector<1x56xf32> to vector<1x1x56xf32>
    %557 = vector.broadcast %556 : vector<1x1x56xf32> to vector<8x16x56xf32>
    %558 = arith.mulf %557, %555 : vector<8x16x56xf32>
    %559 = arith.addf %553, %558 : vector<8x16x56xf32>
    %560 = vector.extract_strided_slice %14 {offsets = [26, 0], sizes = [1, 56], strides = [1, 1]} : vector<49x56xf32> to vector<1x56xf32>
    %561 = vector.extract_strided_slice %541 {offsets = [3, 0, 0], sizes = [8, 16, 56], strides = [1, 1, 1]} : vector<14x16x56xf32> to vector<8x16x56xf32>
    %562 = vector.shape_cast %560 : vector<1x56xf32> to vector<1x1x56xf32>
    %563 = vector.broadcast %562 : vector<1x1x56xf32> to vector<8x16x56xf32>
    %564 = arith.mulf %563, %561 : vector<8x16x56xf32>
    %565 = arith.addf %559, %564 : vector<8x16x56xf32>
    %566 = vector.extract_strided_slice %14 {offsets = [33, 0], sizes = [1, 56], strides = [1, 1]} : vector<49x56xf32> to vector<1x56xf32>
    %567 = vector.extract_strided_slice %541 {offsets = [4, 0, 0], sizes = [8, 16, 56], strides = [1, 1, 1]} : vector<14x16x56xf32> to vector<8x16x56xf32>
    %568 = vector.shape_cast %566 : vector<1x56xf32> to vector<1x1x56xf32>
    %569 = vector.broadcast %568 : vector<1x1x56xf32> to vector<8x16x56xf32>
    %570 = arith.mulf %569, %567 : vector<8x16x56xf32>
    %571 = arith.addf %565, %570 : vector<8x16x56xf32>
    %572 = vector.extract_strided_slice %14 {offsets = [40, 0], sizes = [1, 56], strides = [1, 1]} : vector<49x56xf32> to vector<1x56xf32>
    %573 = vector.extract_strided_slice %541 {offsets = [5, 0, 0], sizes = [8, 16, 56], strides = [1, 1, 1]} : vector<14x16x56xf32> to vector<8x16x56xf32>
    %574 = vector.shape_cast %572 : vector<1x56xf32> to vector<1x1x56xf32>
    %575 = vector.broadcast %574 : vector<1x1x56xf32> to vector<8x16x56xf32>
    %576 = arith.mulf %575, %573 : vector<8x16x56xf32>
    %577 = arith.addf %571, %576 : vector<8x16x56xf32>
    %578 = vector.extract_strided_slice %14 {offsets = [47, 0], sizes = [1, 56], strides = [1, 1]} : vector<49x56xf32> to vector<1x56xf32>
    %579 = vector.extract_strided_slice %541 {offsets = [6, 0, 0], sizes = [8, 16, 56], strides = [1, 1, 1]} : vector<14x16x56xf32> to vector<8x16x56xf32>
    %580 = vector.shape_cast %578 : vector<1x56xf32> to vector<1x1x56xf32>
    %581 = vector.broadcast %580 : vector<1x1x56xf32> to vector<8x16x56xf32>
    %582 = arith.mulf %581, %579 : vector<8x16x56xf32>
    %583 = arith.addf %577, %582 : vector<8x16x56xf32>
    %c8_52 = arith.constant 8 : index
    %c6_53 = arith.constant 6 : index
    %c0_54 = arith.constant 0 : index
    %584 = vector.load %arg13[%c8_52, %c6_53, %c0_54] : memref<22x22x56xf32, #tpu.memory_space<vmem>>, vector<14x16x56xf32>
    %585 = vector.extract_strided_slice %14 {offsets = [6, 0], sizes = [1, 56], strides = [1, 1]} : vector<49x56xf32> to vector<1x56xf32>
    %586 = vector.extract_strided_slice %584 {offsets = [0, 0, 0], sizes = [8, 16, 56], strides = [1, 1, 1]} : vector<14x16x56xf32> to vector<8x16x56xf32>
    %587 = vector.shape_cast %585 : vector<1x56xf32> to vector<1x1x56xf32>
    %588 = vector.broadcast %587 : vector<1x1x56xf32> to vector<8x16x56xf32>
    %589 = arith.mulf %588, %586 : vector<8x16x56xf32>
    %590 = arith.addf %583, %589 : vector<8x16x56xf32>
    %591 = vector.extract_strided_slice %14 {offsets = [13, 0], sizes = [1, 56], strides = [1, 1]} : vector<49x56xf32> to vector<1x56xf32>
    %592 = vector.extract_strided_slice %584 {offsets = [1, 0, 0], sizes = [8, 16, 56], strides = [1, 1, 1]} : vector<14x16x56xf32> to vector<8x16x56xf32>
    %593 = vector.shape_cast %591 : vector<1x56xf32> to vector<1x1x56xf32>
    %594 = vector.broadcast %593 : vector<1x1x56xf32> to vector<8x16x56xf32>
    %595 = arith.mulf %594, %592 : vector<8x16x56xf32>
    %596 = arith.addf %590, %595 : vector<8x16x56xf32>
    %597 = vector.extract_strided_slice %14 {offsets = [20, 0], sizes = [1, 56], strides = [1, 1]} : vector<49x56xf32> to vector<1x56xf32>
    %598 = vector.extract_strided_slice %584 {offsets = [2, 0, 0], sizes = [8, 16, 56], strides = [1, 1, 1]} : vector<14x16x56xf32> to vector<8x16x56xf32>
    %599 = vector.shape_cast %597 : vector<1x56xf32> to vector<1x1x56xf32>
    %600 = vector.broadcast %599 : vector<1x1x56xf32> to vector<8x16x56xf32>
    %601 = arith.mulf %600, %598 : vector<8x16x56xf32>
    %602 = arith.addf %596, %601 : vector<8x16x56xf32>
    %603 = vector.extract_strided_slice %14 {offsets = [27, 0], sizes = [1, 56], strides = [1, 1]} : vector<49x56xf32> to vector<1x56xf32>
    %604 = vector.extract_strided_slice %584 {offsets = [3, 0, 0], sizes = [8, 16, 56], strides = [1, 1, 1]} : vector<14x16x56xf32> to vector<8x16x56xf32>
    %605 = vector.shape_cast %603 : vector<1x56xf32> to vector<1x1x56xf32>
    %606 = vector.broadcast %605 : vector<1x1x56xf32> to vector<8x16x56xf32>
    %607 = arith.mulf %606, %604 : vector<8x16x56xf32>
    %608 = arith.addf %602, %607 : vector<8x16x56xf32>
    %609 = vector.extract_strided_slice %14 {offsets = [34, 0], sizes = [1, 56], strides = [1, 1]} : vector<49x56xf32> to vector<1x56xf32>
    %610 = vector.extract_strided_slice %584 {offsets = [4, 0, 0], sizes = [8, 16, 56], strides = [1, 1, 1]} : vector<14x16x56xf32> to vector<8x16x56xf32>
    %611 = vector.shape_cast %609 : vector<1x56xf32> to vector<1x1x56xf32>
    %612 = vector.broadcast %611 : vector<1x1x56xf32> to vector<8x16x56xf32>
    %613 = arith.mulf %612, %610 : vector<8x16x56xf32>
    %614 = arith.addf %608, %613 : vector<8x16x56xf32>
    %615 = vector.extract_strided_slice %14 {offsets = [41, 0], sizes = [1, 56], strides = [1, 1]} : vector<49x56xf32> to vector<1x56xf32>
    %616 = vector.extract_strided_slice %584 {offsets = [5, 0, 0], sizes = [8, 16, 56], strides = [1, 1, 1]} : vector<14x16x56xf32> to vector<8x16x56xf32>
    %617 = vector.shape_cast %615 : vector<1x56xf32> to vector<1x1x56xf32>
    %618 = vector.broadcast %617 : vector<1x1x56xf32> to vector<8x16x56xf32>
    %619 = arith.mulf %618, %616 : vector<8x16x56xf32>
    %620 = arith.addf %614, %619 : vector<8x16x56xf32>
    %621 = vector.extract_strided_slice %14 {offsets = [48, 0], sizes = [1, 56], strides = [1, 1]} : vector<49x56xf32> to vector<1x56xf32>
    %622 = vector.extract_strided_slice %584 {offsets = [6, 0, 0], sizes = [8, 16, 56], strides = [1, 1, 1]} : vector<14x16x56xf32> to vector<8x16x56xf32>
    %623 = vector.shape_cast %621 : vector<1x56xf32> to vector<1x1x56xf32>
    %624 = vector.broadcast %623 : vector<1x1x56xf32> to vector<8x16x56xf32>
    %625 = arith.mulf %624, %622 : vector<8x16x56xf32>
    %626 = arith.addf %620, %625 : vector<8x16x56xf32>
    %627 = vector.shape_cast %15 : vector<1x56xf32> to vector<1x1x56xf32>
    %628 = vector.broadcast %627 : vector<1x1x56xf32> to vector<8x16x56xf32>
    %629 = arith.addf %626, %628 : vector<8x16x56xf32>
    %cst_55 = arith.constant 5.000000e-01 : f32
    %630 = vector.broadcast %cst_55 : f32 to vector<8x16x56xf32>
    %631 = arith.mulf %629, %630 : vector<8x16x56xf32>
    %632 = vector.shape_cast %631 : vector<8x16x56xf32> to vector<128x56xf32>
    %633 = tpu.transpose %632, [1, 0] : vector<128x56xf32> -> vector<56x128xf32>
    %634 = tpu.concatenate %324, %633 in 1 : vector<56x128xf32>, vector<56x128xf32> -> vector<56x256xf32>
    %635 = vector.extract_strided_slice %634 {offsets = [0, 0], sizes = [8, 256], strides = [1, 1]} : vector<56x256xf32> to vector<8x256xf32>
    %636 = arith.mulf %7, %635 : vector<8x256xf32>
    %c0_56 = arith.constant 0 : index
    %c0_57 = arith.constant 0 : index
    %637 = vector.load %arg6[%c0_56, %c0_57] : memref<16x8xf32, #tpu.memory_space<vmem>>, vector<16x8xf32>
    %cst_58 = arith.constant dense<0.000000e+00> : vector<16x256xf32>
    %638 = tpu.matmul %637, %636, %cst_58 {dimension_numbers = #tpu.dot_dimension_numbers<[1], [0], [0], [1], [0, 0, 1, 1], [], []>} : vector<16x8xf32>, vector<8x256xf32>, vector<16x256xf32> -> vector<16x256xf32>
    %c0_59 = arith.constant 0 : index
    %c0_60 = arith.constant 0 : index
    %639 = vector.load %arg8[%c0_59, %c0_60] : memref<16x1xf32, #tpu.memory_space<vmem>>, vector<16x1xf32>
    %640 = vector.broadcast %639 : vector<16x1xf32> to vector<16x256xf32>
    %641 = arith.addf %638, %640 : vector<16x256xf32>
    %642 = vector.extract_strided_slice %634 {offsets = [8, 0], sizes = [16, 256], strides = [1, 1]} : vector<56x256xf32> to vector<16x256xf32>
    %643 = arith.mulf %641, %642 : vector<16x256xf32>
    %c0_61 = arith.constant 0 : index
    %c0_62 = arith.constant 0 : index
    %644 = vector.load %arg7[%c0_61, %c0_62] : memref<32x16xf32, #tpu.memory_space<vmem>>, vector<32x16xf32>
    %cst_63 = arith.constant dense<0.000000e+00> : vector<32x256xf32>
    %645 = tpu.matmul %644, %643, %cst_63 {dimension_numbers = #tpu.dot_dimension_numbers<[1], [0], [0], [1], [0, 0, 1, 1], [], []>} : vector<32x16xf32>, vector<16x256xf32>, vector<32x256xf32> -> vector<32x256xf32>
    %c0_64 = arith.constant 0 : index
    %c0_65 = arith.constant 0 : index
    %646 = vector.load %arg9[%c0_64, %c0_65] : memref<32x1xf32, #tpu.memory_space<vmem>>, vector<32x1xf32>
    %647 = vector.broadcast %646 : vector<32x1xf32> to vector<32x256xf32>
    %648 = arith.addf %645, %647 : vector<32x256xf32>
    %649 = vector.extract_strided_slice %634 {offsets = [24, 0], sizes = [32, 256], strides = [1, 1]} : vector<56x256xf32> to vector<32x256xf32>
    %650 = arith.mulf %648, %649 : vector<32x256xf32>
    %c0_66 = arith.constant 0 : index
    %c0_67 = arith.constant 0 : index
    %651 = vector.load %arg10[%c0_66, %c0_67] : memref<32x32xf32, #tpu.memory_space<vmem>>, vector<32x32xf32>
    %cst_68 = arith.constant dense<0.000000e+00> : vector<32x256xf32>
    %652 = tpu.matmul %651, %650, %cst_68 {dimension_numbers = #tpu.dot_dimension_numbers<[1], [0], [0], [1], [0, 0, 1, 1], [], []>} : vector<32x32xf32>, vector<32x256xf32>, vector<32x256xf32> -> vector<32x256xf32>
    %c0_69 = arith.constant 0 : index
    %c0_70 = arith.constant 0 : index
    %653 = vector.load %arg11[%c0_69, %c0_70] : memref<32x1xf32, #tpu.memory_space<vmem>>, vector<32x1xf32>
    %654 = vector.broadcast %653 : vector<32x1xf32> to vector<32x256xf32>
    %655 = arith.addf %652, %654 : vector<32x256xf32>
    %c0_71 = arith.constant 0 : index
    %c0_72 = arith.constant 0 : index
    %c0_73 = arith.constant 0 : index
    %656 = vector.load %arg12[%c0_71, %c0_72, %c0_73] : memref<1x32x256xf32, #tpu.memory_space<vmem>>, vector<1x32x256xf32>
    %657 = vector.shape_cast %656 : vector<1x32x256xf32> to vector<32x256xf32>
    %658 = vector.shape_cast %655 : vector<32x256xf32> to vector<1x32x256xf32>
    tpu.vector_store %arg12[%c0_71, %c0_72, %c0_73], %658 {strides = array<i32>} : memref<1x32x256xf32, #tpu.memory_space<vmem>>, vector<1x32x256xf32>,
    return
  }
  func.func @transform_0(%arg0: i32) -> (i32, i32, i32) {
    %c0_i32 = arith.constant 0 : i32
    %c0_i32_0 = arith.constant 0 : i32
    %c0_i32_1 = arith.constant 0 : i32
    return %arg0, %c0_i32, %c0_i32_0 : i32, i32, i32
  }
  func.func @transform_1(%arg0: i32) -> (i32, i32) {
    %c0_i32 = arith.constant 0 : i32
    %c0_i32_0 = arith.constant 0 : i32
    %c0_i32_1 = arith.constant 0 : i32
    return %c0_i32, %c0_i32_0 : i32, i32
  }
  func.func @transform_2(%arg0: i32) -> (i32, i32) {
    %c0_i32 = arith.constant 0 : i32
    %c0_i32_0 = arith.constant 0 : i32
    %c0_i32_1 = arith.constant 0 : i32
    return %c0_i32, %c0_i32_0 : i32, i32
  }
  func.func @transform_3(%arg0: i32) -> (i32, i32) {
    %c0_i32 = arith.constant 0 : i32
    %c0_i32_0 = arith.constant 0 : i32
    %c0_i32_1 = arith.constant 0 : i32
    return %c0_i32, %c0_i32_0 : i32, i32
  }
  func.func @transform_4(%arg0: i32) -> (i32, i32) {
    %c0_i32 = arith.constant 0 : i32
    %c0_i32_0 = arith.constant 0 : i32
    %c0_i32_1 = arith.constant 0 : i32
    return %c0_i32, %c0_i32_0 : i32, i32
  }
  func.func @transform_5(%arg0: i32) -> (i32, i32) {
    %c0_i32 = arith.constant 0 : i32
    %c0_i32_0 = arith.constant 0 : i32
    %c0_i32_1 = arith.constant 0 : i32
    return %c0_i32, %c0_i32_0 : i32, i32
  }
  func.func @transform_6(%arg0: i32) -> (i32, i32) {
    %c0_i32 = arith.constant 0 : i32
    %c0_i32_0 = arith.constant 0 : i32
    %c0_i32_1 = arith.constant 0 : i32
    return %c0_i32, %c0_i32_0 : i32, i32
  }
  func.func @transform_7(%arg0: i32) -> (i32, i32) {
    %c0_i32 = arith.constant 0 : i32
    %c0_i32_0 = arith.constant 0 : i32
    %c0_i32_1 = arith.constant 0 : i32
    return %c0_i32, %c0_i32_0 : i32, i32
  }
  func.func @transform_8(%arg0: i32) -> (i32, i32) {
    %c0_i32 = arith.constant 0 : i32
    %c0_i32_0 = arith.constant 0 : i32
    %c0_i32_1 = arith.constant 0 : i32
    return %c0_i32, %c0_i32_0 : i32, i32
  }
  func.func @transform_9(%arg0: i32) -> (i32, i32) {
    %c0_i32 = arith.constant 0 : i32
    %c0_i32_0 = arith.constant 0 : i32
    %c0_i32_1 = arith.constant 0 : i32
    return %c0_i32, %c0_i32_0 : i32, i32
  }
  func.func @transform_10(%arg0: i32) -> (i32, i32) {
    %c0_i32 = arith.constant 0 : i32
    %c0_i32_0 = arith.constant 0 : i32
    %c0_i32_1 = arith.constant 0 : i32
    return %c0_i32, %c0_i32_0 : i32, i32
  }
  func.func @transform_11(%arg0: i32) -> (i32, i32, i32) {
    %c0_i32 = arith.constant 0 : i32
    %c0_i32_0 = arith.constant 0 : i32
    %c0_i32_1 = arith.constant 0 : i32
    return %arg0, %c0_i32, %c0_i32_0 : i32, i32, i32
  }
}

</mosaic_0001>

<llo_original>
// kernel: tpu_custom_call.1
$region0: #{tpu_custom_call.1}
  #allocation0 [shape = 'u32[]', space=smem, size = 0x4, offset = 0x4, fixed_abs, tag = 'smem constant byte address 0x4 - core index']
  #allocation1 [shape = 'u32[144,128]{1,0:T(1,128)}', space=vmem, size = 0x12000, scoped, tag = 'internal scratch']
  #allocation2 [shape = 'f32[22,22,56]{2,1,0:T(8,128)}', space=vmem, size = 0x42000, scoped, tag = 'scratch operand']
  %s0 = inlined_call_operand.vmem [shape: f32[2,32,256], index: 0, kind: input, shape index: {}]
  %s1 = inlined_call_operand.vmem [shape: f32[64,32], index: 1, kind: input, shape index: {}]
  %s2 = inlined_call_operand.vmem [shape: f32[64,1], index: 2, kind: input, shape index: {}]
  %s3 = inlined_call_operand.vmem [shape: f32[49,56], index: 3, kind: input, shape index: {}]
  %s4 = inlined_call_operand.vmem [shape: f32[1,56], index: 4, kind: input, shape index: {}]
  %s5 = inlined_call_operand.vmem [shape: f32[16,8], index: 5, kind: input, shape index: {}]
  %s6 = inlined_call_operand.vmem [shape: f32[32,16], index: 6, kind: input, shape index: {}]
  %s7 = inlined_call_operand.vmem [shape: f32[16,1], index: 7, kind: input, shape index: {}]
  %s8 = inlined_call_operand.vmem [shape: f32[32,1], index: 8, kind: input, shape index: {}]
  %s9 = inlined_call_operand.vmem [shape: f32[32,32], index: 9, kind: input, shape index: {}]
  %s10 = inlined_call_operand.vmem [shape: f32[32,1], index: 10, kind: input, shape index: {}]
  %s11 = inlined_call_operand.hbm [shape: f32[2,32,256], index: 11, kind: output, shape index: {}]
  %s12 = sld [smem:[#allocation0]]
  $region77: #{tpu_custom_call.1} parent=0
    _
  %s14 = ssub.s32 1, %s12
  %s15 = scalar_select 0, %s14, %s12
  $region1: #{tpu_custom_call.1} parent=0
    #allocation3 [shape = 'u8[65536]{0}', space=vmem, size = 0x10000, scoped, tag = 'output window, operand 0']
    #allocation4 [shape = 's32[2]{0}', space=sflag, size = 0x8, scoped, tag = 'scoped memory for tpu_custom_call.1']
    %16 = vsyncpa [#allocation4], 0
    %s17 = scalar_lea.sflag [#allocation4], 1
    %18 = vsyncpa %s17, 0
    loop: start=0, step=1, limit=4
    $region2: #{tpu_custom_call.1} parent=1 // loop_pre_header
      _
    $region3: #{tpu_custom_call.1} parent=1 // loop_header
      %s20 = sphi 0, %s24
      %p21 = scmp.ge.s32.totalorder %s20, 4
      %s30 = sphi 0, %s32
      %s33 = sphi 0, %s30
      %s34 = sphi 0, %s33
      %s50 = sphi 0, %s34
      %s54 = sphi 0, %s54
      %s56 = sphi 0, %s54
      %s57 = sphi 0, %s56
      %s71 = sphi 0, %s57
      %s75 = sphi 0, %s75
      %s77 = sphi 0, %s75
      %s78 = sphi 0, %s77
      %s92 = sphi 0, %s78
      %s96 = sphi 0, %s96
      %s98 = sphi 0, %s96
      %s99 = sphi 0, %s98
      %s113 = sphi 0, %s99
      %s117 = sphi 0, %s117
      %s119 = sphi 0, %s117
      %s120 = sphi 0, %s119
      %s134 = sphi 0, %s120
      %s138 = sphi 0, %s138
      %s140 = sphi 0, %s138
      %s141 = sphi 0, %s140
      %s155 = sphi 0, %s141
      %s159 = sphi 0, %s159
      %s161 = sphi 0, %s159
      %s162 = sphi 0, %s161
      %s176 = sphi 0, %s162
      %s180 = sphi 0, %s180
      %s182 = sphi 0, %s180
      %s183 = sphi 0, %s182
      %s197 = sphi 0, %s183
      %s201 = sphi 0, %s201
      %s203 = sphi 0, %s201
      %s204 = sphi 0, %s203
      %s218 = sphi 0, %s204
      %s222 = sphi 0, %s222
      %s224 = sphi 0, %s222
      %s225 = sphi 0, %s224
      %s239 = sphi 0, %s225
      %s243 = sphi 0, %s243
      %s245 = sphi 0, %s243
      %s246 = sphi 0, %s245
      %s260 = sphi 0, %s246
      %s266 = sphi 0, %s268
      %s269 = sphi 0, %s266
      %s270 = sphi 0, %s269
      %s286 = sphi 0, %s270
    $region4: #{tpu_custom_call.1} parent=1 // loop_header_branch
      %23 = sbr.rel (%p21) target = $region8
    $region5: #{tpu_custom_call.1} parent=1 // loop_body
      %s25 = ssub.s32 %s20, 1
      %s26 = ssub.s32 %s20, 2
      %s27 = sadd.s32 %s20, 1
      %s28 = ssub.s32 %s20, %s27
      %p29 = scmp.eq.s32.totalorder %s28, 0
      %s31 = sadd.s32 %s30, 1
      %s32 = scalar_select %p29, %s30, %s31
      %p35 = pneg %p29
      %p36 = scmp.eq.s32.totalorder %s20, 1
      %p37 = por %p35, %p36
      %p38 = scmp.ne.s32.totalorder %s30, %s33
      %p39 = scmp.eq.s32.totalorder %s20, 0
      %p40 = por %p38, %p39
      %p41 = scmp.ne.s32.totalorder %s30, %s33
      %p42 = scmp.eq.s32.totalorder %s25, 1
      %p43 = por %p41, %p42
      %p44 = scmp.ne.s32.totalorder %s33, %s34
      %p45 = scmp.eq.s32.totalorder %s25, 0
      %p46 = por %p44, %p45
      %p47 = scmp.ne.s32.totalorder %s33, %s34
      %p48 = scmp.eq.s32.totalorder %s26, 1
      %p49 = por %p47, %p48
      %p51 = scmp.ne.s32.totalorder %s34, %s50
      %p52 = scmp.eq.s32.totalorder %s26, 0
      %p53 = por %p51, %p52
      %s55 = sadd.s32 %s54, 1
      %p58 = scmp.eq.s32.totalorder %s20, 1
      %p59 = scmp.ne.s32.totalorder %s54, %s56
      %p60 = scmp.eq.s32.totalorder %s20, 0
      %p61 = por %p59, %p60
      %p62 = scmp.ne.s32.totalorder %s54, %s56
      %p63 = scmp.eq.s32.totalorder %s25, 1
      %p64 = por %p62, %p63
      %p65 = scmp.ne.s32.totalorder %s56, %s57
      %p66 = scmp.eq.s32.totalorder %s25, 0
      %p67 = por %p65, %p66
      %p68 = scmp.ne.s32.totalorder %s56, %s57
      %p69 = scmp.eq.s32.totalorder %s26, 1
      %p70 = por %p68, %p69
      %p72 = scmp.ne.s32.totalorder %s57, %s71
      %p73 = scmp.eq.s32.totalorder %s26, 0
      %p74 = por %p72, %p73
      %s76 = sadd.s32 %s75, 1
      %p79 = scmp.eq.s32.totalorder %s20, 1
      %p80 = scmp.ne.s32.totalorder %s75, %s77
      %p81 = scmp.eq.s32.totalorder %s20, 0
      %p82 = por %p80, %p81
      %p83 = scmp.ne.s32.totalorder %s75, %s77
      %p84 = scmp.eq.s32.totalorder %s25, 1
      %p85 = por %p83, %p84
      %p86 = scmp.ne.s32.totalorder %s77, %s78
      %p87 = scmp.eq.s32.totalorder %s25, 0
      %p88 = por %p86, %p87
      %p89 = scmp.ne.s32.totalorder %s77, %s78
      %p90 = scmp.eq.s32.totalorder %s26, 1
      %p91 = por %p89, %p90
      %p93 = scmp.ne.s32.totalorder %s78, %s92
      %p94 = scmp.eq.s32.totalorder %s26, 0
      %p95 = por %p93, %p94
      %s97 = sadd.s32 %s96, 1
      %p100 = scmp.eq.s32.totalorder %s20, 1
      %p101 = scmp.ne.s32.totalorder %s96, %s98
      %p102 = scmp.eq.s32.totalorder %s20, 0
      %p103 = por %p101, %p102
      %p104 = scmp.ne.s32.totalorder %s96, %s98
      %p105 = scmp.eq.s32.totalorder %s25, 1
      %p106 = por %p104, %p105
      %p107 = scmp.ne.s32.totalorder %s98, %s99
      %p108 = scmp.eq.s32.totalorder %s25, 0
      %p109 = por %p107, %p108
      %p110 = scmp.ne.s32.totalorder %s98, %s99
      %p111 = scmp.eq.s32.totalorder %s26, 1
      %p112 = por %p110, %p111
      %p114 = scmp.ne.s32.totalorder %s99, %s113
      %p115 = scmp.eq.s32.totalorder %s26, 0
      %p116 = por %p114, %p115
      %s118 = sadd.s32 %s117, 1
      %p121 = scmp.eq.s32.totalorder %s20, 1
      %p122 = scmp.ne.s32.totalorder %s117, %s119
      %p123 = scmp.eq.s32.totalorder %s20, 0
      %p124 = por %p122, %p123
      %p125 = scmp.ne.s32.totalorder %s117, %s119
      %p126 = scmp.eq.s32.totalorder %s25, 1
      %p127 = por %p125, %p126
      %p128 = scmp.ne.s32.totalorder %s119, %s120
      %p129 = scmp.eq.s32.totalorder %s25, 0
      %p130 = por %p128, %p129
      %p131 = scmp.ne.s32.totalorder %s119, %s120
      %p132 = scmp.eq.s32.totalorder %s26, 1
      %p133 = por %p131, %p132
      %p135 = scmp.ne.s32.totalorder %s120, %s134
      %p136 = scmp.eq.s32.totalorder %s26, 0
      %p137 = por %p135, %p136
      %s139 = sadd.s32 %s138, 1
      %p142 = scmp.eq.s32.totalorder %s20, 1
      %p143 = scmp.ne.s32.totalorder %s138, %s140
      %p144 = scmp.eq.s32.totalorder %s20, 0
      %p145 = por %p143, %p144
      %p146 = scmp.ne.s32.totalorder %s138, %s140
      %p147 = scmp.eq.s32.totalorder %s25, 1
      %p148 = por %p146, %p147
      %p149 = scmp.ne.s32.totalorder %s140, %s141
      %p150 = scmp.eq.s32.totalorder %s25, 0
      %p151 = por %p149, %p150
      %p152 = scmp.ne.s32.totalorder %s140, %s141
      %p153 = scmp.eq.s32.totalorder %s26, 1
      %p154 = por %p152, %p153
      %p156 = scmp.ne.s32.totalorder %s141, %s155
      %p157 = scmp.eq.s32.totalorder %s26, 0
      %p158 = por %p156, %p157
      %s160 = sadd.s32 %s159, 1
      %p163 = scmp.eq.s32.totalorder %s20, 1
      %p164 = scmp.ne.s32.totalorder %s159, %s161
      %p165 = scmp.eq.s32.totalorder %s20, 0
      %p166 = por %p164, %p165
      %p167 = scmp.ne.s32.totalorder %s159, %s161
      %p168 = scmp.eq.s32.totalorder %s25, 1
      %p169 = por %p167, %p168
      %p170 = scmp.ne.s32.totalorder %s161, %s162
      %p171 = scmp.eq.s32.totalorder %s25, 0
      %p172 = por %p170, %p171
      %p173 = scmp.ne.s32.totalorder %s161, %s162
      %p174 = scmp.eq.s32.totalorder %s26, 1
      %p175 = por %p173, %p174
      %p177 = scmp.ne.s32.totalorder %s162, %s176
      %p178 = scmp.eq.s32.totalorder %s26, 0
      %p179 = por %p177, %p178
      %s181 = sadd.s32 %s180, 1
      %p184 = scmp.eq.s32.totalorder %s20, 1
      %p185 = scmp.ne.s32.totalorder %s180, %s182
      %p186 = scmp.eq.s32.totalorder %s20, 0
      %p187 = por %p185, %p186
      %p188 = scmp.ne.s32.totalorder %s180, %s182
      %p189 = scmp.eq.s32.totalorder %s25, 1
      %p190 = por %p188, %p189
      %p191 = scmp.ne.s32.totalorder %s182, %s183
      %p192 = scmp.eq.s32.totalorder %s25, 0
      %p193 = por %p191, %p192
      %p194 = scmp.ne.s32.totalorder %s182, %s183
      %p195 = scmp.eq.s32.totalorder %s26, 1
      %p196 = por %p194, %p195
      %p198 = scmp.ne.s32.totalorder %s183, %s197
      %p199 = scmp.eq.s32.totalorder %s26, 0
      %p200 = por %p198, %p199
      %s202 = sadd.s32 %s201, 1
      %p205 = scmp.eq.s32.totalorder %s20, 1
      %p206 = scmp.ne.s32.totalorder %s201, %s203
      %p207 = scmp.eq.s32.totalorder %s20, 0
      %p208 = por %p206, %p207
      %p209 = scmp.ne.s32.totalorder %s201, %s203
      %p210 = scmp.eq.s32.totalorder %s25, 1
      %p211 = por %p209, %p210
      %p212 = scmp.ne.s32.totalorder %s203, %s204
      %p213 = scmp.eq.s32.totalorder %s25, 0
      %p214 = por %p212, %p213
      %p215 = scmp.ne.s32.totalorder %s203, %s204
      %p216 = scmp.eq.s32.totalorder %s26, 1
      %p217 = por %p215, %p216
      %p219 = scmp.ne.s32.totalorder %s204, %s218
      %p220 = scmp.eq.s32.totalorder %s26, 0
      %p221 = por %p219, %p220
      %s223 = sadd.s32 %s222, 1
      %p226 = scmp.eq.s32.totalorder %s20, 1
      %p227 = scmp.ne.s32.totalorder %s222, %s224
      %p228 = scmp.eq.s32.totalorder %s20, 0
      %p229 = por %p227, %p228
      %p230 = scmp.ne.s32.totalorder %s222, %s224
      %p231 = scmp.eq.s32.totalorder %s25, 1
      %p232 = por %p230, %p231
      %p233 = scmp.ne.s32.totalorder %s224, %s225
      %p234 = scmp.eq.s32.totalorder %s25, 0
      %p235 = por %p233, %p234
      %p236 = scmp.ne.s32.totalorder %s224, %s225
      %p237 = scmp.eq.s32.totalorder %s26, 1
      %p238 = por %p236, %p237
      %p240 = scmp.ne.s32.totalorder %s225, %s239
      %p241 = scmp.eq.s32.totalorder %s26, 0
      %p242 = por %p240, %p241
      %s244 = sadd.s32 %s243, 1
      %p247 = scmp.eq.s32.totalorder %s20, 1
      %p248 = scmp.ne.s32.totalorder %s243, %s245
      %p249 = scmp.eq.s32.totalorder %s20, 0
      %p250 = por %p248, %p249
      %p251 = scmp.ne.s32.totalorder %s243, %s245
      %p252 = scmp.eq.s32.totalorder %s25, 1
      %p253 = por %p251, %p252
      %p254 = scmp.ne.s32.totalorder %s245, %s246
      %p255 = scmp.eq.s32.totalorder %s25, 0
      %p256 = por %p254, %p255
      %p257 = scmp.ne.s32.totalorder %s245, %s246
      %p258 = scmp.eq.s32.totalorder %s26, 1
      %p259 = por %p257, %p258
      %p261 = scmp.ne.s32.totalorder %s246, %s260
      %p262 = scmp.eq.s32.totalorder %s26, 0
      %p263 = por %p261, %p262
      %s264 = ssub.s32 %s20, %s27
      %p265 = scmp.eq.s32.totalorder %s264, 0
      %s267 = sadd.s32 %s266, 1
      %s268 = scalar_select %p265, %s266, %s267
      %p271 = pneg %p265
      %p272 = scmp.eq.s32.totalorder %s20, 1
      %p273 = por %p271, %p272
      %p274 = scmp.ne.s32.totalorder %s266, %s269
      %p275 = scmp.eq.s32.totalorder %s20, 0
      %p276 = por %p274, %p275
      %p277 = scmp.ne.s32.totalorder %s266, %s269
      %p278 = scmp.eq.s32.totalorder %s25, 1
      %p279 = por %p277, %p278
      %p280 = scmp.ne.s32.totalorder %s269, %s270
      %p281 = scmp.eq.s32.totalorder %s25, 0
      %p282 = por %p280, %p281
      %p283 = scmp.ne.s32.totalorder %s269, %s270
      %p284 = scmp.eq.s32.totalorder %s26, 1
      %p285 = por %p283, %p284
      %p287 = scmp.ne.s32.totalorder %s270, %s286
      %p288 = scmp.eq.s32.totalorder %s26, 0
      %p289 = por %p287, %p288
      %p290 = scmp.le.s32.totalorder 1, %s20
      %p291 = scmp.lt.s32.totalorder %s20, 3
      %p292 = pnand %p290, %p291
      %p293 = pneg %p292
      // Predicated region
      $region9: #{tpu_custom_call.1} parent=5 // pred_check
        _
      $region10: #{tpu_custom_call.1} parent=5 // pred_check_branch
        %295 = sbr.rel (%p292) target = $region12
      $region11: #{tpu_custom_call.1} parent=5 // pred_region
        %s296 = ssub.s32 %s20, 1
        // Predicated region
        $region13: #{tpu_custom_call.1} parent=11 // pred_check
          %p297 = pneg %p67
        $region14: #{tpu_custom_call.1} parent=11 // pred_check_branch
          %299 = sbr.rel (%p297) target = $region16
        $region15: #{tpu_custom_call.1} parent=11 // pred_region
          _
        $region16: #{tpu_custom_call.1} parent=11 // pred_fallthru
          _
        // Predicated region
        $region17: #{tpu_custom_call.1} parent=11 // pred_check
          %p300 = pneg %p88
        $region18: #{tpu_custom_call.1} parent=11 // pred_check_branch
          %302 = sbr.rel (%p300) target = $region20
        $region19: #{tpu_custom_call.1} parent=11 // pred_region
          _
        $region20: #{tpu_custom_call.1} parent=11 // pred_fallthru
          _
        // Predicated region
        $region21: #{tpu_custom_call.1} parent=11 // pred_check
          %p303 = pneg %p109
        $region22: #{tpu_custom_call.1} parent=11 // pred_check_branch
          %305 = sbr.rel (%p303) target = $region24
        $region23: #{tpu_custom_call.1} parent=11 // pred_region
          _
        $region24: #{tpu_custom_call.1} parent=11 // pred_fallthru
          _
        // Predicated region
        $region25: #{tpu_custom_call.1} parent=11 // pred_check
          %p306 = pneg %p130
        $region26: #{tpu_custom_call.1} parent=11 // pred_check_branch
          %308 = sbr.rel (%p306) target = $region28
        $region27: #{tpu_custom_call.1} parent=11 // pred_region
          _
        $region28: #{tpu_custom_call.1} parent=11 // pred_fallthru
          _
        // Predicated region
        $region29: #{tpu_custom_call.1} parent=11 // pred_check
          %p309 = pneg %p151
        $region30: #{tpu_custom_call.1} parent=11 // pred_check_branch
          %311 = sbr.rel (%p309) target = $region32
        $region31: #{tpu_custom_call.1} parent=11 // pred_region
          _
        $region32: #{tpu_custom_call.1} parent=11 // pred_fallthru
          _
        // Predicated region
        $region33: #{tpu_custom_call.1} parent=11 // pred_check
          %p312 = pneg %p172
        $region34: #{tpu_custom_call.1} parent=11 // pred_check_branch
          %314 = sbr.rel (%p312) target = $region36
        $region35: #{tpu_custom_call.1} parent=11 // pred_region
          _
        $region36: #{tpu_custom_call.1} parent=11 // pred_fallthru
          _
        // Predicated region
        $region37: #{tpu_custom_call.1} parent=11 // pred_check
          %p315 = pneg %p193
        $region38: #{tpu_custom_call.1} parent=11 // pred_check_branch
          %317 = sbr.rel (%p315) target = $region40
        $region39: #{tpu_custom_call.1} parent=11 // pred_region
          _
        $region40: #{tpu_custom_call.1} parent=11 // pred_fallthru
          _
        // Predicated region
        $region41: #{tpu_custom_call.1} parent=11 // pred_check
          %p318 = pneg %p214
        $region42: #{tpu_custom_call.1} parent=11 // pred_check_branch
          %320 = sbr.rel (%p318) target = $region44
        $region43: #{tpu_custom_call.1} parent=11 // pred_region
          _
        $region44: #{tpu_custom_call.1} parent=11 // pred_fallthru
          _
        // Predicated region
        $region45: #{tpu_custom_call.1} parent=11 // pred_check
          %p321 = pneg %p235
        $region46: #{tpu_custom_call.1} parent=11 // pred_check_branch
          %323 = sbr.rel (%p321) target = $region48
        $region47: #{tpu_custom_call.1} parent=11 // pred_region
          _
        $region48: #{tpu_custom_call.1} parent=11 // pred_fallthru
          _
        // Predicated region
        $region49: #{tpu_custom_call.1} parent=11 // pred_check
          %p324 = pneg %p256
        $region50: #{tpu_custom_call.1} parent=11 // pred_check_branch
          %326 = sbr.rel (%p324) target = $region52
        $region51: #{tpu_custom_call.1} parent=11 // pred_region
          _
        $region52: #{tpu_custom_call.1} parent=11 // pred_fallthru
          _
      $region12: #{tpu_custom_call.1} parent=5 // pred_fallthru
        _
      %p327 = scmp.lt.s32.totalorder %s20, 2
      // Predicated region
      $region53: #{tpu_custom_call.1} parent=5 // pred_check
        %p328 = pneg %p327
      $region54: #{tpu_custom_call.1} parent=5 // pred_check_branch
        %330 = sbr.rel (%p328) target = $region56
      $region55: #{tpu_custom_call.1} parent=5 // pred_region
        // Predicated region
        $region57: #{tpu_custom_call.1} parent=55 // pred_check
          %p331 = pneg %p40
        $region58: #{tpu_custom_call.1} parent=55 // pred_check_branch
          %333 = sbr.rel (%p331) target = $region60
        $region59: #{tpu_custom_call.1} parent=55 // pred_region
          %p334 = scmp.lt.s32.totalorder %s20, 1
          %s335 = scalar_select %p334, %s20, 1
          %s336 = smul.addr %s335, 8
          %s337 = smul.addr %s336, 8
          %s338 = scalar_lea.vmem %s0, %s337
        $region60: #{tpu_custom_call.1} parent=55 // pred_fallthru
          _
      $region56: #{tpu_custom_call.1} parent=5 // pred_fallthru
        _
      %p339 = scmp.le.s32.totalorder 1, %s20
      %p340 = scmp.lt.s32.totalorder %s20, 3
      %p341 = pnand %p339, %p340
      %p342 = pneg %p341
      // Predicated region
      $region61: #{tpu_custom_call.1} parent=5 // pred_check
        _
      $region62: #{tpu_custom_call.1} parent=5 // pred_check_branch
        %344 = sbr.rel (%p341) target = $region64
      $region63: #{tpu_custom_call.1} parent=5 // pred_region
        %s345 = ssub.s32 %s20, 1
        %p346 = scmp.lt.s32.totalorder %s25, 1
        %s347 = scalar_select %p346, %s25, 1
        %s348 = smul.addr %s347, 8
        %s349 = smul.addr %s348, 8
        %s350 = scalar_lea.vmem %s0, %s349
        %p351 = pneg %p46
        %p352 = pneg %p43
        %p353 = pneg %p67
        %p354 = pneg %p64
        %p355 = pneg %p88
        %p356 = pneg %p85
        %p357 = pneg %p109
        %p358 = pneg %p106
        %p359 = pneg %p130
        %p360 = pneg %p127
        %p361 = pneg %p151
        %p362 = pneg %p148
        %p363 = pneg %p172
        %p364 = pneg %p169
        %p365 = pneg %p193
        %p366 = pneg %p190
        %p367 = pneg %p214
        %p368 = pneg %p211
        %p369 = pneg %p235
        %p370 = pneg %p232
        %p371 = pneg %p256
        %p372 = pneg %p253
        %p373 = pneg %p282
        %p374 = pneg %p279
        %s375 = sand.u32 %s269, 1
        %s376 = scalar_lea.sflag [#allocation4], %s375
        %s377 = sand.u32 %s269, 1
        %s378 = smul.addr %s377, 64
        %s379 = scalar_lea.vmem [#allocation3], %s378
        %p380 = scmp.lt.s32.totalorder %s25, 1
        %s381 = scalar_select %p380, %s25, 1
        %s382 = smul.addr %s381, 8
        %s383 = smul.addr %s382, 8
        %s384 = scalar_lea.vmem %s0, %s383
        %v385 = vld [vmem:[%s384] sm:$0xff]
        %v386 = vld [vmem:[%s384 + $0x8] sm:$0xff]
        %v387 = vld [vmem:[%s384 + $0x10] sm:$0xff]
        %v388 = vld [vmem:[%s384 + $0x18] sm:$0xff]
        %v389 = vld [vmem:[%s384 + $0x20] sm:$0xff]
        %v390 = vld [vmem:[%s384 + $0x28] sm:$0xff]
        %v391 = vld [vmem:[%s384 + $0x30] sm:$0xff]
        %v392 = vld [vmem:[%s384 + $0x38] sm:$0xff]
        %v393 = vld [vmem:[%s1] sm:$0xff]
        %v394 = vld [vmem:[%s1 + $0x8] sm:$0xff]
        %v395 = vld [vmem:[%s1 + $0x10] sm:$0xff]
        %v396 = vld [vmem:[%s1 + $0x18] sm:$0xff]
        %v397 = vld [vmem:[%s1 + $0x20] sm:$0xff]
        %v398 = vld [vmem:[%s1 + $0x28] sm:$0xff]
        %v399 = vld [vmem:[%s1 + $0x30] sm:$0xff]
        %v400 = vld [vmem:[%s1 + $0x38] sm:$0xff]
        %v401 = vld [vmem:[%s2] sm:$0xff]
        %v402 = vld [vmem:[%s2 + $0x8] sm:$0xff]
        %v403 = vld [vmem:[%s2 + $0x10] sm:$0xff]
        %v404 = vld [vmem:[%s2 + $0x18] sm:$0xff]
        %v405 = vld [vmem:[%s2 + $0x20] sm:$0xff]
        %v406 = vld [vmem:[%s2 + $0x28] sm:$0xff]
        %v407 = vld [vmem:[%s2 + $0x30] sm:$0xff]
        %v408 = vld [vmem:[%s2 + $0x38] sm:$0xff]
        %410 = vset.pattern.permute.xlu0 0
        %411 = vperm.xlu0 %410, %v401
        %v412 = vpop.permute.xlu0 %411
        %415 = vset.pattern.permute.xlu0 0
        %416 = vperm.xlu0 %415, %v402
        %v417 = vpop.permute.xlu0 %416
        %420 = vset.pattern.permute.xlu0 0
        %421 = vperm.xlu0 %420, %v403
        %v422 = vpop.permute.xlu0 %421
        %425 = vset.pattern.permute.xlu0 0
        %426 = vperm.xlu0 %425, %v404
        %v427 = vpop.permute.xlu0 %426
        %430 = vset.pattern.permute.xlu0 0
        %431 = vperm.xlu0 %430, %v405
        %v432 = vpop.permute.xlu0 %431
        %435 = vset.pattern.permute.xlu0 0
        %436 = vperm.xlu0 %435, %v406
        %v437 = vpop.permute.xlu0 %436
        %440 = vset.pattern.permute.xlu0 0
        %441 = vperm.xlu0 %440, %v407
        %v442 = vpop.permute.xlu0 %441
        %445 = vset.pattern.permute.xlu0 0
        %446 = vperm.xlu0 %445, %v408
        %v447 = vpop.permute.xlu0 %446
        %vm449 = vcmask 261120
        %v451 = vsel %vm449, %v393, 0
        %v454 = vsel %vm449, %v394, 0
        %v457 = vsel %vm449, %v395, 0
        %v460 = vsel %vm449, %v396, 0
        %v463 = vsel %vm449, %v397, 0
        %v466 = vsel %vm449, %v398, 0
        %v469 = vsel %vm449, %v399, 0
        %v472 = vsel %vm449, %v400, 0
        %474 = vmatprep.subr.mxu0 0.0
        %475 = vmatpush1.msra.mxu0 0.0
        %476 = vmatprep.subr.mxu0 0.0
        %477 = vmatpush1.msra.mxu0 0.0
        %478 = vmatprep.subr.mxu0 0.0
        %479 = vmatpush1.msra.mxu0 0.0
        %480 = vmatprep.subr.mxu0 0.0
        %481 = vmatpush1.msra.mxu0 0.0
        %482 = vmatprep.subr.mxu0 0.0
        %483 = vmatpush1.msra.mxu0 0.0
        %484 = vmatprep.subr.mxu0 0.0
        %485 = vmatpush1.msra.mxu0 0.0
        %486 = vmatprep.subr.mxu0 0.0
        %487 = vmatpush1.msra.mxu0 0.0
        %488 = vmatprep.subr.mxu0 0.0
        %489 = vmatpush1.msra.mxu0 0.0
        %490 = vmatprep.subr.mxu0 0.0
        %491 = vmatpush1.msra.mxu0 0.0
        %492 = vmatprep.subr.mxu0 0.0
        %493 = vmatpush1.msra.mxu0 0.0
        %494 = vmatprep.subr.mxu0 0.0
        %495 = vmatpush1.msra.mxu0 0.0
        %496 = vmatprep.subr.mxu0 0.0
        %497 = vmatpush1.msra.mxu0 0.0
        %498 = vmatprep.subr.mxu0 %v392
        %499 = vmatpush1.msra.mxu0 %v391
        %500 = vmatprep.subr.mxu0 %v390
        %501 = vmatpush1.msra.mxu0 %v389
        %502 = vmatprep.subr.mxu0 %v388
        %503 = vmatpush1.msra.mxu0 %v387
        %504 = vmatprep.subr.mxu0 %v386
        %505 = vmatpush1.msra.mxu0 %v385
        %506 = vmatprep.subr.mxu0 0.0
        %507 = vmatpush2.msra.mxu0 0.0
        %508 = vmatprep.subr.mxu0 0.0
        %509 = vmatpush2.msra.mxu0 0.0
        %510 = vmatprep.subr.mxu0 0.0
        %511 = vmatpush2.msra.mxu0 0.0
        %512 = vmatprep.subr.mxu0 0.0
        %513 = vmatpush2.msra.mxu0 0.0
        %514 = vmatprep.subr.mxu0 0.0
        %515 = vmatpush2.msra.mxu0 0.0
        %516 = vmatprep.subr.mxu0 0.0
        %517 = vmatpush2.msra.mxu0 0.0
        %518 = vmatprep.subr.mxu0 0.0
        %519 = vmatpush2.msra.mxu0 0.0
        %520 = vmatprep.subr.mxu0 0.0
        %521 = vmatpush2.msra.mxu0 0.0
        %522 = vmatprep.subr.mxu0 0.0
        %523 = vmatpush2.msra.mxu0 0.0
        %524 = vmatprep.subr.mxu0 0.0
        %525 = vmatpush2.msra.mxu0 0.0
        %526 = vmatprep.subr.mxu0 0.0
        %527 = vmatpush2.msra.mxu0 0.0
        %528 = vmatprep.subr.mxu0 0.0
        %529 = vmatpush2.msra.mxu0 0.0
        %530 = vmatprep.subr.mxu0 0.0
        %531 = vmatpush2.msra.mxu0 0.0
        %532 = vmatprep.subr.mxu0 0.0
        %533 = vmatpush2.msra.mxu0 0.0
        %534 = vmatprep.subr.mxu0 0.0
        %535 = vmatpush2.msra.mxu0 0.0
        %536 = vmatprep.subr.mxu0 0.0
        %537 = vmatpush2.msra.mxu0 0.0
        %538 = vmatprep.mubr.f32.mxu0 0.0
        %539 = vmatmul.mubr.f32.gmra.mxu0 %v451
        %v540 = vpop.f32.mrf.mxu0
        %v541 = vadd.f32 %v412, %v540
        %v542 = vpop.f32.mrf.mxu0
        %v543 = vadd.f32 %v412, %v542
        %544 = vmatprep.mubr.f32.mxu0 0.0
        %545 = vmatmul.mubr.f32.gmra.mxu0 %v454
        %v546 = vpop.f32.mrf.mxu0
        %v547 = vadd.f32 %v417, %v546
        %v548 = vpop.f32.mrf.mxu0
        %v549 = vadd.f32 %v417, %v548
        %550 = vmatprep.mubr.f32.mxu0 0.0
        %551 = vmatmul.mubr.f32.gmra.mxu0 %v457
        %v552 = vpop.f32.mrf.mxu0
        %v553 = vadd.f32 %v422, %v552
        %v554 = vpop.f32.mrf.mxu0
        %v555 = vadd.f32 %v422, %v554
        %556 = vmatprep.mubr.f32.mxu0 0.0
        %557 = vmatmul.mubr.f32.gmra.mxu0 %v460
        %v558 = vpop.f32.mrf.mxu0
        %v559 = vadd.f32 %v427, %v558
        %v560 = vpop.f32.mrf.mxu0
        %v561 = vadd.f32 %v427, %v560
        %562 = vmatprep.mubr.f32.mxu0 0.0
        %563 = vmatmul.mubr.f32.gmra.mxu0 %v463
        %v564 = vpop.f32.mrf.mxu0
        %v565 = vadd.f32 %v432, %v564
        %v566 = vpop.f32.mrf.mxu0
        %v567 = vadd.f32 %v432, %v566
        %568 = vmatprep.mubr.f32.mxu0 0.0
        %569 = vmatmul.mubr.f32.gmra.mxu0 %v466
        %v570 = vpop.f32.mrf.mxu0
        %v571 = vadd.f32 %v437, %v570
        %v572 = vpop.f32.mrf.mxu0
        %v573 = vadd.f32 %v437, %v572
        %574 = vmatprep.mubr.f32.mxu0 0.0
        %575 = vmatmul.mubr.f32.gmra.mxu0 %v469
        %v576 = vpop.f32.mrf.mxu0
        %v577 = vadd.f32 %v442, %v576
        %v578 = vpop.f32.mrf.mxu0
        %v579 = vadd.f32 %v442, %v578
        %580 = vmatprep.mubr.f32.mxu0 0.0
        %581 = vmatmul.mubr.f32.gmra.mxu0 %v472
        %v582 = vpop.f32.mrf.mxu0
        %v583 = vadd.f32 %v447, %v582
        %v584 = vpop.f32.mrf.mxu0
        %v585 = vadd.f32 %v447, %v584
        %586 = vdwg.mxu0
        %587 = vxpose.xlu0.b32.start [1/16] %v547, 128
        %588 = vxpose.xlu0.b32.cont [2/16] %v553, 128
        %589 = vxpose.xlu0.b32.cont [3/16] %v559, 128
        %590 = vxpose.xlu0.b32.cont [4/16] %v565, 128
        %591 = vxpose.xlu0.b32.cont [5/16] %v571, 128
        %592 = vxpose.xlu0.b32.cont [6/16] %v577, 128
        %593 = vxpose.xlu0.b32.cont [7/16] %v583, 128
        %594 = vxpose.xlu0.b32.cont [8/16] 0.0, 128
        %595 = vxpose.xlu0.b32.cont [9/16] 0.0, 128
        %596 = vxpose.xlu0.b32.cont [10/16] 0.0, 128
        %597 = vxpose.xlu0.b32.cont [11/16] 0.0, 128
        %598 = vxpose.xlu0.b32.cont [12/16] 0.0, 128
        %599 = vxpose.xlu0.b32.cont [13/16] 0.0, 128
        %600 = vxpose.xlu0.b32.cont [14/16] 0.0, 128
        %601 = vxpose.xlu0.b32.cont [15/16] 0.0, 128
        %602 = vxpose.xlu0.b32.end [16/16] 0.0, 128
        %v603 = vpop.trf.xlu0
        %v604 = vpop.trf.xlu0
        %v605 = vpop.trf.xlu0
        %v606 = vpop.trf.xlu0
        %v607 = vpop.trf.xlu0
        %v608 = vpop.trf.xlu0
        %v609 = vpop.trf.xlu0
        %v610 = vpop.trf.xlu0
        %v611 = vpop.trf.xlu0
        %v612 = vpop.trf.xlu0
        %v613 = vpop.trf.xlu0
        %v614 = vpop.trf.xlu0
        %v615 = vpop.trf.xlu0
        %v616 = vpop.trf.xlu0
        %v617 = vpop.trf.xlu0
        %v618 = vpop.trf.xlu0
        %619 = vxpose.xlu0.b32.start [1/16] %v549, 128
        %620 = vxpose.xlu0.b32.cont [2/16] %v555, 128
        %621 = vxpose.xlu0.b32.cont [3/16] %v561, 128
        %622 = vxpose.xlu0.b32.cont [4/16] %v567, 128
        %623 = vxpose.xlu0.b32.cont [5/16] %v573, 128
        %624 = vxpose.xlu0.b32.cont [6/16] %v579, 128
        %625 = vxpose.xlu0.b32.cont [7/16] %v585, 128
        %626 = vxpose.xlu0.b32.cont [8/16] 0.0, 128
        %627 = vxpose.xlu0.b32.cont [9/16] 0.0, 128
        %628 = vxpose.xlu0.b32.cont [10/16] 0.0, 128
        %629 = vxpose.xlu0.b32.cont [11/16] 0.0, 128
        %630 = vxpose.xlu0.b32.cont [12/16] 0.0, 128
        %631 = vxpose.xlu0.b32.cont [13/16] 0.0, 128
        %632 = vxpose.xlu0.b32.cont [14/16] 0.0, 128
        %633 = vxpose.xlu0.b32.cont [15/16] 0.0, 128
        %634 = vxpose.xlu0.b32.end [16/16] 0.0, 128
        %v635 = vpop.trf.xlu0
        %v636 = vpop.trf.xlu0
        %v637 = vpop.trf.xlu0
        %v638 = vpop.trf.xlu0
        %v639 = vpop.trf.xlu0
        %v640 = vpop.trf.xlu0
        %v641 = vpop.trf.xlu0
        %v642 = vpop.trf.xlu0
        %v643 = vpop.trf.xlu0
        %v644 = vpop.trf.xlu0
        %v645 = vpop.trf.xlu0
        %v646 = vpop.trf.xlu0
        %v647 = vpop.trf.xlu0
        %v648 = vpop.trf.xlu0
        %v649 = vpop.trf.xlu0
        %v650 = vpop.trf.xlu0
        %vm651 = vcmask 457728
        %652 = vst.msk [vmem:[#allocation2] sm:$0xff] %vm651, 0.0
        %653 = vst.msk [vmem:[#allocation2 + $0x8] sm:$0xff] %vm651, 0.0
        %vm654 = vcmask 455680
        %655 = vst.msk [vmem:[#allocation2 + $0x10] sm:$0x3f] %vm654, 0.0
        %656 = vst.msk [vmem:[#allocation2 + $0x18] sm:$0xff] %vm651, 0.0
        %657 = vst.msk [vmem:[#allocation2 + $0x20] sm:$0xff] %vm651, 0.0
        %658 = vst.msk [vmem:[#allocation2 + $0x28] sm:$0x3f] %vm654, 0.0
        %659 = vst.msk [vmem:[#allocation2 + $0x30] sm:$0xff] %vm651, 0.0
        %660 = vst.msk [vmem:[#allocation2 + $0x38] sm:$0xff] %vm651, 0.0
        %661 = vst.msk [vmem:[#allocation2 + $0x40] sm:$0x3f] %vm654, 0.0
        %662 = vst.msk [vmem:[#allocation2 + $0x48] sm:$0xff] %vm651, 0.0
        %663 = vst.msk [vmem:[#allocation2 + $0x50] sm:$0xff] %vm651, 0.0
        %664 = vst.msk [vmem:[#allocation2 + $0x58] sm:$0x3f] %vm654, 0.0
        %665 = vst.msk [vmem:[#allocation2 + $0x60] sm:$0xff] %vm651, 0.0
        %666 = vst.msk [vmem:[#allocation2 + $0x68] sm:$0xff] %vm651, 0.0
        %667 = vst.msk [vmem:[#allocation2 + $0x70] sm:$0x3f] %vm654, 0.0
        %668 = vst.msk [vmem:[#allocation2 + $0x78] sm:$0xff] %vm651, 0.0
        %669 = vst.msk [vmem:[#allocation2 + $0x80] sm:$0xff] %vm651, 0.0
        %670 = vst.msk [vmem:[#allocation2 + $0x88] sm:$0x3f] %vm654, 0.0
        %671 = vst.msk [vmem:[#allocation2 + $0x90] sm:$0xff] %vm651, 0.0
        %672 = vst.msk [vmem:[#allocation2 + $0x98] sm:$0xff] %vm651, 0.0
        %673 = vst.msk [vmem:[#allocation2 + $0xa0] sm:$0x3f] %vm654, 0.0
        %674 = vst.msk [vmem:[#allocation2 + $0xa8] sm:$0xff] %vm651, 0.0
        %675 = vst.msk [vmem:[#allocation2 + $0xb0] sm:$0xff] %vm651, 0.0
        %676 = vst.msk [vmem:[#allocation2 + $0xb8] sm:$0x3f] %vm654, 0.0
        %677 = vst.msk [vmem:[#allocation2 + $0xc0] sm:$0xff] %vm651, 0.0
        %678 = vst.msk [vmem:[#allocation2 + $0xc8] sm:$0xff] %vm651, 0.0
        %679 = vst.msk [vmem:[#allocation2 + $0xd0] sm:$0x3f] %vm654, 0.0
        %680 = vst.msk [vmem:[#allocation2 + $0xd8] sm:$0xff] %vm651, 0.0
        %681 = vst.msk [vmem:[#allocation2 + $0xe0] sm:$0xff] %vm651, 0.0
        %682 = vst.msk [vmem:[#allocation2 + $0xe8] sm:$0x3f] %vm654, 0.0
        %683 = vst.msk [vmem:[#allocation2 + $0xf0] sm:$0xff] %vm651, 0.0
        %684 = vst.msk [vmem:[#allocation2 + $0xf8] sm:$0xff] %vm651, 0.0
        %685 = vst.msk [vmem:[#allocation2 + $0x100] sm:$0x3f] %vm654, 0.0
        %686 = vst.msk [vmem:[#allocation2 + $0x108] sm:$0xff] %vm651, 0.0
        %687 = vst.msk [vmem:[#allocation2 + $0x110] sm:$0xff] %vm651, 0.0
        %688 = vst.msk [vmem:[#allocation2 + $0x118] sm:$0x3f] %vm654, 0.0
        %689 = vst.msk [vmem:[#allocation2 + $0x120] sm:$0xff] %vm651, 0.0
        %690 = vst.msk [vmem:[#allocation2 + $0x128] sm:$0xff] %vm651, 0.0
        %691 = vst.msk [vmem:[#allocation2 + $0x130] sm:$0x3f] %vm654, 0.0
        %692 = vst.msk [vmem:[#allocation2 + $0x138] sm:$0xff] %vm651, 0.0
        %693 = vst.msk [vmem:[#allocation2 + $0x140] sm:$0xff] %vm651, 0.0
        %694 = vst.msk [vmem:[#allocation2 + $0x148] sm:$0x3f] %vm654, 0.0
        %695 = vst.msk [vmem:[#allocation2 + $0x150] sm:$0xff] %vm651, 0.0
        %696 = vst.msk [vmem:[#allocation2 + $0x158] sm:$0xff] %vm651, 0.0
        %697 = vst.msk [vmem:[#allocation2 + $0x160] sm:$0x3f] %vm654, 0.0
        %698 = vst.msk [vmem:[#allocation2 + $0x168] sm:$0xff] %vm651, 0.0
        %699 = vst.msk [vmem:[#allocation2 + $0x170] sm:$0xff] %vm651, 0.0
        %700 = vst.msk [vmem:[#allocation2 + $0x178] sm:$0x3f] %vm654, 0.0
        %701 = vst.msk [vmem:[#allocation2 + $0x180] sm:$0xff] %vm651, 0.0
        %702 = vst.msk [vmem:[#allocation2 + $0x188] sm:$0xff] %vm651, 0.0
        %703 = vst.msk [vmem:[#allocation2 + $0x190] sm:$0x3f] %vm654, 0.0
        %704 = vst.msk [vmem:[#allocation2 + $0x198] sm:$0xff] %vm651, 0.0
        %705 = vst.msk [vmem:[#allocation2 + $0x1a0] sm:$0xff] %vm651, 0.0
        %706 = vst.msk [vmem:[#allocation2 + $0x1a8] sm:$0x3f] %vm654, 0.0
        %707 = vst.msk [vmem:[#allocation2 + $0x1b0] sm:$0xff] %vm651, 0.0
        %708 = vst.msk [vmem:[#allocation2 + $0x1b8] sm:$0xff] %vm651, 0.0
        %709 = vst.msk [vmem:[#allocation2 + $0x1c0] sm:$0x3f] %vm654, 0.0
        %710 = vst.msk [vmem:[#allocation2 + $0x1c8] sm:$0xff] %vm651, 0.0
        %711 = vst.msk [vmem:[#allocation2 + $0x1d0] sm:$0xff] %vm651, 0.0
        %712 = vst.msk [vmem:[#allocation2 + $0x1d8] sm:$0x3f] %vm654, 0.0
        %713 = vst.msk [vmem:[#allocation2 + $0x1e0] sm:$0xff] %vm651, 0.0
        %714 = vst.msk [vmem:[#allocation2 + $0x1e8] sm:$0xff] %vm651, 0.0
        %715 = vst.msk [vmem:[#allocation2 + $0x1f0] sm:$0x3f] %vm654, 0.0
        %716 = vst.msk [vmem:[#allocation2 + $0x1f8] sm:$0xff] %vm651, 0.0
        %717 = vst.msk [vmem:[#allocation2 + $0x200] sm:$0xff] %vm651, 0.0
        %718 = vst.msk [vmem:[#allocation2 + $0x208] sm:$0x3f] %vm654, 0.0
        %s719 = scalar_lea.vmem [#allocation2], 72
        %720 = vst.msk [vmem:[%s719 + $0x3] sm:$0xff] %vm651, %v603
        %721 = vst.msk [vmem:[%s719 + $0xb] sm:$0xff] %vm651, %v604
        %722 = vst.msk [vmem:[%s719 + $0x1b] sm:$0xff] %vm651, %v605
        %723 = vst.msk [vmem:[%s719 + $0x23] sm:$0xff] %vm651, %v606
        %724 = vst.msk [vmem:[%s719 + $0x33] sm:$0xff] %vm651, %v607
        %725 = vst.msk [vmem:[%s719 + $0x3b] sm:$0xff] %vm651, %v608
        %726 = vst.msk [vmem:[%s719 + $0x4b] sm:$0xff] %vm651, %v609
        %727 = vst.msk [vmem:[%s719 + $0x53] sm:$0xff] %vm651, %v610
        %728 = vst.msk [vmem:[%s719 + $0x63] sm:$0xff] %vm651, %v611
        %729 = vst.msk [vmem:[%s719 + $0x6b] sm:$0xff] %vm651, %v612
        %730 = vst.msk [vmem:[%s719 + $0x7b] sm:$0xff] %vm651, %v613
        %731 = vst.msk [vmem:[%s719 + $0x83] sm:$0xff] %vm651, %v614
        %732 = vst.msk [vmem:[%s719 + $0x93] sm:$0xff] %vm651, %v615
        %733 = vst.msk [vmem:[%s719 + $0x9b] sm:$0xff] %vm651, %v616
        %734 = vst.msk [vmem:[%s719 + $0xab] sm:$0xff] %vm651, %v617
        %735 = vst.msk [vmem:[%s719 + $0xb3] sm:$0xff] %vm651, %v618
        %736 = vst.msk [vmem:[%s719 + $0xc3] sm:$0xff] %vm651, %v635
        %737 = vst.msk [vmem:[%s719 + $0xcb] sm:$0xff] %vm651, %v636
        %738 = vst.msk [vmem:[%s719 + $0xdb] sm:$0xff] %vm651, %v637
        %739 = vst.msk [vmem:[%s719 + $0xe3] sm:$0xff] %vm651, %v638
        %740 = vst.msk [vmem:[%s719 + $0xf3] sm:$0xff] %vm651, %v639
        %741 = vst.msk [vmem:[%s719 + $0xfb] sm:$0xff] %vm651, %v640
        %742 = vst.msk [vmem:[%s719 + $0x10b] sm:$0xff] %vm651, %v641
        %743 = vst.msk [vmem:[%s719 + $0x113] sm:$0xff] %vm651, %v642
        %744 = vst.msk [vmem:[%s719 + $0x123] sm:$0xff] %vm651, %v643
        %745 = vst.msk [vmem:[%s719 + $0x12b] sm:$0xff] %vm651, %v644
        %746 = vst.msk [vmem:[%s719 + $0x13b] sm:$0xff] %vm651, %v645
        %747 = vst.msk [vmem:[%s719 + $0x143] sm:$0xff] %vm651, %v646
        %748 = vst.msk [vmem:[%s719 + $0x153] sm:$0xff] %vm651, %v647
        %749 = vst.msk [vmem:[%s719 + $0x15b] sm:$0xff] %vm651, %v648
        %750 = vst.msk [vmem:[%s719 + $0x16b] sm:$0xff] %vm651, %v649
        %751 = vst.msk [vmem:[%s719 + $0x173] sm:$0xff] %vm651, %v650
        %v752 = vld [vmem:[%s3] sm:$0xff]
        %v753 = vld [vmem:[%s3 + $0x8] sm:$0xff]
        %v754 = vld [vmem:[%s3 + $0x10] sm:$0xff]
        %v755 = vld [vmem:[%s3 + $0x18] sm:$0xff]
        %v756 = vld [vmem:[%s3 + $0x20] sm:$0xff]
        %v757 = vld [vmem:[%s3 + $0x28] sm:$0xff]
        %v758 = vld [vmem:[%s3 + $0x30] sm:$0x1]
        %v759 = vld [vmem:[%s4] sm:$0x1]
        %v760 = vld [vmem:[#allocation2] sm:$0xff]
        %v761 = vld [vmem:[#allocation2 + $0x8] sm:$0xff]
        %v762 = vld [vmem:[#allocation2 + $0x18] sm:$0xff]
        %v763 = vld [vmem:[#allocation2 + $0x20] sm:$0xff]
        %v764 = vld [vmem:[#allocation2 + $0x30] sm:$0xff]
        %v765 = vld [vmem:[#allocation2 + $0x38] sm:$0xff]
        %v766 = vld [vmem:[#allocation2 + $0x48] sm:$0xff]
        %v767 = vld [vmem:[#allocation2 + $0x50] sm:$0xff]
        %v768 = vld [vmem:[#allocation2 + $0x60] sm:$0xff]
        %v769 = vld [vmem:[#allocation2 + $0x68] sm:$0xff]
        %v770 = vld [vmem:[#allocation2 + $0x78] sm:$0xff]
        %v771 = vld [vmem:[#allocation2 + $0x80] sm:$0xff]
        %v772 = vld [vmem:[#allocation2 + $0x90] sm:$0xff]
        %v773 = vld [vmem:[#allocation2 + $0x98] sm:$0xff]
        %v774 = vld [vmem:[#allocation2 + $0xa8] sm:$0xff]
        %v775 = vld [vmem:[#allocation2 + $0xb0] sm:$0xff]
        %v776 = vld [vmem:[#allocation2 + $0xc0] sm:$0xff]
        %v777 = vld [vmem:[#allocation2 + $0xc8] sm:$0xff]
        %v778 = vld [vmem:[#allocation2 + $0xd8] sm:$0xff]
        %v779 = vld [vmem:[#allocation2 + $0xe0] sm:$0xff]
        %v780 = vld [vmem:[#allocation2 + $0xf0] sm:$0xff]
        %v781 = vld [vmem:[#allocation2 + $0xf8] sm:$0xff]
        %v782 = vld [vmem:[#allocation2 + $0x108] sm:$0xff]
        %v783 = vld [vmem:[#allocation2 + $0x110] sm:$0xff]
        %v784 = vld [vmem:[#allocation2 + $0x120] sm:$0xff]
        %v785 = vld [vmem:[#allocation2 + $0x128] sm:$0xff]
        %v786 = vld [vmem:[#allocation2 + $0x138] sm:$0xff]
        %v787 = vld [vmem:[#allocation2 + $0x140] sm:$0xff]
        %v788 = vlaneseq
        %v789 = vshrl.u32 %v788, 7
        %v790 = vsub.s32 0, %v789
        %v791 = vrot.slane %v752, %v790
        %v792 = vmul.f32 %v791, %v760
        %v793 = vmul.f32 %v791, %v761
        %v794 = vmul.f32 %v791, %v762
        %v795 = vmul.f32 %v791, %v763
        %v796 = vmul.f32 %v791, %v764
        %v797 = vmul.f32 %v791, %v765
        %v798 = vmul.f32 %v791, %v766
        %v799 = vmul.f32 %v791, %v767
        %v800 = vmul.f32 %v791, %v768
        %v801 = vmul.f32 %v791, %v769
        %v802 = vmul.f32 %v791, %v770
        %v803 = vmul.f32 %v791, %v771
        %v804 = vmul.f32 %v791, %v772
        %v805 = vmul.f32 %v791, %v773
        %v806 = vmul.f32 %v791, %v774
        %v807 = vmul.f32 %v791, %v775
        %v808 = vadd.f32 %v792, 0.0
        %v809 = vadd.f32 %v793, 0.0
        %v810 = vadd.f32 %v794, 0.0
        %v811 = vadd.f32 %v795, 0.0
        %v812 = vadd.f32 %v796, 0.0
        %v813 = vadd.f32 %v797, 0.0
        %v814 = vadd.f32 %v798, 0.0
        %v815 = vadd.f32 %v799, 0.0
        %v816 = vadd.f32 %v800, 0.0
        %v817 = vadd.f32 %v801, 0.0
        %v818 = vadd.f32 %v802, 0.0
        %v819 = vadd.f32 %v803, 0.0
        %v820 = vadd.f32 %v804, 0.0
        %v821 = vadd.f32 %v805, 0.0
        %v822 = vadd.f32 %v806, 0.0
        %v823 = vadd.f32 %v807, 0.0
        %v824 = vlaneseq
        %v825 = vshrl.u32 %v824, 7
        %v826 = vsub.s32 7, %v825
        %v827 = vrot.slane %v752, %v826
        %v828 = vmul.f32 %v827, %v762
        %v829 = vmul.f32 %v827, %v763
        %v830 = vmul.f32 %v827, %v764
        %v831 = vmul.f32 %v827, %v765
        %v832 = vmul.f32 %v827, %v766
        %v833 = vmul.f32 %v827, %v767
        %v834 = vmul.f32 %v827, %v768
        %v835 = vmul.f32 %v827, %v769
        %v836 = vmul.f32 %v827, %v770
        %v837 = vmul.f32 %v827, %v771
        %v838 = vmul.f32 %v827, %v772
        %v839 = vmul.f32 %v827, %v773
        %v840 = vmul.f32 %v827, %v774
        %v841 = vmul.f32 %v827, %v775
        %v842 = vmul.f32 %v827, %v776
        %v843 = vmul.f32 %v827, %v777
        %v844 = vadd.f32 %v808, %v828
        %v845 = vadd.f32 %v809, %v829
        %v846 = vadd.f32 %v810, %v830
        %v847 = vadd.f32 %v811, %v831
        %v848 = vadd.f32 %v812, %v832
        %v849 = vadd.f32 %v813, %v833
        %v850 = vadd.f32 %v814, %v834
        %v851 = vadd.f32 %v815, %v835
        %v852 = vadd.f32 %v816, %v836
        %v853 = vadd.f32 %v817, %v837
        %v854 = vadd.f32 %v818, %v838
        %v855 = vadd.f32 %v819, %v839
        %v856 = vadd.f32 %v820, %v840
        %v857 = vadd.f32 %v821, %v841
        %v858 = vadd.f32 %v822, %v842
        %v859 = vadd.f32 %v823, %v843
        %v860 = vlaneseq
        %v861 = vshrl.u32 %v860, 7
        %v862 = vsub.s32 6, %v861
        %v863 = vrot.slane %v753, %v862
        %v864 = vmul.f32 %v863, %v764
        %v865 = vmul.f32 %v863, %v765
        %v866 = vmul.f32 %v863, %v766
        %v867 = vmul.f32 %v863, %v767
        %v868 = vmul.f32 %v863, %v768
        %v869 = vmul.f32 %v863, %v769
        %v870 = vmul.f32 %v863, %v770
        %v871 = vmul.f32 %v863, %v771
        %v872 = vmul.f32 %v863, %v772
        %v873 = vmul.f32 %v863, %v773
        %v874 = vmul.f32 %v863, %v774
        %v875 = vmul.f32 %v863, %v775
        %v876 = vmul.f32 %v863, %v776
        %v877 = vmul.f32 %v863, %v777
        %v878 = vmul.f32 %v863, %v778
        %v879 = vmul.f32 %v863, %v779
        %v880 = vadd.f32 %v844, %v864
        %v881 = vadd.f32 %v845, %v865
        %v882 = vadd.f32 %v846, %v866
        %v883 = vadd.f32 %v847, %v867
        %v884 = vadd.f32 %v848, %v868
        %v885 = vadd.f32 %v849, %v869
        %v886 = vadd.f32 %v850, %v870
        %v887 = vadd.f32 %v851, %v871
        %v888 = vadd.f32 %v852, %v872
        %v889 = vadd.f32 %v853, %v873
        %v890 = vadd.f32 %v854, %v874
        %v891 = vadd.f32 %v855, %v875
        %v892 = vadd.f32 %v856, %v876
        %v893 = vadd.f32 %v857, %v877
        %v894 = vadd.f32 %v858, %v878
        %v895 = vadd.f32 %v859, %v879
        %v896 = vlaneseq
        %v897 = vshrl.u32 %v896, 7
        %v898 = vsub.s32 5, %v897
        %v899 = vrot.slane %v754, %v898
        %v900 = vmul.f32 %v899, %v766
        %v901 = vmul.f32 %v899, %v767
        %v902 = vmul.f32 %v899, %v768
        %v903 = vmul.f32 %v899, %v769
        %v904 = vmul.f32 %v899, %v770
        %v905 = vmul.f32 %v899, %v771
        %v906 = vmul.f32 %v899, %v772
        %v907 = vmul.f32 %v899, %v773
        %v908 = vmul.f32 %v899, %v774
        %v909 = vmul.f32 %v899, %v775
        %v910 = vmul.f32 %v899, %v776
        %v911 = vmul.f32 %v899, %v777
        %v912 = vmul.f32 %v899, %v778
        %v913 = vmul.f32 %v899, %v779
        %v914 = vmul.f32 %v899, %v780
        %v915 = vmul.f32 %v899, %v781
        %v916 = vadd.f32 %v880, %v900
        %v917 = vadd.f32 %v881, %v901
        %v918 = vadd.f32 %v882, %v902
        %v919 = vadd.f32 %v883, %v903
        %v920 = vadd.f32 %v884, %v904
        %v921 = vadd.f32 %v885, %v905
        %v922 = vadd.f32 %v886, %v906
        %v923 = vadd.f32 %v887, %v907
        %v924 = vadd.f32 %v888, %v908
        %v925 = vadd.f32 %v889, %v909
        %v926 = vadd.f32 %v890, %v910
        %v927 = vadd.f32 %v891, %v911
        %v928 = vadd.f32 %v892, %v912
        %v929 = vadd.f32 %v893, %v913
        %v930 = vadd.f32 %v894, %v914
        %v931 = vadd.f32 %v895, %v915
        %v932 = vlaneseq
        %v933 = vshrl.u32 %v932, 7
        %v934 = vsub.s32 4, %v933
        %v935 = vrot.slane %v755, %v934
        %v936 = vmul.f32 %v935, %v768
        %v937 = vmul.f32 %v935, %v769
        %v938 = vmul.f32 %v935, %v770
        %v939 = vmul.f32 %v935, %v771
        %v940 = vmul.f32 %v935, %v772
        %v941 = vmul.f32 %v935, %v773
        %v942 = vmul.f32 %v935, %v774
        %v943 = vmul.f32 %v935, %v775
        %v944 = vmul.f32 %v935, %v776
        %v945 = vmul.f32 %v935, %v777
        %v946 = vmul.f32 %v935, %v778
        %v947 = vmul.f32 %v935, %v779
        %v948 = vmul.f32 %v935, %v780
        %v949 = vmul.f32 %v935, %v781
        %v950 = vmul.f32 %v935, %v782
        %v951 = vmul.f32 %v935, %v783
        %v952 = vadd.f32 %v916, %v936
        %v953 = vadd.f32 %v917, %v937
        %v954 = vadd.f32 %v918, %v938
        %v955 = vadd.f32 %v919, %v939
        %v956 = vadd.f32 %v920, %v940
        %v957 = vadd.f32 %v921, %v941
        %v958 = vadd.f32 %v922, %v942
        %v959 = vadd.f32 %v923, %v943
        %v960 = vadd.f32 %v924, %v944
        %v961 = vadd.f32 %v925, %v945
        %v962 = vadd.f32 %v926, %v946
        %v963 = vadd.f32 %v927, %v947
        %v964 = vadd.f32 %v928, %v948
        %v965 = vadd.f32 %v929, %v949
        %v966 = vadd.f32 %v930, %v950
        %v967 = vadd.f32 %v931, %v951
        %v968 = vlaneseq
        %v969 = vshrl.u32 %v968, 7
        %v970 = vsub.s32 3, %v969
        %v971 = vrot.slane %v756, %v970
        %v972 = vmul.f32 %v971, %v770
        %v973 = vmul.f32 %v971, %v771
        %v974 = vmul.f32 %v971, %v772
        %v975 = vmul.f32 %v971, %v773
        %v976 = vmul.f32 %v971, %v774
        %v977 = vmul.f32 %v971, %v775
        %v978 = vmul.f32 %v971, %v776
        %v979 = vmul.f32 %v971, %v777
        %v980 = vmul.f32 %v971, %v778
        %v981 = vmul.f32 %v971, %v779
        %v982 = vmul.f32 %v971, %v780
        %v983 = vmul.f32 %v971, %v781
        %v984 = vmul.f32 %v971, %v782
        %v985 = vmul.f32 %v971, %v783
        %v986 = vmul.f32 %v971, %v784
        %v987 = vmul.f32 %v971, %v785
        %v988 = vadd.f32 %v952, %v972
        %v989 = vadd.f32 %v953, %v973
        %v990 = vadd.f32 %v954, %v974
        %v991 = vadd.f32 %v955, %v975
        %v992 = vadd.f32 %v956, %v976
        %v993 = vadd.f32 %v957, %v977
        %v994 = vadd.f32 %v958, %v978
        %v995 = vadd.f32 %v959, %v979
        %v996 = vadd.f32 %v960, %v980
        %v997 = vadd.f32 %v961, %v981
        %v998 = vadd.f32 %v962, %v982
        %v999 = vadd.f32 %v963, %v983
        %v1000 = vadd.f32 %v964, %v984
        %v1001 = vadd.f32 %v965, %v985
        %v1002 = vadd.f32 %v966, %v986
        %v1003 = vadd.f32 %v967, %v987
        %v1004 = vlaneseq
        %v1005 = vshrl.u32 %v1004, 7
        %v1006 = vsub.s32 2, %v1005
        %v1007 = vrot.slane %v757, %v1006
        %v1008 = vmul.f32 %v1007, %v772
        %v1009 = vmul.f32 %v1007, %v773
        %v1010 = vmul.f32 %v1007, %v774
        %v1011 = vmul.f32 %v1007, %v775
        %v1012 = vmul.f32 %v1007, %v776
        %v1013 = vmul.f32 %v1007, %v777
        %v1014 = vmul.f32 %v1007, %v778
        %v1015 = vmul.f32 %v1007, %v779
        %v1016 = vmul.f32 %v1007, %v780
        %v1017 = vmul.f32 %v1007, %v781
        %v1018 = vmul.f32 %v1007, %v782
        %v1019 = vmul.f32 %v1007, %v783
        %v1020 = vmul.f32 %v1007, %v784
        %v1021 = vmul.f32 %v1007, %v785
        %v1022 = vmul.f32 %v1007, %v786
        %v1023 = vmul.f32 %v1007, %v787
        %v1024 = vadd.f32 %v988, %v1008
        %v1025 = vadd.f32 %v989, %v1009
        %v1026 = vadd.f32 %v990, %v1010
        %v1027 = vadd.f32 %v991, %v1011
        %v1028 = vadd.f32 %v992, %v1012
        %v1029 = vadd.f32 %v993, %v1013
        %v1030 = vadd.f32 %v994, %v1014
        %v1031 = vadd.f32 %v995, %v1015
        %v1032 = vadd.f32 %v996, %v1016
        %v1033 = vadd.f32 %v997, %v1017
        %v1034 = vadd.f32 %v998, %v1018
        %v1035 = vadd.f32 %v999, %v1019
        %v1036 = vadd.f32 %v1000, %v1020
        %v1037 = vadd.f32 %v1001, %v1021
        %v1038 = vadd.f32 %v1002, %v1022
        %v1039 = vadd.f32 %v1003, %v1023
        %v1040 = vld [vmem:[#allocation2 + $0x1] sm:$0xff]
        %v1041 = vld [vmem:[#allocation2 + $0x9] sm:$0xff]
        %v1042 = vld [vmem:[#allocation2 + $0x19] sm:$0xff]
        %v1043 = vld [vmem:[#allocation2 + $0x21] sm:$0xff]
        %v1044 = vld [vmem:[#allocation2 + $0x31] sm:$0xff]
        %v1045 = vld [vmem:[#allocation2 + $0x39] sm:$0xff]
        %v1046 = vld [vmem:[#allocation2 + $0x49] sm:$0xff]
        %v1047 = vld [vmem:[#allocation2 + $0x51] sm:$0xff]
        %v1048 = vld [vmem:[#allocation2 + $0x61] sm:$0xff]
        %v1049 = vld [vmem:[#allocation2 + $0x69] sm:$0xff]
        %v1050 = vld [vmem:[#allocation2 + $0x79] sm:$0xff]
        %v1051 = vld [vmem:[#allocation2 + $0x81] sm:$0xff]
        %v1052 = vld [vmem:[#allocation2 + $0x91] sm:$0xff]
        %v1053 = vld [vmem:[#allocation2 + $0x99] sm:$0xff]
        %v1054 = vld [vmem:[#allocation2 + $0xa9] sm:$0xff]
        %v1055 = vld [vmem:[#allocation2 + $0xb1] sm:$0xff]
        %v1056 = vld [vmem:[#allocation2 + $0xc1] sm:$0xff]
        %v1057 = vld [vmem:[#allocation2 + $0xc9] sm:$0xff]
        %v1058 = vld [vmem:[#allocation2 + $0xd9] sm:$0xff]
        %v1059 = vld [vmem:[#allocation2 + $0xe1] sm:$0xff]
        %v1060 = vld [vmem:[#allocation2 + $0xf1] sm:$0xff]
        %v1061 = vld [vmem:[#allocation2 + $0xf9] sm:$0xff]
        %v1062 = vld [vmem:[#allocation2 + $0x109] sm:$0xff]
        %v1063 = vld [vmem:[#allocation2 + $0x111] sm:$0xff]
        %v1064 = vld [vmem:[#allocation2 + $0x121] sm:$0xff]
        %v1065 = vld [vmem:[#allocation2 + $0x129] sm:$0xff]
        %v1066 = vld [vmem:[#allocation2 + $0x139] sm:$0xff]
        %v1067 = vld [vmem:[#allocation2 + $0x141] sm:$0xff]
        %v1068 = vlaneseq
        %v1069 = vshrl.u32 %v1068, 7
        %v1070 = vsub.s32 1, %v1069
        %v1071 = vrot.slane %v752, %v1070
        %v1072 = vmul.f32 %v1071, %v1040
        %v1073 = vmul.f32 %v1071, %v1041
        %v1074 = vmul.f32 %v1071, %v1042
        %v1075 = vmul.f32 %v1071, %v1043
        %v1076 = vmul.f32 %v1071, %v1044
        %v1077 = vmul.f32 %v1071, %v1045
        %v1078 = vmul.f32 %v1071, %v1046
        %v1079 = vmul.f32 %v1071, %v1047
        %v1080 = vmul.f32 %v1071, %v1048
        %v1081 = vmul.f32 %v1071, %v1049
        %v1082 = vmul.f32 %v1071, %v1050
        %v1083 = vmul.f32 %v1071, %v1051
        %v1084 = vmul.f32 %v1071, %v1052
        %v1085 = vmul.f32 %v1071, %v1053
        %v1086 = vmul.f32 %v1071, %v1054
        %v1087 = vmul.f32 %v1071, %v1055
        %v1088 = vadd.f32 %v1024, %v1072
        %v1089 = vadd.f32 %v1025, %v1073
        %v1090 = vadd.f32 %v1026, %v1074
        %v1091 = vadd.f32 %v1027, %v1075
        %v1092 = vadd.f32 %v1028, %v1076
        %v1093 = vadd.f32 %v1029, %v1077
        %v1094 = vadd.f32 %v1030, %v1078
        %v1095 = vadd.f32 %v1031, %v1079
        %v1096 = vadd.f32 %v1032, %v1080
        %v1097 = vadd.f32 %v1033, %v1081
        %v1098 = vadd.f32 %v1034, %v1082
        %v1099 = vadd.f32 %v1035, %v1083
        %v1100 = vadd.f32 %v1036, %v1084
        %v1101 = vadd.f32 %v1037, %v1085
        %v1102 = vadd.f32 %v1038, %v1086
        %v1103 = vadd.f32 %v1039, %v1087
        %v1104 = vlaneseq
        %v1105 = vshrl.u32 %v1104, 7
        %v1106 = vsub.s32 0, %v1105
        %v1107 = vrot.slane %v753, %v1106
        %v1108 = vmul.f32 %v1107, %v1042
        %v1109 = vmul.f32 %v1107, %v1043
        %v1110 = vmul.f32 %v1107, %v1044
        %v1111 = vmul.f32 %v1107, %v1045
        %v1112 = vmul.f32 %v1107, %v1046
        %v1113 = vmul.f32 %v1107, %v1047
        %v1114 = vmul.f32 %v1107, %v1048
        %v1115 = vmul.f32 %v1107, %v1049
        %v1116 = vmul.f32 %v1107, %v1050
        %v1117 = vmul.f32 %v1107, %v1051
        %v1118 = vmul.f32 %v1107, %v1052
        %v1119 = vmul.f32 %v1107, %v1053
        %v1120 = vmul.f32 %v1107, %v1054
        %v1121 = vmul.f32 %v1107, %v1055
        %v1122 = vmul.f32 %v1107, %v1056
        %v1123 = vmul.f32 %v1107, %v1057
        %v1124 = vadd.f32 %v1088, %v1108
        %v1125 = vadd.f32 %v1089, %v1109
        %v1126 = vadd.f32 %v1090, %v1110
        %v1127 = vadd.f32 %v1091, %v1111
        %v1128 = vadd.f32 %v1092, %v1112
        %v1129 = vadd.f32 %v1093, %v1113
        %v1130 = vadd.f32 %v1094, %v1114
        %v1131 = vadd.f32 %v1095, %v1115
        %v1132 = vadd.f32 %v1096, %v1116
        %v1133 = vadd.f32 %v1097, %v1117
        %v1134 = vadd.f32 %v1098, %v1118
        %v1135 = vadd.f32 %v1099, %v1119
        %v1136 = vadd.f32 %v1100, %v1120
        %v1137 = vadd.f32 %v1101, %v1121
        %v1138 = vadd.f32 %v1102, %v1122
        %v1139 = vadd.f32 %v1103, %v1123
        %v1140 = vlaneseq
        %v1141 = vshrl.u32 %v1140, 7
        %v1142 = vsub.s32 7, %v1141
        %v1143 = vrot.slane %v753, %v1142
        %v1144 = vmul.f32 %v1143, %v1044
        %v1145 = vmul.f32 %v1143, %v1045
        %v1146 = vmul.f32 %v1143, %v1046
        %v1147 = vmul.f32 %v1143, %v1047
        %v1148 = vmul.f32 %v1143, %v1048
        %v1149 = vmul.f32 %v1143, %v1049
        %v1150 = vmul.f32 %v1143, %v1050
        %v1151 = vmul.f32 %v1143, %v1051
        %v1152 = vmul.f32 %v1143, %v1052
        %v1153 = vmul.f32 %v1143, %v1053
        %v1154 = vmul.f32 %v1143, %v1054
        %v1155 = vmul.f32 %v1143, %v1055
        %v1156 = vmul.f32 %v1143, %v1056
        %v1157 = vmul.f32 %v1143, %v1057
        %v1158 = vmul.f32 %v1143, %v1058
        %v1159 = vmul.f32 %v1143, %v1059
        %v1160 = vadd.f32 %v1124, %v1144
        %v1161 = vadd.f32 %v1125, %v1145
        %v1162 = vadd.f32 %v1126, %v1146
        %v1163 = vadd.f32 %v1127, %v1147
        %v1164 = vadd.f32 %v1128, %v1148
        %v1165 = vadd.f32 %v1129, %v1149
        %v1166 = vadd.f32 %v1130, %v1150
        %v1167 = vadd.f32 %v1131, %v1151
        %v1168 = vadd.f32 %v1132, %v1152
        %v1169 = vadd.f32 %v1133, %v1153
        %v1170 = vadd.f32 %v1134, %v1154
        %v1171 = vadd.f32 %v1135, %v1155
        %v1172 = vadd.f32 %v1136, %v1156
        %v1173 = vadd.f32 %v1137, %v1157
        %v1174 = vadd.f32 %v1138, %v1158
        %v1175 = vadd.f32 %v1139, %v1159
        %v1176 = vlaneseq
        %v1177 = vshrl.u32 %v1176, 7
        %v1178 = vsub.s32 6, %v1177
        %v1179 = vrot.slane %v754, %v1178
        %v1180 = vmul.f32 %v1179, %v1046
        %v1181 = vmul.f32 %v1179, %v1047
        %v1182 = vmul.f32 %v1179, %v1048
        %v1183 = vmul.f32 %v1179, %v1049
        %v1184 = vmul.f32 %v1179, %v1050
        %v1185 = vmul.f32 %v1179, %v1051
        %v1186 = vmul.f32 %v1179, %v1052
        %v1187 = vmul.f32 %v1179, %v1053
        %v1188 = vmul.f32 %v1179, %v1054
        %v1189 = vmul.f32 %v1179, %v1055
        %v1190 = vmul.f32 %v1179, %v1056
        %v1191 = vmul.f32 %v1179, %v1057
        %v1192 = vmul.f32 %v1179, %v1058
        %v1193 = vmul.f32 %v1179, %v1059
        %v1194 = vmul.f32 %v1179, %v1060
        %v1195 = vmul.f32 %v1179, %v1061
        %v1196 = vadd.f32 %v1160, %v1180
        %v1197 = vadd.f32 %v1161, %v1181
        %v1198 = vadd.f32 %v1162, %v1182
        %v1199 = vadd.f32 %v1163, %v1183
        %v1200 = vadd.f32 %v1164, %v1184
        %v1201 = vadd.f32 %v1165, %v1185
        %v1202 = vadd.f32 %v1166, %v1186
        %v1203 = vadd.f32 %v1167, %v1187
        %v1204 = vadd.f32 %v1168, %v1188
        %v1205 = vadd.f32 %v1169, %v1189
        %v1206 = vadd.f32 %v1170, %v1190
        %v1207 = vadd.f32 %v1171, %v1191
        %v1208 = vadd.f32 %v1172, %v1192
        %v1209 = vadd.f32 %v1173, %v1193
        %v1210 = vadd.f32 %v1174, %v1194
        %v1211 = vadd.f32 %v1175, %v1195
        %v1212 = vlaneseq
        %v1213 = vshrl.u32 %v1212, 7
        %v1214 = vsub.s32 5, %v1213
        %v1215 = vrot.slane %v755, %v1214
        %v1216 = vmul.f32 %v1215, %v1048
        %v1217 = vmul.f32 %v1215, %v1049
        %v1218 = vmul.f32 %v1215, %v1050
        %v1219 = vmul.f32 %v1215, %v1051
        %v1220 = vmul.f32 %v1215, %v1052
        %v1221 = vmul.f32 %v1215, %v1053
        %v1222 = vmul.f32 %v1215, %v1054
        %v1223 = vmul.f32 %v1215, %v1055
        %v1224 = vmul.f32 %v1215, %v1056
        %v1225 = vmul.f32 %v1215, %v1057
        %v1226 = vmul.f32 %v1215, %v1058
        %v1227 = vmul.f32 %v1215, %v1059
        %v1228 = vmul.f32 %v1215, %v1060
        %v1229 = vmul.f32 %v1215, %v1061
        %v1230 = vmul.f32 %v1215, %v1062
        %v1231 = vmul.f32 %v1215, %v1063
        %v1232 = vadd.f32 %v1196, %v1216
        %v1233 = vadd.f32 %v1197, %v1217
        %v1234 = vadd.f32 %v1198, %v1218
        %v1235 = vadd.f32 %v1199, %v1219
        %v1236 = vadd.f32 %v1200, %v1220
        %v1237 = vadd.f32 %v1201, %v1221
        %v1238 = vadd.f32 %v1202, %v1222
        %v1239 = vadd.f32 %v1203, %v1223
        %v1240 = vadd.f32 %v1204, %v1224
        %v1241 = vadd.f32 %v1205, %v1225
        %v1242 = vadd.f32 %v1206, %v1226
        %v1243 = vadd.f32 %v1207, %v1227
        %v1244 = vadd.f32 %v1208, %v1228
        %v1245 = vadd.f32 %v1209, %v1229
        %v1246 = vadd.f32 %v1210, %v1230
        %v1247 = vadd.f32 %v1211, %v1231
        %v1248 = vlaneseq
        %v1249 = vshrl.u32 %v1248, 7
        %v1250 = vsub.s32 4, %v1249
        %v1251 = vrot.slane %v756, %v1250
        %v1252 = vmul.f32 %v1251, %v1050
        %v1253 = vmul.f32 %v1251, %v1051
        %v1254 = vmul.f32 %v1251, %v1052
        %v1255 = vmul.f32 %v1251, %v1053
        %v1256 = vmul.f32 %v1251, %v1054
        %v1257 = vmul.f32 %v1251, %v1055
        %v1258 = vmul.f32 %v1251, %v1056
        %v1259 = vmul.f32 %v1251, %v1057
        %v1260 = vmul.f32 %v1251, %v1058
        %v1261 = vmul.f32 %v1251, %v1059
        %v1262 = vmul.f32 %v1251, %v1060
        %v1263 = vmul.f32 %v1251, %v1061
        %v1264 = vmul.f32 %v1251, %v1062
        %v1265 = vmul.f32 %v1251, %v1063
        %v1266 = vmul.f32 %v1251, %v1064
        %v1267 = vmul.f32 %v1251, %v1065
        %v1268 = vadd.f32 %v1232, %v1252
        %v1269 = vadd.f32 %v1233, %v1253
        %v1270 = vadd.f32 %v1234, %v1254
        %v1271 = vadd.f32 %v1235, %v1255
        %v1272 = vadd.f32 %v1236, %v1256
        %v1273 = vadd.f32 %v1237, %v1257
        %v1274 = vadd.f32 %v1238, %v1258
        %v1275 = vadd.f32 %v1239, %v1259
        %v1276 = vadd.f32 %v1240, %v1260
        %v1277 = vadd.f32 %v1241, %v1261
        %v1278 = vadd.f32 %v1242, %v1262
        %v1279 = vadd.f32 %v1243, %v1263
        %v1280 = vadd.f32 %v1244, %v1264
        %v1281 = vadd.f32 %v1245, %v1265
        %v1282 = vadd.f32 %v1246, %v1266
        %v1283 = vadd.f32 %v1247, %v1267
        %v1284 = vlaneseq
        %v1285 = vshrl.u32 %v1284, 7
        %v1286 = vsub.s32 3, %v1285
        %v1287 = vrot.slane %v757, %v1286
        %v1288 = vmul.f32 %v1287, %v1052
        %v1289 = vmul.f32 %v1287, %v1053
        %v1290 = vmul.f32 %v1287, %v1054
        %v1291 = vmul.f32 %v1287, %v1055
        %v1292 = vmul.f32 %v1287, %v1056
        %v1293 = vmul.f32 %v1287, %v1057
        %v1294 = vmul.f32 %v1287, %v1058
        %v1295 = vmul.f32 %v1287, %v1059
        %v1296 = vmul.f32 %v1287, %v1060
        %v1297 = vmul.f32 %v1287, %v1061
        %v1298 = vmul.f32 %v1287, %v1062
        %v1299 = vmul.f32 %v1287, %v1063
        %v1300 = vmul.f32 %v1287, %v1064
        %v1301 = vmul.f32 %v1287, %v1065
        %v1302 = vmul.f32 %v1287, %v1066
        %v1303 = vmul.f32 %v1287, %v1067
        %v1304 = vadd.f32 %v1268, %v1288
        %v1305 = vadd.f32 %v1269, %v1289
        %v1306 = vadd.f32 %v1270, %v1290
        %v1307 = vadd.f32 %v1271, %v1291
        %v1308 = vadd.f32 %v1272, %v1292
        %v1309 = vadd.f32 %v1273, %v1293
        %v1310 = vadd.f32 %v1274, %v1294
        %v1311 = vadd.f32 %v1275, %v1295
        %v1312 = vadd.f32 %v1276, %v1296
        %v1313 = vadd.f32 %v1277, %v1297
        %v1314 = vadd.f32 %v1278, %v1298
        %v1315 = vadd.f32 %v1279, %v1299
        %v1316 = vadd.f32 %v1280, %v1300
        %v1317 = vadd.f32 %v1281, %v1301
        %v1318 = vadd.f32 %v1282, %v1302
        %v1319 = vadd.f32 %v1283, %v1303
        %v1320 = vld [vmem:[#allocation2 + $0x2] sm:$0xff]
        %v1321 = vld [vmem:[#allocation2 + $0xa] sm:$0xff]
        %v1322 = vld [vmem:[#allocation2 + $0x1a] sm:$0xff]
        %v1323 = vld [vmem:[#allocation2 + $0x22] sm:$0xff]
        %v1324 = vld [vmem:[#allocation2 + $0x32] sm:$0xff]
        %v1325 = vld [vmem:[#allocation2 + $0x3a] sm:$0xff]
        %v1326 = vld [vmem:[#allocation2 + $0x4a] sm:$0xff]
        %v1327 = vld [vmem:[#allocation2 + $0x52] sm:$0xff]
        %v1328 = vld [vmem:[#allocation2 + $0x62] sm:$0xff]
        %v1329 = vld [vmem:[#allocation2 + $0x6a] sm:$0xff]
        %v1330 = vld [vmem:[#allocation2 + $0x7a] sm:$0xff]
        %v1331 = vld [vmem:[#allocation2 + $0x82] sm:$0xff]
        %v1332 = vld [vmem:[#allocation2 + $0x92] sm:$0xff]
        %v1333 = vld [vmem:[#allocation2 + $0x9a] sm:$0xff]
        %v1334 = vld [vmem:[#allocation2 + $0xaa] sm:$0xff]
        %v1335 = vld [vmem:[#allocation2 + $0xb2] sm:$0xff]
        %v1336 = vld [vmem:[#allocation2 + $0xc2] sm:$0xff]
        %v1337 = vld [vmem:[#allocation2 + $0xca] sm:$0xff]
        %v1338 = vld [vmem:[#allocation2 + $0xda] sm:$0xff]
        %v1339 = vld [vmem:[#allocation2 + $0xe2] sm:$0xff]
        %v1340 = vld [vmem:[#allocation2 + $0xf2] sm:$0xff]
        %v1341 = vld [vmem:[#allocation2 + $0xfa] sm:$0xff]
        %v1342 = vld [vmem:[#allocation2 + $0x10a] sm:$0xff]
        %v1343 = vld [vmem:[#allocation2 + $0x112] sm:$0xff]
        %v1344 = vld [vmem:[#allocation2 + $0x122] sm:$0xff]
        %v1345 = vld [vmem:[#allocation2 + $0x12a] sm:$0xff]
        %v1346 = vld [vmem:[#allocation2 + $0x13a] sm:$0xff]
        %v1347 = vld [vmem:[#allocation2 + $0x142] sm:$0xff]
        %v1348 = vlaneseq
        %v1349 = vshrl.u32 %v1348, 7
        %v1350 = vsub.s32 2, %v1349
        %v1351 = vrot.slane %v752, %v1350
        %v1352 = vmul.f32 %v1351, %v1320
        %v1353 = vmul.f32 %v1351, %v1321
        %v1354 = vmul.f32 %v1351, %v1322
        %v1355 = vmul.f32 %v1351, %v1323
        %v1356 = vmul.f32 %v1351, %v1324
        %v1357 = vmul.f32 %v1351, %v1325
        %v1358 = vmul.f32 %v1351, %v1326
        %v1359 = vmul.f32 %v1351, %v1327
        %v1360 = vmul.f32 %v1351, %v1328
        %v1361 = vmul.f32 %v1351, %v1329
        %v1362 = vmul.f32 %v1351, %v1330
        %v1363 = vmul.f32 %v1351, %v1331
        %v1364 = vmul.f32 %v1351, %v1332
        %v1365 = vmul.f32 %v1351, %v1333
        %v1366 = vmul.f32 %v1351, %v1334
        %v1367 = vmul.f32 %v1351, %v1335
        %v1368 = vadd.f32 %v1304, %v1352
        %v1369 = vadd.f32 %v1305, %v1353
        %v1370 = vadd.f32 %v1306, %v1354
        %v1371 = vadd.f32 %v1307, %v1355
        %v1372 = vadd.f32 %v1308, %v1356
        %v1373 = vadd.f32 %v1309, %v1357
        %v1374 = vadd.f32 %v1310, %v1358
        %v1375 = vadd.f32 %v1311, %v1359
        %v1376 = vadd.f32 %v1312, %v1360
        %v1377 = vadd.f32 %v1313, %v1361
        %v1378 = vadd.f32 %v1314, %v1362
        %v1379 = vadd.f32 %v1315, %v1363
        %v1380 = vadd.f32 %v1316, %v1364
        %v1381 = vadd.f32 %v1317, %v1365
        %v1382 = vadd.f32 %v1318, %v1366
        %v1383 = vadd.f32 %v1319, %v1367
        %v1384 = vlaneseq
        %v1385 = vshrl.u32 %v1384, 7
        %v1386 = vsub.s32 1, %v1385
        %v1387 = vrot.slane %v753, %v1386
        %v1388 = vmul.f32 %v1387, %v1322
        %v1389 = vmul.f32 %v1387, %v1323
        %v1390 = vmul.f32 %v1387, %v1324
        %v1391 = vmul.f32 %v1387, %v1325
        %v1392 = vmul.f32 %v1387, %v1326
        %v1393 = vmul.f32 %v1387, %v1327
        %v1394 = vmul.f32 %v1387, %v1328
        %v1395 = vmul.f32 %v1387, %v1329
        %v1396 = vmul.f32 %v1387, %v1330
        %v1397 = vmul.f32 %v1387, %v1331
        %v1398 = vmul.f32 %v1387, %v1332
        %v1399 = vmul.f32 %v1387, %v1333
        %v1400 = vmul.f32 %v1387, %v1334
        %v1401 = vmul.f32 %v1387, %v1335
        %v1402 = vmul.f32 %v1387, %v1336
        %v1403 = vmul.f32 %v1387, %v1337
        %v1404 = vadd.f32 %v1368, %v1388
        %v1405 = vadd.f32 %v1369, %v1389
        %v1406 = vadd.f32 %v1370, %v1390
        %v1407 = vadd.f32 %v1371, %v1391
        %v1408 = vadd.f32 %v1372, %v1392
        %v1409 = vadd.f32 %v1373, %v1393
        %v1410 = vadd.f32 %v1374, %v1394
        %v1411 = vadd.f32 %v1375, %v1395
        %v1412 = vadd.f32 %v1376, %v1396
        %v1413 = vadd.f32 %v1377, %v1397
        %v1414 = vadd.f32 %v1378, %v1398
        %v1415 = vadd.f32 %v1379, %v1399
        %v1416 = vadd.f32 %v1380, %v1400
        %v1417 = vadd.f32 %v1381, %v1401
        %v1418 = vadd.f32 %v1382, %v1402
        %v1419 = vadd.f32 %v1383, %v1403
        %v1420 = vlaneseq
        %v1421 = vshrl.u32 %v1420, 7
        %v1422 = vsub.s32 0, %v1421
        %v1423 = vrot.slane %v754, %v1422
        %v1424 = vmul.f32 %v1423, %v1324
        %v1425 = vmul.f32 %v1423, %v1325
        %v1426 = vmul.f32 %v1423, %v1326
        %v1427 = vmul.f32 %v1423, %v1327
        %v1428 = vmul.f32 %v1423, %v1328
        %v1429 = vmul.f32 %v1423, %v1329
        %v1430 = vmul.f32 %v1423, %v1330
        %v1431 = vmul.f32 %v1423, %v1331
        %v1432 = vmul.f32 %v1423, %v1332
        %v1433 = vmul.f32 %v1423, %v1333
        %v1434 = vmul.f32 %v1423, %v1334
        %v1435 = vmul.f32 %v1423, %v1335
        %v1436 = vmul.f32 %v1423, %v1336
        %v1437 = vmul.f32 %v1423, %v1337
        %v1438 = vmul.f32 %v1423, %v1338
        %v1439 = vmul.f32 %v1423, %v1339
        %v1440 = vadd.f32 %v1404, %v1424
        %v1441 = vadd.f32 %v1405, %v1425
        %v1442 = vadd.f32 %v1406, %v1426
        %v1443 = vadd.f32 %v1407, %v1427
        %v1444 = vadd.f32 %v1408, %v1428
        %v1445 = vadd.f32 %v1409, %v1429
        %v1446 = vadd.f32 %v1410, %v1430
        %v1447 = vadd.f32 %v1411, %v1431
        %v1448 = vadd.f32 %v1412, %v1432
        %v1449 = vadd.f32 %v1413, %v1433
        %v1450 = vadd.f32 %v1414, %v1434
        %v1451 = vadd.f32 %v1415, %v1435
        %v1452 = vadd.f32 %v1416, %v1436
        %v1453 = vadd.f32 %v1417, %v1437
        %v1454 = vadd.f32 %v1418, %v1438
        %v1455 = vadd.f32 %v1419, %v1439
        %v1456 = vlaneseq
        %v1457 = vshrl.u32 %v1456, 7
        %v1458 = vsub.s32 7, %v1457
        %v1459 = vrot.slane %v754, %v1458
        %v1460 = vmul.f32 %v1459, %v1326
        %v1461 = vmul.f32 %v1459, %v1327
        %v1462 = vmul.f32 %v1459, %v1328
        %v1463 = vmul.f32 %v1459, %v1329
        %v1464 = vmul.f32 %v1459, %v1330
        %v1465 = vmul.f32 %v1459, %v1331
        %v1466 = vmul.f32 %v1459, %v1332
        %v1467 = vmul.f32 %v1459, %v1333
        %v1468 = vmul.f32 %v1459, %v1334
        %v1469 = vmul.f32 %v1459, %v1335
        %v1470 = vmul.f32 %v1459, %v1336
        %v1471 = vmul.f32 %v1459, %v1337
        %v1472 = vmul.f32 %v1459, %v1338
        %v1473 = vmul.f32 %v1459, %v1339
        %v1474 = vmul.f32 %v1459, %v1340
        %v1475 = vmul.f32 %v1459, %v1341
        %v1476 = vadd.f32 %v1440, %v1460
        %v1477 = vadd.f32 %v1441, %v1461
        %v1478 = vadd.f32 %v1442, %v1462
        %v1479 = vadd.f32 %v1443, %v1463
        %v1480 = vadd.f32 %v1444, %v1464
        %v1481 = vadd.f32 %v1445, %v1465
        %v1482 = vadd.f32 %v1446, %v1466
        %v1483 = vadd.f32 %v1447, %v1467
        %v1484 = vadd.f32 %v1448, %v1468
        %v1485 = vadd.f32 %v1449, %v1469
        %v1486 = vadd.f32 %v1450, %v1470
        %v1487 = vadd.f32 %v1451, %v1471
        %v1488 = vadd.f32 %v1452, %v1472
        %v1489 = vadd.f32 %v1453, %v1473
        %v1490 = vadd.f32 %v1454, %v1474
        %v1491 = vadd.f32 %v1455, %v1475
        %v1492 = vlaneseq
        %v1493 = vshrl.u32 %v1492, 7
        %v1494 = vsub.s32 6, %v1493
        %v1495 = vrot.slane %v755, %v1494
        %v1496 = vmul.f32 %v1495, %v1328
        %v1497 = vmul.f32 %v1495, %v1329
        %v1498 = vmul.f32 %v1495, %v1330
        %v1499 = vmul.f32 %v1495, %v1331
        %v1500 = vmul.f32 %v1495, %v1332
        %v1501 = vmul.f32 %v1495, %v1333
        %v1502 = vmul.f32 %v1495, %v1334
        %v1503 = vmul.f32 %v1495, %v1335
        %v1504 = vmul.f32 %v1495, %v1336
        %v1505 = vmul.f32 %v1495, %v1337
        %v1506 = vmul.f32 %v1495, %v1338
        %v1507 = vmul.f32 %v1495, %v1339
        %v1508 = vmul.f32 %v1495, %v1340
        %v1509 = vmul.f32 %v1495, %v1341
        %v1510 = vmul.f32 %v1495, %v1342
        %v1511 = vmul.f32 %v1495, %v1343
        %v1512 = vadd.f32 %v1476, %v1496
        %v1513 = vadd.f32 %v1477, %v1497
        %v1514 = vadd.f32 %v1478, %v1498
        %v1515 = vadd.f32 %v1479, %v1499
        %v1516 = vadd.f32 %v1480, %v1500
        %v1517 = vadd.f32 %v1481, %v1501
        %v1518 = vadd.f32 %v1482, %v1502
        %v1519 = vadd.f32 %v1483, %v1503
        %v1520 = vadd.f32 %v1484, %v1504
        %v1521 = vadd.f32 %v1485, %v1505
        %v1522 = vadd.f32 %v1486, %v1506
        %v1523 = vadd.f32 %v1487, %v1507
        %v1524 = vadd.f32 %v1488, %v1508
        %v1525 = vadd.f32 %v1489, %v1509
        %v1526 = vadd.f32 %v1490, %v1510
        %v1527 = vadd.f32 %v1491, %v1511
        %v1528 = vlaneseq
        %v1529 = vshrl.u32 %v1528, 7
        %v1530 = vsub.s32 5, %v1529
        %v1531 = vrot.slane %v756, %v1530
        %v1532 = vmul.f32 %v1531, %v1330
        %v1533 = vmul.f32 %v1531, %v1331
        %v1534 = vmul.f32 %v1531, %v1332
        %v1535 = vmul.f32 %v1531, %v1333
        %v1536 = vmul.f32 %v1531, %v1334
        %v1537 = vmul.f32 %v1531, %v1335
        %v1538 = vmul.f32 %v1531, %v1336
        %v1539 = vmul.f32 %v1531, %v1337
        %v1540 = vmul.f32 %v1531, %v1338
        %v1541 = vmul.f32 %v1531, %v1339
        %v1542 = vmul.f32 %v1531, %v1340
        %v1543 = vmul.f32 %v1531, %v1341
        %v1544 = vmul.f32 %v1531, %v1342
        %v1545 = vmul.f32 %v1531, %v1343
        %v1546 = vmul.f32 %v1531, %v1344
        %v1547 = vmul.f32 %v1531, %v1345
        %v1548 = vadd.f32 %v1512, %v1532
        %v1549 = vadd.f32 %v1513, %v1533
        %v1550 = vadd.f32 %v1514, %v1534
        %v1551 = vadd.f32 %v1515, %v1535
        %v1552 = vadd.f32 %v1516, %v1536
        %v1553 = vadd.f32 %v1517, %v1537
        %v1554 = vadd.f32 %v1518, %v1538
        %v1555 = vadd.f32 %v1519, %v1539
        %v1556 = vadd.f32 %v1520, %v1540
        %v1557 = vadd.f32 %v1521, %v1541
        %v1558 = vadd.f32 %v1522, %v1542
        %v1559 = vadd.f32 %v1523, %v1543
        %v1560 = vadd.f32 %v1524, %v1544
        %v1561 = vadd.f32 %v1525, %v1545
        %v1562 = vadd.f32 %v1526, %v1546
        %v1563 = vadd.f32 %v1527, %v1547
        %v1564 = vlaneseq
        %v1565 = vshrl.u32 %v1564, 7
        %v1566 = vsub.s32 4, %v1565
        %v1567 = vrot.slane %v757, %v1566
        %v1568 = vmul.f32 %v1567, %v1332
        %v1569 = vmul.f32 %v1567, %v1333
        %v1570 = vmul.f32 %v1567, %v1334
        %v1571 = vmul.f32 %v1567, %v1335
        %v1572 = vmul.f32 %v1567, %v1336
        %v1573 = vmul.f32 %v1567, %v1337
        %v1574 = vmul.f32 %v1567, %v1338
        %v1575 = vmul.f32 %v1567, %v1339
        %v1576 = vmul.f32 %v1567, %v1340
        %v1577 = vmul.f32 %v1567, %v1341
        %v1578 = vmul.f32 %v1567, %v1342
        %v1579 = vmul.f32 %v1567, %v1343
        %v1580 = vmul.f32 %v1567, %v1344
        %v1581 = vmul.f32 %v1567, %v1345
        %v1582 = vmul.f32 %v1567, %v1346
        %v1583 = vmul.f32 %v1567, %v1347
        %v1584 = vadd.f32 %v1548, %v1568
        %v1585 = vadd.f32 %v1549, %v1569
        %v1586 = vadd.f32 %v1550, %v1570
        %v1587 = vadd.f32 %v1551, %v1571
        %v1588 = vadd.f32 %v1552, %v1572
        %v1589 = vadd.f32 %v1553, %v1573
        %v1590 = vadd.f32 %v1554, %v1574
        %v1591 = vadd.f32 %v1555, %v1575
        %v1592 = vadd.f32 %v1556, %v1576
        %v1593 = vadd.f32 %v1557, %v1577
        %v1594 = vadd.f32 %v1558, %v1578
        %v1595 = vadd.f32 %v1559, %v1579
        %v1596 = vadd.f32 %v1560, %v1580
        %v1597 = vadd.f32 %v1561, %v1581
        %v1598 = vadd.f32 %v1562, %v1582
        %v1599 = vadd.f32 %v1563, %v1583
        %v1600 = vld [vmem:[#allocation2 + $0x3] sm:$0xff]
        %v1601 = vld [vmem:[#allocation2 + $0xb] sm:$0xff]
        %v1602 = vld [vmem:[#allocation2 + $0x1b] sm:$0xff]
        %v1603 = vld [vmem:[#allocation2 + $0x23] sm:$0xff]
        %v1604 = vld [vmem:[#allocation2 + $0x33] sm:$0xff]
        %v1605 = vld [vmem:[#allocation2 + $0x3b] sm:$0xff]
        %v1606 = vld [vmem:[#allocation2 + $0x4b] sm:$0xff]
        %v1607 = vld [vmem:[#allocation2 + $0x53] sm:$0xff]
        %v1608 = vld [vmem:[#allocation2 + $0x63] sm:$0xff]
        %v1609 = vld [vmem:[#allocation2 + $0x6b] sm:$0xff]
        %v1610 = vld [vmem:[#allocation2 + $0x7b] sm:$0xff]
        %v1611 = vld [vmem:[#allocation2 + $0x83] sm:$0xff]
        %v1612 = vld [vmem:[#allocation2 + $0x93] sm:$0xff]
        %v1613 = vld [vmem:[#allocation2 + $0x9b] sm:$0xff]
        %v1614 = vld [vmem:[#allocation2 + $0xab] sm:$0xff]
        %v1615 = vld [vmem:[#allocation2 + $0xb3] sm:$0xff]
        %v1616 = vld [vmem:[#allocation2 + $0xc3] sm:$0xff]
        %v1617 = vld [vmem:[#allocation2 + $0xcb] sm:$0xff]
        %v1618 = vld [vmem:[#allocation2 + $0xdb] sm:$0xff]
        %v1619 = vld [vmem:[#allocation2 + $0xe3] sm:$0xff]
        %v1620 = vld [vmem:[#allocation2 + $0xf3] sm:$0xff]
        %v1621 = vld [vmem:[#allocation2 + $0xfb] sm:$0xff]
        %v1622 = vld [vmem:[#allocation2 + $0x10b] sm:$0xff]
        %v1623 = vld [vmem:[#allocation2 + $0x113] sm:$0xff]
        %v1624 = vld [vmem:[#allocation2 + $0x123] sm:$0xff]
        %v1625 = vld [vmem:[#allocation2 + $0x12b] sm:$0xff]
        %v1626 = vld [vmem:[#allocation2 + $0x13b] sm:$0xff]
        %v1627 = vld [vmem:[#allocation2 + $0x143] sm:$0xff]
        %v1628 = vlaneseq
        %v1629 = vshrl.u32 %v1628, 7
        %v1630 = vsub.s32 3, %v1629
        %v1631 = vrot.slane %v752, %v1630
        %v1632 = vmul.f32 %v1631, %v1600
        %v1633 = vmul.f32 %v1631, %v1601
        %v1634 = vmul.f32 %v1631, %v1602
        %v1635 = vmul.f32 %v1631, %v1603
        %v1636 = vmul.f32 %v1631, %v1604
        %v1637 = vmul.f32 %v1631, %v1605
        %v1638 = vmul.f32 %v1631, %v1606
        %v1639 = vmul.f32 %v1631, %v1607
        %v1640 = vmul.f32 %v1631, %v1608
        %v1641 = vmul.f32 %v1631, %v1609
        %v1642 = vmul.f32 %v1631, %v1610
        %v1643 = vmul.f32 %v1631, %v1611
        %v1644 = vmul.f32 %v1631, %v1612
        %v1645 = vmul.f32 %v1631, %v1613
        %v1646 = vmul.f32 %v1631, %v1614
        %v1647 = vmul.f32 %v1631, %v1615
        %v1648 = vadd.f32 %v1584, %v1632
        %v1649 = vadd.f32 %v1585, %v1633
        %v1650 = vadd.f32 %v1586, %v1634
        %v1651 = vadd.f32 %v1587, %v1635
        %v1652 = vadd.f32 %v1588, %v1636
        %v1653 = vadd.f32 %v1589, %v1637
        %v1654 = vadd.f32 %v1590, %v1638
        %v1655 = vadd.f32 %v1591, %v1639
        %v1656 = vadd.f32 %v1592, %v1640
        %v1657 = vadd.f32 %v1593, %v1641
        %v1658 = vadd.f32 %v1594, %v1642
        %v1659 = vadd.f32 %v1595, %v1643
        %v1660 = vadd.f32 %v1596, %v1644
        %v1661 = vadd.f32 %v1597, %v1645
        %v1662 = vadd.f32 %v1598, %v1646
        %v1663 = vadd.f32 %v1599, %v1647
        %v1664 = vlaneseq
        %v1665 = vshrl.u32 %v1664, 7
        %v1666 = vsub.s32 2, %v1665
        %v1667 = vrot.slane %v753, %v1666
        %v1668 = vmul.f32 %v1667, %v1602
        %v1669 = vmul.f32 %v1667, %v1603
        %v1670 = vmul.f32 %v1667, %v1604
        %v1671 = vmul.f32 %v1667, %v1605
        %v1672 = vmul.f32 %v1667, %v1606
        %v1673 = vmul.f32 %v1667, %v1607
        %v1674 = vmul.f32 %v1667, %v1608
        %v1675 = vmul.f32 %v1667, %v1609
        %v1676 = vmul.f32 %v1667, %v1610
        %v1677 = vmul.f32 %v1667, %v1611
        %v1678 = vmul.f32 %v1667, %v1612
        %v1679 = vmul.f32 %v1667, %v1613
        %v1680 = vmul.f32 %v1667, %v1614
        %v1681 = vmul.f32 %v1667, %v1615
        %v1682 = vmul.f32 %v1667, %v1616
        %v1683 = vmul.f32 %v1667, %v1617
        %v1684 = vadd.f32 %v1648, %v1668
        %v1685 = vadd.f32 %v1649, %v1669
        %v1686 = vadd.f32 %v1650, %v1670
        %v1687 = vadd.f32 %v1651, %v1671
        %v1688 = vadd.f32 %v1652, %v1672
        %v1689 = vadd.f32 %v1653, %v1673
        %v1690 = vadd.f32 %v1654, %v1674
        %v1691 = vadd.f32 %v1655, %v1675
        %v1692 = vadd.f32 %v1656, %v1676
        %v1693 = vadd.f32 %v1657, %v1677
        %v1694 = vadd.f32 %v1658, %v1678
        %v1695 = vadd.f32 %v1659, %v1679
        %v1696 = vadd.f32 %v1660, %v1680
        %v1697 = vadd.f32 %v1661, %v1681
        %v1698 = vadd.f32 %v1662, %v1682
        %v1699 = vadd.f32 %v1663, %v1683
        %v1700 = vlaneseq
        %v1701 = vshrl.u32 %v1700, 7
        %v1702 = vsub.s32 1, %v1701
        %v1703 = vrot.slane %v754, %v1702
        %v1704 = vmul.f32 %v1703, %v1604
        %v1705 = vmul.f32 %v1703, %v1605
        %v1706 = vmul.f32 %v1703, %v1606
        %v1707 = vmul.f32 %v1703, %v1607
        %v1708 = vmul.f32 %v1703, %v1608
        %v1709 = vmul.f32 %v1703, %v1609
        %v1710 = vmul.f32 %v1703, %v1610
        %v1711 = vmul.f32 %v1703, %v1611
        %v1712 = vmul.f32 %v1703, %v1612
        %v1713 = vmul.f32 %v1703, %v1613
        %v1714 = vmul.f32 %v1703, %v1614
        %v1715 = vmul.f32 %v1703, %v1615
        %v1716 = vmul.f32 %v1703, %v1616
        %v1717 = vmul.f32 %v1703, %v1617
        %v1718 = vmul.f32 %v1703, %v1618
        %v1719 = vmul.f32 %v1703, %v1619
        %v1720 = vadd.f32 %v1684, %v1704
        %v1721 = vadd.f32 %v1685, %v1705
        %v1722 = vadd.f32 %v1686, %v1706
        %v1723 = vadd.f32 %v1687, %v1707
        %v1724 = vadd.f32 %v1688, %v1708
        %v1725 = vadd.f32 %v1689, %v1709
        %v1726 = vadd.f32 %v1690, %v1710
        %v1727 = vadd.f32 %v1691, %v1711
        %v1728 = vadd.f32 %v1692, %v1712
        %v1729 = vadd.f32 %v1693, %v1713
        %v1730 = vadd.f32 %v1694, %v1714
        %v1731 = vadd.f32 %v1695, %v1715
        %v1732 = vadd.f32 %v1696, %v1716
        %v1733 = vadd.f32 %v1697, %v1717
        %v1734 = vadd.f32 %v1698, %v1718
        %v1735 = vadd.f32 %v1699, %v1719
        %v1736 = vlaneseq
        %v1737 = vshrl.u32 %v1736, 7
        %v1738 = vsub.s32 0, %v1737
        %v1739 = vrot.slane %v755, %v1738
        %v1740 = vmul.f32 %v1739, %v1606
        %v1741 = vmul.f32 %v1739, %v1607
        %v1742 = vmul.f32 %v1739, %v1608
        %v1743 = vmul.f32 %v1739, %v1609
        %v1744 = vmul.f32 %v1739, %v1610
        %v1745 = vmul.f32 %v1739, %v1611
        %v1746 = vmul.f32 %v1739, %v1612
        %v1747 = vmul.f32 %v1739, %v1613
        %v1748 = vmul.f32 %v1739, %v1614
        %v1749 = vmul.f32 %v1739, %v1615
        %v1750 = vmul.f32 %v1739, %v1616
        %v1751 = vmul.f32 %v1739, %v1617
        %v1752 = vmul.f32 %v1739, %v1618
        %v1753 = vmul.f32 %v1739, %v1619
        %v1754 = vmul.f32 %v1739, %v1620
        %v1755 = vmul.f32 %v1739, %v1621
        %v1756 = vadd.f32 %v1720, %v1740
        %v1757 = vadd.f32 %v1721, %v1741
        %v1758 = vadd.f32 %v1722, %v1742
        %v1759 = vadd.f32 %v1723, %v1743
        %v1760 = vadd.f32 %v1724, %v1744
        %v1761 = vadd.f32 %v1725, %v1745
        %v1762 = vadd.f32 %v1726, %v1746
        %v1763 = vadd.f32 %v1727, %v1747
        %v1764 = vadd.f32 %v1728, %v1748
        %v1765 = vadd.f32 %v1729, %v1749
        %v1766 = vadd.f32 %v1730, %v1750
        %v1767 = vadd.f32 %v1731, %v1751
        %v1768 = vadd.f32 %v1732, %v1752
        %v1769 = vadd.f32 %v1733, %v1753
        %v1770 = vadd.f32 %v1734, %v1754
        %v1771 = vadd.f32 %v1735, %v1755
        %v1772 = vlaneseq
        %v1773 = vshrl.u32 %v1772, 7
        %v1774 = vsub.s32 7, %v1773
        %v1775 = vrot.slane %v755, %v1774
        %v1776 = vmul.f32 %v1775, %v1608
        %v1777 = vmul.f32 %v1775, %v1609
        %v1778 = vmul.f32 %v1775, %v1610
        %v1779 = vmul.f32 %v1775, %v1611
        %v1780 = vmul.f32 %v1775, %v1612
        %v1781 = vmul.f32 %v1775, %v1613
        %v1782 = vmul.f32 %v1775, %v1614
        %v1783 = vmul.f32 %v1775, %v1615
        %v1784 = vmul.f32 %v1775, %v1616
        %v1785 = vmul.f32 %v1775, %v1617
        %v1786 = vmul.f32 %v1775, %v1618
        %v1787 = vmul.f32 %v1775, %v1619
        %v1788 = vmul.f32 %v1775, %v1620
        %v1789 = vmul.f32 %v1775, %v1621
        %v1790 = vmul.f32 %v1775, %v1622
        %v1791 = vmul.f32 %v1775, %v1623
        %v1792 = vadd.f32 %v1756, %v1776
        %v1793 = vadd.f32 %v1757, %v1777
        %v1794 = vadd.f32 %v1758, %v1778
        %v1795 = vadd.f32 %v1759, %v1779
        %v1796 = vadd.f32 %v1760, %v1780
        %v1797 = vadd.f32 %v1761, %v1781
        %v1798 = vadd.f32 %v1762, %v1782
        %v1799 = vadd.f32 %v1763, %v1783
        %v1800 = vadd.f32 %v1764, %v1784
        %v1801 = vadd.f32 %v1765, %v1785
        %v1802 = vadd.f32 %v1766, %v1786
        %v1803 = vadd.f32 %v1767, %v1787
        %v1804 = vadd.f32 %v1768, %v1788
        %v1805 = vadd.f32 %v1769, %v1789
        %v1806 = vadd.f32 %v1770, %v1790
        %v1807 = vadd.f32 %v1771, %v1791
        %v1808 = vlaneseq
        %v1809 = vshrl.u32 %v1808, 7
        %v1810 = vsub.s32 6, %v1809
        %v1811 = vrot.slane %v756, %v1810
        %v1812 = vmul.f32 %v1811, %v1610
        %v1813 = vmul.f32 %v1811, %v1611
        %v1814 = vmul.f32 %v1811, %v1612
        %v1815 = vmul.f32 %v1811, %v1613
        %v1816 = vmul.f32 %v1811, %v1614
        %v1817 = vmul.f32 %v1811, %v1615
        %v1818 = vmul.f32 %v1811, %v1616
        %v1819 = vmul.f32 %v1811, %v1617
        %v1820 = vmul.f32 %v1811, %v1618
        %v1821 = vmul.f32 %v1811, %v1619
        %v1822 = vmul.f32 %v1811, %v1620
        %v1823 = vmul.f32 %v1811, %v1621
        %v1824 = vmul.f32 %v1811, %v1622
        %v1825 = vmul.f32 %v1811, %v1623
        %v1826 = vmul.f32 %v1811, %v1624
        %v1827 = vmul.f32 %v1811, %v1625
        %v1828 = vadd.f32 %v1792, %v1812
        %v1829 = vadd.f32 %v1793, %v1813
        %v1830 = vadd.f32 %v1794, %v1814
        %v1831 = vadd.f32 %v1795, %v1815
        %v1832 = vadd.f32 %v1796, %v1816
        %v1833 = vadd.f32 %v1797, %v1817
        %v1834 = vadd.f32 %v1798, %v1818
        %v1835 = vadd.f32 %v1799, %v1819
        %v1836 = vadd.f32 %v1800, %v1820
        %v1837 = vadd.f32 %v1801, %v1821
        %v1838 = vadd.f32 %v1802, %v1822
        %v1839 = vadd.f32 %v1803, %v1823
        %v1840 = vadd.f32 %v1804, %v1824
        %v1841 = vadd.f32 %v1805, %v1825
        %v1842 = vadd.f32 %v1806, %v1826
        %v1843 = vadd.f32 %v1807, %v1827
        %v1844 = vlaneseq
        %v1845 = vshrl.u32 %v1844, 7
        %v1846 = vsub.s32 5, %v1845
        %v1847 = vrot.slane %v757, %v1846
        %v1848 = vmul.f32 %v1847, %v1612
        %v1849 = vmul.f32 %v1847, %v1613
        %v1850 = vmul.f32 %v1847, %v1614
        %v1851 = vmul.f32 %v1847, %v1615
        %v1852 = vmul.f32 %v1847, %v1616
        %v1853 = vmul.f32 %v1847, %v1617
        %v1854 = vmul.f32 %v1847, %v1618
        %v1855 = vmul.f32 %v1847, %v1619
        %v1856 = vmul.f32 %v1847, %v1620
        %v1857 = vmul.f32 %v1847, %v1621
        %v1858 = vmul.f32 %v1847, %v1622
        %v1859 = vmul.f32 %v1847, %v1623
        %v1860 = vmul.f32 %v1847, %v1624
        %v1861 = vmul.f32 %v1847, %v1625
        %v1862 = vmul.f32 %v1847, %v1626
        %v1863 = vmul.f32 %v1847, %v1627
        %v1864 = vadd.f32 %v1828, %v1848
        %v1865 = vadd.f32 %v1829, %v1849
        %v1866 = vadd.f32 %v1830, %v1850
        %v1867 = vadd.f32 %v1831, %v1851
        %v1868 = vadd.f32 %v1832, %v1852
        %v1869 = vadd.f32 %v1833, %v1853
        %v1870 = vadd.f32 %v1834, %v1854
        %v1871 = vadd.f32 %v1835, %v1855
        %v1872 = vadd.f32 %v1836, %v1856
        %v1873 = vadd.f32 %v1837, %v1857
        %v1874 = vadd.f32 %v1838, %v1858
        %v1875 = vadd.f32 %v1839, %v1859
        %v1876 = vadd.f32 %v1840, %v1860
        %v1877 = vadd.f32 %v1841, %v1861
        %v1878 = vadd.f32 %v1842, %v1862
        %v1879 = vadd.f32 %v1843, %v1863
        %v1880 = vld [vmem:[#allocation2 + $0x4] sm:$0xff]
        %v1881 = vld [vmem:[#allocation2 + $0xc] sm:$0xff]
        %v1882 = vld [vmem:[#allocation2 + $0x1c] sm:$0xff]
        %v1883 = vld [vmem:[#allocation2 + $0x24] sm:$0xff]
        %v1884 = vld [vmem:[#allocation2 + $0x34] sm:$0xff]
        %v1885 = vld [vmem:[#allocation2 + $0x3c] sm:$0xff]
        %v1886 = vld [vmem:[#allocation2 + $0x4c] sm:$0xff]
        %v1887 = vld [vmem:[#allocation2 + $0x54] sm:$0xff]
        %v1888 = vld [vmem:[#allocation2 + $0x64] sm:$0xff]
        %v1889 = vld [vmem:[#allocation2 + $0x6c] sm:$0xff]
        %v1890 = vld [vmem:[#allocation2 + $0x7c] sm:$0xff]
        %v1891 = vld [vmem:[#allocation2 + $0x84] sm:$0xff]
        %v1892 = vld [vmem:[#allocation2 + $0x94] sm:$0xff]
        %v1893 = vld [vmem:[#allocation2 + $0x9c] sm:$0xff]
        %v1894 = vld [vmem:[#allocation2 + $0xac] sm:$0xff]
        %v1895 = vld [vmem:[#allocation2 + $0xb4] sm:$0xff]
        %v1896 = vld [vmem:[#allocation2 + $0xc4] sm:$0xff]
        %v1897 = vld [vmem:[#allocation2 + $0xcc] sm:$0xff]
        %v1898 = vld [vmem:[#allocation2 + $0xdc] sm:$0xff]
        %v1899 = vld [vmem:[#allocation2 + $0xe4] sm:$0xff]
        %v1900 = vld [vmem:[#allocation2 + $0xf4] sm:$0xff]
        %v1901 = vld [vmem:[#allocation2 + $0xfc] sm:$0xff]
        %v1902 = vld [vmem:[#allocation2 + $0x10c] sm:$0xff]
        %v1903 = vld [vmem:[#allocation2 + $0x114] sm:$0xff]
        %v1904 = vld [vmem:[#allocation2 + $0x124] sm:$0xff]
        %v1905 = vld [vmem:[#allocation2 + $0x12c] sm:$0xff]
        %v1906 = vld [vmem:[#allocation2 + $0x13c] sm:$0xff]
        %v1907 = vld [vmem:[#allocation2 + $0x144] sm:$0xff]
        %v1908 = vlaneseq
        %v1909 = vshrl.u32 %v1908, 7
        %v1910 = vsub.s32 4, %v1909
        %v1911 = vrot.slane %v752, %v1910
        %v1912 = vmul.f32 %v1911, %v1880
        %v1913 = vmul.f32 %v1911, %v1881
        %v1914 = vmul.f32 %v1911, %v1882
        %v1915 = vmul.f32 %v1911, %v1883
        %v1916 = vmul.f32 %v1911, %v1884
        %v1917 = vmul.f32 %v1911, %v1885
        %v1918 = vmul.f32 %v1911, %v1886
        %v1919 = vmul.f32 %v1911, %v1887
        %v1920 = vmul.f32 %v1911, %v1888
        %v1921 = vmul.f32 %v1911, %v1889
        %v1922 = vmul.f32 %v1911, %v1890
        %v1923 = vmul.f32 %v1911, %v1891
        %v1924 = vmul.f32 %v1911, %v1892
        %v1925 = vmul.f32 %v1911, %v1893
        %v1926 = vmul.f32 %v1911, %v1894
        %v1927 = vmul.f32 %v1911, %v1895
        %v1928 = vadd.f32 %v1864, %v1912
        %v1929 = vadd.f32 %v1865, %v1913
        %v1930 = vadd.f32 %v1866, %v1914
        %v1931 = vadd.f32 %v1867, %v1915
        %v1932 = vadd.f32 %v1868, %v1916
        %v1933 = vadd.f32 %v1869, %v1917
        %v1934 = vadd.f32 %v1870, %v1918
        %v1935 = vadd.f32 %v1871, %v1919
        %v1936 = vadd.f32 %v1872, %v1920
        %v1937 = vadd.f32 %v1873, %v1921
        %v1938 = vadd.f32 %v1874, %v1922
        %v1939 = vadd.f32 %v1875, %v1923
        %v1940 = vadd.f32 %v1876, %v1924
        %v1941 = vadd.f32 %v1877, %v1925
        %v1942 = vadd.f32 %v1878, %v1926
        %v1943 = vadd.f32 %v1879, %v1927
        %v1944 = vlaneseq
        %v1945 = vshrl.u32 %v1944, 7
        %v1946 = vsub.s32 3, %v1945
        %v1947 = vrot.slane %v753, %v1946
        %v1948 = vmul.f32 %v1947, %v1882
        %v1949 = vmul.f32 %v1947, %v1883
        %v1950 = vmul.f32 %v1947, %v1884
        %v1951 = vmul.f32 %v1947, %v1885
        %v1952 = vmul.f32 %v1947, %v1886
        %v1953 = vmul.f32 %v1947, %v1887
        %v1954 = vmul.f32 %v1947, %v1888
        %v1955 = vmul.f32 %v1947, %v1889
        %v1956 = vmul.f32 %v1947, %v1890
        %v1957 = vmul.f32 %v1947, %v1891
        %v1958 = vmul.f32 %v1947, %v1892
        %v1959 = vmul.f32 %v1947, %v1893
        %v1960 = vmul.f32 %v1947, %v1894
        %v1961 = vmul.f32 %v1947, %v1895
        %v1962 = vmul.f32 %v1947, %v1896
        %v1963 = vmul.f32 %v1947, %v1897
        %v1964 = vadd.f32 %v1928, %v1948
        %v1965 = vadd.f32 %v1929, %v1949
        %v1966 = vadd.f32 %v1930, %v1950
        %v1967 = vadd.f32 %v1931, %v1951
        %v1968 = vadd.f32 %v1932, %v1952
        %v1969 = vadd.f32 %v1933, %v1953
        %v1970 = vadd.f32 %v1934, %v1954
        %v1971 = vadd.f32 %v1935, %v1955
        %v1972 = vadd.f32 %v1936, %v1956
        %v1973 = vadd.f32 %v1937, %v1957
        %v1974 = vadd.f32 %v1938, %v1958
        %v1975 = vadd.f32 %v1939, %v1959
        %v1976 = vadd.f32 %v1940, %v1960
        %v1977 = vadd.f32 %v1941, %v1961
        %v1978 = vadd.f32 %v1942, %v1962
        %v1979 = vadd.f32 %v1943, %v1963
        %v1980 = vlaneseq
        %v1981 = vshrl.u32 %v1980, 7
        %v1982 = vsub.s32 2, %v1981
        %v1983 = vrot.slane %v754, %v1982
        %v1984 = vmul.f32 %v1983, %v1884
        %v1985 = vmul.f32 %v1983, %v1885
        %v1986 = vmul.f32 %v1983, %v1886
        %v1987 = vmul.f32 %v1983, %v1887
        %v1988 = vmul.f32 %v1983, %v1888
        %v1989 = vmul.f32 %v1983, %v1889
        %v1990 = vmul.f32 %v1983, %v1890
        %v1991 = vmul.f32 %v1983, %v1891
        %v1992 = vmul.f32 %v1983, %v1892
        %v1993 = vmul.f32 %v1983, %v1893
        %v1994 = vmul.f32 %v1983, %v1894
        %v1995 = vmul.f32 %v1983, %v1895
        %v1996 = vmul.f32 %v1983, %v1896
        %v1997 = vmul.f32 %v1983, %v1897
        %v1998 = vmul.f32 %v1983, %v1898
        %v1999 = vmul.f32 %v1983, %v1899
        %v2000 = vadd.f32 %v1964, %v1984
        %v2001 = vadd.f32 %v1965, %v1985
        %v2002 = vadd.f32 %v1966, %v1986
        %v2003 = vadd.f32 %v1967, %v1987
        %v2004 = vadd.f32 %v1968, %v1988
        %v2005 = vadd.f32 %v1969, %v1989
        %v2006 = vadd.f32 %v1970, %v1990
        %v2007 = vadd.f32 %v1971, %v1991
        %v2008 = vadd.f32 %v1972, %v1992
        %v2009 = vadd.f32 %v1973, %v1993
        %v2010 = vadd.f32 %v1974, %v1994
        %v2011 = vadd.f32 %v1975, %v1995
        %v2012 = vadd.f32 %v1976, %v1996
        %v2013 = vadd.f32 %v1977, %v1997
        %v2014 = vadd.f32 %v1978, %v1998
        %v2015 = vadd.f32 %v1979, %v1999
        %v2016 = vlaneseq
        %v2017 = vshrl.u32 %v2016, 7
        %v2018 = vsub.s32 1, %v2017
        %v2019 = vrot.slane %v755, %v2018
        %v2020 = vmul.f32 %v2019, %v1886
        %v2021 = vmul.f32 %v2019, %v1887
        %v2022 = vmul.f32 %v2019, %v1888
        %v2023 = vmul.f32 %v2019, %v1889
        %v2024 = vmul.f32 %v2019, %v1890
        %v2025 = vmul.f32 %v2019, %v1891
        %v2026 = vmul.f32 %v2019, %v1892
        %v2027 = vmul.f32 %v2019, %v1893
        %v2028 = vmul.f32 %v2019, %v1894
        %v2029 = vmul.f32 %v2019, %v1895
        %v2030 = vmul.f32 %v2019, %v1896
        %v2031 = vmul.f32 %v2019, %v1897
        %v2032 = vmul.f32 %v2019, %v1898
        %v2033 = vmul.f32 %v2019, %v1899
        %v2034 = vmul.f32 %v2019, %v1900
        %v2035 = vmul.f32 %v2019, %v1901
        %v2036 = vadd.f32 %v2000, %v2020
        %v2037 = vadd.f32 %v2001, %v2021
        %v2038 = vadd.f32 %v2002, %v2022
        %v2039 = vadd.f32 %v2003, %v2023
        %v2040 = vadd.f32 %v2004, %v2024
        %v2041 = vadd.f32 %v2005, %v2025
        %v2042 = vadd.f32 %v2006, %v2026
        %v2043 = vadd.f32 %v2007, %v2027
        %v2044 = vadd.f32 %v2008, %v2028
        %v2045 = vadd.f32 %v2009, %v2029
        %v2046 = vadd.f32 %v2010, %v2030
        %v2047 = vadd.f32 %v2011, %v2031
        %v2048 = vadd.f32 %v2012, %v2032
        %v2049 = vadd.f32 %v2013, %v2033
        %v2050 = vadd.f32 %v2014, %v2034
        %v2051 = vadd.f32 %v2015, %v2035
        %v2052 = vlaneseq
        %v2053 = vshrl.u32 %v2052, 7
        %v2054 = vsub.s32 0, %v2053
        %v2055 = vrot.slane %v756, %v2054
        %v2056 = vmul.f32 %v2055, %v1888
        %v2057 = vmul.f32 %v2055, %v1889
        %v2058 = vmul.f32 %v2055, %v1890
        %v2059 = vmul.f32 %v2055, %v1891
        %v2060 = vmul.f32 %v2055, %v1892
        %v2061 = vmul.f32 %v2055, %v1893
        %v2062 = vmul.f32 %v2055, %v1894
        %v2063 = vmul.f32 %v2055, %v1895
        %v2064 = vmul.f32 %v2055, %v1896
        %v2065 = vmul.f32 %v2055, %v1897
        %v2066 = vmul.f32 %v2055, %v1898
        %v2067 = vmul.f32 %v2055, %v1899
        %v2068 = vmul.f32 %v2055, %v1900
        %v2069 = vmul.f32 %v2055, %v1901
        %v2070 = vmul.f32 %v2055, %v1902
        %v2071 = vmul.f32 %v2055, %v1903
        %v2072 = vadd.f32 %v2036, %v2056
        %v2073 = vadd.f32 %v2037, %v2057
        %v2074 = vadd.f32 %v2038, %v2058
        %v2075 = vadd.f32 %v2039, %v2059
        %v2076 = vadd.f32 %v2040, %v2060
        %v2077 = vadd.f32 %v2041, %v2061
        %v2078 = vadd.f32 %v2042, %v2062
        %v2079 = vadd.f32 %v2043, %v2063
        %v2080 = vadd.f32 %v2044, %v2064
        %v2081 = vadd.f32 %v2045, %v2065
        %v2082 = vadd.f32 %v2046, %v2066
        %v2083 = vadd.f32 %v2047, %v2067
        %v2084 = vadd.f32 %v2048, %v2068
        %v2085 = vadd.f32 %v2049, %v2069
        %v2086 = vadd.f32 %v2050, %v2070
        %v2087 = vadd.f32 %v2051, %v2071
        %v2088 = vlaneseq
        %v2089 = vshrl.u32 %v2088, 7
        %v2090 = vsub.s32 7, %v2089
        %v2091 = vrot.slane %v756, %v2090
        %v2092 = vmul.f32 %v2091, %v1890
        %v2093 = vmul.f32 %v2091, %v1891
        %v2094 = vmul.f32 %v2091, %v1892
        %v2095 = vmul.f32 %v2091, %v1893
        %v2096 = vmul.f32 %v2091, %v1894
        %v2097 = vmul.f32 %v2091, %v1895
        %v2098 = vmul.f32 %v2091, %v1896
        %v2099 = vmul.f32 %v2091, %v1897
        %v2100 = vmul.f32 %v2091, %v1898
        %v2101 = vmul.f32 %v2091, %v1899
        %v2102 = vmul.f32 %v2091, %v1900
        %v2103 = vmul.f32 %v2091, %v1901
        %v2104 = vmul.f32 %v2091, %v1902
        %v2105 = vmul.f32 %v2091, %v1903
        %v2106 = vmul.f32 %v2091, %v1904
        %v2107 = vmul.f32 %v2091, %v1905
        %v2108 = vadd.f32 %v2072, %v2092
        %v2109 = vadd.f32 %v2073, %v2093
        %v2110 = vadd.f32 %v2074, %v2094
        %v2111 = vadd.f32 %v2075, %v2095
        %v2112 = vadd.f32 %v2076, %v2096
        %v2113 = vadd.f32 %v2077, %v2097
        %v2114 = vadd.f32 %v2078, %v2098
        %v2115 = vadd.f32 %v2079, %v2099
        %v2116 = vadd.f32 %v2080, %v2100
        %v2117 = vadd.f32 %v2081, %v2101
        %v2118 = vadd.f32 %v2082, %v2102
        %v2119 = vadd.f32 %v2083, %v2103
        %v2120 = vadd.f32 %v2084, %v2104
        %v2121 = vadd.f32 %v2085, %v2105
        %v2122 = vadd.f32 %v2086, %v2106
        %v2123 = vadd.f32 %v2087, %v2107
        %v2124 = vlaneseq
        %v2125 = vshrl.u32 %v2124, 7
        %v2126 = vsub.s32 6, %v2125
        %v2127 = vrot.slane %v757, %v2126
        %v2128 = vmul.f32 %v2127, %v1892
        %v2129 = vmul.f32 %v2127, %v1893
        %v2130 = vmul.f32 %v2127, %v1894
        %v2131 = vmul.f32 %v2127, %v1895
        %v2132 = vmul.f32 %v2127, %v1896
        %v2133 = vmul.f32 %v2127, %v1897
        %v2134 = vmul.f32 %v2127, %v1898
        %v2135 = vmul.f32 %v2127, %v1899
        %v2136 = vmul.f32 %v2127, %v1900
        %v2137 = vmul.f32 %v2127, %v1901
        %v2138 = vmul.f32 %v2127, %v1902
        %v2139 = vmul.f32 %v2127, %v1903
        %v2140 = vmul.f32 %v2127, %v1904
        %v2141 = vmul.f32 %v2127, %v1905
        %v2142 = vmul.f32 %v2127, %v1906
        %v2143 = vmul.f32 %v2127, %v1907
        %v2144 = vadd.f32 %v2108, %v2128
        %v2145 = vadd.f32 %v2109, %v2129
        %v2146 = vadd.f32 %v2110, %v2130
        %v2147 = vadd.f32 %v2111, %v2131
        %v2148 = vadd.f32 %v2112, %v2132
        %v2149 = vadd.f32 %v2113, %v2133
        %v2150 = vadd.f32 %v2114, %v2134
        %v2151 = vadd.f32 %v2115, %v2135
        %v2152 = vadd.f32 %v2116, %v2136
        %v2153 = vadd.f32 %v2117, %v2137
        %v2154 = vadd.f32 %v2118, %v2138
        %v2155 = vadd.f32 %v2119, %v2139
        %v2156 = vadd.f32 %v2120, %v2140
        %v2157 = vadd.f32 %v2121, %v2141
        %v2158 = vadd.f32 %v2122, %v2142
        %v2159 = vadd.f32 %v2123, %v2143
        %v2160 = vld [vmem:[#allocation2 + $0x5] sm:$0xff]
        %v2161 = vld [vmem:[#allocation2 + $0xd] sm:$0xff]
        %v2162 = vld [vmem:[#allocation2 + $0x1d] sm:$0xff]
        %v2163 = vld [vmem:[#allocation2 + $0x25] sm:$0xff]
        %v2164 = vld [vmem:[#allocation2 + $0x35] sm:$0xff]
        %v2165 = vld [vmem:[#allocation2 + $0x3d] sm:$0xff]
        %v2166 = vld [vmem:[#allocation2 + $0x4d] sm:$0xff]
        %v2167 = vld [vmem:[#allocation2 + $0x55] sm:$0xff]
        %v2168 = vld [vmem:[#allocation2 + $0x65] sm:$0xff]
        %v2169 = vld [vmem:[#allocation2 + $0x6d] sm:$0xff]
        %v2170 = vld [vmem:[#allocation2 + $0x7d] sm:$0xff]
        %v2171 = vld [vmem:[#allocation2 + $0x85] sm:$0xff]
        %v2172 = vld [vmem:[#allocation2 + $0x95] sm:$0xff]
        %v2173 = vld [vmem:[#allocation2 + $0x9d] sm:$0xff]
        %v2174 = vld [vmem:[#allocation2 + $0xad] sm:$0xff]
        %v2175 = vld [vmem:[#allocation2 + $0xb5] sm:$0xff]
        %v2176 = vld [vmem:[#allocation2 + $0xc5] sm:$0xff]
        %v2177 = vld [vmem:[#allocation2 + $0xcd] sm:$0xff]
        %v2178 = vld [vmem:[#allocation2 + $0xdd] sm:$0xff]
        %v2179 = vld [vmem:[#allocation2 + $0xe5] sm:$0xff]
        %v2180 = vld [vmem:[#allocation2 + $0xf5] sm:$0xff]
        %v2181 = vld [vmem:[#allocation2 + $0xfd] sm:$0xff]
        %v2182 = vld [vmem:[#allocation2 + $0x10d] sm:$0xff]
        %v2183 = vld [vmem:[#allocation2 + $0x115] sm:$0xff]
        %v2184 = vld [vmem:[#allocation2 + $0x125] sm:$0xff]
        %v2185 = vld [vmem:[#allocation2 + $0x12d] sm:$0xff]
        %v2186 = vld [vmem:[#allocation2 + $0x13d] sm:$0xff]
        %v2187 = vld [vmem:[#allocation2 + $0x145] sm:$0xff]
        %v2188 = vlaneseq
        %v2189 = vshrl.u32 %v2188, 7
        %v2190 = vsub.s32 5, %v2189
        %v2191 = vrot.slane %v752, %v2190
        %v2192 = vmul.f32 %v2191, %v2160
        %v2193 = vmul.f32 %v2191, %v2161
        %v2194 = vmul.f32 %v2191, %v2162
        %v2195 = vmul.f32 %v2191, %v2163
        %v2196 = vmul.f32 %v2191, %v2164
        %v2197 = vmul.f32 %v2191, %v2165
        %v2198 = vmul.f32 %v2191, %v2166
        %v2199 = vmul.f32 %v2191, %v2167
        %v2200 = vmul.f32 %v2191, %v2168
        %v2201 = vmul.f32 %v2191, %v2169
        %v2202 = vmul.f32 %v2191, %v2170
        %v2203 = vmul.f32 %v2191, %v2171
        %v2204 = vmul.f32 %v2191, %v2172
        %v2205 = vmul.f32 %v2191, %v2173
        %v2206 = vmul.f32 %v2191, %v2174
        %v2207 = vmul.f32 %v2191, %v2175
        %v2208 = vadd.f32 %v2144, %v2192
        %v2209 = vadd.f32 %v2145, %v2193
        %v2210 = vadd.f32 %v2146, %v2194
        %v2211 = vadd.f32 %v2147, %v2195
        %v2212 = vadd.f32 %v2148, %v2196
        %v2213 = vadd.f32 %v2149, %v2197
        %v2214 = vadd.f32 %v2150, %v2198
        %v2215 = vadd.f32 %v2151, %v2199
        %v2216 = vadd.f32 %v2152, %v2200
        %v2217 = vadd.f32 %v2153, %v2201
        %v2218 = vadd.f32 %v2154, %v2202
        %v2219 = vadd.f32 %v2155, %v2203
        %v2220 = vadd.f32 %v2156, %v2204
        %v2221 = vadd.f32 %v2157, %v2205
        %v2222 = vadd.f32 %v2158, %v2206
        %v2223 = vadd.f32 %v2159, %v2207
        %v2224 = vlaneseq
        %v2225 = vshrl.u32 %v2224, 7
        %v2226 = vsub.s32 4, %v2225
        %v2227 = vrot.slane %v753, %v2226
        %v2228 = vmul.f32 %v2227, %v2162
        %v2229 = vmul.f32 %v2227, %v2163
        %v2230 = vmul.f32 %v2227, %v2164
        %v2231 = vmul.f32 %v2227, %v2165
        %v2232 = vmul.f32 %v2227, %v2166
        %v2233 = vmul.f32 %v2227, %v2167
        %v2234 = vmul.f32 %v2227, %v2168
        %v2235 = vmul.f32 %v2227, %v2169
        %v2236 = vmul.f32 %v2227, %v2170
        %v2237 = vmul.f32 %v2227, %v2171
        %v2238 = vmul.f32 %v2227, %v2172
        %v2239 = vmul.f32 %v2227, %v2173
        %v2240 = vmul.f32 %v2227, %v2174
        %v2241 = vmul.f32 %v2227, %v2175
        %v2242 = vmul.f32 %v2227, %v2176
        %v2243 = vmul.f32 %v2227, %v2177
        %v2244 = vadd.f32 %v2208, %v2228
        %v2245 = vadd.f32 %v2209, %v2229
        %v2246 = vadd.f32 %v2210, %v2230
        %v2247 = vadd.f32 %v2211, %v2231
        %v2248 = vadd.f32 %v2212, %v2232
        %v2249 = vadd.f32 %v2213, %v2233
        %v2250 = vadd.f32 %v2214, %v2234
        %v2251 = vadd.f32 %v2215, %v2235
        %v2252 = vadd.f32 %v2216, %v2236
        %v2253 = vadd.f32 %v2217, %v2237
        %v2254 = vadd.f32 %v2218, %v2238
        %v2255 = vadd.f32 %v2219, %v2239
        %v2256 = vadd.f32 %v2220, %v2240
        %v2257 = vadd.f32 %v2221, %v2241
        %v2258 = vadd.f32 %v2222, %v2242
        %v2259 = vadd.f32 %v2223, %v2243
        %v2260 = vlaneseq
        %v2261 = vshrl.u32 %v2260, 7
        %v2262 = vsub.s32 3, %v2261
        %v2263 = vrot.slane %v754, %v2262
        %v2264 = vmul.f32 %v2263, %v2164
        %v2265 = vmul.f32 %v2263, %v2165
        %v2266 = vmul.f32 %v2263, %v2166
        %v2267 = vmul.f32 %v2263, %v2167
        %v2268 = vmul.f32 %v2263, %v2168
        %v2269 = vmul.f32 %v2263, %v2169
        %v2270 = vmul.f32 %v2263, %v2170
        %v2271 = vmul.f32 %v2263, %v2171
        %v2272 = vmul.f32 %v2263, %v2172
        %v2273 = vmul.f32 %v2263, %v2173
        %v2274 = vmul.f32 %v2263, %v2174
        %v2275 = vmul.f32 %v2263, %v2175
        %v2276 = vmul.f32 %v2263, %v2176
        %v2277 = vmul.f32 %v2263, %v2177
        %v2278 = vmul.f32 %v2263, %v2178
        %v2279 = vmul.f32 %v2263, %v2179
        %v2280 = vadd.f32 %v2244, %v2264
        %v2281 = vadd.f32 %v2245, %v2265
        %v2282 = vadd.f32 %v2246, %v2266
        %v2283 = vadd.f32 %v2247, %v2267
        %v2284 = vadd.f32 %v2248, %v2268
        %v2285 = vadd.f32 %v2249, %v2269
        %v2286 = vadd.f32 %v2250, %v2270
        %v2287 = vadd.f32 %v2251, %v2271
        %v2288 = vadd.f32 %v2252, %v2272
        %v2289 = vadd.f32 %v2253, %v2273
        %v2290 = vadd.f32 %v2254, %v2274
        %v2291 = vadd.f32 %v2255, %v2275
        %v2292 = vadd.f32 %v2256, %v2276
        %v2293 = vadd.f32 %v2257, %v2277
        %v2294 = vadd.f32 %v2258, %v2278
        %v2295 = vadd.f32 %v2259, %v2279
        %v2296 = vlaneseq
        %v2297 = vshrl.u32 %v2296, 7
        %v2298 = vsub.s32 2, %v2297
        %v2299 = vrot.slane %v755, %v2298
        %v2300 = vmul.f32 %v2299, %v2166
        %v2301 = vmul.f32 %v2299, %v2167
        %v2302 = vmul.f32 %v2299, %v2168
        %v2303 = vmul.f32 %v2299, %v2169
        %v2304 = vmul.f32 %v2299, %v2170
        %v2305 = vmul.f32 %v2299, %v2171
        %v2306 = vmul.f32 %v2299, %v2172
        %v2307 = vmul.f32 %v2299, %v2173
        %v2308 = vmul.f32 %v2299, %v2174
        %v2309 = vmul.f32 %v2299, %v2175
        %v2310 = vmul.f32 %v2299, %v2176
        %v2311 = vmul.f32 %v2299, %v2177
        %v2312 = vmul.f32 %v2299, %v2178
        %v2313 = vmul.f32 %v2299, %v2179
        %v2314 = vmul.f32 %v2299, %v2180
        %v2315 = vmul.f32 %v2299, %v2181
        %v2316 = vadd.f32 %v2280, %v2300
        %v2317 = vadd.f32 %v2281, %v2301
        %v2318 = vadd.f32 %v2282, %v2302
        %v2319 = vadd.f32 %v2283, %v2303
        %v2320 = vadd.f32 %v2284, %v2304
        %v2321 = vadd.f32 %v2285, %v2305
        %v2322 = vadd.f32 %v2286, %v2306
        %v2323 = vadd.f32 %v2287, %v2307
        %v2324 = vadd.f32 %v2288, %v2308
        %v2325 = vadd.f32 %v2289, %v2309
        %v2326 = vadd.f32 %v2290, %v2310
        %v2327 = vadd.f32 %v2291, %v2311
        %v2328 = vadd.f32 %v2292, %v2312
        %v2329 = vadd.f32 %v2293, %v2313
        %v2330 = vadd.f32 %v2294, %v2314
        %v2331 = vadd.f32 %v2295, %v2315
        %v2332 = vlaneseq
        %v2333 = vshrl.u32 %v2332, 7
        %v2334 = vsub.s32 1, %v2333
        %v2335 = vrot.slane %v756, %v2334
        %v2336 = vmul.f32 %v2335, %v2168
        %v2337 = vmul.f32 %v2335, %v2169
        %v2338 = vmul.f32 %v2335, %v2170
        %v2339 = vmul.f32 %v2335, %v2171
        %v2340 = vmul.f32 %v2335, %v2172
        %v2341 = vmul.f32 %v2335, %v2173
        %v2342 = vmul.f32 %v2335, %v2174
        %v2343 = vmul.f32 %v2335, %v2175
        %v2344 = vmul.f32 %v2335, %v2176
        %v2345 = vmul.f32 %v2335, %v2177
        %v2346 = vmul.f32 %v2335, %v2178
        %v2347 = vmul.f32 %v2335, %v2179
        %v2348 = vmul.f32 %v2335, %v2180
        %v2349 = vmul.f32 %v2335, %v2181
        %v2350 = vmul.f32 %v2335, %v2182
        %v2351 = vmul.f32 %v2335, %v2183
        %v2352 = vadd.f32 %v2316, %v2336
        %v2353 = vadd.f32 %v2317, %v2337
        %v2354 = vadd.f32 %v2318, %v2338
        %v2355 = vadd.f32 %v2319, %v2339
        %v2356 = vadd.f32 %v2320, %v2340
        %v2357 = vadd.f32 %v2321, %v2341
        %v2358 = vadd.f32 %v2322, %v2342
        %v2359 = vadd.f32 %v2323, %v2343
        %v2360 = vadd.f32 %v2324, %v2344
        %v2361 = vadd.f32 %v2325, %v2345
        %v2362 = vadd.f32 %v2326, %v2346
        %v2363 = vadd.f32 %v2327, %v2347
        %v2364 = vadd.f32 %v2328, %v2348
        %v2365 = vadd.f32 %v2329, %v2349
        %v2366 = vadd.f32 %v2330, %v2350
        %v2367 = vadd.f32 %v2331, %v2351
        %v2368 = vlaneseq
        %v2369 = vshrl.u32 %v2368, 7
        %v2370 = vsub.s32 0, %v2369
        %v2371 = vrot.slane %v757, %v2370
        %v2372 = vmul.f32 %v2371, %v2170
        %v2373 = vmul.f32 %v2371, %v2171
        %v2374 = vmul.f32 %v2371, %v2172
        %v2375 = vmul.f32 %v2371, %v2173
        %v2376 = vmul.f32 %v2371, %v2174
        %v2377 = vmul.f32 %v2371, %v2175
        %v2378 = vmul.f32 %v2371, %v2176
        %v2379 = vmul.f32 %v2371, %v2177
        %v2380 = vmul.f32 %v2371, %v2178
        %v2381 = vmul.f32 %v2371, %v2179
        %v2382 = vmul.f32 %v2371, %v2180
        %v2383 = vmul.f32 %v2371, %v2181
        %v2384 = vmul.f32 %v2371, %v2182
        %v2385 = vmul.f32 %v2371, %v2183
        %v2386 = vmul.f32 %v2371, %v2184
        %v2387 = vmul.f32 %v2371, %v2185
        %v2388 = vadd.f32 %v2352, %v2372
        %v2389 = vadd.f32 %v2353, %v2373
        %v2390 = vadd.f32 %v2354, %v2374
        %v2391 = vadd.f32 %v2355, %v2375
        %v2392 = vadd.f32 %v2356, %v2376
        %v2393 = vadd.f32 %v2357, %v2377
        %v2394 = vadd.f32 %v2358, %v2378
        %v2395 = vadd.f32 %v2359, %v2379
        %v2396 = vadd.f32 %v2360, %v2380
        %v2397 = vadd.f32 %v2361, %v2381
        %v2398 = vadd.f32 %v2362, %v2382
        %v2399 = vadd.f32 %v2363, %v2383
        %v2400 = vadd.f32 %v2364, %v2384
        %v2401 = vadd.f32 %v2365, %v2385
        %v2402 = vadd.f32 %v2366, %v2386
        %v2403 = vadd.f32 %v2367, %v2387
        %v2404 = vlaneseq
        %v2405 = vshrl.u32 %v2404, 7
        %v2406 = vsub.s32 7, %v2405
        %v2407 = vrot.slane %v757, %v2406
        %v2408 = vmul.f32 %v2407, %v2172
        %v2409 = vmul.f32 %v2407, %v2173
        %v2410 = vmul.f32 %v2407, %v2174
        %v2411 = vmul.f32 %v2407, %v2175
        %v2412 = vmul.f32 %v2407, %v2176
        %v2413 = vmul.f32 %v2407, %v2177
        %v2414 = vmul.f32 %v2407, %v2178
        %v2415 = vmul.f32 %v2407, %v2179
        %v2416 = vmul.f32 %v2407, %v2180
        %v2417 = vmul.f32 %v2407, %v2181
        %v2418 = vmul.f32 %v2407, %v2182
        %v2419 = vmul.f32 %v2407, %v2183
        %v2420 = vmul.f32 %v2407, %v2184
        %v2421 = vmul.f32 %v2407, %v2185
        %v2422 = vmul.f32 %v2407, %v2186
        %v2423 = vmul.f32 %v2407, %v2187
        %v2424 = vadd.f32 %v2388, %v2408
        %v2425 = vadd.f32 %v2389, %v2409
        %v2426 = vadd.f32 %v2390, %v2410
        %v2427 = vadd.f32 %v2391, %v2411
        %v2428 = vadd.f32 %v2392, %v2412
        %v2429 = vadd.f32 %v2393, %v2413
        %v2430 = vadd.f32 %v2394, %v2414
        %v2431 = vadd.f32 %v2395, %v2415
        %v2432 = vadd.f32 %v2396, %v2416
        %v2433 = vadd.f32 %v2397, %v2417
        %v2434 = vadd.f32 %v2398, %v2418
        %v2435 = vadd.f32 %v2399, %v2419
        %v2436 = vadd.f32 %v2400, %v2420
        %v2437 = vadd.f32 %v2401, %v2421
        %v2438 = vadd.f32 %v2402, %v2422
        %v2439 = vadd.f32 %v2403, %v2423
        %v2440 = vld [vmem:[#allocation2 + $0x6] sm:$0xff]
        %v2441 = vld [vmem:[#allocation2 + $0xe] sm:$0xff]
        %v2442 = vld [vmem:[#allocation2 + $0x1e] sm:$0xff]
        %v2443 = vld [vmem:[#allocation2 + $0x26] sm:$0xff]
        %v2444 = vld [vmem:[#allocation2 + $0x36] sm:$0xff]
        %v2445 = vld [vmem:[#allocation2 + $0x3e] sm:$0xff]
        %v2446 = vld [vmem:[#allocation2 + $0x4e] sm:$0xff]
        %v2447 = vld [vmem:[#allocation2 + $0x56] sm:$0xff]
        %v2448 = vld [vmem:[#allocation2 + $0x66] sm:$0xff]
        %v2449 = vld [vmem:[#allocation2 + $0x6e] sm:$0xff]
        %v2450 = vld [vmem:[#allocation2 + $0x7e] sm:$0xff]
        %v2451 = vld [vmem:[#allocation2 + $0x86] sm:$0xff]
        %v2452 = vld [vmem:[#allocation2 + $0x96] sm:$0xff]
        %v2453 = vld [vmem:[#allocation2 + $0x9e] sm:$0xff]
        %v2454 = vld [vmem:[#allocation2 + $0xae] sm:$0xff]
        %v2455 = vld [vmem:[#allocation2 + $0xb6] sm:$0xff]
        %v2456 = vld [vmem:[#allocation2 + $0xc6] sm:$0xff]
        %v2457 = vld [vmem:[#allocation2 + $0xce] sm:$0xff]
        %v2458 = vld [vmem:[#allocation2 + $0xde] sm:$0xff]
        %v2459 = vld [vmem:[#allocation2 + $0xe6] sm:$0xff]
        %v2460 = vld [vmem:[#allocation2 + $0xf6] sm:$0xff]
        %v2461 = vld [vmem:[#allocation2 + $0xfe] sm:$0xff]
        %v2462 = vld [vmem:[#allocation2 + $0x10e] sm:$0xff]
        %v2463 = vld [vmem:[#allocation2 + $0x116] sm:$0xff]
        %v2464 = vld [vmem:[#allocation2 + $0x126] sm:$0xff]
        %v2465 = vld [vmem:[#allocation2 + $0x12e] sm:$0xff]
        %v2466 = vld [vmem:[#allocation2 + $0x13e] sm:$0xff]
        %v2467 = vld [vmem:[#allocation2 + $0x146] sm:$0xff]
        %v2468 = vlaneseq
        %v2469 = vshrl.u32 %v2468, 7
        %v2470 = vsub.s32 6, %v2469
        %v2471 = vrot.slane %v752, %v2470
        %v2472 = vmul.f32 %v2471, %v2440
        %v2473 = vmul.f32 %v2471, %v2441
        %v2474 = vmul.f32 %v2471, %v2442
        %v2475 = vmul.f32 %v2471, %v2443
        %v2476 = vmul.f32 %v2471, %v2444
        %v2477 = vmul.f32 %v2471, %v2445
        %v2478 = vmul.f32 %v2471, %v2446
        %v2479 = vmul.f32 %v2471, %v2447
        %v2480 = vmul.f32 %v2471, %v2448
        %v2481 = vmul.f32 %v2471, %v2449
        %v2482 = vmul.f32 %v2471, %v2450
        %v2483 = vmul.f32 %v2471, %v2451
        %v2484 = vmul.f32 %v2471, %v2452
        %v2485 = vmul.f32 %v2471, %v2453
        %v2486 = vmul.f32 %v2471, %v2454
        %v2487 = vmul.f32 %v2471, %v2455
        %v2488 = vadd.f32 %v2424, %v2472
        %v2489 = vadd.f32 %v2425, %v2473
        %v2490 = vadd.f32 %v2426, %v2474
        %v2491 = vadd.f32 %v2427, %v2475
        %v2492 = vadd.f32 %v2428, %v2476
        %v2493 = vadd.f32 %v2429, %v2477
        %v2494 = vadd.f32 %v2430, %v2478
        %v2495 = vadd.f32 %v2431, %v2479
        %v2496 = vadd.f32 %v2432, %v2480
        %v2497 = vadd.f32 %v2433, %v2481
        %v2498 = vadd.f32 %v2434, %v2482
        %v2499 = vadd.f32 %v2435, %v2483
        %v2500 = vadd.f32 %v2436, %v2484
        %v2501 = vadd.f32 %v2437, %v2485
        %v2502 = vadd.f32 %v2438, %v2486
        %v2503 = vadd.f32 %v2439, %v2487
        %v2504 = vlaneseq
        %v2505 = vshrl.u32 %v2504, 7
        %v2506 = vsub.s32 5, %v2505
        %v2507 = vrot.slane %v753, %v2506
        %v2508 = vmul.f32 %v2507, %v2442
        %v2509 = vmul.f32 %v2507, %v2443
        %v2510 = vmul.f32 %v2507, %v2444
        %v2511 = vmul.f32 %v2507, %v2445
        %v2512 = vmul.f32 %v2507, %v2446
        %v2513 = vmul.f32 %v2507, %v2447
        %v2514 = vmul.f32 %v2507, %v2448
        %v2515 = vmul.f32 %v2507, %v2449
        %v2516 = vmul.f32 %v2507, %v2450
        %v2517 = vmul.f32 %v2507, %v2451
        %v2518 = vmul.f32 %v2507, %v2452
        %v2519 = vmul.f32 %v2507, %v2453
        %v2520 = vmul.f32 %v2507, %v2454
        %v2521 = vmul.f32 %v2507, %v2455
        %v2522 = vmul.f32 %v2507, %v2456
        %v2523 = vmul.f32 %v2507, %v2457
        %v2524 = vadd.f32 %v2488, %v2508
        %v2525 = vadd.f32 %v2489, %v2509
        %v2526 = vadd.f32 %v2490, %v2510
        %v2527 = vadd.f32 %v2491, %v2511
        %v2528 = vadd.f32 %v2492, %v2512
        %v2529 = vadd.f32 %v2493, %v2513
        %v2530 = vadd.f32 %v2494, %v2514
        %v2531 = vadd.f32 %v2495, %v2515
        %v2532 = vadd.f32 %v2496, %v2516
        %v2533 = vadd.f32 %v2497, %v2517
        %v2534 = vadd.f32 %v2498, %v2518
        %v2535 = vadd.f32 %v2499, %v2519
        %v2536 = vadd.f32 %v2500, %v2520
        %v2537 = vadd.f32 %v2501, %v2521
        %v2538 = vadd.f32 %v2502, %v2522
        %v2539 = vadd.f32 %v2503, %v2523
        %v2540 = vlaneseq
        %v2541 = vshrl.u32 %v2540, 7
        %v2542 = vsub.s32 4, %v2541
        %v2543 = vrot.slane %v754, %v2542
        %v2544 = vmul.f32 %v2543, %v2444
        %v2545 = vmul.f32 %v2543, %v2445
        %v2546 = vmul.f32 %v2543, %v2446
        %v2547 = vmul.f32 %v2543, %v2447
        %v2548 = vmul.f32 %v2543, %v2448
        %v2549 = vmul.f32 %v2543, %v2449
        %v2550 = vmul.f32 %v2543, %v2450
        %v2551 = vmul.f32 %v2543, %v2451
        %v2552 = vmul.f32 %v2543, %v2452
        %v2553 = vmul.f32 %v2543, %v2453
        %v2554 = vmul.f32 %v2543, %v2454
        %v2555 = vmul.f32 %v2543, %v2455
        %v2556 = vmul.f32 %v2543, %v2456
        %v2557 = vmul.f32 %v2543, %v2457
        %v2558 = vmul.f32 %v2543, %v2458
        %v2559 = vmul.f32 %v2543, %v2459
        %v2560 = vadd.f32 %v2524, %v2544
        %v2561 = vadd.f32 %v2525, %v2545
        %v2562 = vadd.f32 %v2526, %v2546
        %v2563 = vadd.f32 %v2527, %v2547
        %v2564 = vadd.f32 %v2528, %v2548
        %v2565 = vadd.f32 %v2529, %v2549
        %v2566 = vadd.f32 %v2530, %v2550
        %v2567 = vadd.f32 %v2531, %v2551
        %v2568 = vadd.f32 %v2532, %v2552
        %v2569 = vadd.f32 %v2533, %v2553
        %v2570 = vadd.f32 %v2534, %v2554
        %v2571 = vadd.f32 %v2535, %v2555
        %v2572 = vadd.f32 %v2536, %v2556
        %v2573 = vadd.f32 %v2537, %v2557
        %v2574 = vadd.f32 %v2538, %v2558
        %v2575 = vadd.f32 %v2539, %v2559
        %v2576 = vlaneseq
        %v2577 = vshrl.u32 %v2576, 7
        %v2578 = vsub.s32 3, %v2577
        %v2579 = vrot.slane %v755, %v2578
        %v2580 = vmul.f32 %v2579, %v2446
        %v2581 = vmul.f32 %v2579, %v2447
        %v2582 = vmul.f32 %v2579, %v2448
        %v2583 = vmul.f32 %v2579, %v2449
        %v2584 = vmul.f32 %v2579, %v2450
        %v2585 = vmul.f32 %v2579, %v2451
        %v2586 = vmul.f32 %v2579, %v2452
        %v2587 = vmul.f32 %v2579, %v2453
        %v2588 = vmul.f32 %v2579, %v2454
        %v2589 = vmul.f32 %v2579, %v2455
        %v2590 = vmul.f32 %v2579, %v2456
        %v2591 = vmul.f32 %v2579, %v2457
        %v2592 = vmul.f32 %v2579, %v2458
        %v2593 = vmul.f32 %v2579, %v2459
        %v2594 = vmul.f32 %v2579, %v2460
        %v2595 = vmul.f32 %v2579, %v2461
        %v2596 = vadd.f32 %v2560, %v2580
        %v2597 = vadd.f32 %v2561, %v2581
        %v2598 = vadd.f32 %v2562, %v2582
        %v2599 = vadd.f32 %v2563, %v2583
        %v2600 = vadd.f32 %v2564, %v2584
        %v2601 = vadd.f32 %v2565, %v2585
        %v2602 = vadd.f32 %v2566, %v2586
        %v2603 = vadd.f32 %v2567, %v2587
        %v2604 = vadd.f32 %v2568, %v2588
        %v2605 = vadd.f32 %v2569, %v2589
        %v2606 = vadd.f32 %v2570, %v2590
        %v2607 = vadd.f32 %v2571, %v2591
        %v2608 = vadd.f32 %v2572, %v2592
        %v2609 = vadd.f32 %v2573, %v2593
        %v2610 = vadd.f32 %v2574, %v2594
        %v2611 = vadd.f32 %v2575, %v2595
        %v2612 = vlaneseq
        %v2613 = vshrl.u32 %v2612, 7
        %v2614 = vsub.s32 2, %v2613
        %v2615 = vrot.slane %v756, %v2614
        %v2616 = vmul.f32 %v2615, %v2448
        %v2617 = vmul.f32 %v2615, %v2449
        %v2618 = vmul.f32 %v2615, %v2450
        %v2619 = vmul.f32 %v2615, %v2451
        %v2620 = vmul.f32 %v2615, %v2452
        %v2621 = vmul.f32 %v2615, %v2453
        %v2622 = vmul.f32 %v2615, %v2454
        %v2623 = vmul.f32 %v2615, %v2455
        %v2624 = vmul.f32 %v2615, %v2456
        %v2625 = vmul.f32 %v2615, %v2457
        %v2626 = vmul.f32 %v2615, %v2458
        %v2627 = vmul.f32 %v2615, %v2459
        %v2628 = vmul.f32 %v2615, %v2460
        %v2629 = vmul.f32 %v2615, %v2461
        %v2630 = vmul.f32 %v2615, %v2462
        %v2631 = vmul.f32 %v2615, %v2463
        %v2632 = vadd.f32 %v2596, %v2616
        %v2633 = vadd.f32 %v2597, %v2617
        %v2634 = vadd.f32 %v2598, %v2618
        %v2635 = vadd.f32 %v2599, %v2619
        %v2636 = vadd.f32 %v2600, %v2620
        %v2637 = vadd.f32 %v2601, %v2621
        %v2638 = vadd.f32 %v2602, %v2622
        %v2639 = vadd.f32 %v2603, %v2623
        %v2640 = vadd.f32 %v2604, %v2624
        %v2641 = vadd.f32 %v2605, %v2625
        %v2642 = vadd.f32 %v2606, %v2626
        %v2643 = vadd.f32 %v2607, %v2627
        %v2644 = vadd.f32 %v2608, %v2628
        %v2645 = vadd.f32 %v2609, %v2629
        %v2646 = vadd.f32 %v2610, %v2630
        %v2647 = vadd.f32 %v2611, %v2631
        %v2648 = vlaneseq
        %v2649 = vshrl.u32 %v2648, 7
        %v2650 = vsub.s32 1, %v2649
        %v2651 = vrot.slane %v757, %v2650
        %v2652 = vmul.f32 %v2651, %v2450
        %v2653 = vmul.f32 %v2651, %v2451
        %v2654 = vmul.f32 %v2651, %v2452
        %v2655 = vmul.f32 %v2651, %v2453
        %v2656 = vmul.f32 %v2651, %v2454
        %v2657 = vmul.f32 %v2651, %v2455
        %v2658 = vmul.f32 %v2651, %v2456
        %v2659 = vmul.f32 %v2651, %v2457
        %v2660 = vmul.f32 %v2651, %v2458
        %v2661 = vmul.f32 %v2651, %v2459
        %v2662 = vmul.f32 %v2651, %v2460
        %v2663 = vmul.f32 %v2651, %v2461
        %v2664 = vmul.f32 %v2651, %v2462
        %v2665 = vmul.f32 %v2651, %v2463
        %v2666 = vmul.f32 %v2651, %v2464
        %v2667 = vmul.f32 %v2651, %v2465
        %v2668 = vadd.f32 %v2632, %v2652
        %v2669 = vadd.f32 %v2633, %v2653
        %v2670 = vadd.f32 %v2634, %v2654
        %v2671 = vadd.f32 %v2635, %v2655
        %v2672 = vadd.f32 %v2636, %v2656
        %v2673 = vadd.f32 %v2637, %v2657
        %v2674 = vadd.f32 %v2638, %v2658
        %v2675 = vadd.f32 %v2639, %v2659
        %v2676 = vadd.f32 %v2640, %v2660
        %v2677 = vadd.f32 %v2641, %v2661
        %v2678 = vadd.f32 %v2642, %v2662
        %v2679 = vadd.f32 %v2643, %v2663
        %v2680 = vadd.f32 %v2644, %v2664
        %v2681 = vadd.f32 %v2645, %v2665
        %v2682 = vadd.f32 %v2646, %v2666
        %v2683 = vadd.f32 %v2647, %v2667
        %v2684 = vlaneseq
        %v2685 = vshrl.u32 %v2684, 7
        %v2686 = vsub.s32 0, %v2685
        %v2687 = vrot.slane %v758, %v2686
        %v2688 = vmul.f32 %v2687, %v2452
        %v2689 = vmul.f32 %v2687, %v2453
        %v2690 = vmul.f32 %v2687, %v2454
        %v2691 = vmul.f32 %v2687, %v2455
        %v2692 = vmul.f32 %v2687, %v2456
        %v2693 = vmul.f32 %v2687, %v2457
        %v2694 = vmul.f32 %v2687, %v2458
        %v2695 = vmul.f32 %v2687, %v2459
        %v2696 = vmul.f32 %v2687, %v2460
        %v2697 = vmul.f32 %v2687, %v2461
        %v2698 = vmul.f32 %v2687, %v2462
        %v2699 = vmul.f32 %v2687, %v2463
        %v2700 = vmul.f32 %v2687, %v2464
        %v2701 = vmul.f32 %v2687, %v2465
        %v2702 = vmul.f32 %v2687, %v2466
        %v2703 = vmul.f32 %v2687, %v2467
        %v2704 = vadd.f32 %v2668, %v2688
        %v2705 = vadd.f32 %v2669, %v2689
        %v2706 = vadd.f32 %v2670, %v2690
        %v2707 = vadd.f32 %v2671, %v2691
        %v2708 = vadd.f32 %v2672, %v2692
        %v2709 = vadd.f32 %v2673, %v2693
        %v2710 = vadd.f32 %v2674, %v2694
        %v2711 = vadd.f32 %v2675, %v2695
        %v2712 = vadd.f32 %v2676, %v2696
        %v2713 = vadd.f32 %v2677, %v2697
        %v2714 = vadd.f32 %v2678, %v2698
        %v2715 = vadd.f32 %v2679, %v2699
        %v2716 = vadd.f32 %v2680, %v2700
        %v2717 = vadd.f32 %v2681, %v2701
        %v2718 = vadd.f32 %v2682, %v2702
        %v2719 = vadd.f32 %v2683, %v2703
        %v2721 = vlaneseq
        %v2722 = vshrl.u32 %v2721, 7
        %v2723 = vsub.s32 0, %v2722
        %v2724 = vrot.slane %v759, %v2723
        %v2726 = vadd.f32 %v2704, %v2724
        %v2727 = vadd.f32 %v2705, %v2724
        %v2728 = vadd.f32 %v2706, %v2724
        %v2729 = vadd.f32 %v2707, %v2724
        %v2730 = vadd.f32 %v2708, %v2724
        %v2731 = vadd.f32 %v2709, %v2724
        %v2732 = vadd.f32 %v2710, %v2724
        %v2733 = vadd.f32 %v2711, %v2724
        %v2734 = vadd.f32 %v2712, %v2724
        %v2735 = vadd.f32 %v2713, %v2724
        %v2736 = vadd.f32 %v2714, %v2724
        %v2737 = vadd.f32 %v2715, %v2724
        %v2738 = vadd.f32 %v2716, %v2724
        %v2739 = vadd.f32 %v2717, %v2724
        %v2740 = vadd.f32 %v2718, %v2724
        %v2741 = vadd.f32 %v2719, %v2724
        %v2742 = vmul.f32 %v2726, 0.5
        %v2743 = vmul.f32 %v2727, 0.5
        %v2744 = vmul.f32 %v2728, 0.5
        %v2745 = vmul.f32 %v2729, 0.5
        %v2746 = vmul.f32 %v2730, 0.5
        %v2747 = vmul.f32 %v2731, 0.5
        %v2748 = vmul.f32 %v2732, 0.5
        %v2749 = vmul.f32 %v2733, 0.5
        %v2750 = vmul.f32 %v2734, 0.5
        %v2751 = vmul.f32 %v2735, 0.5
        %v2752 = vmul.f32 %v2736, 0.5
        %v2753 = vmul.f32 %v2737, 0.5
        %v2754 = vmul.f32 %v2738, 0.5
        %v2755 = vmul.f32 %v2739, 0.5
        %v2756 = vmul.f32 %v2740, 0.5
        %v2757 = vmul.f32 %v2741, 0.5
        %2758 = vxpose.xlu0.b32.start [1/16] %v2742, 128
        %2759 = vxpose.xlu0.b32.cont [2/16] %v2743, 128
        %2760 = vxpose.xlu0.b32.cont [3/16] %v2744, 128
        %2761 = vxpose.xlu0.b32.cont [4/16] %v2745, 128
        %2762 = vxpose.xlu0.b32.cont [5/16] %v2746, 128
        %2763 = vxpose.xlu0.b32.cont [6/16] %v2747, 128
        %2764 = vxpose.xlu0.b32.cont [7/16] %v2748, 128
        %2765 = vxpose.xlu0.b32.cont [8/16] %v2749, 128
        %2766 = vxpose.xlu0.b32.cont [9/16] %v2750, 128
        %2767 = vxpose.xlu0.b32.cont [10/16] %v2751, 128
        %2768 = vxpose.xlu0.b32.cont [11/16] %v2752, 128
        %2769 = vxpose.xlu0.b32.cont [12/16] %v2753, 128
        %2770 = vxpose.xlu0.b32.cont [13/16] %v2754, 128
        %2771 = vxpose.xlu0.b32.cont [14/16] %v2755, 128
        %2772 = vxpose.xlu0.b32.cont [15/16] %v2756, 128
        %2773 = vxpose.xlu0.b32.end [16/16] %v2757, 128
        %v2774 = vpop.trf.xlu0
        %v2775 = vpop.trf.xlu0
        %v2776 = vpop.trf.xlu0
        %v2777 = vpop.trf.xlu0
        %v2778 = vpop.trf.xlu0
        %v2779 = vpop.trf.xlu0
        %v2780 = vpop.trf.xlu0
        %v2781 = vpop.trf.xlu0
        %v2782 = vpop.trf.xlu0
        %v2783 = vpop.trf.xlu0
        %v2784 = vpop.trf.xlu0
        %v2785 = vpop.trf.xlu0
        %v2786 = vpop.trf.xlu0
        %v2787 = vpop.trf.xlu0
        %v2788 = vpop.trf.xlu0
        %v2789 = vpop.trf.xlu0
        %s2790 = scalar_lea.vmem [#allocation2], 192
        %v2791 = vld [vmem:[%s2790] sm:$0xff]
        %v2792 = vld [vmem:[%s2790 + $0x8] sm:$0xff]
        %v2793 = vld [vmem:[%s2790 + $0x18] sm:$0xff]
        %v2794 = vld [vmem:[%s2790 + $0x20] sm:$0xff]
        %v2795 = vld [vmem:[%s2790 + $0x30] sm:$0xff]
        %v2796 = vld [vmem:[%s2790 + $0x38] sm:$0xff]
        %v2797 = vld [vmem:[%s2790 + $0x48] sm:$0xff]
        %v2798 = vld [vmem:[%s2790 + $0x50] sm:$0xff]
        %v2799 = vld [vmem:[%s2790 + $0x60] sm:$0xff]
        %v2800 = vld [vmem:[%s2790 + $0x68] sm:$0xff]
        %v2801 = vld [vmem:[%s2790 + $0x78] sm:$0xff]
        %v2802 = vld [vmem:[%s2790 + $0x80] sm:$0xff]
        %v2803 = vld [vmem:[%s2790 + $0x90] sm:$0xff]
        %v2804 = vld [vmem:[%s2790 + $0x98] sm:$0xff]
        %v2805 = vld [vmem:[%s2790 + $0xa8] sm:$0xff]
        %v2806 = vld [vmem:[%s2790 + $0xb0] sm:$0xff]
        %v2807 = vld [vmem:[%s2790 + $0xc0] sm:$0xff]
        %v2808 = vld [vmem:[%s2790 + $0xc8] sm:$0xff]
        %v2809 = vld [vmem:[%s2790 + $0xd8] sm:$0xff]
        %v2810 = vld [vmem:[%s2790 + $0xe0] sm:$0xff]
        %v2811 = vld [vmem:[%s2790 + $0xf0] sm:$0xff]
        %v2812 = vld [vmem:[%s2790 + $0xf8] sm:$0xff]
        %v2813 = vld [vmem:[%s2790 + $0x108] sm:$0xff]
        %v2814 = vld [vmem:[%s2790 + $0x110] sm:$0xff]
        %v2815 = vld [vmem:[%s2790 + $0x120] sm:$0xff]
        %v2816 = vld [vmem:[%s2790 + $0x128] sm:$0xff]
        %v2817 = vld [vmem:[%s2790 + $0x138] sm:$0xff]
        %v2818 = vld [vmem:[%s2790 + $0x140] sm:$0xff]
        %v2819 = vmul.f32 %v791, %v2791
        %v2820 = vmul.f32 %v791, %v2792
        %v2821 = vmul.f32 %v791, %v2793
        %v2822 = vmul.f32 %v791, %v2794
        %v2823 = vmul.f32 %v791, %v2795
        %v2824 = vmul.f32 %v791, %v2796
        %v2825 = vmul.f32 %v791, %v2797
        %v2826 = vmul.f32 %v791, %v2798
        %v2827 = vmul.f32 %v791, %v2799
        %v2828 = vmul.f32 %v791, %v2800
        %v2829 = vmul.f32 %v791, %v2801
        %v2830 = vmul.f32 %v791, %v2802
        %v2831 = vmul.f32 %v791, %v2803
        %v2832 = vmul.f32 %v791, %v2804
        %v2833 = vmul.f32 %v791, %v2805
        %v2834 = vmul.f32 %v791, %v2806
        %v2835 = vadd.f32 %v2819, 0.0
        %v2836 = vadd.f32 %v2820, 0.0
        %v2837 = vadd.f32 %v2821, 0.0
        %v2838 = vadd.f32 %v2822, 0.0
        %v2839 = vadd.f32 %v2823, 0.0
        %v2840 = vadd.f32 %v2824, 0.0
        %v2841 = vadd.f32 %v2825, 0.0
        %v2842 = vadd.f32 %v2826, 0.0
        %v2843 = vadd.f32 %v2827, 0.0
        %v2844 = vadd.f32 %v2828, 0.0
        %v2845 = vadd.f32 %v2829, 0.0
        %v2846 = vadd.f32 %v2830, 0.0
        %v2847 = vadd.f32 %v2831, 0.0
        %v2848 = vadd.f32 %v2832, 0.0
        %v2849 = vadd.f32 %v2833, 0.0
        %v2850 = vadd.f32 %v2834, 0.0
        %v2851 = vmul.f32 %v827, %v2793
        %v2852 = vmul.f32 %v827, %v2794
        %v2853 = vmul.f32 %v827, %v2795
        %v2854 = vmul.f32 %v827, %v2796
        %v2855 = vmul.f32 %v827, %v2797
        %v2856 = vmul.f32 %v827, %v2798
        %v2857 = vmul.f32 %v827, %v2799
        %v2858 = vmul.f32 %v827, %v2800
        %v2859 = vmul.f32 %v827, %v2801
        %v2860 = vmul.f32 %v827, %v2802
        %v2861 = vmul.f32 %v827, %v2803
        %v2862 = vmul.f32 %v827, %v2804
        %v2863 = vmul.f32 %v827, %v2805
        %v2864 = vmul.f32 %v827, %v2806
        %v2865 = vmul.f32 %v827, %v2807
        %v2866 = vmul.f32 %v827, %v2808
        %v2867 = vadd.f32 %v2835, %v2851
        %v2868 = vadd.f32 %v2836, %v2852
        %v2869 = vadd.f32 %v2837, %v2853
        %v2870 = vadd.f32 %v2838, %v2854
        %v2871 = vadd.f32 %v2839, %v2855
        %v2872 = vadd.f32 %v2840, %v2856
        %v2873 = vadd.f32 %v2841, %v2857
        %v2874 = vadd.f32 %v2842, %v2858
        %v2875 = vadd.f32 %v2843, %v2859
        %v2876 = vadd.f32 %v2844, %v2860
        %v2877 = vadd.f32 %v2845, %v2861
        %v2878 = vadd.f32 %v2846, %v2862
        %v2879 = vadd.f32 %v2847, %v2863
        %v2880 = vadd.f32 %v2848, %v2864
        %v2881 = vadd.f32 %v2849, %v2865
        %v2882 = vadd.f32 %v2850, %v2866
        %v2883 = vmul.f32 %v863, %v2795
        %v2884 = vmul.f32 %v863, %v2796
        %v2885 = vmul.f32 %v863, %v2797
        %v2886 = vmul.f32 %v863, %v2798
        %v2887 = vmul.f32 %v863, %v2799
        %v2888 = vmul.f32 %v863, %v2800
        %v2889 = vmul.f32 %v863, %v2801
        %v2890 = vmul.f32 %v863, %v2802
        %v2891 = vmul.f32 %v863, %v2803
        %v2892 = vmul.f32 %v863, %v2804
        %v2893 = vmul.f32 %v863, %v2805
        %v2894 = vmul.f32 %v863, %v2806
        %v2895 = vmul.f32 %v863, %v2807
        %v2896 = vmul.f32 %v863, %v2808
        %v2897 = vmul.f32 %v863, %v2809
        %v2898 = vmul.f32 %v863, %v2810
        %v2899 = vadd.f32 %v2867, %v2883
        %v2900 = vadd.f32 %v2868, %v2884
        %v2901 = vadd.f32 %v2869, %v2885
        %v2902 = vadd.f32 %v2870, %v2886
        %v2903 = vadd.f32 %v2871, %v2887
        %v2904 = vadd.f32 %v2872, %v2888
        %v2905 = vadd.f32 %v2873, %v2889
        %v2906 = vadd.f32 %v2874, %v2890
        %v2907 = vadd.f32 %v2875, %v2891
        %v2908 = vadd.f32 %v2876, %v2892
        %v2909 = vadd.f32 %v2877, %v2893
        %v2910 = vadd.f32 %v2878, %v2894
        %v2911 = vadd.f32 %v2879, %v2895
        %v2912 = vadd.f32 %v2880, %v2896
        %v2913 = vadd.f32 %v2881, %v2897
        %v2914 = vadd.f32 %v2882, %v2898
        %v2915 = vmul.f32 %v899, %v2797
        %v2916 = vmul.f32 %v899, %v2798
        %v2917 = vmul.f32 %v899, %v2799
        %v2918 = vmul.f32 %v899, %v2800
        %v2919 = vmul.f32 %v899, %v2801
        %v2920 = vmul.f32 %v899, %v2802
        %v2921 = vmul.f32 %v899, %v2803
        %v2922 = vmul.f32 %v899, %v2804
        %v2923 = vmul.f32 %v899, %v2805
        %v2924 = vmul.f32 %v899, %v2806
        %v2925 = vmul.f32 %v899, %v2807
        %v2926 = vmul.f32 %v899, %v2808
        %v2927 = vmul.f32 %v899, %v2809
        %v2928 = vmul.f32 %v899, %v2810
        %v2929 = vmul.f32 %v899, %v2811
        %v2930 = vmul.f32 %v899, %v2812
        %v2931 = vadd.f32 %v2899, %v2915
        %v2932 = vadd.f32 %v2900, %v2916
        %v2933 = vadd.f32 %v2901, %v2917
        %v2934 = vadd.f32 %v2902, %v2918
        %v2935 = vadd.f32 %v2903, %v2919
        %v2936 = vadd.f32 %v2904, %v2920
        %v2937 = vadd.f32 %v2905, %v2921
        %v2938 = vadd.f32 %v2906, %v2922
        %v2939 = vadd.f32 %v2907, %v2923
        %v2940 = vadd.f32 %v2908, %v2924
        %v2941 = vadd.f32 %v2909, %v2925
        %v2942 = vadd.f32 %v2910, %v2926
        %v2943 = vadd.f32 %v2911, %v2927
        %v2944 = vadd.f32 %v2912, %v2928
        %v2945 = vadd.f32 %v2913, %v2929
        %v2946 = vadd.f32 %v2914, %v2930
        %v2947 = vmul.f32 %v935, %v2799
        %v2948 = vmul.f32 %v935, %v2800
        %v2949 = vmul.f32 %v935, %v2801
        %v2950 = vmul.f32 %v935, %v2802
        %v2951 = vmul.f32 %v935, %v2803
        %v2952 = vmul.f32 %v935, %v2804
        %v2953 = vmul.f32 %v935, %v2805
        %v2954 = vmul.f32 %v935, %v2806
        %v2955 = vmul.f32 %v935, %v2807
        %v2956 = vmul.f32 %v935, %v2808
        %v2957 = vmul.f32 %v935, %v2809
        %v2958 = vmul.f32 %v935, %v2810
        %v2959 = vmul.f32 %v935, %v2811
        %v2960 = vmul.f32 %v935, %v2812
        %v2961 = vmul.f32 %v935, %v2813
        %v2962 = vmul.f32 %v935, %v2814
        %v2963 = vadd.f32 %v2931, %v2947
        %v2964 = vadd.f32 %v2932, %v2948
        %v2965 = vadd.f32 %v2933, %v2949
        %v2966 = vadd.f32 %v2934, %v2950
        %v2967 = vadd.f32 %v2935, %v2951
        %v2968 = vadd.f32 %v2936, %v2952
        %v2969 = vadd.f32 %v2937, %v2953
        %v2970 = vadd.f32 %v2938, %v2954
        %v2971 = vadd.f32 %v2939, %v2955
        %v2972 = vadd.f32 %v2940, %v2956
        %v2973 = vadd.f32 %v2941, %v2957
        %v2974 = vadd.f32 %v2942, %v2958
        %v2975 = vadd.f32 %v2943, %v2959
        %v2976 = vadd.f32 %v2944, %v2960
        %v2977 = vadd.f32 %v2945, %v2961
        %v2978 = vadd.f32 %v2946, %v2962
        %v2979 = vmul.f32 %v971, %v2801
        %v2980 = vmul.f32 %v971, %v2802
        %v2981 = vmul.f32 %v971, %v2803
        %v2982 = vmul.f32 %v971, %v2804
        %v2983 = vmul.f32 %v971, %v2805
        %v2984 = vmul.f32 %v971, %v2806
        %v2985 = vmul.f32 %v971, %v2807
        %v2986 = vmul.f32 %v971, %v2808
        %v2987 = vmul.f32 %v971, %v2809
        %v2988 = vmul.f32 %v971, %v2810
        %v2989 = vmul.f32 %v971, %v2811
        %v2990 = vmul.f32 %v971, %v2812
        %v2991 = vmul.f32 %v971, %v2813
        %v2992 = vmul.f32 %v971, %v2814
        %v2993 = vmul.f32 %v971, %v2815
        %v2994 = vmul.f32 %v971, %v2816
        %v2995 = vadd.f32 %v2963, %v2979
        %v2996 = vadd.f32 %v2964, %v2980
        %v2997 = vadd.f32 %v2965, %v2981
        %v2998 = vadd.f32 %v2966, %v2982
        %v2999 = vadd.f32 %v2967, %v2983
        %v3000 = vadd.f32 %v2968, %v2984
        %v3001 = vadd.f32 %v2969, %v2985
        %v3002 = vadd.f32 %v2970, %v2986
        %v3003 = vadd.f32 %v2971, %v2987
        %v3004 = vadd.f32 %v2972, %v2988
        %v3005 = vadd.f32 %v2973, %v2989
        %v3006 = vadd.f32 %v2974, %v2990
        %v3007 = vadd.f32 %v2975, %v2991
        %v3008 = vadd.f32 %v2976, %v2992
        %v3009 = vadd.f32 %v2977, %v2993
        %v3010 = vadd.f32 %v2978, %v2994
        %v3011 = vmul.f32 %v1007, %v2803
        %v3012 = vmul.f32 %v1007, %v2804
        %v3013 = vmul.f32 %v1007, %v2805
        %v3014 = vmul.f32 %v1007, %v2806
        %v3015 = vmul.f32 %v1007, %v2807
        %v3016 = vmul.f32 %v1007, %v2808
        %v3017 = vmul.f32 %v1007, %v2809
        %v3018 = vmul.f32 %v1007, %v2810
        %v3019 = vmul.f32 %v1007, %v2811
        %v3020 = vmul.f32 %v1007, %v2812
        %v3021 = vmul.f32 %v1007, %v2813
        %v3022 = vmul.f32 %v1007, %v2814
        %v3023 = vmul.f32 %v1007, %v2815
        %v3024 = vmul.f32 %v1007, %v2816
        %v3025 = vmul.f32 %v1007, %v2817
        %v3026 = vmul.f32 %v1007, %v2818
        %v3027 = vadd.f32 %v2995, %v3011
        %v3028 = vadd.f32 %v2996, %v3012
        %v3029 = vadd.f32 %v2997, %v3013
        %v3030 = vadd.f32 %v2998, %v3014
        %v3031 = vadd.f32 %v2999, %v3015
        %v3032 = vadd.f32 %v3000, %v3016
        %v3033 = vadd.f32 %v3001, %v3017
        %v3034 = vadd.f32 %v3002, %v3018
        %v3035 = vadd.f32 %v3003, %v3019
        %v3036 = vadd.f32 %v3004, %v3020
        %v3037 = vadd.f32 %v3005, %v3021
        %v3038 = vadd.f32 %v3006, %v3022
        %v3039 = vadd.f32 %v3007, %v3023
        %v3040 = vadd.f32 %v3008, %v3024
        %v3041 = vadd.f32 %v3009, %v3025
        %v3042 = vadd.f32 %v3010, %v3026
        %v3043 = vld [vmem:[%s2790 + $0x1] sm:$0xff]
        %v3044 = vld [vmem:[%s2790 + $0x9] sm:$0xff]
        %v3045 = vld [vmem:[%s2790 + $0x19] sm:$0xff]
        %v3046 = vld [vmem:[%s2790 + $0x21] sm:$0xff]
        %v3047 = vld [vmem:[%s2790 + $0x31] sm:$0xff]
        %v3048 = vld [vmem:[%s2790 + $0x39] sm:$0xff]
        %v3049 = vld [vmem:[%s2790 + $0x49] sm:$0xff]
        %v3050 = vld [vmem:[%s2790 + $0x51] sm:$0xff]
        %v3051 = vld [vmem:[%s2790 + $0x61] sm:$0xff]
        %v3052 = vld [vmem:[%s2790 + $0x69] sm:$0xff]
        %v3053 = vld [vmem:[%s2790 + $0x79] sm:$0xff]
        %v3054 = vld [vmem:[%s2790 + $0x81] sm:$0xff]
        %v3055 = vld [vmem:[%s2790 + $0x91] sm:$0xff]
        %v3056 = vld [vmem:[%s2790 + $0x99] sm:$0xff]
        %v3057 = vld [vmem:[%s2790 + $0xa9] sm:$0xff]
        %v3058 = vld [vmem:[%s2790 + $0xb1] sm:$0xff]
        %v3059 = vld [vmem:[%s2790 + $0xc1] sm:$0xff]
        %v3060 = vld [vmem:[%s2790 + $0xc9] sm:$0xff]
        %v3061 = vld [vmem:[%s2790 + $0xd9] sm:$0xff]
        %v3062 = vld [vmem:[%s2790 + $0xe1] sm:$0xff]
        %v3063 = vld [vmem:[%s2790 + $0xf1] sm:$0xff]
        %v3064 = vld [vmem:[%s2790 + $0xf9] sm:$0xff]
        %v3065 = vld [vmem:[%s2790 + $0x109] sm:$0xff]
        %v3066 = vld [vmem:[%s2790 + $0x111] sm:$0xff]
        %v3067 = vld [vmem:[%s2790 + $0x121] sm:$0xff]
        %v3068 = vld [vmem:[%s2790 + $0x129] sm:$0xff]
        %v3069 = vld [vmem:[%s2790 + $0x139] sm:$0xff]
        %v3070 = vld [vmem:[%s2790 + $0x141] sm:$0xff]
        %v3071 = vmul.f32 %v1071, %v3043
        %v3072 = vmul.f32 %v1071, %v3044
        %v3073 = vmul.f32 %v1071, %v3045
        %v3074 = vmul.f32 %v1071, %v3046
        %v3075 = vmul.f32 %v1071, %v3047
        %v3076 = vmul.f32 %v1071, %v3048
        %v3077 = vmul.f32 %v1071, %v3049
        %v3078 = vmul.f32 %v1071, %v3050
        %v3079 = vmul.f32 %v1071, %v3051
        %v3080 = vmul.f32 %v1071, %v3052
        %v3081 = vmul.f32 %v1071, %v3053
        %v3082 = vmul.f32 %v1071, %v3054
        %v3083 = vmul.f32 %v1071, %v3055
        %v3084 = vmul.f32 %v1071, %v3056
        %v3085 = vmul.f32 %v1071, %v3057
        %v3086 = vmul.f32 %v1071, %v3058
        %v3087 = vadd.f32 %v3027, %v3071
        %v3088 = vadd.f32 %v3028, %v3072
        %v3089 = vadd.f32 %v3029, %v3073
        %v3090 = vadd.f32 %v3030, %v3074
        %v3091 = vadd.f32 %v3031, %v3075
        %v3092 = vadd.f32 %v3032, %v3076
        %v3093 = vadd.f32 %v3033, %v3077
        %v3094 = vadd.f32 %v3034, %v3078
        %v3095 = vadd.f32 %v3035, %v3079
        %v3096 = vadd.f32 %v3036, %v3080
        %v3097 = vadd.f32 %v3037, %v3081
        %v3098 = vadd.f32 %v3038, %v3082
        %v3099 = vadd.f32 %v3039, %v3083
        %v3100 = vadd.f32 %v3040, %v3084
        %v3101 = vadd.f32 %v3041, %v3085
        %v3102 = vadd.f32 %v3042, %v3086
        %v3103 = vmul.f32 %v1107, %v3045
        %v3104 = vmul.f32 %v1107, %v3046
        %v3105 = vmul.f32 %v1107, %v3047
        %v3106 = vmul.f32 %v1107, %v3048
        %v3107 = vmul.f32 %v1107, %v3049
        %v3108 = vmul.f32 %v1107, %v3050
        %v3109 = vmul.f32 %v1107, %v3051
        %v3110 = vmul.f32 %v1107, %v3052
        %v3111 = vmul.f32 %v1107, %v3053
        %v3112 = vmul.f32 %v1107, %v3054
        %v3113 = vmul.f32 %v1107, %v3055
        %v3114 = vmul.f32 %v1107, %v3056
        %v3115 = vmul.f32 %v1107, %v3057
        %v3116 = vmul.f32 %v1107, %v3058
        %v3117 = vmul.f32 %v1107, %v3059
        %v3118 = vmul.f32 %v1107, %v3060
        %v3119 = vadd.f32 %v3087, %v3103
        %v3120 = vadd.f32 %v3088, %v3104
        %v3121 = vadd.f32 %v3089, %v3105
        %v3122 = vadd.f32 %v3090, %v3106
        %v3123 = vadd.f32 %v3091, %v3107
        %v3124 = vadd.f32 %v3092, %v3108
        %v3125 = vadd.f32 %v3093, %v3109
        %v3126 = vadd.f32 %v3094, %v3110
        %v3127 = vadd.f32 %v3095, %v3111
        %v3128 = vadd.f32 %v3096, %v3112
        %v3129 = vadd.f32 %v3097, %v3113
        %v3130 = vadd.f32 %v3098, %v3114
        %v3131 = vadd.f32 %v3099, %v3115
        %v3132 = vadd.f32 %v3100, %v3116
        %v3133 = vadd.f32 %v3101, %v3117
        %v3134 = vadd.f32 %v3102, %v3118
        %v3135 = vmul.f32 %v1143, %v3047
        %v3136 = vmul.f32 %v1143, %v3048
        %v3137 = vmul.f32 %v1143, %v3049
        %v3138 = vmul.f32 %v1143, %v3050
        %v3139 = vmul.f32 %v1143, %v3051
        %v3140 = vmul.f32 %v1143, %v3052
        %v3141 = vmul.f32 %v1143, %v3053
        %v3142 = vmul.f32 %v1143, %v3054
        %v3143 = vmul.f32 %v1143, %v3055
        %v3144 = vmul.f32 %v1143, %v3056
        %v3145 = vmul.f32 %v1143, %v3057
        %v3146 = vmul.f32 %v1143, %v3058
        %v3147 = vmul.f32 %v1143, %v3059
        %v3148 = vmul.f32 %v1143, %v3060
        %v3149 = vmul.f32 %v1143, %v3061
        %v3150 = vmul.f32 %v1143, %v3062
        %v3151 = vadd.f32 %v3119, %v3135
        %v3152 = vadd.f32 %v3120, %v3136
        %v3153 = vadd.f32 %v3121, %v3137
        %v3154 = vadd.f32 %v3122, %v3138
        %v3155 = vadd.f32 %v3123, %v3139
        %v3156 = vadd.f32 %v3124, %v3140
        %v3157 = vadd.f32 %v3125, %v3141
        %v3158 = vadd.f32 %v3126, %v3142
        %v3159 = vadd.f32 %v3127, %v3143
        %v3160 = vadd.f32 %v3128, %v3144
        %v3161 = vadd.f32 %v3129, %v3145
        %v3162 = vadd.f32 %v3130, %v3146
        %v3163 = vadd.f32 %v3131, %v3147
        %v3164 = vadd.f32 %v3132, %v3148
        %v3165 = vadd.f32 %v3133, %v3149
        %v3166 = vadd.f32 %v3134, %v3150
        %v3167 = vmul.f32 %v1179, %v3049
        %v3168 = vmul.f32 %v1179, %v3050
        %v3169 = vmul.f32 %v1179, %v3051
        %v3170 = vmul.f32 %v1179, %v3052
        %v3171 = vmul.f32 %v1179, %v3053
        %v3172 = vmul.f32 %v1179, %v3054
        %v3173 = vmul.f32 %v1179, %v3055
        %v3174 = vmul.f32 %v1179, %v3056
        %v3175 = vmul.f32 %v1179, %v3057
        %v3176 = vmul.f32 %v1179, %v3058
        %v3177 = vmul.f32 %v1179, %v3059
        %v3178 = vmul.f32 %v1179, %v3060
        %v3179 = vmul.f32 %v1179, %v3061
        %v3180 = vmul.f32 %v1179, %v3062
        %v3181 = vmul.f32 %v1179, %v3063
        %v3182 = vmul.f32 %v1179, %v3064
        %v3183 = vadd.f32 %v3151, %v3167
        %v3184 = vadd.f32 %v3152, %v3168
        %v3185 = vadd.f32 %v3153, %v3169
        %v3186 = vadd.f32 %v3154, %v3170
        %v3187 = vadd.f32 %v3155, %v3171
        %v3188 = vadd.f32 %v3156, %v3172
        %v3189 = vadd.f32 %v3157, %v3173
        %v3190 = vadd.f32 %v3158, %v3174
        %v3191 = vadd.f32 %v3159, %v3175
        %v3192 = vadd.f32 %v3160, %v3176
        %v3193 = vadd.f32 %v3161, %v3177
        %v3194 = vadd.f32 %v3162, %v3178
        %v3195 = vadd.f32 %v3163, %v3179
        %v3196 = vadd.f32 %v3164, %v3180
        %v3197 = vadd.f32 %v3165, %v3181
        %v3198 = vadd.f32 %v3166, %v3182
        %v3199 = vmul.f32 %v1215, %v3051
        %v3200 = vmul.f32 %v1215, %v3052
        %v3201 = vmul.f32 %v1215, %v3053
        %v3202 = vmul.f32 %v1215, %v3054
        %v3203 = vmul.f32 %v1215, %v3055
        %v3204 = vmul.f32 %v1215, %v3056
        %v3205 = vmul.f32 %v1215, %v3057
        %v3206 = vmul.f32 %v1215, %v3058
        %v3207 = vmul.f32 %v1215, %v3059
        %v3208 = vmul.f32 %v1215, %v3060
        %v3209 = vmul.f32 %v1215, %v3061
        %v3210 = vmul.f32 %v1215, %v3062
        %v3211 = vmul.f32 %v1215, %v3063
        %v3212 = vmul.f32 %v1215, %v3064
        %v3213 = vmul.f32 %v1215, %v3065
        %v3214 = vmul.f32 %v1215, %v3066
        %v3215 = vadd.f32 %v3183, %v3199
        %v3216 = vadd.f32 %v3184, %v3200
        %v3217 = vadd.f32 %v3185, %v3201
        %v3218 = vadd.f32 %v3186, %v3202
        %v3219 = vadd.f32 %v3187, %v3203
        %v3220 = vadd.f32 %v3188, %v3204
        %v3221 = vadd.f32 %v3189, %v3205
        %v3222 = vadd.f32 %v3190, %v3206
        %v3223 = vadd.f32 %v3191, %v3207
        %v3224 = vadd.f32 %v3192, %v3208
        %v3225 = vadd.f32 %v3193, %v3209
        %v3226 = vadd.f32 %v3194, %v3210
        %v3227 = vadd.f32 %v3195, %v3211
        %v3228 = vadd.f32 %v3196, %v3212
        %v3229 = vadd.f32 %v3197, %v3213
        %v3230 = vadd.f32 %v3198, %v3214
        %v3231 = vmul.f32 %v1251, %v3053
        %v3232 = vmul.f32 %v1251, %v3054
        %v3233 = vmul.f32 %v1251, %v3055
        %v3234 = vmul.f32 %v1251, %v3056
        %v3235 = vmul.f32 %v1251, %v3057
        %v3236 = vmul.f32 %v1251, %v3058
        %v3237 = vmul.f32 %v1251, %v3059
        %v3238 = vmul.f32 %v1251, %v3060
        %v3239 = vmul.f32 %v1251, %v3061
        %v3240 = vmul.f32 %v1251, %v3062
        %v3241 = vmul.f32 %v1251, %v3063
        %v3242 = vmul.f32 %v1251, %v3064
        %v3243 = vmul.f32 %v1251, %v3065
        %v3244 = vmul.f32 %v1251, %v3066
        %v3245 = vmul.f32 %v1251, %v3067
        %v3246 = vmul.f32 %v1251, %v3068
        %v3247 = vadd.f32 %v3215, %v3231
        %v3248 = vadd.f32 %v3216, %v3232
        %v3249 = vadd.f32 %v3217, %v3233
        %v3250 = vadd.f32 %v3218, %v3234
        %v3251 = vadd.f32 %v3219, %v3235
        %v3252 = vadd.f32 %v3220, %v3236
        %v3253 = vadd.f32 %v3221, %v3237
        %v3254 = vadd.f32 %v3222, %v3238
        %v3255 = vadd.f32 %v3223, %v3239
        %v3256 = vadd.f32 %v3224, %v3240
        %v3257 = vadd.f32 %v3225, %v3241
        %v3258 = vadd.f32 %v3226, %v3242
        %v3259 = vadd.f32 %v3227, %v3243
        %v3260 = vadd.f32 %v3228, %v3244
        %v3261 = vadd.f32 %v3229, %v3245
        %v3262 = vadd.f32 %v3230, %v3246
        %v3263 = vmul.f32 %v1287, %v3055
        %v3264 = vmul.f32 %v1287, %v3056
        %v3265 = vmul.f32 %v1287, %v3057
        %v3266 = vmul.f32 %v1287, %v3058
        %v3267 = vmul.f32 %v1287, %v3059
        %v3268 = vmul.f32 %v1287, %v3060
        %v3269 = vmul.f32 %v1287, %v3061
        %v3270 = vmul.f32 %v1287, %v3062
        %v3271 = vmul.f32 %v1287, %v3063
        %v3272 = vmul.f32 %v1287, %v3064
        %v3273 = vmul.f32 %v1287, %v3065
        %v3274 = vmul.f32 %v1287, %v3066
        %v3275 = vmul.f32 %v1287, %v3067
        %v3276 = vmul.f32 %v1287, %v3068
        %v3277 = vmul.f32 %v1287, %v3069
        %v3278 = vmul.f32 %v1287, %v3070
        %v3279 = vadd.f32 %v3247, %v3263
        %v3280 = vadd.f32 %v3248, %v3264
        %v3281 = vadd.f32 %v3249, %v3265
        %v3282 = vadd.f32 %v3250, %v3266
        %v3283 = vadd.f32 %v3251, %v3267
        %v3284 = vadd.f32 %v3252, %v3268
        %v3285 = vadd.f32 %v3253, %v3269
        %v3286 = vadd.f32 %v3254, %v3270
        %v3287 = vadd.f32 %v3255, %v3271
        %v3288 = vadd.f32 %v3256, %v3272
        %v3289 = vadd.f32 %v3257, %v3273
        %v3290 = vadd.f32 %v3258, %v3274
        %v3291 = vadd.f32 %v3259, %v3275
        %v3292 = vadd.f32 %v3260, %v3276
        %v3293 = vadd.f32 %v3261, %v3277
        %v3294 = vadd.f32 %v3262, %v3278
        %v3295 = vld [vmem:[%s2790 + $0x2] sm:$0xff]
        %v3296 = vld [vmem:[%s2790 + $0xa] sm:$0xff]
        %v3297 = vld [vmem:[%s2790 + $0x1a] sm:$0xff]
        %v3298 = vld [vmem:[%s2790 + $0x22] sm:$0xff]
        %v3299 = vld [vmem:[%s2790 + $0x32] sm:$0xff]
        %v3300 = vld [vmem:[%s2790 + $0x3a] sm:$0xff]
        %v3301 = vld [vmem:[%s2790 + $0x4a] sm:$0xff]
        %v3302 = vld [vmem:[%s2790 + $0x52] sm:$0xff]
        %v3303 = vld [vmem:[%s2790 + $0x62] sm:$0xff]
        %v3304 = vld [vmem:[%s2790 + $0x6a] sm:$0xff]
        %v3305 = vld [vmem:[%s2790 + $0x7a] sm:$0xff]
        %v3306 = vld [vmem:[%s2790 + $0x82] sm:$0xff]
        %v3307 = vld [vmem:[%s2790 + $0x92] sm:$0xff]
        %v3308 = vld [vmem:[%s2790 + $0x9a] sm:$0xff]
        %v3309 = vld [vmem:[%s2790 + $0xaa] sm:$0xff]
        %v3310 = vld [vmem:[%s2790 + $0xb2] sm:$0xff]
        %v3311 = vld [vmem:[%s2790 + $0xc2] sm:$0xff]
        %v3312 = vld [vmem:[%s2790 + $0xca] sm:$0xff]
        %v3313 = vld [vmem:[%s2790 + $0xda] sm:$0xff]
        %v3314 = vld [vmem:[%s2790 + $0xe2] sm:$0xff]
        %v3315 = vld [vmem:[%s2790 + $0xf2] sm:$0xff]
        %v3316 = vld [vmem:[%s2790 + $0xfa] sm:$0xff]
        %v3317 = vld [vmem:[%s2790 + $0x10a] sm:$0xff]
        %v3318 = vld [vmem:[%s2790 + $0x112] sm:$0xff]
        %v3319 = vld [vmem:[%s2790 + $0x122] sm:$0xff]
        %v3320 = vld [vmem:[%s2790 + $0x12a] sm:$0xff]
        %v3321 = vld [vmem:[%s2790 + $0x13a] sm:$0xff]
        %v3322 = vld [vmem:[%s2790 + $0x142] sm:$0xff]
        %v3323 = vmul.f32 %v1351, %v3295
        %v3324 = vmul.f32 %v1351, %v3296
        %v3325 = vmul.f32 %v1351, %v3297
        %v3326 = vmul.f32 %v1351, %v3298
        %v3327 = vmul.f32 %v1351, %v3299
        %v3328 = vmul.f32 %v1351, %v3300
        %v3329 = vmul.f32 %v1351, %v3301
        %v3330 = vmul.f32 %v1351, %v3302
        %v3331 = vmul.f32 %v1351, %v3303
        %v3332 = vmul.f32 %v1351, %v3304
        %v3333 = vmul.f32 %v1351, %v3305
        %v3334 = vmul.f32 %v1351, %v3306
        %v3335 = vmul.f32 %v1351, %v3307
        %v3336 = vmul.f32 %v1351, %v3308
        %v3337 = vmul.f32 %v1351, %v3309
        %v3338 = vmul.f32 %v1351, %v3310
        %v3339 = vadd.f32 %v3279, %v3323
        %v3340 = vadd.f32 %v3280, %v3324
        %v3341 = vadd.f32 %v3281, %v3325
        %v3342 = vadd.f32 %v3282, %v3326
        %v3343 = vadd.f32 %v3283, %v3327
        %v3344 = vadd.f32 %v3284, %v3328
        %v3345 = vadd.f32 %v3285, %v3329
        %v3346 = vadd.f32 %v3286, %v3330
        %v3347 = vadd.f32 %v3287, %v3331
        %v3348 = vadd.f32 %v3288, %v3332
        %v3349 = vadd.f32 %v3289, %v3333
        %v3350 = vadd.f32 %v3290, %v3334
        %v3351 = vadd.f32 %v3291, %v3335
        %v3352 = vadd.f32 %v3292, %v3336
        %v3353 = vadd.f32 %v3293, %v3337
        %v3354 = vadd.f32 %v3294, %v3338
        %v3355 = vmul.f32 %v1387, %v3297
        %v3356 = vmul.f32 %v1387, %v3298
        %v3357 = vmul.f32 %v1387, %v3299
        %v3358 = vmul.f32 %v1387, %v3300
        %v3359 = vmul.f32 %v1387, %v3301
        %v3360 = vmul.f32 %v1387, %v3302
        %v3361 = vmul.f32 %v1387, %v3303
        %v3362 = vmul.f32 %v1387, %v3304
        %v3363 = vmul.f32 %v1387, %v3305
        %v3364 = vmul.f32 %v1387, %v3306
        %v3365 = vmul.f32 %v1387, %v3307
        %v3366 = vmul.f32 %v1387, %v3308
        %v3367 = vmul.f32 %v1387, %v3309
        %v3368 = vmul.f32 %v1387, %v3310
        %v3369 = vmul.f32 %v1387, %v3311
        %v3370 = vmul.f32 %v1387, %v3312
        %v3371 = vadd.f32 %v3339, %v3355
        %v3372 = vadd.f32 %v3340, %v3356
        %v3373 = vadd.f32 %v3341, %v3357
        %v3374 = vadd.f32 %v3342, %v3358
        %v3375 = vadd.f32 %v3343, %v3359
        %v3376 = vadd.f32 %v3344, %v3360
        %v3377 = vadd.f32 %v3345, %v3361
        %v3378 = vadd.f32 %v3346, %v3362
        %v3379 = vadd.f32 %v3347, %v3363
        %v3380 = vadd.f32 %v3348, %v3364
        %v3381 = vadd.f32 %v3349, %v3365
        %v3382 = vadd.f32 %v3350, %v3366
        %v3383 = vadd.f32 %v3351, %v3367
        %v3384 = vadd.f32 %v3352, %v3368
        %v3385 = vadd.f32 %v3353, %v3369
        %v3386 = vadd.f32 %v3354, %v3370
        %v3387 = vmul.f32 %v1423, %v3299
        %v3388 = vmul.f32 %v1423, %v3300
        %v3389 = vmul.f32 %v1423, %v3301
        %v3390 = vmul.f32 %v1423, %v3302
        %v3391 = vmul.f32 %v1423, %v3303
        %v3392 = vmul.f32 %v1423, %v3304
        %v3393 = vmul.f32 %v1423, %v3305
        %v3394 = vmul.f32 %v1423, %v3306
        %v3395 = vmul.f32 %v1423, %v3307
        %v3396 = vmul.f32 %v1423, %v3308
        %v3397 = vmul.f32 %v1423, %v3309
        %v3398 = vmul.f32 %v1423, %v3310
        %v3399 = vmul.f32 %v1423, %v3311
        %v3400 = vmul.f32 %v1423, %v3312
        %v3401 = vmul.f32 %v1423, %v3313
        %v3402 = vmul.f32 %v1423, %v3314
        %v3403 = vadd.f32 %v3371, %v3387
        %v3404 = vadd.f32 %v3372, %v3388
        %v3405 = vadd.f32 %v3373, %v3389
        %v3406 = vadd.f32 %v3374, %v3390
        %v3407 = vadd.f32 %v3375, %v3391
        %v3408 = vadd.f32 %v3376, %v3392
        %v3409 = vadd.f32 %v3377, %v3393
        %v3410 = vadd.f32 %v3378, %v3394
        %v3411 = vadd.f32 %v3379, %v3395
        %v3412 = vadd.f32 %v3380, %v3396
        %v3413 = vadd.f32 %v3381, %v3397
        %v3414 = vadd.f32 %v3382, %v3398
        %v3415 = vadd.f32 %v3383, %v3399
        %v3416 = vadd.f32 %v3384, %v3400
        %v3417 = vadd.f32 %v3385, %v3401
        %v3418 = vadd.f32 %v3386, %v3402
        %v3419 = vmul.f32 %v1459, %v3301
        %v3420 = vmul.f32 %v1459, %v3302
        %v3421 = vmul.f32 %v1459, %v3303
        %v3422 = vmul.f32 %v1459, %v3304
        %v3423 = vmul.f32 %v1459, %v3305
        %v3424 = vmul.f32 %v1459, %v3306
        %v3425 = vmul.f32 %v1459, %v3307
        %v3426 = vmul.f32 %v1459, %v3308
        %v3427 = vmul.f32 %v1459, %v3309
        %v3428 = vmul.f32 %v1459, %v3310
        %v3429 = vmul.f32 %v1459, %v3311
        %v3430 = vmul.f32 %v1459, %v3312
        %v3431 = vmul.f32 %v1459, %v3313
        %v3432 = vmul.f32 %v1459, %v3314
        %v3433 = vmul.f32 %v1459, %v3315
        %v3434 = vmul.f32 %v1459, %v3316
        %v3435 = vadd.f32 %v3403, %v3419
        %v3436 = vadd.f32 %v3404, %v3420
        %v3437 = vadd.f32 %v3405, %v3421
        %v3438 = vadd.f32 %v3406, %v3422
        %v3439 = vadd.f32 %v3407, %v3423
        %v3440 = vadd.f32 %v3408, %v3424
        %v3441 = vadd.f32 %v3409, %v3425
        %v3442 = vadd.f32 %v3410, %v3426
        %v3443 = vadd.f32 %v3411, %v3427
        %v3444 = vadd.f32 %v3412, %v3428
        %v3445 = vadd.f32 %v3413, %v3429
        %v3446 = vadd.f32 %v3414, %v3430
        %v3447 = vadd.f32 %v3415, %v3431
        %v3448 = vadd.f32 %v3416, %v3432
        %v3449 = vadd.f32 %v3417, %v3433
        %v3450 = vadd.f32 %v3418, %v3434
        %v3451 = vmul.f32 %v1495, %v3303
        %v3452 = vmul.f32 %v1495, %v3304
        %v3453 = vmul.f32 %v1495, %v3305
        %v3454 = vmul.f32 %v1495, %v3306
        %v3455 = vmul.f32 %v1495, %v3307
        %v3456 = vmul.f32 %v1495, %v3308
        %v3457 = vmul.f32 %v1495, %v3309
        %v3458 = vmul.f32 %v1495, %v3310
        %v3459 = vmul.f32 %v1495, %v3311
        %v3460 = vmul.f32 %v1495, %v3312
        %v3461 = vmul.f32 %v1495, %v3313
        %v3462 = vmul.f32 %v1495, %v3314
        %v3463 = vmul.f32 %v1495, %v3315
        %v3464 = vmul.f32 %v1495, %v3316
        %v3465 = vmul.f32 %v1495, %v3317
        %v3466 = vmul.f32 %v1495, %v3318
        %v3467 = vadd.f32 %v3435, %v3451
        %v3468 = vadd.f32 %v3436, %v3452
        %v3469 = vadd.f32 %v3437, %v3453
        %v3470 = vadd.f32 %v3438, %v3454
        %v3471 = vadd.f32 %v3439, %v3455
        %v3472 = vadd.f32 %v3440, %v3456
        %v3473 = vadd.f32 %v3441, %v3457
        %v3474 = vadd.f32 %v3442, %v3458
        %v3475 = vadd.f32 %v3443, %v3459
        %v3476 = vadd.f32 %v3444, %v3460
        %v3477 = vadd.f32 %v3445, %v3461
        %v3478 = vadd.f32 %v3446, %v3462
        %v3479 = vadd.f32 %v3447, %v3463
        %v3480 = vadd.f32 %v3448, %v3464
        %v3481 = vadd.f32 %v3449, %v3465
        %v3482 = vadd.f32 %v3450, %v3466
        %v3483 = vmul.f32 %v1531, %v3305
        %v3484 = vmul.f32 %v1531, %v3306
        %v3485 = vmul.f32 %v1531, %v3307
        %v3486 = vmul.f32 %v1531, %v3308
        %v3487 = vmul.f32 %v1531, %v3309
        %v3488 = vmul.f32 %v1531, %v3310
        %v3489 = vmul.f32 %v1531, %v3311
        %v3490 = vmul.f32 %v1531, %v3312
        %v3491 = vmul.f32 %v1531, %v3313
        %v3492 = vmul.f32 %v1531, %v3314
        %v3493 = vmul.f32 %v1531, %v3315
        %v3494 = vmul.f32 %v1531, %v3316
        %v3495 = vmul.f32 %v1531, %v3317
        %v3496 = vmul.f32 %v1531, %v3318
        %v3497 = vmul.f32 %v1531, %v3319
        %v3498 = vmul.f32 %v1531, %v3320
        %v3499 = vadd.f32 %v3467, %v3483
        %v3500 = vadd.f32 %v3468, %v3484
        %v3501 = vadd.f32 %v3469, %v3485
        %v3502 = vadd.f32 %v3470, %v3486
        %v3503 = vadd.f32 %v3471, %v3487
        %v3504 = vadd.f32 %v3472, %v3488
        %v3505 = vadd.f32 %v3473, %v3489
        %v3506 = vadd.f32 %v3474, %v3490
        %v3507 = vadd.f32 %v3475, %v3491
        %v3508 = vadd.f32 %v3476, %v3492
        %v3509 = vadd.f32 %v3477, %v3493
        %v3510 = vadd.f32 %v3478, %v3494
        %v3511 = vadd.f32 %v3479, %v3495
        %v3512 = vadd.f32 %v3480, %v3496
        %v3513 = vadd.f32 %v3481, %v3497
        %v3514 = vadd.f32 %v3482, %v3498
        %v3515 = vmul.f32 %v1567, %v3307
        %v3516 = vmul.f32 %v1567, %v3308
        %v3517 = vmul.f32 %v1567, %v3309
        %v3518 = vmul.f32 %v1567, %v3310
        %v3519 = vmul.f32 %v1567, %v3311
        %v3520 = vmul.f32 %v1567, %v3312
        %v3521 = vmul.f32 %v1567, %v3313
        %v3522 = vmul.f32 %v1567, %v3314
        %v3523 = vmul.f32 %v1567, %v3315
        %v3524 = vmul.f32 %v1567, %v3316
        %v3525 = vmul.f32 %v1567, %v3317
        %v3526 = vmul.f32 %v1567, %v3318
        %v3527 = vmul.f32 %v1567, %v3319
        %v3528 = vmul.f32 %v1567, %v3320
        %v3529 = vmul.f32 %v1567, %v3321
        %v3530 = vmul.f32 %v1567, %v3322
        %v3531 = vadd.f32 %v3499, %v3515
        %v3532 = vadd.f32 %v3500, %v3516
        %v3533 = vadd.f32 %v3501, %v3517
        %v3534 = vadd.f32 %v3502, %v3518
        %v3535 = vadd.f32 %v3503, %v3519
        %v3536 = vadd.f32 %v3504, %v3520
        %v3537 = vadd.f32 %v3505, %v3521
        %v3538 = vadd.f32 %v3506, %v3522
        %v3539 = vadd.f32 %v3507, %v3523
        %v3540 = vadd.f32 %v3508, %v3524
        %v3541 = vadd.f32 %v3509, %v3525
        %v3542 = vadd.f32 %v3510, %v3526
        %v3543 = vadd.f32 %v3511, %v3527
        %v3544 = vadd.f32 %v3512, %v3528
        %v3545 = vadd.f32 %v3513, %v3529
        %v3546 = vadd.f32 %v3514, %v3530
        %v3547 = vld [vmem:[%s2790 + $0x3] sm:$0xff]
        %v3548 = vld [vmem:[%s2790 + $0xb] sm:$0xff]
        %v3549 = vld [vmem:[%s2790 + $0x1b] sm:$0xff]
        %v3550 = vld [vmem:[%s2790 + $0x23] sm:$0xff]
        %v3551 = vld [vmem:[%s2790 + $0x33] sm:$0xff]
        %v3552 = vld [vmem:[%s2790 + $0x3b] sm:$0xff]
        %v3553 = vld [vmem:[%s2790 + $0x4b] sm:$0xff]
        %v3554 = vld [vmem:[%s2790 + $0x53] sm:$0xff]
        %v3555 = vld [vmem:[%s2790 + $0x63] sm:$0xff]
        %v3556 = vld [vmem:[%s2790 + $0x6b] sm:$0xff]
        %v3557 = vld [vmem:[%s2790 + $0x7b] sm:$0xff]
        %v3558 = vld [vmem:[%s2790 + $0x83] sm:$0xff]
        %v3559 = vld [vmem:[%s2790 + $0x93] sm:$0xff]
        %v3560 = vld [vmem:[%s2790 + $0x9b] sm:$0xff]
        %v3561 = vld [vmem:[%s2790 + $0xab] sm:$0xff]
        %v3562 = vld [vmem:[%s2790 + $0xb3] sm:$0xff]
        %v3563 = vld [vmem:[%s2790 + $0xc3] sm:$0xff]
        %v3564 = vld [vmem:[%s2790 + $0xcb] sm:$0xff]
        %v3565 = vld [vmem:[%s2790 + $0xdb] sm:$0xff]
        %v3566 = vld [vmem:[%s2790 + $0xe3] sm:$0xff]
        %v3567 = vld [vmem:[%s2790 + $0xf3] sm:$0xff]
        %v3568 = vld [vmem:[%s2790 + $0xfb] sm:$0xff]
        %v3569 = vld [vmem:[%s2790 + $0x10b] sm:$0xff]
        %v3570 = vld [vmem:[%s2790 + $0x113] sm:$0xff]
        %v3571 = vld [vmem:[%s2790 + $0x123] sm:$0xff]
        %v3572 = vld [vmem:[%s2790 + $0x12b] sm:$0xff]
        %v3573 = vld [vmem:[%s2790 + $0x13b] sm:$0xff]
        %v3574 = vld [vmem:[%s2790 + $0x143] sm:$0xff]
        %v3575 = vmul.f32 %v1631, %v3547
        %v3576 = vmul.f32 %v1631, %v3548
        %v3577 = vmul.f32 %v1631, %v3549
        %v3578 = vmul.f32 %v1631, %v3550
        %v3579 = vmul.f32 %v1631, %v3551
        %v3580 = vmul.f32 %v1631, %v3552
        %v3581 = vmul.f32 %v1631, %v3553
        %v3582 = vmul.f32 %v1631, %v3554
        %v3583 = vmul.f32 %v1631, %v3555
        %v3584 = vmul.f32 %v1631, %v3556
        %v3585 = vmul.f32 %v1631, %v3557
        %v3586 = vmul.f32 %v1631, %v3558
        %v3587 = vmul.f32 %v1631, %v3559
        %v3588 = vmul.f32 %v1631, %v3560
        %v3589 = vmul.f32 %v1631, %v3561
        %v3590 = vmul.f32 %v1631, %v3562
        %v3591 = vadd.f32 %v3531, %v3575
        %v3592 = vadd.f32 %v3532, %v3576
        %v3593 = vadd.f32 %v3533, %v3577
        %v3594 = vadd.f32 %v3534, %v3578
        %v3595 = vadd.f32 %v3535, %v3579
        %v3596 = vadd.f32 %v3536, %v3580
        %v3597 = vadd.f32 %v3537, %v3581
        %v3598 = vadd.f32 %v3538, %v3582
        %v3599 = vadd.f32 %v3539, %v3583
        %v3600 = vadd.f32 %v3540, %v3584
        %v3601 = vadd.f32 %v3541, %v3585
        %v3602 = vadd.f32 %v3542, %v3586
        %v3603 = vadd.f32 %v3543, %v3587
        %v3604 = vadd.f32 %v3544, %v3588
        %v3605 = vadd.f32 %v3545, %v3589
        %v3606 = vadd.f32 %v3546, %v3590
        %v3607 = vmul.f32 %v1667, %v3549
        %v3608 = vmul.f32 %v1667, %v3550
        %v3609 = vmul.f32 %v1667, %v3551
        %v3610 = vmul.f32 %v1667, %v3552
        %v3611 = vmul.f32 %v1667, %v3553
        %v3612 = vmul.f32 %v1667, %v3554
        %v3613 = vmul.f32 %v1667, %v3555
        %v3614 = vmul.f32 %v1667, %v3556
        %v3615 = vmul.f32 %v1667, %v3557
        %v3616 = vmul.f32 %v1667, %v3558
        %v3617 = vmul.f32 %v1667, %v3559
        %v3618 = vmul.f32 %v1667, %v3560
        %v3619 = vmul.f32 %v1667, %v3561
        %v3620 = vmul.f32 %v1667, %v3562
        %v3621 = vmul.f32 %v1667, %v3563
        %v3622 = vmul.f32 %v1667, %v3564
        %v3623 = vadd.f32 %v3591, %v3607
        %v3624 = vadd.f32 %v3592, %v3608
        %v3625 = vadd.f32 %v3593, %v3609
        %v3626 = vadd.f32 %v3594, %v3610
        %v3627 = vadd.f32 %v3595, %v3611
        %v3628 = vadd.f32 %v3596, %v3612
        %v3629 = vadd.f32 %v3597, %v3613
        %v3630 = vadd.f32 %v3598, %v3614
        %v3631 = vadd.f32 %v3599, %v3615
        %v3632 = vadd.f32 %v3600, %v3616
        %v3633 = vadd.f32 %v3601, %v3617
        %v3634 = vadd.f32 %v3602, %v3618
        %v3635 = vadd.f32 %v3603, %v3619
        %v3636 = vadd.f32 %v3604, %v3620
        %v3637 = vadd.f32 %v3605, %v3621
        %v3638 = vadd.f32 %v3606, %v3622
        %v3639 = vmul.f32 %v1703, %v3551
        %v3640 = vmul.f32 %v1703, %v3552
        %v3641 = vmul.f32 %v1703, %v3553
        %v3642 = vmul.f32 %v1703, %v3554
        %v3643 = vmul.f32 %v1703, %v3555
        %v3644 = vmul.f32 %v1703, %v3556
        %v3645 = vmul.f32 %v1703, %v3557
        %v3646 = vmul.f32 %v1703, %v3558
        %v3647 = vmul.f32 %v1703, %v3559
        %v3648 = vmul.f32 %v1703, %v3560
        %v3649 = vmul.f32 %v1703, %v3561
        %v3650 = vmul.f32 %v1703, %v3562
        %v3651 = vmul.f32 %v1703, %v3563
        %v3652 = vmul.f32 %v1703, %v3564
        %v3653 = vmul.f32 %v1703, %v3565
        %v3654 = vmul.f32 %v1703, %v3566
        %v3655 = vadd.f32 %v3623, %v3639
        %v3656 = vadd.f32 %v3624, %v3640
        %v3657 = vadd.f32 %v3625, %v3641
        %v3658 = vadd.f32 %v3626, %v3642
        %v3659 = vadd.f32 %v3627, %v3643
        %v3660 = vadd.f32 %v3628, %v3644
        %v3661 = vadd.f32 %v3629, %v3645
        %v3662 = vadd.f32 %v3630, %v3646
        %v3663 = vadd.f32 %v3631, %v3647
        %v3664 = vadd.f32 %v3632, %v3648
        %v3665 = vadd.f32 %v3633, %v3649
        %v3666 = vadd.f32 %v3634, %v3650
        %v3667 = vadd.f32 %v3635, %v3651
        %v3668 = vadd.f32 %v3636, %v3652
        %v3669 = vadd.f32 %v3637, %v3653
        %v3670 = vadd.f32 %v3638, %v3654
        %v3671 = vmul.f32 %v1739, %v3553
        %v3672 = vmul.f32 %v1739, %v3554
        %v3673 = vmul.f32 %v1739, %v3555
        %v3674 = vmul.f32 %v1739, %v3556
        %v3675 = vmul.f32 %v1739, %v3557
        %v3676 = vmul.f32 %v1739, %v3558
        %v3677 = vmul.f32 %v1739, %v3559
        %v3678 = vmul.f32 %v1739, %v3560
        %v3679 = vmul.f32 %v1739, %v3561
        %v3680 = vmul.f32 %v1739, %v3562
        %v3681 = vmul.f32 %v1739, %v3563
        %v3682 = vmul.f32 %v1739, %v3564
        %v3683 = vmul.f32 %v1739, %v3565
        %v3684 = vmul.f32 %v1739, %v3566
        %v3685 = vmul.f32 %v1739, %v3567
        %v3686 = vmul.f32 %v1739, %v3568
        %v3687 = vadd.f32 %v3655, %v3671
        %v3688 = vadd.f32 %v3656, %v3672
        %v3689 = vadd.f32 %v3657, %v3673
        %v3690 = vadd.f32 %v3658, %v3674
        %v3691 = vadd.f32 %v3659, %v3675
        %v3692 = vadd.f32 %v3660, %v3676
        %v3693 = vadd.f32 %v3661, %v3677
        %v3694 = vadd.f32 %v3662, %v3678
        %v3695 = vadd.f32 %v3663, %v3679
        %v3696 = vadd.f32 %v3664, %v3680
        %v3697 = vadd.f32 %v3665, %v3681
        %v3698 = vadd.f32 %v3666, %v3682
        %v3699 = vadd.f32 %v3667, %v3683
        %v3700 = vadd.f32 %v3668, %v3684
        %v3701 = vadd.f32 %v3669, %v3685
        %v3702 = vadd.f32 %v3670, %v3686
        %v3703 = vmul.f32 %v1775, %v3555
        %v3704 = vmul.f32 %v1775, %v3556
        %v3705 = vmul.f32 %v1775, %v3557
        %v3706 = vmul.f32 %v1775, %v3558
        %v3707 = vmul.f32 %v1775, %v3559
        %v3708 = vmul.f32 %v1775, %v3560
        %v3709 = vmul.f32 %v1775, %v3561
        %v3710 = vmul.f32 %v1775, %v3562
        %v3711 = vmul.f32 %v1775, %v3563
        %v3712 = vmul.f32 %v1775, %v3564
        %v3713 = vmul.f32 %v1775, %v3565
        %v3714 = vmul.f32 %v1775, %v3566
        %v3715 = vmul.f32 %v1775, %v3567
        %v3716 = vmul.f32 %v1775, %v3568
        %v3717 = vmul.f32 %v1775, %v3569
        %v3718 = vmul.f32 %v1775, %v3570
        %v3719 = vadd.f32 %v3687, %v3703
        %v3720 = vadd.f32 %v3688, %v3704
        %v3721 = vadd.f32 %v3689, %v3705
        %v3722 = vadd.f32 %v3690, %v3706
        %v3723 = vadd.f32 %v3691, %v3707
        %v3724 = vadd.f32 %v3692, %v3708
        %v3725 = vadd.f32 %v3693, %v3709
        %v3726 = vadd.f32 %v3694, %v3710
        %v3727 = vadd.f32 %v3695, %v3711
        %v3728 = vadd.f32 %v3696, %v3712
        %v3729 = vadd.f32 %v3697, %v3713
        %v3730 = vadd.f32 %v3698, %v3714
        %v3731 = vadd.f32 %v3699, %v3715
        %v3732 = vadd.f32 %v3700, %v3716
        %v3733 = vadd.f32 %v3701, %v3717
        %v3734 = vadd.f32 %v3702, %v3718
        %v3735 = vmul.f32 %v1811, %v3557
        %v3736 = vmul.f32 %v1811, %v3558
        %v3737 = vmul.f32 %v1811, %v3559
        %v3738 = vmul.f32 %v1811, %v3560
        %v3739 = vmul.f32 %v1811, %v3561
        %v3740 = vmul.f32 %v1811, %v3562
        %v3741 = vmul.f32 %v1811, %v3563
        %v3742 = vmul.f32 %v1811, %v3564
        %v3743 = vmul.f32 %v1811, %v3565
        %v3744 = vmul.f32 %v1811, %v3566
        %v3745 = vmul.f32 %v1811, %v3567
        %v3746 = vmul.f32 %v1811, %v3568
        %v3747 = vmul.f32 %v1811, %v3569
        %v3748 = vmul.f32 %v1811, %v3570
        %v3749 = vmul.f32 %v1811, %v3571
        %v3750 = vmul.f32 %v1811, %v3572
        %v3751 = vadd.f32 %v3719, %v3735
        %v3752 = vadd.f32 %v3720, %v3736
        %v3753 = vadd.f32 %v3721, %v3737
        %v3754 = vadd.f32 %v3722, %v3738
        %v3755 = vadd.f32 %v3723, %v3739
        %v3756 = vadd.f32 %v3724, %v3740
        %v3757 = vadd.f32 %v3725, %v3741
        %v3758 = vadd.f32 %v3726, %v3742
        %v3759 = vadd.f32 %v3727, %v3743
        %v3760 = vadd.f32 %v3728, %v3744
        %v3761 = vadd.f32 %v3729, %v3745
        %v3762 = vadd.f32 %v3730, %v3746
        %v3763 = vadd.f32 %v3731, %v3747
        %v3764 = vadd.f32 %v3732, %v3748
        %v3765 = vadd.f32 %v3733, %v3749
        %v3766 = vadd.f32 %v3734, %v3750
        %v3767 = vmul.f32 %v1847, %v3559
        %v3768 = vmul.f32 %v1847, %v3560
        %v3769 = vmul.f32 %v1847, %v3561
        %v3770 = vmul.f32 %v1847, %v3562
        %v3771 = vmul.f32 %v1847, %v3563
        %v3772 = vmul.f32 %v1847, %v3564
        %v3773 = vmul.f32 %v1847, %v3565
        %v3774 = vmul.f32 %v1847, %v3566
        %v3775 = vmul.f32 %v1847, %v3567
        %v3776 = vmul.f32 %v1847, %v3568
        %v3777 = vmul.f32 %v1847, %v3569
        %v3778 = vmul.f32 %v1847, %v3570
        %v3779 = vmul.f32 %v1847, %v3571
        %v3780 = vmul.f32 %v1847, %v3572
        %v3781 = vmul.f32 %v1847, %v3573
        %v3782 = vmul.f32 %v1847, %v3574
        %v3783 = vadd.f32 %v3751, %v3767
        %v3784 = vadd.f32 %v3752, %v3768
        %v3785 = vadd.f32 %v3753, %v3769
        %v3786 = vadd.f32 %v3754, %v3770
        %v3787 = vadd.f32 %v3755, %v3771
        %v3788 = vadd.f32 %v3756, %v3772
        %v3789 = vadd.f32 %v3757, %v3773
        %v3790 = vadd.f32 %v3758, %v3774
        %v3791 = vadd.f32 %v3759, %v3775
        %v3792 = vadd.f32 %v3760, %v3776
        %v3793 = vadd.f32 %v3761, %v3777
        %v3794 = vadd.f32 %v3762, %v3778
        %v3795 = vadd.f32 %v3763, %v3779
        %v3796 = vadd.f32 %v3764, %v3780
        %v3797 = vadd.f32 %v3765, %v3781
        %v3798 = vadd.f32 %v3766, %v3782
        %v3799 = vld [vmem:[%s2790 + $0x4] sm:$0xff]
        %v3800 = vld [vmem:[%s2790 + $0xc] sm:$0xff]
        %v3801 = vld [vmem:[%s2790 + $0x1c] sm:$0xff]
        %v3802 = vld [vmem:[%s2790 + $0x24] sm:$0xff]
        %v3803 = vld [vmem:[%s2790 + $0x34] sm:$0xff]
        %v3804 = vld [vmem:[%s2790 + $0x3c] sm:$0xff]
        %v3805 = vld [vmem:[%s2790 + $0x4c] sm:$0xff]
        %v3806 = vld [vmem:[%s2790 + $0x54] sm:$0xff]
        %v3807 = vld [vmem:[%s2790 + $0x64] sm:$0xff]
        %v3808 = vld [vmem:[%s2790 + $0x6c] sm:$0xff]
        %v3809 = vld [vmem:[%s2790 + $0x7c] sm:$0xff]
        %v3810 = vld [vmem:[%s2790 + $0x84] sm:$0xff]
        %v3811 = vld [vmem:[%s2790 + $0x94] sm:$0xff]
        %v3812 = vld [vmem:[%s2790 + $0x9c] sm:$0xff]
        %v3813 = vld [vmem:[%s2790 + $0xac] sm:$0xff]
        %v3814 = vld [vmem:[%s2790 + $0xb4] sm:$0xff]
        %v3815 = vld [vmem:[%s2790 + $0xc4] sm:$0xff]
        %v3816 = vld [vmem:[%s2790 + $0xcc] sm:$0xff]
        %v3817 = vld [vmem:[%s2790 + $0xdc] sm:$0xff]
        %v3818 = vld [vmem:[%s2790 + $0xe4] sm:$0xff]
        %v3819 = vld [vmem:[%s2790 + $0xf4] sm:$0xff]
        %v3820 = vld [vmem:[%s2790 + $0xfc] sm:$0xff]
        %v3821 = vld [vmem:[%s2790 + $0x10c] sm:$0xff]
        %v3822 = vld [vmem:[%s2790 + $0x114] sm:$0xff]
        %v3823 = vld [vmem:[%s2790 + $0x124] sm:$0xff]
        %v3824 = vld [vmem:[%s2790 + $0x12c] sm:$0xff]
        %v3825 = vld [vmem:[%s2790 + $0x13c] sm:$0xff]
        %v3826 = vld [vmem:[%s2790 + $0x144] sm:$0xff]
        %v3827 = vmul.f32 %v1911, %v3799
        %v3828 = vmul.f32 %v1911, %v3800
        %v3829 = vmul.f32 %v1911, %v3801
        %v3830 = vmul.f32 %v1911, %v3802
        %v3831 = vmul.f32 %v1911, %v3803
        %v3832 = vmul.f32 %v1911, %v3804
        %v3833 = vmul.f32 %v1911, %v3805
        %v3834 = vmul.f32 %v1911, %v3806
        %v3835 = vmul.f32 %v1911, %v3807
        %v3836 = vmul.f32 %v1911, %v3808
        %v3837 = vmul.f32 %v1911, %v3809
        %v3838 = vmul.f32 %v1911, %v3810
        %v3839 = vmul.f32 %v1911, %v3811
        %v3840 = vmul.f32 %v1911, %v3812
        %v3841 = vmul.f32 %v1911, %v3813
        %v3842 = vmul.f32 %v1911, %v3814
        %v3843 = vadd.f32 %v3783, %v3827
        %v3844 = vadd.f32 %v3784, %v3828
        %v3845 = vadd.f32 %v3785, %v3829
        %v3846 = vadd.f32 %v3786, %v3830
        %v3847 = vadd.f32 %v3787, %v3831
        %v3848 = vadd.f32 %v3788, %v3832
        %v3849 = vadd.f32 %v3789, %v3833
        %v3850 = vadd.f32 %v3790, %v3834
        %v3851 = vadd.f32 %v3791, %v3835
        %v3852 = vadd.f32 %v3792, %v3836
        %v3853 = vadd.f32 %v3793, %v3837
        %v3854 = vadd.f32 %v3794, %v3838
        %v3855 = vadd.f32 %v3795, %v3839
        %v3856 = vadd.f32 %v3796, %v3840
        %v3857 = vadd.f32 %v3797, %v3841
        %v3858 = vadd.f32 %v3798, %v3842
        %v3859 = vmul.f32 %v1947, %v3801
        %v3860 = vmul.f32 %v1947, %v3802
        %v3861 = vmul.f32 %v1947, %v3803
        %v3862 = vmul.f32 %v1947, %v3804
        %v3863 = vmul.f32 %v1947, %v3805
        %v3864 = vmul.f32 %v1947, %v3806
        %v3865 = vmul.f32 %v1947, %v3807
        %v3866 = vmul.f32 %v1947, %v3808
        %v3867 = vmul.f32 %v1947, %v3809
        %v3868 = vmul.f32 %v1947, %v3810
        %v3869 = vmul.f32 %v1947, %v3811
        %v3870 = vmul.f32 %v1947, %v3812
        %v3871 = vmul.f32 %v1947, %v3813
        %v3872 = vmul.f32 %v1947, %v3814
        %v3873 = vmul.f32 %v1947, %v3815
        %v3874 = vmul.f32 %v1947, %v3816
        %v3875 = vadd.f32 %v3843, %v3859
        %v3876 = vadd.f32 %v3844, %v3860
        %v3877 = vadd.f32 %v3845, %v3861
        %v3878 = vadd.f32 %v3846, %v3862
        %v3879 = vadd.f32 %v3847, %v3863
        %v3880 = vadd.f32 %v3848, %v3864
        %v3881 = vadd.f32 %v3849, %v3865
        %v3882 = vadd.f32 %v3850, %v3866
        %v3883 = vadd.f32 %v3851, %v3867
        %v3884 = vadd.f32 %v3852, %v3868
        %v3885 = vadd.f32 %v3853, %v3869
        %v3886 = vadd.f32 %v3854, %v3870
        %v3887 = vadd.f32 %v3855, %v3871
        %v3888 = vadd.f32 %v3856, %v3872
        %v3889 = vadd.f32 %v3857, %v3873
        %v3890 = vadd.f32 %v3858, %v3874
        %v3891 = vmul.f32 %v1983, %v3803
        %v3892 = vmul.f32 %v1983, %v3804
        %v3893 = vmul.f32 %v1983, %v3805
        %v3894 = vmul.f32 %v1983, %v3806
        %v3895 = vmul.f32 %v1983, %v3807
        %v3896 = vmul.f32 %v1983, %v3808
        %v3897 = vmul.f32 %v1983, %v3809
        %v3898 = vmul.f32 %v1983, %v3810
        %v3899 = vmul.f32 %v1983, %v3811
        %v3900 = vmul.f32 %v1983, %v3812
        %v3901 = vmul.f32 %v1983, %v3813
        %v3902 = vmul.f32 %v1983, %v3814
        %v3903 = vmul.f32 %v1983, %v3815
        %v3904 = vmul.f32 %v1983, %v3816
        %v3905 = vmul.f32 %v1983, %v3817
        %v3906 = vmul.f32 %v1983, %v3818
        %v3907 = vadd.f32 %v3875, %v3891
        %v3908 = vadd.f32 %v3876, %v3892
        %v3909 = vadd.f32 %v3877, %v3893
        %v3910 = vadd.f32 %v3878, %v3894
        %v3911 = vadd.f32 %v3879, %v3895
        %v3912 = vadd.f32 %v3880, %v3896
        %v3913 = vadd.f32 %v3881, %v3897
        %v3914 = vadd.f32 %v3882, %v3898
        %v3915 = vadd.f32 %v3883, %v3899
        %v3916 = vadd.f32 %v3884, %v3900
        %v3917 = vadd.f32 %v3885, %v3901
        %v3918 = vadd.f32 %v3886, %v3902
        %v3919 = vadd.f32 %v3887, %v3903
        %v3920 = vadd.f32 %v3888, %v3904
        %v3921 = vadd.f32 %v3889, %v3905
        %v3922 = vadd.f32 %v3890, %v3906
        %v3923 = vmul.f32 %v2019, %v3805
        %v3924 = vmul.f32 %v2019, %v3806
        %v3925 = vmul.f32 %v2019, %v3807
        %v3926 = vmul.f32 %v2019, %v3808
        %v3927 = vmul.f32 %v2019, %v3809
        %v3928 = vmul.f32 %v2019, %v3810
        %v3929 = vmul.f32 %v2019, %v3811
        %v3930 = vmul.f32 %v2019, %v3812
        %v3931 = vmul.f32 %v2019, %v3813
        %v3932 = vmul.f32 %v2019, %v3814
        %v3933 = vmul.f32 %v2019, %v3815
        %v3934 = vmul.f32 %v2019, %v3816
        %v3935 = vmul.f32 %v2019, %v3817
        %v3936 = vmul.f32 %v2019, %v3818
        %v3937 = vmul.f32 %v2019, %v3819
        %v3938 = vmul.f32 %v2019, %v3820
        %v3939 = vadd.f32 %v3907, %v3923
        %v3940 = vadd.f32 %v3908, %v3924
        %v3941 = vadd.f32 %v3909, %v3925
        %v3942 = vadd.f32 %v3910, %v3926
        %v3943 = vadd.f32 %v3911, %v3927
        %v3944 = vadd.f32 %v3912, %v3928
        %v3945 = vadd.f32 %v3913, %v3929
        %v3946 = vadd.f32 %v3914, %v3930
        %v3947 = vadd.f32 %v3915, %v3931
        %v3948 = vadd.f32 %v3916, %v3932
        %v3949 = vadd.f32 %v3917, %v3933
        %v3950 = vadd.f32 %v3918, %v3934
        %v3951 = vadd.f32 %v3919, %v3935
        %v3952 = vadd.f32 %v3920, %v3936
        %v3953 = vadd.f32 %v3921, %v3937
        %v3954 = vadd.f32 %v3922, %v3938
        %v3955 = vmul.f32 %v2055, %v3807
        %v3956 = vmul.f32 %v2055, %v3808
        %v3957 = vmul.f32 %v2055, %v3809
        %v3958 = vmul.f32 %v2055, %v3810
        %v3959 = vmul.f32 %v2055, %v3811
        %v3960 = vmul.f32 %v2055, %v3812
        %v3961 = vmul.f32 %v2055, %v3813
        %v3962 = vmul.f32 %v2055, %v3814
        %v3963 = vmul.f32 %v2055, %v3815
        %v3964 = vmul.f32 %v2055, %v3816
        %v3965 = vmul.f32 %v2055, %v3817
        %v3966 = vmul.f32 %v2055, %v3818
        %v3967 = vmul.f32 %v2055, %v3819
        %v3968 = vmul.f32 %v2055, %v3820
        %v3969 = vmul.f32 %v2055, %v3821
        %v3970 = vmul.f32 %v2055, %v3822
        %v3971 = vadd.f32 %v3939, %v3955
        %v3972 = vadd.f32 %v3940, %v3956
        %v3973 = vadd.f32 %v3941, %v3957
        %v3974 = vadd.f32 %v3942, %v3958
        %v3975 = vadd.f32 %v3943, %v3959
        %v3976 = vadd.f32 %v3944, %v3960
        %v3977 = vadd.f32 %v3945, %v3961
        %v3978 = vadd.f32 %v3946, %v3962
        %v3979 = vadd.f32 %v3947, %v3963
        %v3980 = vadd.f32 %v3948, %v3964
        %v3981 = vadd.f32 %v3949, %v3965
        %v3982 = vadd.f32 %v3950, %v3966
        %v3983 = vadd.f32 %v3951, %v3967
        %v3984 = vadd.f32 %v3952, %v3968
        %v3985 = vadd.f32 %v3953, %v3969
        %v3986 = vadd.f32 %v3954, %v3970
        %v3987 = vmul.f32 %v2091, %v3809
        %v3988 = vmul.f32 %v2091, %v3810
        %v3989 = vmul.f32 %v2091, %v3811
        %v3990 = vmul.f32 %v2091, %v3812
        %v3991 = vmul.f32 %v2091, %v3813
        %v3992 = vmul.f32 %v2091, %v3814
        %v3993 = vmul.f32 %v2091, %v3815
        %v3994 = vmul.f32 %v2091, %v3816
        %v3995 = vmul.f32 %v2091, %v3817
        %v3996 = vmul.f32 %v2091, %v3818
        %v3997 = vmul.f32 %v2091, %v3819
        %v3998 = vmul.f32 %v2091, %v3820
        %v3999 = vmul.f32 %v2091, %v3821
        %v4000 = vmul.f32 %v2091, %v3822
        %v4001 = vmul.f32 %v2091, %v3823
        %v4002 = vmul.f32 %v2091, %v3824
        %v4003 = vadd.f32 %v3971, %v3987
        %v4004 = vadd.f32 %v3972, %v3988
        %v4005 = vadd.f32 %v3973, %v3989
        %v4006 = vadd.f32 %v3974, %v3990
        %v4007 = vadd.f32 %v3975, %v3991
        %v4008 = vadd.f32 %v3976, %v3992
        %v4009 = vadd.f32 %v3977, %v3993
        %v4010 = vadd.f32 %v3978, %v3994
        %v4011 = vadd.f32 %v3979, %v3995
        %v4012 = vadd.f32 %v3980, %v3996
        %v4013 = vadd.f32 %v3981, %v3997
        %v4014 = vadd.f32 %v3982, %v3998
        %v4015 = vadd.f32 %v3983, %v3999
        %v4016 = vadd.f32 %v3984, %v4000
        %v4017 = vadd.f32 %v3985, %v4001
        %v4018 = vadd.f32 %v3986, %v4002
        %v4019 = vmul.f32 %v2127, %v3811
        %v4020 = vmul.f32 %v2127, %v3812
        %v4021 = vmul.f32 %v2127, %v3813
        %v4022 = vmul.f32 %v2127, %v3814
        %v4023 = vmul.f32 %v2127, %v3815
        %v4024 = vmul.f32 %v2127, %v3816
        %v4025 = vmul.f32 %v2127, %v3817
        %v4026 = vmul.f32 %v2127, %v3818
        %v4027 = vmul.f32 %v2127, %v3819
        %v4028 = vmul.f32 %v2127, %v3820
        %v4029 = vmul.f32 %v2127, %v3821
        %v4030 = vmul.f32 %v2127, %v3822
        %v4031 = vmul.f32 %v2127, %v3823
        %v4032 = vmul.f32 %v2127, %v3824
        %v4033 = vmul.f32 %v2127, %v3825
        %v4034 = vmul.f32 %v2127, %v3826
        %v4035 = vadd.f32 %v4003, %v4019
        %v4036 = vadd.f32 %v4004, %v4020
        %v4037 = vadd.f32 %v4005, %v4021
        %v4038 = vadd.f32 %v4006, %v4022
        %v4039 = vadd.f32 %v4007, %v4023
        %v4040 = vadd.f32 %v4008, %v4024
        %v4041 = vadd.f32 %v4009, %v4025
        %v4042 = vadd.f32 %v4010, %v4026
        %v4043 = vadd.f32 %v4011, %v4027
        %v4044 = vadd.f32 %v4012, %v4028
        %v4045 = vadd.f32 %v4013, %v4029
        %v4046 = vadd.f32 %v4014, %v4030
        %v4047 = vadd.f32 %v4015, %v4031
        %v4048 = vadd.f32 %v4016, %v4032
        %v4049 = vadd.f32 %v4017, %v4033
        %v4050 = vadd.f32 %v4018, %v4034
        %v4051 = vld [vmem:[%s2790 + $0x5] sm:$0xff]
        %v4052 = vld [vmem:[%s2790 + $0xd] sm:$0xff]
        %v4053 = vld [vmem:[%s2790 + $0x1d] sm:$0xff]
        %v4054 = vld [vmem:[%s2790 + $0x25] sm:$0xff]
        %v4055 = vld [vmem:[%s2790 + $0x35] sm:$0xff]
        %v4056 = vld [vmem:[%s2790 + $0x3d] sm:$0xff]
        %v4057 = vld [vmem:[%s2790 + $0x4d] sm:$0xff]
        %v4058 = vld [vmem:[%s2790 + $0x55] sm:$0xff]
        %v4059 = vld [vmem:[%s2790 + $0x65] sm:$0xff]
        %v4060 = vld [vmem:[%s2790 + $0x6d] sm:$0xff]
        %v4061 = vld [vmem:[%s2790 + $0x7d] sm:$0xff]
        %v4062 = vld [vmem:[%s2790 + $0x85] sm:$0xff]
        %v4063 = vld [vmem:[%s2790 + $0x95] sm:$0xff]
        %v4064 = vld [vmem:[%s2790 + $0x9d] sm:$0xff]
        %v4065 = vld [vmem:[%s2790 + $0xad] sm:$0xff]
        %v4066 = vld [vmem:[%s2790 + $0xb5] sm:$0xff]
        %v4067 = vld [vmem:[%s2790 + $0xc5] sm:$0xff]
        %v4068 = vld [vmem:[%s2790 + $0xcd] sm:$0xff]
        %v4069 = vld [vmem:[%s2790 + $0xdd] sm:$0xff]
        %v4070 = vld [vmem:[%s2790 + $0xe5] sm:$0xff]
        %v4071 = vld [vmem:[%s2790 + $0xf5] sm:$0xff]
        %v4072 = vld [vmem:[%s2790 + $0xfd] sm:$0xff]
        %v4073 = vld [vmem:[%s2790 + $0x10d] sm:$0xff]
        %v4074 = vld [vmem:[%s2790 + $0x115] sm:$0xff]
        %v4075 = vld [vmem:[%s2790 + $0x125] sm:$0xff]
        %v4076 = vld [vmem:[%s2790 + $0x12d] sm:$0xff]
        %v4077 = vld [vmem:[%s2790 + $0x13d] sm:$0xff]
        %v4078 = vld [vmem:[%s2790 + $0x145] sm:$0xff]
        %v4079 = vmul.f32 %v2191, %v4051
        %v4080 = vmul.f32 %v2191, %v4052
        %v4081 = vmul.f32 %v2191, %v4053
        %v4082 = vmul.f32 %v2191, %v4054
        %v4083 = vmul.f32 %v2191, %v4055
        %v4084 = vmul.f32 %v2191, %v4056
        %v4085 = vmul.f32 %v2191, %v4057
        %v4086 = vmul.f32 %v2191, %v4058
        %v4087 = vmul.f32 %v2191, %v4059
        %v4088 = vmul.f32 %v2191, %v4060
        %v4089 = vmul.f32 %v2191, %v4061
        %v4090 = vmul.f32 %v2191, %v4062
        %v4091 = vmul.f32 %v2191, %v4063
        %v4092 = vmul.f32 %v2191, %v4064
        %v4093 = vmul.f32 %v2191, %v4065
        %v4094 = vmul.f32 %v2191, %v4066
        %v4095 = vadd.f32 %v4035, %v4079
        %v4096 = vadd.f32 %v4036, %v4080
        %v4097 = vadd.f32 %v4037, %v4081
        %v4098 = vadd.f32 %v4038, %v4082
        %v4099 = vadd.f32 %v4039, %v4083
        %v4100 = vadd.f32 %v4040, %v4084
        %v4101 = vadd.f32 %v4041, %v4085
        %v4102 = vadd.f32 %v4042, %v4086
        %v4103 = vadd.f32 %v4043, %v4087
        %v4104 = vadd.f32 %v4044, %v4088
        %v4105 = vadd.f32 %v4045, %v4089
        %v4106 = vadd.f32 %v4046, %v4090
        %v4107 = vadd.f32 %v4047, %v4091
        %v4108 = vadd.f32 %v4048, %v4092
        %v4109 = vadd.f32 %v4049, %v4093
        %v4110 = vadd.f32 %v4050, %v4094
        %v4111 = vmul.f32 %v2227, %v4053
        %v4112 = vmul.f32 %v2227, %v4054
        %v4113 = vmul.f32 %v2227, %v4055
        %v4114 = vmul.f32 %v2227, %v4056
        %v4115 = vmul.f32 %v2227, %v4057
        %v4116 = vmul.f32 %v2227, %v4058
        %v4117 = vmul.f32 %v2227, %v4059
        %v4118 = vmul.f32 %v2227, %v4060
        %v4119 = vmul.f32 %v2227, %v4061
        %v4120 = vmul.f32 %v2227, %v4062
        %v4121 = vmul.f32 %v2227, %v4063
        %v4122 = vmul.f32 %v2227, %v4064
        %v4123 = vmul.f32 %v2227, %v4065
        %v4124 = vmul.f32 %v2227, %v4066
        %v4125 = vmul.f32 %v2227, %v4067
        %v4126 = vmul.f32 %v2227, %v4068
        %v4127 = vadd.f32 %v4095, %v4111
        %v4128 = vadd.f32 %v4096, %v4112
        %v4129 = vadd.f32 %v4097, %v4113
        %v4130 = vadd.f32 %v4098, %v4114
        %v4131 = vadd.f32 %v4099, %v4115
        %v4132 = vadd.f32 %v4100, %v4116
        %v4133 = vadd.f32 %v4101, %v4117
        %v4134 = vadd.f32 %v4102, %v4118
        %v4135 = vadd.f32 %v4103, %v4119
        %v4136 = vadd.f32 %v4104, %v4120
        %v4137 = vadd.f32 %v4105, %v4121
        %v4138 = vadd.f32 %v4106, %v4122
        %v4139 = vadd.f32 %v4107, %v4123
        %v4140 = vadd.f32 %v4108, %v4124
        %v4141 = vadd.f32 %v4109, %v4125
        %v4142 = vadd.f32 %v4110, %v4126
        %v4143 = vmul.f32 %v2263, %v4055
        %v4144 = vmul.f32 %v2263, %v4056
        %v4145 = vmul.f32 %v2263, %v4057
        %v4146 = vmul.f32 %v2263, %v4058
        %v4147 = vmul.f32 %v2263, %v4059
        %v4148 = vmul.f32 %v2263, %v4060
        %v4149 = vmul.f32 %v2263, %v4061
        %v4150 = vmul.f32 %v2263, %v4062
        %v4151 = vmul.f32 %v2263, %v4063
        %v4152 = vmul.f32 %v2263, %v4064
        %v4153 = vmul.f32 %v2263, %v4065
        %v4154 = vmul.f32 %v2263, %v4066
        %v4155 = vmul.f32 %v2263, %v4067
        %v4156 = vmul.f32 %v2263, %v4068
        %v4157 = vmul.f32 %v2263, %v4069
        %v4158 = vmul.f32 %v2263, %v4070
        %v4159 = vadd.f32 %v4127, %v4143
        %v4160 = vadd.f32 %v4128, %v4144
        %v4161 = vadd.f32 %v4129, %v4145
        %v4162 = vadd.f32 %v4130, %v4146
        %v4163 = vadd.f32 %v4131, %v4147
        %v4164 = vadd.f32 %v4132, %v4148
        %v4165 = vadd.f32 %v4133, %v4149
        %v4166 = vadd.f32 %v4134, %v4150
        %v4167 = vadd.f32 %v4135, %v4151
        %v4168 = vadd.f32 %v4136, %v4152
        %v4169 = vadd.f32 %v4137, %v4153
        %v4170 = vadd.f32 %v4138, %v4154
        %v4171 = vadd.f32 %v4139, %v4155
        %v4172 = vadd.f32 %v4140, %v4156
        %v4173 = vadd.f32 %v4141, %v4157
        %v4174 = vadd.f32 %v4142, %v4158
        %v4175 = vmul.f32 %v2299, %v4057
        %v4176 = vmul.f32 %v2299, %v4058
        %v4177 = vmul.f32 %v2299, %v4059
        %v4178 = vmul.f32 %v2299, %v4060
        %v4179 = vmul.f32 %v2299, %v4061
        %v4180 = vmul.f32 %v2299, %v4062
        %v4181 = vmul.f32 %v2299, %v4063
        %v4182 = vmul.f32 %v2299, %v4064
        %v4183 = vmul.f32 %v2299, %v4065
        %v4184 = vmul.f32 %v2299, %v4066
        %v4185 = vmul.f32 %v2299, %v4067
        %v4186 = vmul.f32 %v2299, %v4068
        %v4187 = vmul.f32 %v2299, %v4069
        %v4188 = vmul.f32 %v2299, %v4070
        %v4189 = vmul.f32 %v2299, %v4071
        %v4190 = vmul.f32 %v2299, %v4072
        %v4191 = vadd.f32 %v4159, %v4175
        %v4192 = vadd.f32 %v4160, %v4176
        %v4193 = vadd.f32 %v4161, %v4177
        %v4194 = vadd.f32 %v4162, %v4178
        %v4195 = vadd.f32 %v4163, %v4179
        %v4196 = vadd.f32 %v4164, %v4180
        %v4197 = vadd.f32 %v4165, %v4181
        %v4198 = vadd.f32 %v4166, %v4182
        %v4199 = vadd.f32 %v4167, %v4183
        %v4200 = vadd.f32 %v4168, %v4184
        %v4201 = vadd.f32 %v4169, %v4185
        %v4202 = vadd.f32 %v4170, %v4186
        %v4203 = vadd.f32 %v4171, %v4187
        %v4204 = vadd.f32 %v4172, %v4188
        %v4205 = vadd.f32 %v4173, %v4189
        %v4206 = vadd.f32 %v4174, %v4190
        %v4207 = vmul.f32 %v2335, %v4059
        %v4208 = vmul.f32 %v2335, %v4060
        %v4209 = vmul.f32 %v2335, %v4061
        %v4210 = vmul.f32 %v2335, %v4062
        %v4211 = vmul.f32 %v2335, %v4063
        %v4212 = vmul.f32 %v2335, %v4064
        %v4213 = vmul.f32 %v2335, %v4065
        %v4214 = vmul.f32 %v2335, %v4066
        %v4215 = vmul.f32 %v2335, %v4067
        %v4216 = vmul.f32 %v2335, %v4068
        %v4217 = vmul.f32 %v2335, %v4069
        %v4218 = vmul.f32 %v2335, %v4070
        %v4219 = vmul.f32 %v2335, %v4071
        %v4220 = vmul.f32 %v2335, %v4072
        %v4221 = vmul.f32 %v2335, %v4073
        %v4222 = vmul.f32 %v2335, %v4074
        %v4223 = vadd.f32 %v4191, %v4207
        %v4224 = vadd.f32 %v4192, %v4208
        %v4225 = vadd.f32 %v4193, %v4209
        %v4226 = vadd.f32 %v4194, %v4210
        %v4227 = vadd.f32 %v4195, %v4211
        %v4228 = vadd.f32 %v4196, %v4212
        %v4229 = vadd.f32 %v4197, %v4213
        %v4230 = vadd.f32 %v4198, %v4214
        %v4231 = vadd.f32 %v4199, %v4215
        %v4232 = vadd.f32 %v4200, %v4216
        %v4233 = vadd.f32 %v4201, %v4217
        %v4234 = vadd.f32 %v4202, %v4218
        %v4235 = vadd.f32 %v4203, %v4219
        %v4236 = vadd.f32 %v4204, %v4220
        %v4237 = vadd.f32 %v4205, %v4221
        %v4238 = vadd.f32 %v4206, %v4222
        %v4239 = vmul.f32 %v2371, %v4061
        %v4240 = vmul.f32 %v2371, %v4062
        %v4241 = vmul.f32 %v2371, %v4063
        %v4242 = vmul.f32 %v2371, %v4064
        %v4243 = vmul.f32 %v2371, %v4065
        %v4244 = vmul.f32 %v2371, %v4066
        %v4245 = vmul.f32 %v2371, %v4067
        %v4246 = vmul.f32 %v2371, %v4068
        %v4247 = vmul.f32 %v2371, %v4069
        %v4248 = vmul.f32 %v2371, %v4070
        %v4249 = vmul.f32 %v2371, %v4071
        %v4250 = vmul.f32 %v2371, %v4072
        %v4251 = vmul.f32 %v2371, %v4073
        %v4252 = vmul.f32 %v2371, %v4074
        %v4253 = vmul.f32 %v2371, %v4075
        %v4254 = vmul.f32 %v2371, %v4076
        %v4255 = vadd.f32 %v4223, %v4239
        %v4256 = vadd.f32 %v4224, %v4240
        %v4257 = vadd.f32 %v4225, %v4241
        %v4258 = vadd.f32 %v4226, %v4242
        %v4259 = vadd.f32 %v4227, %v4243
        %v4260 = vadd.f32 %v4228, %v4244
        %v4261 = vadd.f32 %v4229, %v4245
        %v4262 = vadd.f32 %v4230, %v4246
        %v4263 = vadd.f32 %v4231, %v4247
        %v4264 = vadd.f32 %v4232, %v4248
        %v4265 = vadd.f32 %v4233, %v4249
        %v4266 = vadd.f32 %v4234, %v4250
        %v4267 = vadd.f32 %v4235, %v4251
        %v4268 = vadd.f32 %v4236, %v4252
        %v4269 = vadd.f32 %v4237, %v4253
        %v4270 = vadd.f32 %v4238, %v4254
        %v4271 = vmul.f32 %v2407, %v4063
        %v4272 = vmul.f32 %v2407, %v4064
        %v4273 = vmul.f32 %v2407, %v4065
        %v4274 = vmul.f32 %v2407, %v4066
        %v4275 = vmul.f32 %v2407, %v4067
        %v4276 = vmul.f32 %v2407, %v4068
        %v4277 = vmul.f32 %v2407, %v4069
        %v4278 = vmul.f32 %v2407, %v4070
        %v4279 = vmul.f32 %v2407, %v4071
        %v4280 = vmul.f32 %v2407, %v4072
        %v4281 = vmul.f32 %v2407, %v4073
        %v4282 = vmul.f32 %v2407, %v4074
        %v4283 = vmul.f32 %v2407, %v4075
        %v4284 = vmul.f32 %v2407, %v4076
        %v4285 = vmul.f32 %v2407, %v4077
        %v4286 = vmul.f32 %v2407, %v4078
        %v4287 = vadd.f32 %v4255, %v4271
        %v4288 = vadd.f32 %v4256, %v4272
        %v4289 = vadd.f32 %v4257, %v4273
        %v4290 = vadd.f32 %v4258, %v4274
        %v4291 = vadd.f32 %v4259, %v4275
        %v4292 = vadd.f32 %v4260, %v4276
        %v4293 = vadd.f32 %v4261, %v4277
        %v4294 = vadd.f32 %v4262, %v4278
        %v4295 = vadd.f32 %v4263, %v4279
        %v4296 = vadd.f32 %v4264, %v4280
        %v4297 = vadd.f32 %v4265, %v4281
        %v4298 = vadd.f32 %v4266, %v4282
        %v4299 = vadd.f32 %v4267, %v4283
        %v4300 = vadd.f32 %v4268, %v4284
        %v4301 = vadd.f32 %v4269, %v4285
        %v4302 = vadd.f32 %v4270, %v4286
        %v4303 = vld [vmem:[%s2790 + $0x6] sm:$0xff]
        %v4304 = vld [vmem:[%s2790 + $0xe] sm:$0xff]
        %v4305 = vld [vmem:[%s2790 + $0x1e] sm:$0xff]
        %v4306 = vld [vmem:[%s2790 + $0x26] sm:$0xff]
        %v4307 = vld [vmem:[%s2790 + $0x36] sm:$0xff]
        %v4308 = vld [vmem:[%s2790 + $0x3e] sm:$0xff]
        %v4309 = vld [vmem:[%s2790 + $0x4e] sm:$0xff]
        %v4310 = vld [vmem:[%s2790 + $0x56] sm:$0xff]
        %v4311 = vld [vmem:[%s2790 + $0x66] sm:$0xff]
        %v4312 = vld [vmem:[%s2790 + $0x6e] sm:$0xff]
        %v4313 = vld [vmem:[%s2790 + $0x7e] sm:$0xff]
        %v4314 = vld [vmem:[%s2790 + $0x86] sm:$0xff]
        %v4315 = vld [vmem:[%s2790 + $0x96] sm:$0xff]
        %v4316 = vld [vmem:[%s2790 + $0x9e] sm:$0xff]
        %v4317 = vld [vmem:[%s2790 + $0xae] sm:$0xff]
        %v4318 = vld [vmem:[%s2790 + $0xb6] sm:$0xff]
        %v4319 = vld [vmem:[%s2790 + $0xc6] sm:$0xff]
        %v4320 = vld [vmem:[%s2790 + $0xce] sm:$0xff]
        %v4321 = vld [vmem:[%s2790 + $0xde] sm:$0xff]
        %v4322 = vld [vmem:[%s2790 + $0xe6] sm:$0xff]
        %v4323 = vld [vmem:[%s2790 + $0xf6] sm:$0xff]
        %v4324 = vld [vmem:[%s2790 + $0xfe] sm:$0xff]
        %v4325 = vld [vmem:[%s2790 + $0x10e] sm:$0xff]
        %v4326 = vld [vmem:[%s2790 + $0x116] sm:$0xff]
        %v4327 = vld [vmem:[%s2790 + $0x126] sm:$0xff]
        %v4328 = vld [vmem:[%s2790 + $0x12e] sm:$0xff]
        %v4329 = vld [vmem:[%s2790 + $0x13e] sm:$0xff]
        %v4330 = vld [vmem:[%s2790 + $0x146] sm:$0xff]
        %v4331 = vmul.f32 %v2471, %v4303
        %v4332 = vmul.f32 %v2471, %v4304
        %v4333 = vmul.f32 %v2471, %v4305
        %v4334 = vmul.f32 %v2471, %v4306
        %v4335 = vmul.f32 %v2471, %v4307
        %v4336 = vmul.f32 %v2471, %v4308
        %v4337 = vmul.f32 %v2471, %v4309
        %v4338 = vmul.f32 %v2471, %v4310
        %v4339 = vmul.f32 %v2471, %v4311
        %v4340 = vmul.f32 %v2471, %v4312
        %v4341 = vmul.f32 %v2471, %v4313
        %v4342 = vmul.f32 %v2471, %v4314
        %v4343 = vmul.f32 %v2471, %v4315
        %v4344 = vmul.f32 %v2471, %v4316
        %v4345 = vmul.f32 %v2471, %v4317
        %v4346 = vmul.f32 %v2471, %v4318
        %v4347 = vadd.f32 %v4287, %v4331
        %v4348 = vadd.f32 %v4288, %v4332
        %v4349 = vadd.f32 %v4289, %v4333
        %v4350 = vadd.f32 %v4290, %v4334
        %v4351 = vadd.f32 %v4291, %v4335
        %v4352 = vadd.f32 %v4292, %v4336
        %v4353 = vadd.f32 %v4293, %v4337
        %v4354 = vadd.f32 %v4294, %v4338
        %v4355 = vadd.f32 %v4295, %v4339
        %v4356 = vadd.f32 %v4296, %v4340
        %v4357 = vadd.f32 %v4297, %v4341
        %v4358 = vadd.f32 %v4298, %v4342
        %v4359 = vadd.f32 %v4299, %v4343
        %v4360 = vadd.f32 %v4300, %v4344
        %v4361 = vadd.f32 %v4301, %v4345
        %v4362 = vadd.f32 %v4302, %v4346
        %v4363 = vmul.f32 %v2507, %v4305
        %v4364 = vmul.f32 %v2507, %v4306
        %v4365 = vmul.f32 %v2507, %v4307
        %v4366 = vmul.f32 %v2507, %v4308
        %v4367 = vmul.f32 %v2507, %v4309
        %v4368 = vmul.f32 %v2507, %v4310
        %v4369 = vmul.f32 %v2507, %v4311
        %v4370 = vmul.f32 %v2507, %v4312
        %v4371 = vmul.f32 %v2507, %v4313
        %v4372 = vmul.f32 %v2507, %v4314
        %v4373 = vmul.f32 %v2507, %v4315
        %v4374 = vmul.f32 %v2507, %v4316
        %v4375 = vmul.f32 %v2507, %v4317
        %v4376 = vmul.f32 %v2507, %v4318
        %v4377 = vmul.f32 %v2507, %v4319
        %v4378 = vmul.f32 %v2507, %v4320
        %v4379 = vadd.f32 %v4347, %v4363
        %v4380 = vadd.f32 %v4348, %v4364
        %v4381 = vadd.f32 %v4349, %v4365
        %v4382 = vadd.f32 %v4350, %v4366
        %v4383 = vadd.f32 %v4351, %v4367
        %v4384 = vadd.f32 %v4352, %v4368
        %v4385 = vadd.f32 %v4353, %v4369
        %v4386 = vadd.f32 %v4354, %v4370
        %v4387 = vadd.f32 %v4355, %v4371
        %v4388 = vadd.f32 %v4356, %v4372
        %v4389 = vadd.f32 %v4357, %v4373
        %v4390 = vadd.f32 %v4358, %v4374
        %v4391 = vadd.f32 %v4359, %v4375
        %v4392 = vadd.f32 %v4360, %v4376
        %v4393 = vadd.f32 %v4361, %v4377
        %v4394 = vadd.f32 %v4362, %v4378
        %v4395 = vmul.f32 %v2543, %v4307
        %v4396 = vmul.f32 %v2543, %v4308
        %v4397 = vmul.f32 %v2543, %v4309
        %v4398 = vmul.f32 %v2543, %v4310
        %v4399 = vmul.f32 %v2543, %v4311
        %v4400 = vmul.f32 %v2543, %v4312
        %v4401 = vmul.f32 %v2543, %v4313
        %v4402 = vmul.f32 %v2543, %v4314
        %v4403 = vmul.f32 %v2543, %v4315
        %v4404 = vmul.f32 %v2543, %v4316
        %v4405 = vmul.f32 %v2543, %v4317
        %v4406 = vmul.f32 %v2543, %v4318
        %v4407 = vmul.f32 %v2543, %v4319
        %v4408 = vmul.f32 %v2543, %v4320
        %v4409 = vmul.f32 %v2543, %v4321
        %v4410 = vmul.f32 %v2543, %v4322
        %v4411 = vadd.f32 %v4379, %v4395
        %v4412 = vadd.f32 %v4380, %v4396
        %v4413 = vadd.f32 %v4381, %v4397
        %v4414 = vadd.f32 %v4382, %v4398
        %v4415 = vadd.f32 %v4383, %v4399
        %v4416 = vadd.f32 %v4384, %v4400
        %v4417 = vadd.f32 %v4385, %v4401
        %v4418 = vadd.f32 %v4386, %v4402
        %v4419 = vadd.f32 %v4387, %v4403
        %v4420 = vadd.f32 %v4388, %v4404
        %v4421 = vadd.f32 %v4389, %v4405
        %v4422 = vadd.f32 %v4390, %v4406
        %v4423 = vadd.f32 %v4391, %v4407
        %v4424 = vadd.f32 %v4392, %v4408
        %v4425 = vadd.f32 %v4393, %v4409
        %v4426 = vadd.f32 %v4394, %v4410
        %v4427 = vmul.f32 %v2579, %v4309
        %v4428 = vmul.f32 %v2579, %v4310
        %v4429 = vmul.f32 %v2579, %v4311
        %v4430 = vmul.f32 %v2579, %v4312
        %v4431 = vmul.f32 %v2579, %v4313
        %v4432 = vmul.f32 %v2579, %v4314
        %v4433 = vmul.f32 %v2579, %v4315
        %v4434 = vmul.f32 %v2579, %v4316
        %v4435 = vmul.f32 %v2579, %v4317
        %v4436 = vmul.f32 %v2579, %v4318
        %v4437 = vmul.f32 %v2579, %v4319
        %v4438 = vmul.f32 %v2579, %v4320
        %v4439 = vmul.f32 %v2579, %v4321
        %v4440 = vmul.f32 %v2579, %v4322
        %v4441 = vmul.f32 %v2579, %v4323
        %v4442 = vmul.f32 %v2579, %v4324
        %v4443 = vadd.f32 %v4411, %v4427
        %v4444 = vadd.f32 %v4412, %v4428
        %v4445 = vadd.f32 %v4413, %v4429
        %v4446 = vadd.f32 %v4414, %v4430
        %v4447 = vadd.f32 %v4415, %v4431
        %v4448 = vadd.f32 %v4416, %v4432
        %v4449 = vadd.f32 %v4417, %v4433
        %v4450 = vadd.f32 %v4418, %v4434
        %v4451 = vadd.f32 %v4419, %v4435
        %v4452 = vadd.f32 %v4420, %v4436
        %v4453 = vadd.f32 %v4421, %v4437
        %v4454 = vadd.f32 %v4422, %v4438
        %v4455 = vadd.f32 %v4423, %v4439
        %v4456 = vadd.f32 %v4424, %v4440
        %v4457 = vadd.f32 %v4425, %v4441
        %v4458 = vadd.f32 %v4426, %v4442
        %v4459 = vmul.f32 %v2615, %v4311
        %v4460 = vmul.f32 %v2615, %v4312
        %v4461 = vmul.f32 %v2615, %v4313
        %v4462 = vmul.f32 %v2615, %v4314
        %v4463 = vmul.f32 %v2615, %v4315
        %v4464 = vmul.f32 %v2615, %v4316
        %v4465 = vmul.f32 %v2615, %v4317
        %v4466 = vmul.f32 %v2615, %v4318
        %v4467 = vmul.f32 %v2615, %v4319
        %v4468 = vmul.f32 %v2615, %v4320
        %v4469 = vmul.f32 %v2615, %v4321
        %v4470 = vmul.f32 %v2615, %v4322
        %v4471 = vmul.f32 %v2615, %v4323
        %v4472 = vmul.f32 %v2615, %v4324
        %v4473 = vmul.f32 %v2615, %v4325
        %v4474 = vmul.f32 %v2615, %v4326
        %v4475 = vadd.f32 %v4443, %v4459
        %v4476 = vadd.f32 %v4444, %v4460
        %v4477 = vadd.f32 %v4445, %v4461
        %v4478 = vadd.f32 %v4446, %v4462
        %v4479 = vadd.f32 %v4447, %v4463
        %v4480 = vadd.f32 %v4448, %v4464
        %v4481 = vadd.f32 %v4449, %v4465
        %v4482 = vadd.f32 %v4450, %v4466
        %v4483 = vadd.f32 %v4451, %v4467
        %v4484 = vadd.f32 %v4452, %v4468
        %v4485 = vadd.f32 %v4453, %v4469
        %v4486 = vadd.f32 %v4454, %v4470
        %v4487 = vadd.f32 %v4455, %v4471
        %v4488 = vadd.f32 %v4456, %v4472
        %v4489 = vadd.f32 %v4457, %v4473
        %v4490 = vadd.f32 %v4458, %v4474
        %v4491 = vmul.f32 %v2651, %v4313
        %v4492 = vmul.f32 %v2651, %v4314
        %v4493 = vmul.f32 %v2651, %v4315
        %v4494 = vmul.f32 %v2651, %v4316
        %v4495 = vmul.f32 %v2651, %v4317
        %v4496 = vmul.f32 %v2651, %v4318
        %v4497 = vmul.f32 %v2651, %v4319
        %v4498 = vmul.f32 %v2651, %v4320
        %v4499 = vmul.f32 %v2651, %v4321
        %v4500 = vmul.f32 %v2651, %v4322
        %v4501 = vmul.f32 %v2651, %v4323
        %v4502 = vmul.f32 %v2651, %v4324
        %v4503 = vmul.f32 %v2651, %v4325
        %v4504 = vmul.f32 %v2651, %v4326
        %v4505 = vmul.f32 %v2651, %v4327
        %v4506 = vmul.f32 %v2651, %v4328
        %v4507 = vadd.f32 %v4475, %v4491
        %v4508 = vadd.f32 %v4476, %v4492
        %v4509 = vadd.f32 %v4477, %v4493
        %v4510 = vadd.f32 %v4478, %v4494
        %v4511 = vadd.f32 %v4479, %v4495
        %v4512 = vadd.f32 %v4480, %v4496
        %v4513 = vadd.f32 %v4481, %v4497
        %v4514 = vadd.f32 %v4482, %v4498
        %v4515 = vadd.f32 %v4483, %v4499
        %v4516 = vadd.f32 %v4484, %v4500
        %v4517 = vadd.f32 %v4485, %v4501
        %v4518 = vadd.f32 %v4486, %v4502
        %v4519 = vadd.f32 %v4487, %v4503
        %v4520 = vadd.f32 %v4488, %v4504
        %v4521 = vadd.f32 %v4489, %v4505
        %v4522 = vadd.f32 %v4490, %v4506
        %v4523 = vmul.f32 %v2687, %v4315
        %v4524 = vmul.f32 %v2687, %v4316
        %v4525 = vmul.f32 %v2687, %v4317
        %v4526 = vmul.f32 %v2687, %v4318
        %v4527 = vmul.f32 %v2687, %v4319
        %v4528 = vmul.f32 %v2687, %v4320
        %v4529 = vmul.f32 %v2687, %v4321
        %v4530 = vmul.f32 %v2687, %v4322
        %v4531 = vmul.f32 %v2687, %v4323
        %v4532 = vmul.f32 %v2687, %v4324
        %v4533 = vmul.f32 %v2687, %v4325
        %v4534 = vmul.f32 %v2687, %v4326
        %v4535 = vmul.f32 %v2687, %v4327
        %v4536 = vmul.f32 %v2687, %v4328
        %v4537 = vmul.f32 %v2687, %v4329
        %v4538 = vmul.f32 %v2687, %v4330
        %v4539 = vadd.f32 %v4507, %v4523
        %v4540 = vadd.f32 %v4508, %v4524
        %v4541 = vadd.f32 %v4509, %v4525
        %v4542 = vadd.f32 %v4510, %v4526
        %v4543 = vadd.f32 %v4511, %v4527
        %v4544 = vadd.f32 %v4512, %v4528
        %v4545 = vadd.f32 %v4513, %v4529
        %v4546 = vadd.f32 %v4514, %v4530
        %v4547 = vadd.f32 %v4515, %v4531
        %v4548 = vadd.f32 %v4516, %v4532
        %v4549 = vadd.f32 %v4517, %v4533
        %v4550 = vadd.f32 %v4518, %v4534
        %v4551 = vadd.f32 %v4519, %v4535
        %v4552 = vadd.f32 %v4520, %v4536
        %v4553 = vadd.f32 %v4521, %v4537
        %v4554 = vadd.f32 %v4522, %v4538
        %v4555 = vadd.f32 %v4539, %v2724
        %v4556 = vadd.f32 %v4540, %v2724
        %v4557 = vadd.f32 %v4541, %v2724
        %v4558 = vadd.f32 %v4542, %v2724
        %v4559 = vadd.f32 %v4543, %v2724
        %v4560 = vadd.f32 %v4544, %v2724
        %v4561 = vadd.f32 %v4545, %v2724
        %v4562 = vadd.f32 %v4546, %v2724
        %v4563 = vadd.f32 %v4547, %v2724
        %v4564 = vadd.f32 %v4548, %v2724
        %v4565 = vadd.f32 %v4549, %v2724
        %v4566 = vadd.f32 %v4550, %v2724
        %v4567 = vadd.f32 %v4551, %v2724
        %v4568 = vadd.f32 %v4552, %v2724
        %v4569 = vadd.f32 %v4553, %v2724
        %v4570 = vadd.f32 %v4554, %v2724
        %v4571 = vmul.f32 %v4555, 0.5
        %v4572 = vmul.f32 %v4556, 0.5
        %v4573 = vmul.f32 %v4557, 0.5
        %v4574 = vmul.f32 %v4558, 0.5
        %v4575 = vmul.f32 %v4559, 0.5
        %v4576 = vmul.f32 %v4560, 0.5
        %v4577 = vmul.f32 %v4561, 0.5
        %v4578 = vmul.f32 %v4562, 0.5
        %v4579 = vmul.f32 %v4563, 0.5
        %v4580 = vmul.f32 %v4564, 0.5
        %v4581 = vmul.f32 %v4565, 0.5
        %v4582 = vmul.f32 %v4566, 0.5
        %v4583 = vmul.f32 %v4567, 0.5
        %v4584 = vmul.f32 %v4568, 0.5
        %v4585 = vmul.f32 %v4569, 0.5
        %v4586 = vmul.f32 %v4570, 0.5
        %4587 = vxpose.xlu0.b32.start [1/16] %v4571, 128
        %4588 = vxpose.xlu0.b32.cont [2/16] %v4572, 128
        %4589 = vxpose.xlu0.b32.cont [3/16] %v4573, 128
        %4590 = vxpose.xlu0.b32.cont [4/16] %v4574, 128
        %4591 = vxpose.xlu0.b32.cont [5/16] %v4575, 128
        %4592 = vxpose.xlu0.b32.cont [6/16] %v4576, 128
        %4593 = vxpose.xlu0.b32.cont [7/16] %v4577, 128
        %4594 = vxpose.xlu0.b32.cont [8/16] %v4578, 128
        %4595 = vxpose.xlu0.b32.cont [9/16] %v4579, 128
        %4596 = vxpose.xlu0.b32.cont [10/16] %v4580, 128
        %4597 = vxpose.xlu0.b32.cont [11/16] %v4581, 128
        %4598 = vxpose.xlu0.b32.cont [12/16] %v4582, 128
        %4599 = vxpose.xlu0.b32.cont [13/16] %v4583, 128
        %4600 = vxpose.xlu0.b32.cont [14/16] %v4584, 128
        %4601 = vxpose.xlu0.b32.cont [15/16] %v4585, 128
        %4602 = vxpose.xlu0.b32.end [16/16] %v4586, 128
        %v4603 = vpop.trf.xlu0
        %v4604 = vpop.trf.xlu0
        %v4605 = vpop.trf.xlu0
        %v4606 = vpop.trf.xlu0
        %v4607 = vpop.trf.xlu0
        %v4608 = vpop.trf.xlu0
        %v4609 = vpop.trf.xlu0
        %v4610 = vpop.trf.xlu0
        %v4611 = vpop.trf.xlu0
        %v4612 = vpop.trf.xlu0
        %v4613 = vpop.trf.xlu0
        %v4614 = vpop.trf.xlu0
        %v4615 = vpop.trf.xlu0
        %v4616 = vpop.trf.xlu0
        %v4617 = vpop.trf.xlu0
        %v4618 = vpop.trf.xlu0
        %v4619 = vmul.f32 %v541, %v2774
        %v4620 = vmul.f32 %v543, %v4603
        %v4621 = vld [vmem:[%s5] sm:$0xff]
        %v4622 = vld [vmem:[%s5 + $0x8] sm:$0xff]
        %v4623 = vld [vmem:[%s7] sm:$0xff]
        %v4624 = vld [vmem:[%s7 + $0x8] sm:$0xff]
        %4626 = vset.pattern.permute.xlu0 0
        %4627 = vperm.xlu0 %4626, %v4623
        %v4628 = vpop.permute.xlu0 %4627
        %4631 = vset.pattern.permute.xlu0 0
        %4632 = vperm.xlu0 %4631, %v4624
        %v4633 = vpop.permute.xlu0 %4632
        %vm4635 = vcmask 64512
        %v4637 = vsel %vm4635, %v4621, 0
        %v4640 = vsel %vm4635, %v4622, 0
        %4642 = vmatprep.subr.mxu0 0.0
        %4643 = vmatpush1.msra.mxu0 0.0
        %4644 = vmatprep.subr.mxu0 0.0
        %4645 = vmatpush1.msra.mxu0 0.0
        %4646 = vmatprep.subr.mxu0 0.0
        %4647 = vmatpush1.msra.mxu0 0.0
        %4648 = vmatprep.subr.mxu0 0.0
        %4649 = vmatpush1.msra.mxu0 0.0
        %4650 = vmatprep.subr.mxu0 0.0
        %4651 = vmatpush1.msra.mxu0 0.0
        %4652 = vmatprep.subr.mxu0 0.0
        %4653 = vmatpush1.msra.mxu0 0.0
        %4654 = vmatprep.subr.mxu0 0.0
        %4655 = vmatpush1.msra.mxu0 0.0
        %4656 = vmatprep.subr.mxu0 0.0
        %4657 = vmatpush1.msra.mxu0 0.0
        %4658 = vmatprep.subr.mxu0 0.0
        %4659 = vmatpush1.msra.mxu0 0.0
        %4660 = vmatprep.subr.mxu0 0.0
        %4661 = vmatpush1.msra.mxu0 0.0
        %4662 = vmatprep.subr.mxu0 0.0
        %4663 = vmatpush1.msra.mxu0 0.0
        %4664 = vmatprep.subr.mxu0 0.0
        %4665 = vmatpush1.msra.mxu0 0.0
        %4666 = vmatprep.subr.mxu0 0.0
        %4667 = vmatpush1.msra.mxu0 0.0
        %4668 = vmatprep.subr.mxu0 0.0
        %4669 = vmatpush1.msra.mxu0 0.0
        %4670 = vmatprep.subr.mxu0 0.0
        %4671 = vmatpush1.msra.mxu0 0.0
        %4672 = vmatprep.subr.mxu0 %v4620
        %4673 = vmatpush1.msra.mxu0 %v4619
        %4674 = vmatprep.subr.mxu0 0.0
        %4675 = vmatpush2.msra.mxu0 0.0
        %4676 = vmatprep.subr.mxu0 0.0
        %4677 = vmatpush2.msra.mxu0 0.0
        %4678 = vmatprep.subr.mxu0 0.0
        %4679 = vmatpush2.msra.mxu0 0.0
        %4680 = vmatprep.subr.mxu0 0.0
        %4681 = vmatpush2.msra.mxu0 0.0
        %4682 = vmatprep.subr.mxu0 0.0
        %4683 = vmatpush2.msra.mxu0 0.0
        %4684 = vmatprep.subr.mxu0 0.0
        %4685 = vmatpush2.msra.mxu0 0.0
        %4686 = vmatprep.subr.mxu0 0.0
        %4687 = vmatpush2.msra.mxu0 0.0
        %4688 = vmatprep.subr.mxu0 0.0
        %4689 = vmatpush2.msra.mxu0 0.0
        %4690 = vmatprep.subr.mxu0 0.0
        %4691 = vmatpush2.msra.mxu0 0.0
        %4692 = vmatprep.subr.mxu0 0.0
        %4693 = vmatpush2.msra.mxu0 0.0
        %4694 = vmatprep.subr.mxu0 0.0
        %4695 = vmatpush2.msra.mxu0 0.0
        %4696 = vmatprep.subr.mxu0 0.0
        %4697 = vmatpush2.msra.mxu0 0.0
        %4698 = vmatprep.subr.mxu0 0.0
        %4699 = vmatpush2.msra.mxu0 0.0
        %4700 = vmatprep.subr.mxu0 0.0
        %4701 = vmatpush2.msra.mxu0 0.0
        %4702 = vmatprep.subr.mxu0 0.0
        %4703 = vmatpush2.msra.mxu0 0.0
        %4704 = vmatprep.subr.mxu0 0.0
        %4705 = vmatpush2.msra.mxu0 0.0
        %4706 = vmatprep.mubr.f32.mxu0 0.0
        %4707 = vmatmul.mubr.f32.gmra.mxu0 %v4637
        %v4708 = vpop.f32.mrf.mxu0
        %v4709 = vadd.f32 %v4628, %v4708
        %v4710 = vpop.f32.mrf.mxu0
        %v4711 = vadd.f32 %v4628, %v4710
        %4712 = vmatprep.mubr.f32.mxu0 0.0
        %4713 = vmatmul.mubr.f32.gmra.mxu0 %v4640
        %v4714 = vpop.f32.mrf.mxu0
        %v4715 = vadd.f32 %v4633, %v4714
        %v4716 = vpop.f32.mrf.mxu0
        %v4717 = vadd.f32 %v4633, %v4716
        %4718 = vdwg.mxu0
        %v4719 = vmul.f32 %v4709, %v2775
        %v4720 = vmul.f32 %v4711, %v4604
        %v4721 = vmul.f32 %v4715, %v2776
        %v4722 = vmul.f32 %v4717, %v4605
        %v4723 = vld [vmem:[%s6] sm:$0xff]
        %v4724 = vld [vmem:[%s6 + $0x8] sm:$0xff]
        %v4725 = vld [vmem:[%s6 + $0x10] sm:$0xff]
        %v4726 = vld [vmem:[%s6 + $0x18] sm:$0xff]
        %v4727 = vld [vmem:[%s8] sm:$0xff]
        %v4728 = vld [vmem:[%s8 + $0x8] sm:$0xff]
        %v4729 = vld [vmem:[%s8 + $0x10] sm:$0xff]
        %v4730 = vld [vmem:[%s8 + $0x18] sm:$0xff]
        %4732 = vset.pattern.permute.xlu0 0
        %4733 = vperm.xlu0 %4732, %v4727
        %v4734 = vpop.permute.xlu0 %4733
        %4737 = vset.pattern.permute.xlu0 0
        %4738 = vperm.xlu0 %4737, %v4728
        %v4739 = vpop.permute.xlu0 %4738
        %4742 = vset.pattern.permute.xlu0 0
        %4743 = vperm.xlu0 %4742, %v4729
        %v4744 = vpop.permute.xlu0 %4743
        %4747 = vset.pattern.permute.xlu0 0
        %4748 = vperm.xlu0 %4747, %v4730
        %v4749 = vpop.permute.xlu0 %4748
        %vm4751 = vcmask 130048
        %v4753 = vsel %vm4751, %v4723, 0
        %v4756 = vsel %vm4751, %v4724, 0
        %v4759 = vsel %vm4751, %v4725, 0
        %v4762 = vsel %vm4751, %v4726, 0
        %4764 = vmatprep.subr.mxu0 0.0
        %4765 = vmatpush1.msra.mxu0 0.0
        %4766 = vmatprep.subr.mxu0 0.0
        %4767 = vmatpush1.msra.mxu0 0.0
        %4768 = vmatprep.subr.mxu0 0.0
        %4769 = vmatpush1.msra.mxu0 0.0
        %4770 = vmatprep.subr.mxu0 0.0
        %4771 = vmatpush1.msra.mxu0 0.0
        %4772 = vmatprep.subr.mxu0 0.0
        %4773 = vmatpush1.msra.mxu0 0.0
        %4774 = vmatprep.subr.mxu0 0.0
        %4775 = vmatpush1.msra.mxu0 0.0
        %4776 = vmatprep.subr.mxu0 0.0
        %4777 = vmatpush1.msra.mxu0 0.0
        %4778 = vmatprep.subr.mxu0 0.0
        %4779 = vmatpush1.msra.mxu0 0.0
        %4780 = vmatprep.subr.mxu0 0.0
        %4781 = vmatpush1.msra.mxu0 0.0
        %4782 = vmatprep.subr.mxu0 0.0
        %4783 = vmatpush1.msra.mxu0 0.0
        %4784 = vmatprep.subr.mxu0 0.0
        %4785 = vmatpush1.msra.mxu0 0.0
        %4786 = vmatprep.subr.mxu0 0.0
        %4787 = vmatpush1.msra.mxu0 0.0
        %4788 = vmatprep.subr.mxu0 0.0
        %4789 = vmatpush1.msra.mxu0 0.0
        %4790 = vmatprep.subr.mxu0 0.0
        %4791 = vmatpush1.msra.mxu0 0.0
        %4792 = vmatprep.subr.mxu0 %v4722
        %4793 = vmatpush1.msra.mxu0 %v4721
        %4794 = vmatprep.subr.mxu0 %v4720
        %4795 = vmatpush1.msra.mxu0 %v4719
        %4796 = vmatprep.subr.mxu0 0.0
        %4797 = vmatpush2.msra.mxu0 0.0
        %4798 = vmatprep.subr.mxu0 0.0
        %4799 = vmatpush2.msra.mxu0 0.0
        %4800 = vmatprep.subr.mxu0 0.0
        %4801 = vmatpush2.msra.mxu0 0.0
        %4802 = vmatprep.subr.mxu0 0.0
        %4803 = vmatpush2.msra.mxu0 0.0
        %4804 = vmatprep.subr.mxu0 0.0
        %4805 = vmatpush2.msra.mxu0 0.0
        %4806 = vmatprep.subr.mxu0 0.0
        %4807 = vmatpush2.msra.mxu0 0.0
        %4808 = vmatprep.subr.mxu0 0.0
        %4809 = vmatpush2.msra.mxu0 0.0
        %4810 = vmatprep.subr.mxu0 0.0
        %4811 = vmatpush2.msra.mxu0 0.0
        %4812 = vmatprep.subr.mxu0 0.0
        %4813 = vmatpush2.msra.mxu0 0.0
        %4814 = vmatprep.subr.mxu0 0.0
        %4815 = vmatpush2.msra.mxu0 0.0
        %4816 = vmatprep.subr.mxu0 0.0
        %4817 = vmatpush2.msra.mxu0 0.0
        %4818 = vmatprep.subr.mxu0 0.0
        %4819 = vmatpush2.msra.mxu0 0.0
        %4820 = vmatprep.subr.mxu0 0.0
        %4821 = vmatpush2.msra.mxu0 0.0
        %4822 = vmatprep.subr.mxu0 0.0
        %4823 = vmatpush2.msra.mxu0 0.0
        %4824 = vmatprep.subr.mxu0 0.0
        %4825 = vmatpush2.msra.mxu0 0.0
        %4826 = vmatprep.subr.mxu0 0.0
        %4827 = vmatpush2.msra.mxu0 0.0
        %4828 = vmatprep.mubr.f32.mxu0 0.0
        %4829 = vmatmul.mubr.f32.gmra.mxu0 %v4753
        %v4830 = vpop.f32.mrf.mxu0
        %v4831 = vadd.f32 %v4734, %v4830
        %v4832 = vpop.f32.mrf.mxu0
        %v4833 = vadd.f32 %v4734, %v4832
        %4834 = vmatprep.mubr.f32.mxu0 0.0
        %4835 = vmatmul.mubr.f32.gmra.mxu0 %v4756
        %v4836 = vpop.f32.mrf.mxu0
        %v4837 = vadd.f32 %v4739, %v4836
        %v4838 = vpop.f32.mrf.mxu0
        %v4839 = vadd.f32 %v4739, %v4838
        %4840 = vmatprep.mubr.f32.mxu0 0.0
        %4841 = vmatmul.mubr.f32.gmra.mxu0 %v4759
        %v4842 = vpop.f32.mrf.mxu0
        %v4843 = vadd.f32 %v4744, %v4842
        %v4844 = vpop.f32.mrf.mxu0
        %v4845 = vadd.f32 %v4744, %v4844
        %4846 = vmatprep.mubr.f32.mxu0 0.0
        %4847 = vmatmul.mubr.f32.gmra.mxu0 %v4762
        %v4848 = vpop.f32.mrf.mxu0
        %v4849 = vadd.f32 %v4749, %v4848
        %v4850 = vpop.f32.mrf.mxu0
        %v4851 = vadd.f32 %v4749, %v4850
        %4852 = vdwg.mxu0
        %v4853 = vmul.f32 %v4831, %v2777
        %v4854 = vmul.f32 %v4833, %v4606
        %v4855 = vmul.f32 %v4837, %v2778
        %v4856 = vmul.f32 %v4839, %v4607
        %v4857 = vmul.f32 %v4843, %v2779
        %v4858 = vmul.f32 %v4845, %v4608
        %v4859 = vmul.f32 %v4849, %v2780
        %v4860 = vmul.f32 %v4851, %v4609
        %v4861 = vld [vmem:[%s9] sm:$0xff]
        %v4862 = vld [vmem:[%s9 + $0x8] sm:$0xff]
        %v4863 = vld [vmem:[%s9 + $0x10] sm:$0xff]
        %v4864 = vld [vmem:[%s9 + $0x18] sm:$0xff]
        %v4865 = vld [vmem:[%s10] sm:$0xff]
        %v4866 = vld [vmem:[%s10 + $0x8] sm:$0xff]
        %v4867 = vld [vmem:[%s10 + $0x10] sm:$0xff]
        %v4868 = vld [vmem:[%s10 + $0x18] sm:$0xff]
        %4870 = vset.pattern.permute.xlu0 0
        %4871 = vperm.xlu0 %4870, %v4865
        %v4872 = vpop.permute.xlu0 %4871
        %4875 = vset.pattern.permute.xlu0 0
        %4876 = vperm.xlu0 %4875, %v4866
        %v4877 = vpop.permute.xlu0 %4876
        %4880 = vset.pattern.permute.xlu0 0
        %4881 = vperm.xlu0 %4880, %v4867
        %v4882 = vpop.permute.xlu0 %4881
        %4885 = vset.pattern.permute.xlu0 0
        %4886 = vperm.xlu0 %4885, %v4868
        %v4887 = vpop.permute.xlu0 %4886
        %v4890 = vsel %vm449, %v4861, 0
        %v4893 = vsel %vm449, %v4862, 0
        %v4896 = vsel %vm449, %v4863, 0
        %v4899 = vsel %vm449, %v4864, 0
        %4901 = vmatprep.subr.mxu0 0.0
        %4902 = vmatpush1.msra.mxu0 0.0
        %4903 = vmatprep.subr.mxu0 0.0
        %4904 = vmatpush1.msra.mxu0 0.0
        %4905 = vmatprep.subr.mxu0 0.0
        %4906 = vmatpush1.msra.mxu0 0.0
        %4907 = vmatprep.subr.mxu0 0.0
        %4908 = vmatpush1.msra.mxu0 0.0
        %4909 = vmatprep.subr.mxu0 0.0
        %4910 = vmatpush1.msra.mxu0 0.0
        %4911 = vmatprep.subr.mxu0 0.0
        %4912 = vmatpush1.msra.mxu0 0.0
        %4913 = vmatprep.subr.mxu0 0.0
        %4914 = vmatpush1.msra.mxu0 0.0
        %4915 = vmatprep.subr.mxu0 0.0
        %4916 = vmatpush1.msra.mxu0 0.0
        %4917 = vmatprep.subr.mxu0 0.0
        %4918 = vmatpush1.msra.mxu0 0.0
        %4919 = vmatprep.subr.mxu0 0.0
        %4920 = vmatpush1.msra.mxu0 0.0
        %4921 = vmatprep.subr.mxu0 0.0
        %4922 = vmatpush1.msra.mxu0 0.0
        %4923 = vmatprep.subr.mxu0 0.0
        %4924 = vmatpush1.msra.mxu0 0.0
        %4925 = vmatprep.subr.mxu0 %v4860
        %4926 = vmatpush1.msra.mxu0 %v4859
        %4927 = vmatprep.subr.mxu0 %v4858
        %4928 = vmatpush1.msra.mxu0 %v4857
        %4929 = vmatprep.subr.mxu0 %v4856
        %4930 = vmatpush1.msra.mxu0 %v4855
        %4931 = vmatprep.subr.mxu0 %v4854
        %4932 = vmatpush1.msra.mxu0 %v4853
        %4933 = vmatprep.subr.mxu0 0.0
        %4934 = vmatpush2.msra.mxu0 0.0
        %4935 = vmatprep.subr.mxu0 0.0
        %4936 = vmatpush2.msra.mxu0 0.0
        %4937 = vmatprep.subr.mxu0 0.0
        %4938 = vmatpush2.msra.mxu0 0.0
        %4939 = vmatprep.subr.mxu0 0.0
        %4940 = vmatpush2.msra.mxu0 0.0
        %4941 = vmatprep.subr.mxu0 0.0
        %4942 = vmatpush2.msra.mxu0 0.0
        %4943 = vmatprep.subr.mxu0 0.0
        %4944 = vmatpush2.msra.mxu0 0.0
        %4945 = vmatprep.subr.mxu0 0.0
        %4946 = vmatpush2.msra.mxu0 0.0
        %4947 = vmatprep.subr.mxu0 0.0
        %4948 = vmatpush2.msra.mxu0 0.0
        %4949 = vmatprep.subr.mxu0 0.0
        %4950 = vmatpush2.msra.mxu0 0.0
        %4951 = vmatprep.subr.mxu0 0.0
        %4952 = vmatpush2.msra.mxu0 0.0
        %4953 = vmatprep.subr.mxu0 0.0
        %4954 = vmatpush2.msra.mxu0 0.0
        %4955 = vmatprep.subr.mxu0 0.0
        %4956 = vmatpush2.msra.mxu0 0.0
        %4957 = vmatprep.subr.mxu0 0.0
        %4958 = vmatpush2.msra.mxu0 0.0
        %4959 = vmatprep.subr.mxu0 0.0
        %4960 = vmatpush2.msra.mxu0 0.0
        %4961 = vmatprep.subr.mxu0 0.0
        %4962 = vmatpush2.msra.mxu0 0.0
        %4963 = vmatprep.subr.mxu0 0.0
        %4964 = vmatpush2.msra.mxu0 0.0
        %4965 = vmatprep.mubr.f32.mxu0 0.0
        %4966 = vmatmul.mubr.f32.gmra.mxu0 %v4890
        %v4967 = vpop.f32.mrf.mxu0
        %v4968 = vadd.f32 %v4872, %v4967
        %v4969 = vpop.f32.mrf.mxu0
        %v4970 = vadd.f32 %v4872, %v4969
        %4971 = vmatprep.mubr.f32.mxu0 0.0
        %4972 = vmatmul.mubr.f32.gmra.mxu0 %v4893
        %v4973 = vpop.f32.mrf.mxu0
        %v4974 = vadd.f32 %v4877, %v4973
        %v4975 = vpop.f32.mrf.mxu0
        %v4976 = vadd.f32 %v4877, %v4975
        %4977 = vmatprep.mubr.f32.mxu0 0.0
        %4978 = vmatmul.mubr.f32.gmra.mxu0 %v4896
        %v4979 = vpop.f32.mrf.mxu0
        %v4980 = vadd.f32 %v4882, %v4979
        %v4981 = vpop.f32.mrf.mxu0
        %v4982 = vadd.f32 %v4882, %v4981
        %4983 = vmatprep.mubr.f32.mxu0 0.0
        %4984 = vmatmul.mubr.f32.gmra.mxu0 %v4899
        %v4985 = vpop.f32.mrf.mxu0
        %v4986 = vadd.f32 %v4887, %v4985
        %v4987 = vpop.f32.mrf.mxu0
        %v4988 = vadd.f32 %v4887, %v4987
        %4989 = vdwg.mxu0
        %4990 = vst [vmem:[%s379] sm:$0xff] %v4968
        %4991 = vst [vmem:[%s379 + $0x8] sm:$0xff] %v4970
        %4992 = vst [vmem:[%s379 + $0x10] sm:$0xff] %v4974
        %4993 = vst [vmem:[%s379 + $0x18] sm:$0xff] %v4976
        %4994 = vst [vmem:[%s379 + $0x20] sm:$0xff] %v4980
        %4995 = vst [vmem:[%s379 + $0x28] sm:$0xff] %v4982
        %4996 = vst [vmem:[%s379 + $0x30] sm:$0xff] %v4986
        %4997 = vst [vmem:[%s379 + $0x38] sm:$0xff] %v4988
        %s4998 = sand.u32 %s269, 1
        %s4999 = scalar_lea.sflag [#allocation4], %s4998
        %s5000 = sand.u32 %s269, 1
        %s5001 = smul.addr %s5000, 64
        %s5002 = scalar_lea.vmem [#allocation3], %s5001
        // Predicated region
        $region65: #{tpu_custom_call.1} parent=63 // pred_check
          %p5003 = pneg %p279
        $region66: #{tpu_custom_call.1} parent=63 // pred_check_branch
          %5005 = sbr.rel (%p5003) target = $region68
        $region67: #{tpu_custom_call.1} parent=63 // pred_region
          %s5007 = ssub.s32 1024, 1024
          %5008 = vsyncadd %s4999, %s5007
          %s5009 = smul.addr %s25, 8
          %s5010 = smul.addr %s5009, 128
          %s5011 = scalar_lea.hbm %s11, %s5010
          %s5012 = sshll.u32 %s5002, 4
          %s5013 = int_to_ptr.vmem [resolvable:$true] %s5012
          %5018 = dma.vmem_to_hbm [thread:$0]  %s5013, 1024, %s5011, %s4999, 256, 256, 16
        $region68: #{tpu_custom_call.1} parent=63 // pred_fallthru
          _
      $region64: #{tpu_custom_call.1} parent=5 // pred_fallthru
        _
      %p5019 = scmp.le.s32.totalorder 2, %s20
      // Predicated region
      $region69: #{tpu_custom_call.1} parent=5 // pred_check
        %p5020 = pneg %p5019
      $region70: #{tpu_custom_call.1} parent=5 // pred_check_branch
        %5022 = sbr.rel (%p5020) target = $region72
      $region71: #{tpu_custom_call.1} parent=5 // pred_region
        %s5023 = ssub.s32 %s20, 2
        // Predicated region
        $region73: #{tpu_custom_call.1} parent=71 // pred_check
          %p5024 = pneg %p285
        $region74: #{tpu_custom_call.1} parent=71 // pred_check_branch
          %5026 = sbr.rel (%p5024) target = $region76
        $region75: #{tpu_custom_call.1} parent=71 // pred_region
          %s5027 = sand.u32 %s270, 1
          %s5028 = scalar_lea.sflag [#allocation4], %s5027
          %s5029 = sand.u32 %s270, 1
          %s5030 = smul.addr %s5029, 64
          %s5031 = scalar_lea.vmem [#allocation3], %s5030
          %5032 = dma.done %s5028, 1024
        $region76: #{tpu_custom_call.1} parent=71 // pred_fallthru
          _
      $region72: #{tpu_custom_call.1} parent=5 // pred_fallthru
        _
    $region6: #{tpu_custom_call.1} parent=1 // loop_footer
      %s24 = sadd.s32 1, %s20
    $region7: #{tpu_custom_call.1} parent=1 // loop_footer_branch
      %19 = sbr.rel target = $region3
    $region8: #{tpu_custom_call.1} parent=1 // loop_exit
      _
    %5033 = vsyncpa [#allocation4], 1
    %s5034 = scalar_lea.sflag [#allocation4], 1
    %5035 = vsyncpa %s5034, 1

</llo_original>
